<compile_context>
chip_gen: v7x
topology: tpu7x:2x2x1
jax: 0.10.0
libtpu: 0.0.40
codegen_flags: <defaults>
</compile_context>

<pallas_src>
import numpy as np
import jax
import jax.numpy as jnp
from jax.experimental import pallas as pl
from jax.experimental.pallas import tpu as pltpu

EPS = 1e-5
MXU_DTYPE = jnp.bfloat16      # MXU operand dtype (weights / staged slabs / upsample)
PADL = 128                    # lane padding on each side of the conv staging scratch


# -----------------------------------------------------------------------------
# host-side constants: transposed bilinear upsample operators, conv edge masks
# -----------------------------------------------------------------------------

def _up1d(n):
    """1-D x2 bilinear upsample matrix [2n, n], align_corners=False."""
    a = np.zeros((2 * n, n), np.float32)
    for y in range(2 * n):
        src = (y + 0.5) / 2.0 - 0.5
        i0 = int(np.floor(src))
        frac = src - i0
        lo = min(max(i0, 0), n - 1)
        hi = min(max(i0 + 1, 0), n - 1)
        a[y, lo] += 1.0 - frac
        a[y, hi] += frac
    return a


def _up_matrix_T(h, w):
    """Transposed flattened operator [h*w, 4*h*w]: up[C,4hw] = x[C,hw] @ UT."""
    return np.ascontiguousarray(np.kron(_up1d(h), _up1d(w)).T)


def _edge_masks(h, w):
    """[2, h*w] f32; row0 valid for dx=-1 (w>=1), row1 valid for dx=+1 (w<=W-2)."""
    wi = np.arange(h * w) % w
    return np.stack([(wi >= 1), (wi <= w - 2)], axis=0).astype(np.float32)


# -----------------------------------------------------------------------------
# Fused whole-decoder forward
# -----------------------------------------------------------------------------

def decoder_forward(d2, d3, d4, d5, params):
    f32 = jnp.float32
    N, C, H2, W2 = d2.shape
    _, _, H3, W3 = d3.shape
    _, _, H4, W4 = d4.shape
    _, _, H5, W5 = d5.shape
    assert (H4, W4) == (2 * H5, 2 * W5)
    assert (H3, W3) == (2 * H4, 2 * W4)
    assert (H2, W2) == (2 * H3, 2 * W3)
    assert C % 8 == 0 and min(W2, W3, W4, W5) >= 2
    M2, M3, M4, M5 = H2 * W2, H3 * W3, H4 * W4, H5 * W5
    Mmax = M2
    assert PADL >= max(W2, W3, W4, W5) + 1

    # NCHW -> [N, C, H*W]: pure reshape, channels on sublanes, space on lanes.
    f2 = d2.reshape(N, C, M2)
    f3 = d3.reshape(N, C, M3)
    f4 = d4.reshape(N, C, M4)
    f5 = d5.reshape(N, C, M5)

    # Upsample operators (exact bilinear weights, bf16-representable) and masks.
    UT4 = jnp.asarray(_up_matrix_T(H5, W5), dtype=MXU_DTYPE)   # [M5, M4]
    UT3 = jnp.asarray(_up_matrix_T(H4, W4), dtype=MXU_DTYPE)   # [M4, M3]
    UT2 = jnp.asarray(_up_matrix_T(H3, W3), dtype=MXU_DTYPE)   # [M3, M2]
    EM5 = jnp.asarray(_edge_masks(H5, W5))
    EM4 = jnp.asarray(_edge_masks(H4, W4))
    EM3 = jnp.asarray(_edge_masks(H3, W3))
    EM2 = jnp.asarray(_edge_masks(H2, W2))

    def kernel(f2_ref, f3_ref, f4_ref, f5_ref,
               ut4_ref, ut3_ref, ut2_ref,
               em5_ref, em4_ref, em3_ref, em2_ref,
               wconv_ref, bconv_ref, wcls_ref, bcls_ref, ctxa_ref, ctxb_ref,
               p2_ref, p3_ref, p4_ref, p5_ref,
               m2_ref, m3_ref, m4_ref, m5_ref,
               xpad_ref, col_ref):

        # Zero the lane-padded staging scratch once per sample.  Pad regions are
        # read (as zero conv taps) but never written below; interior beyond the
        # current level's M is only read after being zeroed here (M grows
        # monotonically through the pyramid).
        xpad_ref[...] = jnp.zeros_like(xpad_ref)

        def conv3x3(x, idx, H, W, em_ref):
            """3x3 conv (zero pad=1) + folded BN + ReLU on a [C, H*W] slab."""
            M = H * W
            xpad_ref[:, PADL:PADL + M] = x
            em = em_ref[...]
            left = em[0:1, :]      # kills dx = -1 taps at w == 0   (flatten wrap)
            right = em[1:2, :]     # kills dx = +1 taps at w == W-1 (flatten wrap)
            k = 0
            for dy in (-1, 0, 1):
                for dx in (-1, 0, 1):
                    off = dy * W + dx
                    xs = xpad_ref[:, PADL + off:PADL + off + M]
                    if dx == -1:
                        xs = xs * left
                    elif dx == 1:
                        xs = xs * right
                    col_ref[k * C:(k + 1) * C, :M] = xs.astype(MXU_DTYPE)
                    k += 1
            # One deep-K MXU dot: [C, 9C] @ [9C, M] -> f32 [C, M] (scale folded).
            out = jnp.dot(wconv_ref[idx], col_ref[:, :M],
                          preferred_element_type=jnp.float32)
            return jnp.maximum(out + bconv_ref[idx], 0.0)

        def cls_head(x, i):
            # 1x1 conv -> lane-dense [1, M] row (f32 exact, sublane reduction).
            return (jnp.sum(x * wcls_ref[i], axis=0, keepdims=True)
                    + bcls_ref[i])

        def sam(x, s, conv_idx, H, W, em_ref):
            mask = cls_head(x, s)                                    # [1, M]
            mf = 1.0 / (1.0 + jnp.exp(-mask))                        # exact sigmoid
            ctx = jnp.maximum(mf * ctxa_ref[s] + ctxb_ref[s], 0.0)   # [C, M]
            x_out = conv3x3(x * ctx, conv_idx, H, W, em_ref)
            return x_out, mask

        # ---------------- level 5 ----------------
        p5, m5 = sam(f5_ref[0], s=0, conv_idx=0, H=H5, W=W5, em_ref=em5_ref)
        p5_ref[0] = p5
        m5_ref[0] = m5

        # ---------------- level 4 ----------------
        t4 = jnp.dot(p5.astype(MXU_DTYPE), ut4_ref[...],
                     preferred_element_type=jnp.float32) + f4_ref[0]
        c4 = conv3x3(t4, 1, H4, W4, em4_ref)
        p4, m4 = sam(c4, s=1, conv_idx=2, H=H4, W=W4, em_ref=em4_ref)
        p4_ref[0] = p4
        m4_ref[0] = m4

        # ---------------- level 3 ----------------
        t3 = jnp.dot(p4.astype(MXU_DTYPE), ut3_ref[...],
                     preferred_element_type=jnp.float32) + f3_ref[0]
        c3 = conv3x3(t3, 3, H3, W3, em3_ref)
        p3, m3 = sam(c3, s=2, conv_idx=4, H=H3, W=W3, em_ref=em3_ref)
        p3_ref[0] = p3
        m3_ref[0] = m3

        # ---------------- level 2 ----------------
        t2 = jnp.dot(p3.astype(MXU_DTYPE), ut2_ref[...],
                     preferred_element_type=jnp.float32) + f2_ref[0]
        p2 = conv3x3(t2, 5, H2, W2, em2_ref)
        m2 = cls_head(p2, 3)
        p2_ref[0] = p2
        m2_ref[0] = m2

    def act_spec(M):
        return pl.BlockSpec((1, C, M), lambda n: (n, 0, 0))

    def mask_spec(M):
        return pl.BlockSpec((1, 1, M), lambda n: (n, 0, 0))

    def const_spec(a):
        nd = a.ndim
        return pl.BlockSpec(tuple(a.shape), lambda n: (0,) * nd)

    in_specs = [act_spec(M2), act_spec(M3), act_spec(M4), act_spec(M5),
                const_spec(UT4), const_spec(UT3), const_spec(UT2),
                const_spec(EM5), const_spec(EM4), const_spec(EM3), const_spec(EM2),
                const_spec(params["wconv"]), const_spec(params["bconv"]),
                const_spec(params["wcls"]), const_spec(params["bcls"]),
                const_spec(params["ctxa"]), const_spec(params["ctxb"])]

    out_shape = (jax.ShapeDtypeStruct((N, C, M2), f32),
                 jax.ShapeDtypeStruct((N, C, M3), f32),
                 jax.ShapeDtypeStruct((N, C, M4), f32),
                 jax.ShapeDtypeStruct((N, C, M5), f32),
                 jax.ShapeDtypeStruct((N, 1, M2), f32),
                 jax.ShapeDtypeStruct((N, 1, M3), f32),
                 jax.ShapeDtypeStruct((N, 1, M4), f32),
                 jax.ShapeDtypeStruct((N, 1, M5), f32))
    out_specs = (act_spec(M2), act_spec(M3), act_spec(M4), act_spec(M5),
                 mask_spec(M2), mask_spec(M3), mask_spec(M4), mask_spec(M5))

    outs = pl.pallas_call(
        kernel,
        out_shape=out_shape,
        grid=(N,),
        in_specs=in_specs,
        out_specs=out_specs,
        scratch_shapes=[pltpu.VMEM((C, 2 * PADL + Mmax), jnp.float32),
                        pltpu.VMEM((9 * C, Mmax), MXU_DTYPE)],
        compiler_params=pltpu.CompilerParams(
            dimension_semantics=("parallel",),
            vmem_limit_bytes=32 * 1024 * 1024),
    )(f2, f3, f4, f5, UT4, UT3, UT2, EM5, EM4, EM3, EM2,
      params["wconv"], params["bconv"], params["wcls"], params["bcls"],
      params["ctxa"], params["ctxb"])

    p2f, p3f, p4f, p5f, m2f, m3f, m4f, m5f = outs
    return (p2f.reshape(N, C, H2, W2), p3f.reshape(N, C, H3, W3),
            p4f.reshape(N, C, H4, W4), p5f.reshape(N, C, H5, W5),
            m2f.reshape(N, 1, H2, W2), m3f.reshape(N, 1, H3, W3),
            m4f.reshape(N, 1, H4, W4), m5f.reshape(N, 1, H5, W5))


# -----------------------------------------------------------------------------
# Deterministic parameter init (PyTorch-like shapes), packed for the kernel
# -----------------------------------------------------------------------------

def _init_conv(key, cin, cout, k):
    wkey, bkey = jax.random.split(key)
    bound = 1.0 / np.sqrt(cin * k * k)
    w = jax.random.uniform(wkey, (cout, cin, k, k), jnp.float32, -bound, bound)
    b = jax.random.uniform(bkey, (cout,), jnp.float32, -bound, bound)
    return w, b


def _init_bn(key, c):
    k1, k2, k3, k4 = jax.random.split(key, 4)
    gamma = 1.0 + 0.1 * jax.random.normal(k1, (c,), jnp.float32)
    beta = 0.1 * jax.random.normal(k2, (c,), jnp.float32)
    mean = 0.1 * jax.random.normal(k3, (c,), jnp.float32)
    var = 1.0 + 0.1 * jax.random.uniform(k4, (c,), jnp.float32)
    return gamma, beta, mean, var


def _fold_bn(conv_b, gamma, beta, mean, var):
    scale = gamma / jnp.sqrt(var + EPS)
    bias = (conv_b - mean) * scale + beta
    return scale, bias


def _im2col_weight(w, scale):
    # torch [co, ci, 3, 3] with per-co BN scale folded -> [co, 9*ci],
    # column index = tap*ci_dim + ci with tap = ky*3 + kx.
    co, ci = w.shape[0], w.shape[1]
    w = w * scale[:, None, None, None]
    return jnp.transpose(w, (0, 2, 3, 1)).reshape(co, 9 * ci)


def _init_sam(key, C):
    ks = jax.random.split(key, 5)
    wcls, bcls = _init_conv(ks[0], C, 1, 1)                  # [1,C,1,1], [1]
    wctx, bctx = _init_conv(ks[1], 2, C, 1)                  # [C,2,1,1], [C]
    g1, b1, m1, v1 = _init_bn(ks[2], C)
    wc2, bc2 = _init_conv(ks[3], C, C, 3)                    # [C,C,3,3], [C]
    g2, b2, m2, v2 = _init_bn(ks[4], C)
    ctx_s, ctx_b = _fold_bn(bctx, g1, b1, m1, v1)
    c2_s, c2_b = _fold_bn(bc2, g2, b2, m2, v2)
    wf = wctx[:, 0, 0, 0]
    wb = wctx[:, 1, 0, 0]
    return dict(cls_w=wcls[0, :, 0, 0].reshape(C, 1),
                cls_b=bcls.reshape(1, 1),
                ctxa=((wf - wb) * ctx_s).reshape(C, 1),
                ctxb=(wb * ctx_s + ctx_b).reshape(C, 1),
                conv_w=_im2col_weight(wc2, c2_s),
                conv_b=c2_b.reshape(C, 1))


def _init_convbn(key, C):
    k1, k2 = jax.random.split(key)
    w, b = _init_conv(k1, C, C, 3)
    g, be, m, v = _init_bn(k2, C)
    s, bi = _fold_bn(b, g, be, m, v)
    return dict(w=_im2col_weight(w, s), b=bi.reshape(C, 1))


def init_decoder(key, C):
    ks = jax.random.split(key, 7)
    sam5, sam4, sam3 = _init_sam(ks[0], C), _init_sam(ks[1], C), _init_sam(ks[2], C)
    cp4, cp3, cp2 = _init_convbn(ks[3], C), _init_convbn(ks[4], C), _init_convbn(ks[5], C)
    wcls_f, bcls_f = _init_conv(ks[6], C, 1, 1)

    # conv order: sam5.conv2, conv_p4, sam4.conv2, conv_p3, sam3.conv2, conv_p2
    wconv = jnp.stack([sam5["conv_w"], cp4["w"], sam4["conv_w"],
                       cp3["w"], sam3["conv_w"], cp2["w"]], axis=0).astype(MXU_DTYPE)
    bconv = jnp.stack([sam5["conv_b"], cp4["b"], sam4["conv_b"],
                       cp3["b"], sam3["conv_b"], cp2["b"]], axis=0)       # [6, C, 1]
    wcls = jnp.stack([sam5["cls_w"], sam4["cls_w"], sam3["cls_w"],
                      wcls_f[0, :, 0, 0].reshape(C, 1)], axis=0)          # [4, C, 1]
    bcls = jnp.stack([sam5["cls_b"], sam4["cls_b"], sam3["cls_b"],
                      bcls_f.reshape(1, 1)], axis=0)                      # [4, 1, 1]
    ctxa = jnp.stack([sam5["ctxa"], sam4["ctxa"], sam3["ctxa"]], axis=0)  # [3, C, 1]
    ctxb = jnp.stack([sam5["ctxb"], sam4["ctxb"], sam3["ctxb"]], axis=0)  # [3, C, 1]
    return dict(wconv=wconv, bconv=bconv, wcls=wcls, bcls=bcls,
                ctxa=ctxa, ctxb=ctxb)


# -----------------------------------------------------------------------------

if __name__ == "__main__":
    key = jax.random.PRNGKey(0)
    mid_d = 32
    N = 2
    kd = jax.random.split(key, 5)
    d5 = jax.random.normal(kd[0], (N, mid_d, 4, 4), jnp.float32)
    d4 = jax.random.normal(kd[1], (N, mid_d, 8, 8), jnp.float32)
    d3 = jax.random.normal(kd[2], (N, mid_d, 16, 16), jnp.float32)
    d2 = jax.random.normal(kd[3], (N, mid_d, 32, 32), jnp.float32)
    params = init_decoder(kd[4], mid_d)

    outs = decoder_forward(d2, d3, d4, d5, params)
    jax.block_until_ready(outs)

    p2, p3, p4, p5, m2, m3, m4, m5 = outs
    assert p2.shape == (N, mid_d, 32, 32) and m2.shape == (N, 1, 32, 32)
    assert p3.shape == (N, mid_d, 16, 16) and m3.shape == (N, 1, 16, 16)
    assert p4.shape == (N, mid_d, 8, 8) and m4.shape == (N, 1, 8, 8)
    assert p5.shape == (N, mid_d, 4, 4) and m5.shape == (N, 1, 4, 4)
    assert all(bool(jnp.all(jnp.isfinite(o))) for o in outs)

    print("KERNEL_OK")
</pallas_src>

<mosaic_0001>
module attributes {stable_mosaic.version = 11 : i64} {
  func.func @kernel(%arg0: i32, %arg1: memref<1x32x1024xf32, #tpu.memory_space<vmem>>, %arg2: memref<1x32x256xf32, #tpu.memory_space<vmem>>, %arg3: memref<1x32x64xf32, #tpu.memory_space<vmem>>, %arg4: memref<1x32x16xf32, #tpu.memory_space<vmem>>, %arg5: memref<16x64xbf16, #tpu.memory_space<vmem>>, %arg6: memref<64x256xbf16, #tpu.memory_space<vmem>>, %arg7: memref<256x1024xbf16, #tpu.memory_space<vmem>>, %arg8: memref<2x16xf32, #tpu.memory_space<vmem>>, %arg9: memref<2x64xf32, #tpu.memory_space<vmem>>, %arg10: memref<2x256xf32, #tpu.memory_space<vmem>>, %arg11: memref<2x1024xf32, #tpu.memory_space<vmem>>, %arg12: memref<6x32x288xbf16, #tpu.memory_space<vmem>>, %arg13: memref<6x32x1xf32, #tpu.memory_space<vmem>>, %arg14: memref<4x32x1xf32, #tpu.memory_space<vmem>>, %arg15: memref<4x1x1xf32, #tpu.memory_space<vmem>>, %arg16: memref<3x32x1xf32, #tpu.memory_space<vmem>>, %arg17: memref<3x32x1xf32, #tpu.memory_space<vmem>>, %arg18: memref<1x32x1024xf32, #tpu.memory_space<vmem>>, %arg19: memref<1x32x256xf32, #tpu.memory_space<vmem>>, %arg20: memref<1x32x64xf32, #tpu.memory_space<vmem>>, %arg21: memref<1x32x16xf32, #tpu.memory_space<vmem>>, %arg22: memref<1x1x1024xf32, #tpu.memory_space<vmem>>, %arg23: memref<1x1x256xf32, #tpu.memory_space<vmem>>, %arg24: memref<1x1x64xf32, #tpu.memory_space<vmem>>, %arg25: memref<1x1x16xf32, #tpu.memory_space<vmem>>, %arg26: memref<32x1280xf32, #tpu.memory_space<vmem>>, %arg27: memref<288x1024xbf16, #tpu.memory_space<vmem>>) attributes {dimension_semantics = [#tpu.dimension_semantics<parallel>], iteration_bounds = array<i64: 2>, scalar_prefetch = 0 : i64, scratch_operands = 2 : i64, tpu.core_type = #tpu.core_type<tc>, window_params = [{transform_indices = @transform_0, window_bounds = array<i64: 1, 32, 1024>}, {transform_indices = @transform_1, window_bounds = array<i64: 1, 32, 256>}, {transform_indices = @transform_2, window_bounds = array<i64: 1, 32, 64>}, {transform_indices = @transform_3, window_bounds = array<i64: 1, 32, 16>}, {pipeline_mode = #tpu.pipeline_mode<synchronous>, transform_indices = @transform_4, window_bounds = array<i64: 16, 64>}, {pipeline_mode = #tpu.pipeline_mode<synchronous>, transform_indices = @transform_5, window_bounds = array<i64: 64, 256>}, {pipeline_mode = #tpu.pipeline_mode<synchronous>, transform_indices = @transform_6, window_bounds = array<i64: 256, 1024>}, {pipeline_mode = #tpu.pipeline_mode<synchronous>, transform_indices = @transform_7, window_bounds = array<i64: 2, 16>}, {pipeline_mode = #tpu.pipeline_mode<synchronous>, transform_indices = @transform_8, window_bounds = array<i64: 2, 64>}, {pipeline_mode = #tpu.pipeline_mode<synchronous>, transform_indices = @transform_9, window_bounds = array<i64: 2, 256>}, {pipeline_mode = #tpu.pipeline_mode<synchronous>, transform_indices = @transform_10, window_bounds = array<i64: 2, 1024>}, {pipeline_mode = #tpu.pipeline_mode<synchronous>, transform_indices = @transform_11, window_bounds = array<i64: 6, 32, 288>}, {pipeline_mode = #tpu.pipeline_mode<synchronous>, transform_indices = @transform_12, window_bounds = array<i64: 6, 32, 1>}, {pipeline_mode = #tpu.pipeline_mode<synchronous>, transform_indices = @transform_13, window_bounds = array<i64: 4, 32, 1>}, {pipeline_mode = #tpu.pipeline_mode<synchronous>, transform_indices = @transform_14, window_bounds = array<i64: 4, 1, 1>}, {pipeline_mode = #tpu.pipeline_mode<synchronous>, transform_indices = @transform_15, window_bounds = array<i64: 3, 32, 1>}, {pipeline_mode = #tpu.pipeline_mode<synchronous>, transform_indices = @transform_16, window_bounds = array<i64: 3, 32, 1>}, {transform_indices = @transform_17, window_bounds = array<i64: 1, 32, 1024>}, {transform_indices = @transform_18, window_bounds = array<i64: 1, 32, 256>}, {transform_indices = @transform_19, window_bounds = array<i64: 1, 32, 64>}, {transform_indices = @transform_20, window_bounds = array<i64: 1, 32, 16>}, {transform_indices = @transform_21, window_bounds = array<i64: 1, 1, 1024>}, {transform_indices = @transform_22, window_bounds = array<i64: 1, 1, 256>}, {transform_indices = @transform_23, window_bounds = array<i64: 1, 1, 64>}, {transform_indices = @transform_24, window_bounds = array<i64: 1, 1, 16>}]} {
    %cst = arith.constant 0.000000e+00 : f32
    %0 = vector.broadcast %cst : f32 to vector<32x1280xf32>
    %c0 = arith.constant 0 : index
    %c0_0 = arith.constant 0 : index
    %1 = vector.load %arg26[%c0, %c0_0] : memref<32x1280xf32, #tpu.memory_space<vmem>>, vector<32x1280xf32>
    tpu.vector_store %arg26[%c0, %c0_0], %0 {strides = array<i32>} : memref<32x1280xf32, #tpu.memory_space<vmem>>, vector<32x1280xf32>,
    %c0_1 = arith.constant 0 : index
    %c0_2 = arith.constant 0 : index
    %c0_3 = arith.constant 0 : index
    %2 = vector.load %arg4[%c0_1, %c0_2, %c0_3] : memref<1x32x16xf32, #tpu.memory_space<vmem>>, vector<1x32x16xf32>
    %3 = vector.shape_cast %2 : vector<1x32x16xf32> to vector<32x16xf32>
    %c0_4 = arith.constant 0 : index
    %c0_5 = arith.constant 0 : index
    %c0_6 = arith.constant 0 : index
    %4 = vector.load %arg14[%c0_4, %c0_5, %c0_6] : memref<4x32x1xf32, #tpu.memory_space<vmem>>, vector<1x32x1xf32>
    %5 = vector.shape_cast %4 : vector<1x32x1xf32> to vector<32x1xf32>
    %6 = vector.broadcast %5 : vector<32x1xf32> to vector<32x16xf32>
    %7 = arith.mulf %3, %6 : vector<32x16xf32>
    %cst_7 = arith.constant dense<0.000000e+00> : vector<16xf32>
    %8 = vector.multi_reduction <add>, %7, %cst_7 [0] : vector<32x16xf32> to vector<16xf32>
    %9 = vector.shape_cast %8 : vector<16xf32> to vector<1x16xf32>
    %c0_8 = arith.constant 0 : index
    %c0_9 = arith.constant 0 : index
    %c0_10 = arith.constant 0 : index
    %10 = vector.load %arg15[%c0_8, %c0_9, %c0_10] : memref<4x1x1xf32, #tpu.memory_space<vmem>>, vector<1x1x1xf32>
    %11 = vector.shape_cast %10 : vector<1x1x1xf32> to vector<1x1xf32>
    %12 = vector.broadcast %11 : vector<1x1xf32> to vector<1x16xf32>
    %13 = arith.addf %9, %12 : vector<1x16xf32>
    %cst_11 = arith.constant 0.000000e+00 : f32
    %14 = vector.broadcast %cst_11 : f32 to vector<1x16xf32>
    %15 = arith.subf %14, %13 : vector<1x16xf32>
    %16 = math.exp %15 : vector<1x16xf32>
    %cst_12 = arith.constant 1.000000e+00 : f32
    %17 = vector.broadcast %cst_12 : f32 to vector<1x16xf32>
    %18 = arith.addf %17, %16 : vector<1x16xf32>
    %cst_13 = arith.constant 1.000000e+00 : f32
    %19 = vector.broadcast %cst_13 : f32 to vector<1x16xf32>
    %20 = arith.divf %19, %18 : vector<1x16xf32>
    %c0_14 = arith.constant 0 : index
    %c0_15 = arith.constant 0 : index
    %c0_16 = arith.constant 0 : index
    %21 = vector.load %arg16[%c0_14, %c0_15, %c0_16] : memref<3x32x1xf32, #tpu.memory_space<vmem>>, vector<1x32x1xf32>
    %22 = vector.shape_cast %21 : vector<1x32x1xf32> to vector<32x1xf32>
    %23 = vector.broadcast %20 : vector<1x16xf32> to vector<32x16xf32>
    %24 = vector.broadcast %22 : vector<32x1xf32> to vector<32x16xf32>
    %25 = arith.mulf %23, %24 : vector<32x16xf32>
    %c0_17 = arith.constant 0 : index
    %c0_18 = arith.constant 0 : index
    %c0_19 = arith.constant 0 : index
    %26 = vector.load %arg17[%c0_17, %c0_18, %c0_19] : memref<3x32x1xf32, #tpu.memory_space<vmem>>, vector<1x32x1xf32>
    %27 = vector.shape_cast %26 : vector<1x32x1xf32> to vector<32x1xf32>
    %28 = vector.broadcast %27 : vector<32x1xf32> to vector<32x16xf32>
    %29 = arith.addf %25, %28 : vector<32x16xf32>
    %cst_20 = arith.constant 0.000000e+00 : f32
    %30 = vector.broadcast %cst_20 : f32 to vector<32x16xf32>
    %31 = arith.maximumf %29, %30 : vector<32x16xf32>
    %32 = arith.mulf %3, %31 : vector<32x16xf32>
    %c0_21 = arith.constant 0 : index
    %c128 = arith.constant 128 : index
    %33 = vector.load %arg26[%c0_21, %c128] : memref<32x1280xf32, #tpu.memory_space<vmem>>, vector<32x16xf32>
    tpu.vector_store %arg26[%c0_21, %c128], %32 {strides = array<i32>} : memref<32x1280xf32, #tpu.memory_space<vmem>>, vector<32x16xf32>,
    %c0_22 = arith.constant 0 : index
    %c0_23 = arith.constant 0 : index
    %34 = vector.load %arg8[%c0_22, %c0_23] : memref<2x16xf32, #tpu.memory_space<vmem>>, vector<2x16xf32>
    %35 = vector.extract_strided_slice %34 {offsets = [0, 0], sizes = [1, 16], strides = [1, 1]} : vector<2x16xf32> to vector<1x16xf32>
    %36 = vector.extract_strided_slice %34 {offsets = [1, 0], sizes = [1, 16], strides = [1, 1]} : vector<2x16xf32> to vector<1x16xf32>
    %c0_24 = arith.constant 0 : index
    %c123 = arith.constant 123 : index
    %37 = vector.load %arg26[%c0_24, %c123] : memref<32x1280xf32, #tpu.memory_space<vmem>>, vector<32x16xf32>
    %38 = vector.broadcast %35 : vector<1x16xf32> to vector<32x16xf32>
    %39 = arith.mulf %37, %38 : vector<32x16xf32>
    %40 = arith.truncf %39 : vector<32x16xf32> to vector<32x16xbf16>
    %c0_25 = arith.constant 0 : index
    %c0_26 = arith.constant 0 : index
    %41 = vector.load %arg27[%c0_25, %c0_26] : memref<288x1024xbf16, #tpu.memory_space<vmem>>, vector<32x16xbf16>
    tpu.vector_store %arg27[%c0_25, %c0_26], %40 {strides = array<i32>} : memref<288x1024xbf16, #tpu.memory_space<vmem>>, vector<32x16xbf16>,
    %c0_27 = arith.constant 0 : index
    %c124 = arith.constant 124 : index
    %42 = vector.load %arg26[%c0_27, %c124] : memref<32x1280xf32, #tpu.memory_space<vmem>>, vector<32x16xf32>
    %43 = arith.truncf %42 : vector<32x16xf32> to vector<32x16xbf16>
    %c32 = arith.constant 32 : index
    %c0_28 = arith.constant 0 : index
    %44 = vector.load %arg27[%c32, %c0_28] : memref<288x1024xbf16, #tpu.memory_space<vmem>>, vector<32x16xbf16>
    tpu.vector_store %arg27[%c32, %c0_28], %43 {strides = array<i32>} : memref<288x1024xbf16, #tpu.memory_space<vmem>>, vector<32x16xbf16>,
    %c0_29 = arith.constant 0 : index
    %c125 = arith.constant 125 : index
    %45 = vector.load %arg26[%c0_29, %c125] : memref<32x1280xf32, #tpu.memory_space<vmem>>, vector<32x16xf32>
    %46 = vector.broadcast %36 : vector<1x16xf32> to vector<32x16xf32>
    %47 = arith.mulf %45, %46 : vector<32x16xf32>
    %48 = arith.truncf %47 : vector<32x16xf32> to vector<32x16xbf16>
    %c64 = arith.constant 64 : index
    %c0_30 = arith.constant 0 : index
    %49 = vector.load %arg27[%c64, %c0_30] : memref<288x1024xbf16, #tpu.memory_space<vmem>>, vector<32x16xbf16>
    tpu.vector_store %arg27[%c64, %c0_30], %48 {strides = array<i32>} : memref<288x1024xbf16, #tpu.memory_space<vmem>>, vector<32x16xbf16>,
    %c0_31 = arith.constant 0 : index
    %c127 = arith.constant 127 : index
    %50 = vector.load %arg26[%c0_31, %c127] : memref<32x1280xf32, #tpu.memory_space<vmem>>, vector<32x16xf32>
    %51 = vector.broadcast %35 : vector<1x16xf32> to vector<32x16xf32>
    %52 = arith.mulf %50, %51 : vector<32x16xf32>
    %53 = arith.truncf %52 : vector<32x16xf32> to vector<32x16xbf16>
    %c96 = arith.constant 96 : index
    %c0_32 = arith.constant 0 : index
    %54 = vector.load %arg27[%c96, %c0_32] : memref<288x1024xbf16, #tpu.memory_space<vmem>>, vector<32x16xbf16>
    tpu.vector_store %arg27[%c96, %c0_32], %53 {strides = array<i32>} : memref<288x1024xbf16, #tpu.memory_space<vmem>>, vector<32x16xbf16>,
    %c0_33 = arith.constant 0 : index
    %c128_34 = arith.constant 128 : index
    %55 = vector.load %arg26[%c0_33, %c128_34] : memref<32x1280xf32, #tpu.memory_space<vmem>>, vector<32x16xf32>
    %56 = arith.truncf %55 : vector<32x16xf32> to vector<32x16xbf16>
    %c128_35 = arith.constant 128 : index
    %c0_36 = arith.constant 0 : index
    %57 = vector.load %arg27[%c128_35, %c0_36] : memref<288x1024xbf16, #tpu.memory_space<vmem>>, vector<32x16xbf16>
    tpu.vector_store %arg27[%c128_35, %c0_36], %56 {strides = array<i32>} : memref<288x1024xbf16, #tpu.memory_space<vmem>>, vector<32x16xbf16>,
    %c0_37 = arith.constant 0 : index
    %c129 = arith.constant 129 : index
    %58 = vector.load %arg26[%c0_37, %c129] : memref<32x1280xf32, #tpu.memory_space<vmem>>, vector<32x16xf32>
    %59 = vector.broadcast %36 : vector<1x16xf32> to vector<32x16xf32>
    %60 = arith.mulf %58, %59 : vector<32x16xf32>
    %61 = arith.truncf %60 : vector<32x16xf32> to vector<32x16xbf16>
    %c160 = arith.constant 160 : index
    %c0_38 = arith.constant 0 : index
    %62 = vector.load %arg27[%c160, %c0_38] : memref<288x1024xbf16, #tpu.memory_space<vmem>>, vector<32x16xbf16>
    tpu.vector_store %arg27[%c160, %c0_38], %61 {strides = array<i32>} : memref<288x1024xbf16, #tpu.memory_space<vmem>>, vector<32x16xbf16>,
    %c0_39 = arith.constant 0 : index
    %c131 = arith.constant 131 : index
    %63 = vector.load %arg26[%c0_39, %c131] : memref<32x1280xf32, #tpu.memory_space<vmem>>, vector<32x16xf32>
    %64 = vector.broadcast %35 : vector<1x16xf32> to vector<32x16xf32>
    %65 = arith.mulf %63, %64 : vector<32x16xf32>
    %66 = arith.truncf %65 : vector<32x16xf32> to vector<32x16xbf16>
    %c192 = arith.constant 192 : index
    %c0_40 = arith.constant 0 : index
    %67 = vector.load %arg27[%c192, %c0_40] : memref<288x1024xbf16, #tpu.memory_space<vmem>>, vector<32x16xbf16>
    tpu.vector_store %arg27[%c192, %c0_40], %66 {strides = array<i32>} : memref<288x1024xbf16, #tpu.memory_space<vmem>>, vector<32x16xbf16>,
    %c0_41 = arith.constant 0 : index
    %c132 = arith.constant 132 : index
    %68 = vector.load %arg26[%c0_41, %c132] : memref<32x1280xf32, #tpu.memory_space<vmem>>, vector<32x16xf32>
    %69 = arith.truncf %68 : vector<32x16xf32> to vector<32x16xbf16>
    %c224 = arith.constant 224 : index
    %c0_42 = arith.constant 0 : index
    %70 = vector.load %arg27[%c224, %c0_42] : memref<288x1024xbf16, #tpu.memory_space<vmem>>, vector<32x16xbf16>
    tpu.vector_store %arg27[%c224, %c0_42], %69 {strides = array<i32>} : memref<288x1024xbf16, #tpu.memory_space<vmem>>, vector<32x16xbf16>,
    %c0_43 = arith.constant 0 : index
    %c133 = arith.constant 133 : index
    %71 = vector.load %arg26[%c0_43, %c133] : memref<32x1280xf32, #tpu.memory_space<vmem>>, vector<32x16xf32>
    %72 = vector.broadcast %36 : vector<1x16xf32> to vector<32x16xf32>
    %73 = arith.mulf %71, %72 : vector<32x16xf32>
    %74 = arith.truncf %73 : vector<32x16xf32> to vector<32x16xbf16>
    %c256 = arith.constant 256 : index
    %c0_44 = arith.constant 0 : index
    %75 = vector.load %arg27[%c256, %c0_44] : memref<288x1024xbf16, #tpu.memory_space<vmem>>, vector<32x16xbf16>
    tpu.vector_store %arg27[%c256, %c0_44], %74 {strides = array<i32>} : memref<288x1024xbf16, #tpu.memory_space<vmem>>, vector<32x16xbf16>,
    %c0_45 = arith.constant 0 : index
    %c0_46 = arith.constant 0 : index
    %c0_47 = arith.constant 0 : index
    %76 = vector.load %arg12[%c0_45, %c0_46, %c0_47] : memref<6x32x288xbf16, #tpu.memory_space<vmem>>, vector<1x32x288xbf16>
    %77 = vector.shape_cast %76 : vector<1x32x288xbf16> to vector<32x288xbf16>
    %c0_48 = arith.constant 0 : index
    %c0_49 = arith.constant 0 : index
    %78 = vector.load %arg27[%c0_48, %c0_49] : memref<288x1024xbf16, #tpu.memory_space<vmem>>, vector<288x16xbf16>
    %cst_50 = arith.constant dense<0.000000e+00> : vector<32x16xf32>
    %79 = tpu.matmul %77, %78, %cst_50 {dimension_numbers = #tpu.dot_dimension_numbers<[1], [0], [0], [1], [0, 0, 1, 1], [], []>} : vector<32x288xbf16>, vector<288x16xbf16>, vector<32x16xf32> -> vector<32x16xf32>
    %c0_51 = arith.constant 0 : index
    %c0_52 = arith.constant 0 : index
    %c0_53 = arith.constant 0 : index
    %80 = vector.load %arg13[%c0_51, %c0_52, %c0_53] : memref<6x32x1xf32, #tpu.memory_space<vmem>>, vector<1x32x1xf32>
    %81 = vector.shape_cast %80 : vector<1x32x1xf32> to vector<32x1xf32>
    %82 = vector.broadcast %81 : vector<32x1xf32> to vector<32x16xf32>
    %83 = arith.addf %79, %82 : vector<32x16xf32>
    %cst_54 = arith.constant 0.000000e+00 : f32
    %84 = vector.broadcast %cst_54 : f32 to vector<32x16xf32>
    %85 = arith.maximumf %83, %84 : vector<32x16xf32>
    %c0_55 = arith.constant 0 : index
    %c0_56 = arith.constant 0 : index
    %c0_57 = arith.constant 0 : index
    %86 = vector.load %arg21[%c0_55, %c0_56, %c0_57] : memref<1x32x16xf32, #tpu.memory_space<vmem>>, vector<1x32x16xf32>
    %87 = vector.shape_cast %86 : vector<1x32x16xf32> to vector<32x16xf32>
    %88 = vector.shape_cast %85 : vector<32x16xf32> to vector<1x32x16xf32>
    tpu.vector_store %arg21[%c0_55, %c0_56, %c0_57], %88 {strides = array<i32>} : memref<1x32x16xf32, #tpu.memory_space<vmem>>, vector<1x32x16xf32>,
    %c0_58 = arith.constant 0 : index
    %c0_59 = arith.constant 0 : index
    %c0_60 = arith.constant 0 : index
    %89 = vector.load %arg25[%c0_58, %c0_59, %c0_60] : memref<1x1x16xf32, #tpu.memory_space<vmem>>, vector<1x1x16xf32>
    %90 = vector.shape_cast %89 : vector<1x1x16xf32> to vector<1x16xf32>
    %91 = vector.shape_cast %13 : vector<1x16xf32> to vector<1x1x16xf32>
    tpu.vector_store %arg25[%c0_58, %c0_59, %c0_60], %91 {strides = array<i32>} : memref<1x1x16xf32, #tpu.memory_space<vmem>>, vector<1x1x16xf32>,
    %92 = arith.truncf %85 : vector<32x16xf32> to vector<32x16xbf16>
    %c0_61 = arith.constant 0 : index
    %c0_62 = arith.constant 0 : index
    %93 = vector.load %arg5[%c0_61, %c0_62] : memref<16x64xbf16, #tpu.memory_space<vmem>>, vector<16x64xbf16>
    %cst_63 = arith.constant dense<0.000000e+00> : vector<32x64xf32>
    %94 = tpu.matmul %92, %93, %cst_63 {dimension_numbers = #tpu.dot_dimension_numbers<[1], [0], [0], [1], [0, 0, 1, 1], [], []>} : vector<32x16xbf16>, vector<16x64xbf16>, vector<32x64xf32> -> vector<32x64xf32>
    %c0_64 = arith.constant 0 : index
    %c0_65 = arith.constant 0 : index
    %c0_66 = arith.constant 0 : index
    %95 = vector.load %arg3[%c0_64, %c0_65, %c0_66] : memref<1x32x64xf32, #tpu.memory_space<vmem>>, vector<1x32x64xf32>
    %96 = vector.shape_cast %95 : vector<1x32x64xf32> to vector<32x64xf32>
    %97 = arith.addf %94, %96 : vector<32x64xf32>
    %c0_67 = arith.constant 0 : index
    %c128_68 = arith.constant 128 : index
    %98 = vector.load %arg26[%c0_67, %c128_68] : memref<32x1280xf32, #tpu.memory_space<vmem>>, vector<32x64xf32>
    tpu.vector_store %arg26[%c0_67, %c128_68], %97 {strides = array<i32>} : memref<32x1280xf32, #tpu.memory_space<vmem>>, vector<32x64xf32>,
    %c0_69 = arith.constant 0 : index
    %c0_70 = arith.constant 0 : index
    %99 = vector.load %arg9[%c0_69, %c0_70] : memref<2x64xf32, #tpu.memory_space<vmem>>, vector<2x64xf32>
    %100 = vector.extract_strided_slice %99 {offsets = [0, 0], sizes = [1, 64], strides = [1, 1]} : vector<2x64xf32> to vector<1x64xf32>
    %101 = vector.extract_strided_slice %99 {offsets = [1, 0], sizes = [1, 64], strides = [1, 1]} : vector<2x64xf32> to vector<1x64xf32>
    %c0_71 = arith.constant 0 : index
    %c119 = arith.constant 119 : index
    %102 = vector.load %arg26[%c0_71, %c119] : memref<32x1280xf32, #tpu.memory_space<vmem>>, vector<32x64xf32>
    %103 = vector.broadcast %100 : vector<1x64xf32> to vector<32x64xf32>
    %104 = arith.mulf %102, %103 : vector<32x64xf32>
    %105 = arith.truncf %104 : vector<32x64xf32> to vector<32x64xbf16>
    %c0_72 = arith.constant 0 : index
    %c0_73 = arith.constant 0 : index
    %106 = vector.load %arg27[%c0_72, %c0_73] : memref<288x1024xbf16, #tpu.memory_space<vmem>>, vector<32x64xbf16>
    tpu.vector_store %arg27[%c0_72, %c0_73], %105 {strides = array<i32>} : memref<288x1024xbf16, #tpu.memory_space<vmem>>, vector<32x64xbf16>,
    %c0_74 = arith.constant 0 : index
    %c120 = arith.constant 120 : index
    %107 = vector.load %arg26[%c0_74, %c120] : memref<32x1280xf32, #tpu.memory_space<vmem>>, vector<32x64xf32>
    %108 = arith.truncf %107 : vector<32x64xf32> to vector<32x64xbf16>
    %c32_75 = arith.constant 32 : index
    %c0_76 = arith.constant 0 : index
    %109 = vector.load %arg27[%c32_75, %c0_76] : memref<288x1024xbf16, #tpu.memory_space<vmem>>, vector<32x64xbf16>
    tpu.vector_store %arg27[%c32_75, %c0_76], %108 {strides = array<i32>} : memref<288x1024xbf16, #tpu.memory_space<vmem>>, vector<32x64xbf16>,
    %c0_77 = arith.constant 0 : index
    %c121 = arith.constant 121 : index
    %110 = vector.load %arg26[%c0_77, %c121] : memref<32x1280xf32, #tpu.memory_space<vmem>>, vector<32x64xf32>
    %111 = vector.broadcast %101 : vector<1x64xf32> to vector<32x64xf32>
    %112 = arith.mulf %110, %111 : vector<32x64xf32>
    %113 = arith.truncf %112 : vector<32x64xf32> to vector<32x64xbf16>
    %c64_78 = arith.constant 64 : index
    %c0_79 = arith.constant 0 : index
    %114 = vector.load %arg27[%c64_78, %c0_79] : memref<288x1024xbf16, #tpu.memory_space<vmem>>, vector<32x64xbf16>
    tpu.vector_store %arg27[%c64_78, %c0_79], %113 {strides = array<i32>} : memref<288x1024xbf16, #tpu.memory_space<vmem>>, vector<32x64xbf16>,
    %c0_80 = arith.constant 0 : index
    %c127_81 = arith.constant 127 : index
    %115 = vector.load %arg26[%c0_80, %c127_81] : memref<32x1280xf32, #tpu.memory_space<vmem>>, vector<32x64xf32>
    %116 = vector.broadcast %100 : vector<1x64xf32> to vector<32x64xf32>
    %117 = arith.mulf %115, %116 : vector<32x64xf32>
    %118 = arith.truncf %117 : vector<32x64xf32> to vector<32x64xbf16>
    %c96_82 = arith.constant 96 : index
    %c0_83 = arith.constant 0 : index
    %119 = vector.load %arg27[%c96_82, %c0_83] : memref<288x1024xbf16, #tpu.memory_space<vmem>>, vector<32x64xbf16>
    tpu.vector_store %arg27[%c96_82, %c0_83], %118 {strides = array<i32>} : memref<288x1024xbf16, #tpu.memory_space<vmem>>, vector<32x64xbf16>,
    %c0_84 = arith.constant 0 : index
    %c128_85 = arith.constant 128 : index
    %120 = vector.load %arg26[%c0_84, %c128_85] : memref<32x1280xf32, #tpu.memory_space<vmem>>, vector<32x64xf32>
    %121 = arith.truncf %120 : vector<32x64xf32> to vector<32x64xbf16>
    %c128_86 = arith.constant 128 : index
    %c0_87 = arith.constant 0 : index
    %122 = vector.load %arg27[%c128_86, %c0_87] : memref<288x1024xbf16, #tpu.memory_space<vmem>>, vector<32x64xbf16>
    tpu.vector_store %arg27[%c128_86, %c0_87], %121 {strides = array<i32>} : memref<288x1024xbf16, #tpu.memory_space<vmem>>, vector<32x64xbf16>,
    %c0_88 = arith.constant 0 : index
    %c129_89 = arith.constant 129 : index
    %123 = vector.load %arg26[%c0_88, %c129_89] : memref<32x1280xf32, #tpu.memory_space<vmem>>, vector<32x64xf32>
    %124 = vector.broadcast %101 : vector<1x64xf32> to vector<32x64xf32>
    %125 = arith.mulf %123, %124 : vector<32x64xf32>
    %126 = arith.truncf %125 : vector<32x64xf32> to vector<32x64xbf16>
    %c160_90 = arith.constant 160 : index
    %c0_91 = arith.constant 0 : index
    %127 = vector.load %arg27[%c160_90, %c0_91] : memref<288x1024xbf16, #tpu.memory_space<vmem>>, vector<32x64xbf16>
    tpu.vector_store %arg27[%c160_90, %c0_91], %126 {strides = array<i32>} : memref<288x1024xbf16, #tpu.memory_space<vmem>>, vector<32x64xbf16>,
    %c0_92 = arith.constant 0 : index
    %c135 = arith.constant 135 : index
    %128 = vector.load %arg26[%c0_92, %c135] : memref<32x1280xf32, #tpu.memory_space<vmem>>, vector<32x64xf32>
    %129 = vector.broadcast %100 : vector<1x64xf32> to vector<32x64xf32>
    %130 = arith.mulf %128, %129 : vector<32x64xf32>
    %131 = arith.truncf %130 : vector<32x64xf32> to vector<32x64xbf16>
    %c192_93 = arith.constant 192 : index
    %c0_94 = arith.constant 0 : index
    %132 = vector.load %arg27[%c192_93, %c0_94] : memref<288x1024xbf16, #tpu.memory_space<vmem>>, vector<32x64xbf16>
    tpu.vector_store %arg27[%c192_93, %c0_94], %131 {strides = array<i32>} : memref<288x1024xbf16, #tpu.memory_space<vmem>>, vector<32x64xbf16>,
    %c0_95 = arith.constant 0 : index
    %c136 = arith.constant 136 : index
    %133 = vector.load %arg26[%c0_95, %c136] : memref<32x1280xf32, #tpu.memory_space<vmem>>, vector<32x64xf32>
    %134 = arith.truncf %133 : vector<32x64xf32> to vector<32x64xbf16>
    %c224_96 = arith.constant 224 : index
    %c0_97 = arith.constant 0 : index
    %135 = vector.load %arg27[%c224_96, %c0_97] : memref<288x1024xbf16, #tpu.memory_space<vmem>>, vector<32x64xbf16>
    tpu.vector_store %arg27[%c224_96, %c0_97], %134 {strides = array<i32>} : memref<288x1024xbf16, #tpu.memory_space<vmem>>, vector<32x64xbf16>,
    %c0_98 = arith.constant 0 : index
    %c137 = arith.constant 137 : index
    %136 = vector.load %arg26[%c0_98, %c137] : memref<32x1280xf32, #tpu.memory_space<vmem>>, vector<32x64xf32>
    %137 = vector.broadcast %101 : vector<1x64xf32> to vector<32x64xf32>
    %138 = arith.mulf %136, %137 : vector<32x64xf32>
    %139 = arith.truncf %138 : vector<32x64xf32> to vector<32x64xbf16>
    %c256_99 = arith.constant 256 : index
    %c0_100 = arith.constant 0 : index
    %140 = vector.load %arg27[%c256_99, %c0_100] : memref<288x1024xbf16, #tpu.memory_space<vmem>>, vector<32x64xbf16>
    tpu.vector_store %arg27[%c256_99, %c0_100], %139 {strides = array<i32>} : memref<288x1024xbf16, #tpu.memory_space<vmem>>, vector<32x64xbf16>,
    %c1 = arith.constant 1 : index
    %c0_101 = arith.constant 0 : index
    %c0_102 = arith.constant 0 : index
    %141 = vector.load %arg12[%c1, %c0_101, %c0_102] : memref<6x32x288xbf16, #tpu.memory_space<vmem>>, vector<1x32x288xbf16>
    %142 = vector.shape_cast %141 : vector<1x32x288xbf16> to vector<32x288xbf16>
    %c0_103 = arith.constant 0 : index
    %c0_104 = arith.constant 0 : index
    %143 = vector.load %arg27[%c0_103, %c0_104] : memref<288x1024xbf16, #tpu.memory_space<vmem>>, vector<288x64xbf16>
    %cst_105 = arith.constant dense<0.000000e+00> : vector<32x64xf32>
    %144 = tpu.matmul %142, %143, %cst_105 {dimension_numbers = #tpu.dot_dimension_numbers<[1], [0], [0], [1], [0, 0, 1, 1], [], []>} : vector<32x288xbf16>, vector<288x64xbf16>, vector<32x64xf32> -> vector<32x64xf32>
    %c1_106 = arith.constant 1 : index
    %c0_107 = arith.constant 0 : index
    %c0_108 = arith.constant 0 : index
    %145 = vector.load %arg13[%c1_106, %c0_107, %c0_108] : memref<6x32x1xf32, #tpu.memory_space<vmem>>, vector<1x32x1xf32>
    %146 = vector.shape_cast %145 : vector<1x32x1xf32> to vector<32x1xf32>
    %147 = vector.broadcast %146 : vector<32x1xf32> to vector<32x64xf32>
    %148 = arith.addf %144, %147 : vector<32x64xf32>
    %cst_109 = arith.constant 0.000000e+00 : f32
    %149 = vector.broadcast %cst_109 : f32 to vector<32x64xf32>
    %150 = arith.maximumf %148, %149 : vector<32x64xf32>
    %c1_110 = arith.constant 1 : index
    %c0_111 = arith.constant 0 : index
    %c0_112 = arith.constant 0 : index
    %151 = vector.load %arg14[%c1_110, %c0_111, %c0_112] : memref<4x32x1xf32, #tpu.memory_space<vmem>>, vector<1x32x1xf32>
    %152 = vector.shape_cast %151 : vector<1x32x1xf32> to vector<32x1xf32>
    %153 = vector.broadcast %152 : vector<32x1xf32> to vector<32x64xf32>
    %154 = arith.mulf %150, %153 : vector<32x64xf32>
    %cst_113 = arith.constant dense<0.000000e+00> : vector<64xf32>
    %155 = vector.multi_reduction <add>, %154, %cst_113 [0] : vector<32x64xf32> to vector<64xf32>
    %156 = vector.shape_cast %155 : vector<64xf32> to vector<1x64xf32>
    %c1_114 = arith.constant 1 : index
    %c0_115 = arith.constant 0 : index
    %c0_116 = arith.constant 0 : index
    %157 = vector.load %arg15[%c1_114, %c0_115, %c0_116] : memref<4x1x1xf32, #tpu.memory_space<vmem>>, vector<1x1x1xf32>
    %158 = vector.shape_cast %157 : vector<1x1x1xf32> to vector<1x1xf32>
    %159 = vector.broadcast %158 : vector<1x1xf32> to vector<1x64xf32>
    %160 = arith.addf %156, %159 : vector<1x64xf32>
    %cst_117 = arith.constant 0.000000e+00 : f32
    %161 = vector.broadcast %cst_117 : f32 to vector<1x64xf32>
    %162 = arith.subf %161, %160 : vector<1x64xf32>
    %163 = math.exp %162 : vector<1x64xf32>
    %cst_118 = arith.constant 1.000000e+00 : f32
    %164 = vector.broadcast %cst_118 : f32 to vector<1x64xf32>
    %165 = arith.addf %164, %163 : vector<1x64xf32>
    %cst_119 = arith.constant 1.000000e+00 : f32
    %166 = vector.broadcast %cst_119 : f32 to vector<1x64xf32>
    %167 = arith.divf %166, %165 : vector<1x64xf32>
    %c1_120 = arith.constant 1 : index
    %c0_121 = arith.constant 0 : index
    %c0_122 = arith.constant 0 : index
    %168 = vector.load %arg16[%c1_120, %c0_121, %c0_122] : memref<3x32x1xf32, #tpu.memory_space<vmem>>, vector<1x32x1xf32>
    %169 = vector.shape_cast %168 : vector<1x32x1xf32> to vector<32x1xf32>
    %170 = vector.broadcast %167 : vector<1x64xf32> to vector<32x64xf32>
    %171 = vector.broadcast %169 : vector<32x1xf32> to vector<32x64xf32>
    %172 = arith.mulf %170, %171 : vector<32x64xf32>
    %c1_123 = arith.constant 1 : index
    %c0_124 = arith.constant 0 : index
    %c0_125 = arith.constant 0 : index
    %173 = vector.load %arg17[%c1_123, %c0_124, %c0_125] : memref<3x32x1xf32, #tpu.memory_space<vmem>>, vector<1x32x1xf32>
    %174 = vector.shape_cast %173 : vector<1x32x1xf32> to vector<32x1xf32>
    %175 = vector.broadcast %174 : vector<32x1xf32> to vector<32x64xf32>
    %176 = arith.addf %172, %175 : vector<32x64xf32>
    %cst_126 = arith.constant 0.000000e+00 : f32
    %177 = vector.broadcast %cst_126 : f32 to vector<32x64xf32>
    %178 = arith.maximumf %176, %177 : vector<32x64xf32>
    %179 = arith.mulf %150, %178 : vector<32x64xf32>
    %c0_127 = arith.constant 0 : index
    %c128_128 = arith.constant 128 : index
    %180 = vector.load %arg26[%c0_127, %c128_128] : memref<32x1280xf32, #tpu.memory_space<vmem>>, vector<32x64xf32>
    tpu.vector_store %arg26[%c0_127, %c128_128], %179 {strides = array<i32>} : memref<32x1280xf32, #tpu.memory_space<vmem>>, vector<32x64xf32>,
    %c0_129 = arith.constant 0 : index
    %c0_130 = arith.constant 0 : index
    %181 = vector.load %arg9[%c0_129, %c0_130] : memref<2x64xf32, #tpu.memory_space<vmem>>, vector<2x64xf32>
    %182 = vector.extract_strided_slice %181 {offsets = [0, 0], sizes = [1, 64], strides = [1, 1]} : vector<2x64xf32> to vector<1x64xf32>
    %183 = vector.extract_strided_slice %181 {offsets = [1, 0], sizes = [1, 64], strides = [1, 1]} : vector<2x64xf32> to vector<1x64xf32>
    %c0_131 = arith.constant 0 : index
    %c119_132 = arith.constant 119 : index
    %184 = vector.load %arg26[%c0_131, %c119_132] : memref<32x1280xf32, #tpu.memory_space<vmem>>, vector<32x64xf32>
    %185 = vector.broadcast %182 : vector<1x64xf32> to vector<32x64xf32>
    %186 = arith.mulf %184, %185 : vector<32x64xf32>
    %187 = arith.truncf %186 : vector<32x64xf32> to vector<32x64xbf16>
    %c0_133 = arith.constant 0 : index
    %c0_134 = arith.constant 0 : index
    %188 = vector.load %arg27[%c0_133, %c0_134] : memref<288x1024xbf16, #tpu.memory_space<vmem>>, vector<32x64xbf16>
    tpu.vector_store %arg27[%c0_133, %c0_134], %187 {strides = array<i32>} : memref<288x1024xbf16, #tpu.memory_space<vmem>>, vector<32x64xbf16>,
    %c0_135 = arith.constant 0 : index
    %c120_136 = arith.constant 120 : index
    %189 = vector.load %arg26[%c0_135, %c120_136] : memref<32x1280xf32, #tpu.memory_space<vmem>>, vector<32x64xf32>
    %190 = arith.truncf %189 : vector<32x64xf32> to vector<32x64xbf16>
    %c32_137 = arith.constant 32 : index
    %c0_138 = arith.constant 0 : index
    %191 = vector.load %arg27[%c32_137, %c0_138] : memref<288x1024xbf16, #tpu.memory_space<vmem>>, vector<32x64xbf16>
    tpu.vector_store %arg27[%c32_137, %c0_138], %190 {strides = array<i32>} : memref<288x1024xbf16, #tpu.memory_space<vmem>>, vector<32x64xbf16>,
    %c0_139 = arith.constant 0 : index
    %c121_140 = arith.constant 121 : index
    %192 = vector.load %arg26[%c0_139, %c121_140] : memref<32x1280xf32, #tpu.memory_space<vmem>>, vector<32x64xf32>
    %193 = vector.broadcast %183 : vector<1x64xf32> to vector<32x64xf32>
    %194 = arith.mulf %192, %193 : vector<32x64xf32>
    %195 = arith.truncf %194 : vector<32x64xf32> to vector<32x64xbf16>
    %c64_141 = arith.constant 64 : index
    %c0_142 = arith.constant 0 : index
    %196 = vector.load %arg27[%c64_141, %c0_142] : memref<288x1024xbf16, #tpu.memory_space<vmem>>, vector<32x64xbf16>
    tpu.vector_store %arg27[%c64_141, %c0_142], %195 {strides = array<i32>} : memref<288x1024xbf16, #tpu.memory_space<vmem>>, vector<32x64xbf16>,
    %c0_143 = arith.constant 0 : index
    %c127_144 = arith.constant 127 : index
    %197 = vector.load %arg26[%c0_143, %c127_144] : memref<32x1280xf32, #tpu.memory_space<vmem>>, vector<32x64xf32>
    %198 = vector.broadcast %182 : vector<1x64xf32> to vector<32x64xf32>
    %199 = arith.mulf %197, %198 : vector<32x64xf32>
    %200 = arith.truncf %199 : vector<32x64xf32> to vector<32x64xbf16>
    %c96_145 = arith.constant 96 : index
    %c0_146 = arith.constant 0 : index
    %201 = vector.load %arg27[%c96_145, %c0_146] : memref<288x1024xbf16, #tpu.memory_space<vmem>>, vector<32x64xbf16>
    tpu.vector_store %arg27[%c96_145, %c0_146], %200 {strides = array<i32>} : memref<288x1024xbf16, #tpu.memory_space<vmem>>, vector<32x64xbf16>,
    %c0_147 = arith.constant 0 : index
    %c128_148 = arith.constant 128 : index
    %202 = vector.load %arg26[%c0_147, %c128_148] : memref<32x1280xf32, #tpu.memory_space<vmem>>, vector<32x64xf32>
    %203 = arith.truncf %202 : vector<32x64xf32> to vector<32x64xbf16>
    %c128_149 = arith.constant 128 : index
    %c0_150 = arith.constant 0 : index
    %204 = vector.load %arg27[%c128_149, %c0_150] : memref<288x1024xbf16, #tpu.memory_space<vmem>>, vector<32x64xbf16>
    tpu.vector_store %arg27[%c128_149, %c0_150], %203 {strides = array<i32>} : memref<288x1024xbf16, #tpu.memory_space<vmem>>, vector<32x64xbf16>,
    %c0_151 = arith.constant 0 : index
    %c129_152 = arith.constant 129 : index
    %205 = vector.load %arg26[%c0_151, %c129_152] : memref<32x1280xf32, #tpu.memory_space<vmem>>, vector<32x64xf32>
    %206 = vector.broadcast %183 : vector<1x64xf32> to vector<32x64xf32>
    %207 = arith.mulf %205, %206 : vector<32x64xf32>
    %208 = arith.truncf %207 : vector<32x64xf32> to vector<32x64xbf16>
    %c160_153 = arith.constant 160 : index
    %c0_154 = arith.constant 0 : index
    %209 = vector.load %arg27[%c160_153, %c0_154] : memref<288x1024xbf16, #tpu.memory_space<vmem>>, vector<32x64xbf16>
    tpu.vector_store %arg27[%c160_153, %c0_154], %208 {strides = array<i32>} : memref<288x1024xbf16, #tpu.memory_space<vmem>>, vector<32x64xbf16>,
    %c0_155 = arith.constant 0 : index
    %c135_156 = arith.constant 135 : index
    %210 = vector.load %arg26[%c0_155, %c135_156] : memref<32x1280xf32, #tpu.memory_space<vmem>>, vector<32x64xf32>
    %211 = vector.broadcast %182 : vector<1x64xf32> to vector<32x64xf32>
    %212 = arith.mulf %210, %211 : vector<32x64xf32>
    %213 = arith.truncf %212 : vector<32x64xf32> to vector<32x64xbf16>
    %c192_157 = arith.constant 192 : index
    %c0_158 = arith.constant 0 : index
    %214 = vector.load %arg27[%c192_157, %c0_158] : memref<288x1024xbf16, #tpu.memory_space<vmem>>, vector<32x64xbf16>
    tpu.vector_store %arg27[%c192_157, %c0_158], %213 {strides = array<i32>} : memref<288x1024xbf16, #tpu.memory_space<vmem>>, vector<32x64xbf16>,
    %c0_159 = arith.constant 0 : index
    %c136_160 = arith.constant 136 : index
    %215 = vector.load %arg26[%c0_159, %c136_160] : memref<32x1280xf32, #tpu.memory_space<vmem>>, vector<32x64xf32>
    %216 = arith.truncf %215 : vector<32x64xf32> to vector<32x64xbf16>
    %c224_161 = arith.constant 224 : index
    %c0_162 = arith.constant 0 : index
    %217 = vector.load %arg27[%c224_161, %c0_162] : memref<288x1024xbf16, #tpu.memory_space<vmem>>, vector<32x64xbf16>
    tpu.vector_store %arg27[%c224_161, %c0_162], %216 {strides = array<i32>} : memref<288x1024xbf16, #tpu.memory_space<vmem>>, vector<32x64xbf16>,
    %c0_163 = arith.constant 0 : index
    %c137_164 = arith.constant 137 : index
    %218 = vector.load %arg26[%c0_163, %c137_164] : memref<32x1280xf32, #tpu.memory_space<vmem>>, vector<32x64xf32>
    %219 = vector.broadcast %183 : vector<1x64xf32> to vector<32x64xf32>
    %220 = arith.mulf %218, %219 : vector<32x64xf32>
    %221 = arith.truncf %220 : vector<32x64xf32> to vector<32x64xbf16>
    %c256_165 = arith.constant 256 : index
    %c0_166 = arith.constant 0 : index
    %222 = vector.load %arg27[%c256_165, %c0_166] : memref<288x1024xbf16, #tpu.memory_space<vmem>>, vector<32x64xbf16>
    tpu.vector_store %arg27[%c256_165, %c0_166], %221 {strides = array<i32>} : memref<288x1024xbf16, #tpu.memory_space<vmem>>, vector<32x64xbf16>,
    %c2 = arith.constant 2 : index
    %c0_167 = arith.constant 0 : index
    %c0_168 = arith.constant 0 : index
    %223 = vector.load %arg12[%c2, %c0_167, %c0_168] : memref<6x32x288xbf16, #tpu.memory_space<vmem>>, vector<1x32x288xbf16>
    %224 = vector.shape_cast %223 : vector<1x32x288xbf16> to vector<32x288xbf16>
    %c0_169 = arith.constant 0 : index
    %c0_170 = arith.constant 0 : index
    %225 = vector.load %arg27[%c0_169, %c0_170] : memref<288x1024xbf16, #tpu.memory_space<vmem>>, vector<288x64xbf16>
    %cst_171 = arith.constant dense<0.000000e+00> : vector<32x64xf32>
    %226 = tpu.matmul %224, %225, %cst_171 {dimension_numbers = #tpu.dot_dimension_numbers<[1], [0], [0], [1], [0, 0, 1, 1], [], []>} : vector<32x288xbf16>, vector<288x64xbf16>, vector<32x64xf32> -> vector<32x64xf32>
    %c2_172 = arith.constant 2 : index
    %c0_173 = arith.constant 0 : index
    %c0_174 = arith.constant 0 : index
    %227 = vector.load %arg13[%c2_172, %c0_173, %c0_174] : memref<6x32x1xf32, #tpu.memory_space<vmem>>, vector<1x32x1xf32>
    %228 = vector.shape_cast %227 : vector<1x32x1xf32> to vector<32x1xf32>
    %229 = vector.broadcast %228 : vector<32x1xf32> to vector<32x64xf32>
    %230 = arith.addf %226, %229 : vector<32x64xf32>
    %cst_175 = arith.constant 0.000000e+00 : f32
    %231 = vector.broadcast %cst_175 : f32 to vector<32x64xf32>
    %232 = arith.maximumf %230, %231 : vector<32x64xf32>
    %c0_176 = arith.constant 0 : index
    %c0_177 = arith.constant 0 : index
    %c0_178 = arith.constant 0 : index
    %233 = vector.load %arg20[%c0_176, %c0_177, %c0_178] : memref<1x32x64xf32, #tpu.memory_space<vmem>>, vector<1x32x64xf32>
    %234 = vector.shape_cast %233 : vector<1x32x64xf32> to vector<32x64xf32>
    %235 = vector.shape_cast %232 : vector<32x64xf32> to vector<1x32x64xf32>
    tpu.vector_store %arg20[%c0_176, %c0_177, %c0_178], %235 {strides = array<i32>} : memref<1x32x64xf32, #tpu.memory_space<vmem>>, vector<1x32x64xf32>,
    %c0_179 = arith.constant 0 : index
    %c0_180 = arith.constant 0 : index
    %c0_181 = arith.constant 0 : index
    %236 = vector.load %arg24[%c0_179, %c0_180, %c0_181] : memref<1x1x64xf32, #tpu.memory_space<vmem>>, vector<1x1x64xf32>
    %237 = vector.shape_cast %236 : vector<1x1x64xf32> to vector<1x64xf32>
    %238 = vector.shape_cast %160 : vector<1x64xf32> to vector<1x1x64xf32>
    tpu.vector_store %arg24[%c0_179, %c0_180, %c0_181], %238 {strides = array<i32>} : memref<1x1x64xf32, #tpu.memory_space<vmem>>, vector<1x1x64xf32>,
    %239 = arith.truncf %232 : vector<32x64xf32> to vector<32x64xbf16>
    %c0_182 = arith.constant 0 : index
    %c0_183 = arith.constant 0 : index
    %240 = vector.load %arg6[%c0_182, %c0_183] : memref<64x256xbf16, #tpu.memory_space<vmem>>, vector<64x256xbf16>
    %cst_184 = arith.constant dense<0.000000e+00> : vector<32x256xf32>
    %241 = tpu.matmul %239, %240, %cst_184 {dimension_numbers = #tpu.dot_dimension_numbers<[1], [0], [0], [1], [0, 0, 1, 1], [], []>} : vector<32x64xbf16>, vector<64x256xbf16>, vector<32x256xf32> -> vector<32x256xf32>
    %c0_185 = arith.constant 0 : index
    %c0_186 = arith.constant 0 : index
    %c0_187 = arith.constant 0 : index
    %242 = vector.load %arg2[%c0_185, %c0_186, %c0_187] : memref<1x32x256xf32, #tpu.memory_space<vmem>>, vector<1x32x256xf32>
    %243 = vector.shape_cast %242 : vector<1x32x256xf32> to vector<32x256xf32>
    %244 = arith.addf %241, %243 : vector<32x256xf32>
    %c0_188 = arith.constant 0 : index
    %c128_189 = arith.constant 128 : index
    %245 = vector.load %arg26[%c0_188, %c128_189] : memref<32x1280xf32, #tpu.memory_space<vmem>>, vector<32x256xf32>
    tpu.vector_store %arg26[%c0_188, %c128_189], %244 {strides = array<i32>} : memref<32x1280xf32, #tpu.memory_space<vmem>>, vector<32x256xf32>,
    %c0_190 = arith.constant 0 : index
    %c0_191 = arith.constant 0 : index
    %246 = vector.load %arg10[%c0_190, %c0_191] : memref<2x256xf32, #tpu.memory_space<vmem>>, vector<2x256xf32>
    %247 = vector.extract_strided_slice %246 {offsets = [0, 0], sizes = [1, 256], strides = [1, 1]} : vector<2x256xf32> to vector<1x256xf32>
    %248 = vector.extract_strided_slice %246 {offsets = [1, 0], sizes = [1, 256], strides = [1, 1]} : vector<2x256xf32> to vector<1x256xf32>
    %c0_192 = arith.constant 0 : index
    %c111 = arith.constant 111 : index
    %249 = vector.load %arg26[%c0_192, %c111] : memref<32x1280xf32, #tpu.memory_space<vmem>>, vector<32x256xf32>
    %250 = vector.broadcast %247 : vector<1x256xf32> to vector<32x256xf32>
    %251 = arith.mulf %249, %250 : vector<32x256xf32>
    %252 = arith.truncf %251 : vector<32x256xf32> to vector<32x256xbf16>
    %c0_193 = arith.constant 0 : index
    %c0_194 = arith.constant 0 : index
    %253 = vector.load %arg27[%c0_193, %c0_194] : memref<288x1024xbf16, #tpu.memory_space<vmem>>, vector<32x256xbf16>
    tpu.vector_store %arg27[%c0_193, %c0_194], %252 {strides = array<i32>} : memref<288x1024xbf16, #tpu.memory_space<vmem>>, vector<32x256xbf16>,
    %c0_195 = arith.constant 0 : index
    %c112 = arith.constant 112 : index
    %254 = vector.load %arg26[%c0_195, %c112] : memref<32x1280xf32, #tpu.memory_space<vmem>>, vector<32x256xf32>
    %255 = arith.truncf %254 : vector<32x256xf32> to vector<32x256xbf16>
    %c32_196 = arith.constant 32 : index
    %c0_197 = arith.constant 0 : index
    %256 = vector.load %arg27[%c32_196, %c0_197] : memref<288x1024xbf16, #tpu.memory_space<vmem>>, vector<32x256xbf16>
    tpu.vector_store %arg27[%c32_196, %c0_197], %255 {strides = array<i32>} : memref<288x1024xbf16, #tpu.memory_space<vmem>>, vector<32x256xbf16>,
    %c0_198 = arith.constant 0 : index
    %c113 = arith.constant 113 : index
    %257 = vector.load %arg26[%c0_198, %c113] : memref<32x1280xf32, #tpu.memory_space<vmem>>, vector<32x256xf32>
    %258 = vector.broadcast %248 : vector<1x256xf32> to vector<32x256xf32>
    %259 = arith.mulf %257, %258 : vector<32x256xf32>
    %260 = arith.truncf %259 : vector<32x256xf32> to vector<32x256xbf16>
    %c64_199 = arith.constant 64 : index
    %c0_200 = arith.constant 0 : index
    %261 = vector.load %arg27[%c64_199, %c0_200] : memref<288x1024xbf16, #tpu.memory_space<vmem>>, vector<32x256xbf16>
    tpu.vector_store %arg27[%c64_199, %c0_200], %260 {strides = array<i32>} : memref<288x1024xbf16, #tpu.memory_space<vmem>>, vector<32x256xbf16>,
    %c0_201 = arith.constant 0 : index
    %c127_202 = arith.constant 127 : index
    %262 = vector.load %arg26[%c0_201, %c127_202] : memref<32x1280xf32, #tpu.memory_space<vmem>>, vector<32x256xf32>
    %263 = vector.broadcast %247 : vector<1x256xf32> to vector<32x256xf32>
    %264 = arith.mulf %262, %263 : vector<32x256xf32>
    %265 = arith.truncf %264 : vector<32x256xf32> to vector<32x256xbf16>
    %c96_203 = arith.constant 96 : index
    %c0_204 = arith.constant 0 : index
    %266 = vector.load %arg27[%c96_203, %c0_204] : memref<288x1024xbf16, #tpu.memory_space<vmem>>, vector<32x256xbf16>
    tpu.vector_store %arg27[%c96_203, %c0_204], %265 {strides = array<i32>} : memref<288x1024xbf16, #tpu.memory_space<vmem>>, vector<32x256xbf16>,
    %c0_205 = arith.constant 0 : index
    %c128_206 = arith.constant 128 : index
    %267 = vector.load %arg26[%c0_205, %c128_206] : memref<32x1280xf32, #tpu.memory_space<vmem>>, vector<32x256xf32>
    %268 = arith.truncf %267 : vector<32x256xf32> to vector<32x256xbf16>
    %c128_207 = arith.constant 128 : index
    %c0_208 = arith.constant 0 : index
    %269 = vector.load %arg27[%c128_207, %c0_208] : memref<288x1024xbf16, #tpu.memory_space<vmem>>, vector<32x256xbf16>
    tpu.vector_store %arg27[%c128_207, %c0_208], %268 {strides = array<i32>} : memref<288x1024xbf16, #tpu.memory_space<vmem>>, vector<32x256xbf16>,
    %c0_209 = arith.constant 0 : index
    %c129_210 = arith.constant 129 : index
    %270 = vector.load %arg26[%c0_209, %c129_210] : memref<32x1280xf32, #tpu.memory_space<vmem>>, vector<32x256xf32>
    %271 = vector.broadcast %248 : vector<1x256xf32> to vector<32x256xf32>
    %272 = arith.mulf %270, %271 : vector<32x256xf32>
    %273 = arith.truncf %272 : vector<32x256xf32> to vector<32x256xbf16>
    %c160_211 = arith.constant 160 : index
    %c0_212 = arith.constant 0 : index
    %274 = vector.load %arg27[%c160_211, %c0_212] : memref<288x1024xbf16, #tpu.memory_space<vmem>>, vector<32x256xbf16>
    tpu.vector_store %arg27[%c160_211, %c0_212], %273 {strides = array<i32>} : memref<288x1024xbf16, #tpu.memory_space<vmem>>, vector<32x256xbf16>,
    %c0_213 = arith.constant 0 : index
    %c143 = arith.constant 143 : index
    %275 = vector.load %arg26[%c0_213, %c143] : memref<32x1280xf32, #tpu.memory_space<vmem>>, vector<32x256xf32>
    %276 = vector.broadcast %247 : vector<1x256xf32> to vector<32x256xf32>
    %277 = arith.mulf %275, %276 : vector<32x256xf32>
    %278 = arith.truncf %277 : vector<32x256xf32> to vector<32x256xbf16>
    %c192_214 = arith.constant 192 : index
    %c0_215 = arith.constant 0 : index
    %279 = vector.load %arg27[%c192_214, %c0_215] : memref<288x1024xbf16, #tpu.memory_space<vmem>>, vector<32x256xbf16>
    tpu.vector_store %arg27[%c192_214, %c0_215], %278 {strides = array<i32>} : memref<288x1024xbf16, #tpu.memory_space<vmem>>, vector<32x256xbf16>,
    %c0_216 = arith.constant 0 : index
    %c144 = arith.constant 144 : index
    %280 = vector.load %arg26[%c0_216, %c144] : memref<32x1280xf32, #tpu.memory_space<vmem>>, vector<32x256xf32>
    %281 = arith.truncf %280 : vector<32x256xf32> to vector<32x256xbf16>
    %c224_217 = arith.constant 224 : index
    %c0_218 = arith.constant 0 : index
    %282 = vector.load %arg27[%c224_217, %c0_218] : memref<288x1024xbf16, #tpu.memory_space<vmem>>, vector<32x256xbf16>
    tpu.vector_store %arg27[%c224_217, %c0_218], %281 {strides = array<i32>} : memref<288x1024xbf16, #tpu.memory_space<vmem>>, vector<32x256xbf16>,
    %c0_219 = arith.constant 0 : index
    %c145 = arith.constant 145 : index
    %283 = vector.load %arg26[%c0_219, %c145] : memref<32x1280xf32, #tpu.memory_space<vmem>>, vector<32x256xf32>
    %284 = vector.broadcast %248 : vector<1x256xf32> to vector<32x256xf32>
    %285 = arith.mulf %283, %284 : vector<32x256xf32>
    %286 = arith.truncf %285 : vector<32x256xf32> to vector<32x256xbf16>
    %c256_220 = arith.constant 256 : index
    %c0_221 = arith.constant 0 : index
    %287 = vector.load %arg27[%c256_220, %c0_221] : memref<288x1024xbf16, #tpu.memory_space<vmem>>, vector<32x256xbf16>
    tpu.vector_store %arg27[%c256_220, %c0_221], %286 {strides = array<i32>} : memref<288x1024xbf16, #tpu.memory_space<vmem>>, vector<32x256xbf16>,
    %c3 = arith.constant 3 : index
    %c0_222 = arith.constant 0 : index
    %c0_223 = arith.constant 0 : index
    %288 = vector.load %arg12[%c3, %c0_222, %c0_223] : memref<6x32x288xbf16, #tpu.memory_space<vmem>>, vector<1x32x288xbf16>
    %289 = vector.shape_cast %288 : vector<1x32x288xbf16> to vector<32x288xbf16>
    %c0_224 = arith.constant 0 : index
    %c0_225 = arith.constant 0 : index
    %290 = vector.load %arg27[%c0_224, %c0_225] : memref<288x1024xbf16, #tpu.memory_space<vmem>>, vector<288x256xbf16>
    %cst_226 = arith.constant dense<0.000000e+00> : vector<32x256xf32>
    %291 = tpu.matmul %289, %290, %cst_226 {dimension_numbers = #tpu.dot_dimension_numbers<[1], [0], [0], [1], [0, 0, 1, 1], [], []>} : vector<32x288xbf16>, vector<288x256xbf16>, vector<32x256xf32> -> vector<32x256xf32>
    %c3_227 = arith.constant 3 : index
    %c0_228 = arith.constant 0 : index
    %c0_229 = arith.constant 0 : index
    %292 = vector.load %arg13[%c3_227, %c0_228, %c0_229] : memref<6x32x1xf32, #tpu.memory_space<vmem>>, vector<1x32x1xf32>
    %293 = vector.shape_cast %292 : vector<1x32x1xf32> to vector<32x1xf32>
    %294 = vector.broadcast %293 : vector<32x1xf32> to vector<32x256xf32>
    %295 = arith.addf %291, %294 : vector<32x256xf32>
    %cst_230 = arith.constant 0.000000e+00 : f32
    %296 = vector.broadcast %cst_230 : f32 to vector<32x256xf32>
    %297 = arith.maximumf %295, %296 : vector<32x256xf32>
    %c2_231 = arith.constant 2 : index
    %c0_232 = arith.constant 0 : index
    %c0_233 = arith.constant 0 : index
    %298 = vector.load %arg14[%c2_231, %c0_232, %c0_233] : memref<4x32x1xf32, #tpu.memory_space<vmem>>, vector<1x32x1xf32>
    %299 = vector.shape_cast %298 : vector<1x32x1xf32> to vector<32x1xf32>
    %300 = vector.broadcast %299 : vector<32x1xf32> to vector<32x256xf32>
    %301 = arith.mulf %297, %300 : vector<32x256xf32>
    %cst_234 = arith.constant dense<0.000000e+00> : vector<256xf32>
    %302 = vector.multi_reduction <add>, %301, %cst_234 [0] : vector<32x256xf32> to vector<256xf32>
    %303 = vector.shape_cast %302 : vector<256xf32> to vector<1x256xf32>
    %c2_235 = arith.constant 2 : index
    %c0_236 = arith.constant 0 : index
    %c0_237 = arith.constant 0 : index
    %304 = vector.load %arg15[%c2_235, %c0_236, %c0_237] : memref<4x1x1xf32, #tpu.memory_space<vmem>>, vector<1x1x1xf32>
    %305 = vector.shape_cast %304 : vector<1x1x1xf32> to vector<1x1xf32>
    %306 = vector.broadcast %305 : vector<1x1xf32> to vector<1x256xf32>
    %307 = arith.addf %303, %306 : vector<1x256xf32>
    %cst_238 = arith.constant 0.000000e+00 : f32
    %308 = vector.broadcast %cst_238 : f32 to vector<1x256xf32>
    %309 = arith.subf %308, %307 : vector<1x256xf32>
    %310 = math.exp %309 : vector<1x256xf32>
    %cst_239 = arith.constant 1.000000e+00 : f32
    %311 = vector.broadcast %cst_239 : f32 to vector<1x256xf32>
    %312 = arith.addf %311, %310 : vector<1x256xf32>
    %cst_240 = arith.constant 1.000000e+00 : f32
    %313 = vector.broadcast %cst_240 : f32 to vector<1x256xf32>
    %314 = arith.divf %313, %312 : vector<1x256xf32>
    %c2_241 = arith.constant 2 : index
    %c0_242 = arith.constant 0 : index
    %c0_243 = arith.constant 0 : index
    %315 = vector.load %arg16[%c2_241, %c0_242, %c0_243] : memref<3x32x1xf32, #tpu.memory_space<vmem>>, vector<1x32x1xf32>
    %316 = vector.shape_cast %315 : vector<1x32x1xf32> to vector<32x1xf32>
    %317 = vector.broadcast %314 : vector<1x256xf32> to vector<32x256xf32>
    %318 = vector.broadcast %316 : vector<32x1xf32> to vector<32x256xf32>
    %319 = arith.mulf %317, %318 : vector<32x256xf32>
    %c2_244 = arith.constant 2 : index
    %c0_245 = arith.constant 0 : index
    %c0_246 = arith.constant 0 : index
    %320 = vector.load %arg17[%c2_244, %c0_245, %c0_246] : memref<3x32x1xf32, #tpu.memory_space<vmem>>, vector<1x32x1xf32>
    %321 = vector.shape_cast %320 : vector<1x32x1xf32> to vector<32x1xf32>
    %322 = vector.broadcast %321 : vector<32x1xf32> to vector<32x256xf32>
    %323 = arith.addf %319, %322 : vector<32x256xf32>
    %cst_247 = arith.constant 0.000000e+00 : f32
    %324 = vector.broadcast %cst_247 : f32 to vector<32x256xf32>
    %325 = arith.maximumf %323, %324 : vector<32x256xf32>
    %326 = arith.mulf %297, %325 : vector<32x256xf32>
    %c0_248 = arith.constant 0 : index
    %c128_249 = arith.constant 128 : index
    %327 = vector.load %arg26[%c0_248, %c128_249] : memref<32x1280xf32, #tpu.memory_space<vmem>>, vector<32x256xf32>
    tpu.vector_store %arg26[%c0_248, %c128_249], %326 {strides = array<i32>} : memref<32x1280xf32, #tpu.memory_space<vmem>>, vector<32x256xf32>,
    %c0_250 = arith.constant 0 : index
    %c0_251 = arith.constant 0 : index
    %328 = vector.load %arg10[%c0_250, %c0_251] : memref<2x256xf32, #tpu.memory_space<vmem>>, vector<2x256xf32>
    %329 = vector.extract_strided_slice %328 {offsets = [0, 0], sizes = [1, 256], strides = [1, 1]} : vector<2x256xf32> to vector<1x256xf32>
    %330 = vector.extract_strided_slice %328 {offsets = [1, 0], sizes = [1, 256], strides = [1, 1]} : vector<2x256xf32> to vector<1x256xf32>
    %c0_252 = arith.constant 0 : index
    %c111_253 = arith.constant 111 : index
    %331 = vector.load %arg26[%c0_252, %c111_253] : memref<32x1280xf32, #tpu.memory_space<vmem>>, vector<32x256xf32>
    %332 = vector.broadcast %329 : vector<1x256xf32> to vector<32x256xf32>
    %333 = arith.mulf %331, %332 : vector<32x256xf32>
    %334 = arith.truncf %333 : vector<32x256xf32> to vector<32x256xbf16>
    %c0_254 = arith.constant 0 : index
    %c0_255 = arith.constant 0 : index
    %335 = vector.load %arg27[%c0_254, %c0_255] : memref<288x1024xbf16, #tpu.memory_space<vmem>>, vector<32x256xbf16>
    tpu.vector_store %arg27[%c0_254, %c0_255], %334 {strides = array<i32>} : memref<288x1024xbf16, #tpu.memory_space<vmem>>, vector<32x256xbf16>,
    %c0_256 = arith.constant 0 : index
    %c112_257 = arith.constant 112 : index
    %336 = vector.load %arg26[%c0_256, %c112_257] : memref<32x1280xf32, #tpu.memory_space<vmem>>, vector<32x256xf32>
    %337 = arith.truncf %336 : vector<32x256xf32> to vector<32x256xbf16>
    %c32_258 = arith.constant 32 : index
    %c0_259 = arith.constant 0 : index
    %338 = vector.load %arg27[%c32_258, %c0_259] : memref<288x1024xbf16, #tpu.memory_space<vmem>>, vector<32x256xbf16>
    tpu.vector_store %arg27[%c32_258, %c0_259], %337 {strides = array<i32>} : memref<288x1024xbf16, #tpu.memory_space<vmem>>, vector<32x256xbf16>,
    %c0_260 = arith.constant 0 : index
    %c113_261 = arith.constant 113 : index
    %339 = vector.load %arg26[%c0_260, %c113_261] : memref<32x1280xf32, #tpu.memory_space<vmem>>, vector<32x256xf32>
    %340 = vector.broadcast %330 : vector<1x256xf32> to vector<32x256xf32>
    %341 = arith.mulf %339, %340 : vector<32x256xf32>
    %342 = arith.truncf %341 : vector<32x256xf32> to vector<32x256xbf16>
    %c64_262 = arith.constant 64 : index
    %c0_263 = arith.constant 0 : index
    %343 = vector.load %arg27[%c64_262, %c0_263] : memref<288x1024xbf16, #tpu.memory_space<vmem>>, vector<32x256xbf16>
    tpu.vector_store %arg27[%c64_262, %c0_263], %342 {strides = array<i32>} : memref<288x1024xbf16, #tpu.memory_space<vmem>>, vector<32x256xbf16>,
    %c0_264 = arith.constant 0 : index
    %c127_265 = arith.constant 127 : index
    %344 = vector.load %arg26[%c0_264, %c127_265] : memref<32x1280xf32, #tpu.memory_space<vmem>>, vector<32x256xf32>
    %345 = vector.broadcast %329 : vector<1x256xf32> to vector<32x256xf32>
    %346 = arith.mulf %344, %345 : vector<32x256xf32>
    %347 = arith.truncf %346 : vector<32x256xf32> to vector<32x256xbf16>
    %c96_266 = arith.constant 96 : index
    %c0_267 = arith.constant 0 : index
    %348 = vector.load %arg27[%c96_266, %c0_267] : memref<288x1024xbf16, #tpu.memory_space<vmem>>, vector<32x256xbf16>
    tpu.vector_store %arg27[%c96_266, %c0_267], %347 {strides = array<i32>} : memref<288x1024xbf16, #tpu.memory_space<vmem>>, vector<32x256xbf16>,
    %c0_268 = arith.constant 0 : index
    %c128_269 = arith.constant 128 : index
    %349 = vector.load %arg26[%c0_268, %c128_269] : memref<32x1280xf32, #tpu.memory_space<vmem>>, vector<32x256xf32>
    %350 = arith.truncf %349 : vector<32x256xf32> to vector<32x256xbf16>
    %c128_270 = arith.constant 128 : index
    %c0_271 = arith.constant 0 : index
    %351 = vector.load %arg27[%c128_270, %c0_271] : memref<288x1024xbf16, #tpu.memory_space<vmem>>, vector<32x256xbf16>
    tpu.vector_store %arg27[%c128_270, %c0_271], %350 {strides = array<i32>} : memref<288x1024xbf16, #tpu.memory_space<vmem>>, vector<32x256xbf16>,
    %c0_272 = arith.constant 0 : index
    %c129_273 = arith.constant 129 : index
    %352 = vector.load %arg26[%c0_272, %c129_273] : memref<32x1280xf32, #tpu.memory_space<vmem>>, vector<32x256xf32>
    %353 = vector.broadcast %330 : vector<1x256xf32> to vector<32x256xf32>
    %354 = arith.mulf %352, %353 : vector<32x256xf32>
    %355 = arith.truncf %354 : vector<32x256xf32> to vector<32x256xbf16>
    %c160_274 = arith.constant 160 : index
    %c0_275 = arith.constant 0 : index
    %356 = vector.load %arg27[%c160_274, %c0_275] : memref<288x1024xbf16, #tpu.memory_space<vmem>>, vector<32x256xbf16>
    tpu.vector_store %arg27[%c160_274, %c0_275], %355 {strides = array<i32>} : memref<288x1024xbf16, #tpu.memory_space<vmem>>, vector<32x256xbf16>,
    %c0_276 = arith.constant 0 : index
    %c143_277 = arith.constant 143 : index
    %357 = vector.load %arg26[%c0_276, %c143_277] : memref<32x1280xf32, #tpu.memory_space<vmem>>, vector<32x256xf32>
    %358 = vector.broadcast %329 : vector<1x256xf32> to vector<32x256xf32>
    %359 = arith.mulf %357, %358 : vector<32x256xf32>
    %360 = arith.truncf %359 : vector<32x256xf32> to vector<32x256xbf16>
    %c192_278 = arith.constant 192 : index
    %c0_279 = arith.constant 0 : index
    %361 = vector.load %arg27[%c192_278, %c0_279] : memref<288x1024xbf16, #tpu.memory_space<vmem>>, vector<32x256xbf16>
    tpu.vector_store %arg27[%c192_278, %c0_279], %360 {strides = array<i32>} : memref<288x1024xbf16, #tpu.memory_space<vmem>>, vector<32x256xbf16>,
    %c0_280 = arith.constant 0 : index
    %c144_281 = arith.constant 144 : index
    %362 = vector.load %arg26[%c0_280, %c144_281] : memref<32x1280xf32, #tpu.memory_space<vmem>>, vector<32x256xf32>
    %363 = arith.truncf %362 : vector<32x256xf32> to vector<32x256xbf16>
    %c224_282 = arith.constant 224 : index
    %c0_283 = arith.constant 0 : index
    %364 = vector.load %arg27[%c224_282, %c0_283] : memref<288x1024xbf16, #tpu.memory_space<vmem>>, vector<32x256xbf16>
    tpu.vector_store %arg27[%c224_282, %c0_283], %363 {strides = array<i32>} : memref<288x1024xbf16, #tpu.memory_space<vmem>>, vector<32x256xbf16>,
    %c0_284 = arith.constant 0 : index
    %c145_285 = arith.constant 145 : index
    %365 = vector.load %arg26[%c0_284, %c145_285] : memref<32x1280xf32, #tpu.memory_space<vmem>>, vector<32x256xf32>
    %366 = vector.broadcast %330 : vector<1x256xf32> to vector<32x256xf32>
    %367 = arith.mulf %365, %366 : vector<32x256xf32>
    %368 = arith.truncf %367 : vector<32x256xf32> to vector<32x256xbf16>
    %c256_286 = arith.constant 256 : index
    %c0_287 = arith.constant 0 : index
    %369 = vector.load %arg27[%c256_286, %c0_287] : memref<288x1024xbf16, #tpu.memory_space<vmem>>, vector<32x256xbf16>
    tpu.vector_store %arg27[%c256_286, %c0_287], %368 {strides = array<i32>} : memref<288x1024xbf16, #tpu.memory_space<vmem>>, vector<32x256xbf16>,
    %c4 = arith.constant 4 : index
    %c0_288 = arith.constant 0 : index
    %c0_289 = arith.constant 0 : index
    %370 = vector.load %arg12[%c4, %c0_288, %c0_289] : memref<6x32x288xbf16, #tpu.memory_space<vmem>>, vector<1x32x288xbf16>
    %371 = vector.shape_cast %370 : vector<1x32x288xbf16> to vector<32x288xbf16>
    %c0_290 = arith.constant 0 : index
    %c0_291 = arith.constant 0 : index
    %372 = vector.load %arg27[%c0_290, %c0_291] : memref<288x1024xbf16, #tpu.memory_space<vmem>>, vector<288x256xbf16>
    %cst_292 = arith.constant dense<0.000000e+00> : vector<32x256xf32>
    %373 = tpu.matmul %371, %372, %cst_292 {dimension_numbers = #tpu.dot_dimension_numbers<[1], [0], [0], [1], [0, 0, 1, 1], [], []>} : vector<32x288xbf16>, vector<288x256xbf16>, vector<32x256xf32> -> vector<32x256xf32>
    %c4_293 = arith.constant 4 : index
    %c0_294 = arith.constant 0 : index
    %c0_295 = arith.constant 0 : index
    %374 = vector.load %arg13[%c4_293, %c0_294, %c0_295] : memref<6x32x1xf32, #tpu.memory_space<vmem>>, vector<1x32x1xf32>
    %375 = vector.shape_cast %374 : vector<1x32x1xf32> to vector<32x1xf32>
    %376 = vector.broadcast %375 : vector<32x1xf32> to vector<32x256xf32>
    %377 = arith.addf %373, %376 : vector<32x256xf32>
    %cst_296 = arith.constant 0.000000e+00 : f32
    %378 = vector.broadcast %cst_296 : f32 to vector<32x256xf32>
    %379 = arith.maximumf %377, %378 : vector<32x256xf32>
    %c0_297 = arith.constant 0 : index
    %c0_298 = arith.constant 0 : index
    %c0_299 = arith.constant 0 : index
    %380 = vector.load %arg19[%c0_297, %c0_298, %c0_299] : memref<1x32x256xf32, #tpu.memory_space<vmem>>, vector<1x32x256xf32>
    %381 = vector.shape_cast %380 : vector<1x32x256xf32> to vector<32x256xf32>
    %382 = vector.shape_cast %379 : vector<32x256xf32> to vector<1x32x256xf32>
    tpu.vector_store %arg19[%c0_297, %c0_298, %c0_299], %382 {strides = array<i32>} : memref<1x32x256xf32, #tpu.memory_space<vmem>>, vector<1x32x256xf32>,
    %c0_300 = arith.constant 0 : index
    %c0_301 = arith.constant 0 : index
    %c0_302 = arith.constant 0 : index
    %383 = vector.load %arg23[%c0_300, %c0_301, %c0_302] : memref<1x1x256xf32, #tpu.memory_space<vmem>>, vector<1x1x256xf32>
    %384 = vector.shape_cast %383 : vector<1x1x256xf32> to vector<1x256xf32>
    %385 = vector.shape_cast %307 : vector<1x256xf32> to vector<1x1x256xf32>
    tpu.vector_store %arg23[%c0_300, %c0_301, %c0_302], %385 {strides = array<i32>} : memref<1x1x256xf32, #tpu.memory_space<vmem>>, vector<1x1x256xf32>,
    %386 = arith.truncf %379 : vector<32x256xf32> to vector<32x256xbf16>
    %c0_303 = arith.constant 0 : index
    %c0_304 = arith.constant 0 : index
    %387 = vector.load %arg7[%c0_303, %c0_304] : memref<256x1024xbf16, #tpu.memory_space<vmem>>, vector<256x1024xbf16>
    %cst_305 = arith.constant dense<0.000000e+00> : vector<32x1024xf32>
    %388 = tpu.matmul %386, %387, %cst_305 {dimension_numbers = #tpu.dot_dimension_numbers<[1], [0], [0], [1], [0, 0, 1, 1], [], []>} : vector<32x256xbf16>, vector<256x1024xbf16>, vector<32x1024xf32> -> vector<32x1024xf32>
    %c0_306 = arith.constant 0 : index
    %c0_307 = arith.constant 0 : index
    %c0_308 = arith.constant 0 : index
    %389 = vector.load %arg1[%c0_306, %c0_307, %c0_308] : memref<1x32x1024xf32, #tpu.memory_space<vmem>>, vector<1x32x1024xf32>
    %390 = vector.shape_cast %389 : vector<1x32x1024xf32> to vector<32x1024xf32>
    %391 = arith.addf %388, %390 : vector<32x1024xf32>
    %c0_309 = arith.constant 0 : index
    %c128_310 = arith.constant 128 : index
    %392 = vector.load %arg26[%c0_309, %c128_310] : memref<32x1280xf32, #tpu.memory_space<vmem>>, vector<32x1024xf32>
    tpu.vector_store %arg26[%c0_309, %c128_310], %391 {strides = array<i32>} : memref<32x1280xf32, #tpu.memory_space<vmem>>, vector<32x1024xf32>,
    %c0_311 = arith.constant 0 : index
    %c0_312 = arith.constant 0 : index
    %393 = vector.load %arg11[%c0_311, %c0_312] : memref<2x1024xf32, #tpu.memory_space<vmem>>, vector<2x1024xf32>
    %394 = vector.extract_strided_slice %393 {offsets = [0, 0], sizes = [1, 1024], strides = [1, 1]} : vector<2x1024xf32> to vector<1x1024xf32>
    %395 = vector.extract_strided_slice %393 {offsets = [1, 0], sizes = [1, 1024], strides = [1, 1]} : vector<2x1024xf32> to vector<1x1024xf32>
    %c0_313 = arith.constant 0 : index
    %c95 = arith.constant 95 : index
    %396 = vector.load %arg26[%c0_313, %c95] : memref<32x1280xf32, #tpu.memory_space<vmem>>, vector<32x1024xf32>
    %397 = vector.broadcast %394 : vector<1x1024xf32> to vector<32x1024xf32>
    %398 = arith.mulf %396, %397 : vector<32x1024xf32>
    %399 = arith.truncf %398 : vector<32x1024xf32> to vector<32x1024xbf16>
    %c0_314 = arith.constant 0 : index
    %c0_315 = arith.constant 0 : index
    %400 = vector.load %arg27[%c0_314, %c0_315] : memref<288x1024xbf16, #tpu.memory_space<vmem>>, vector<32x1024xbf16>
    tpu.vector_store %arg27[%c0_314, %c0_315], %399 {strides = array<i32>} : memref<288x1024xbf16, #tpu.memory_space<vmem>>, vector<32x1024xbf16>,
    %c0_316 = arith.constant 0 : index
    %c96_317 = arith.constant 96 : index
    %401 = vector.load %arg26[%c0_316, %c96_317] : memref<32x1280xf32, #tpu.memory_space<vmem>>, vector<32x1024xf32>
    %402 = arith.truncf %401 : vector<32x1024xf32> to vector<32x1024xbf16>
    %c32_318 = arith.constant 32 : index
    %c0_319 = arith.constant 0 : index
    %403 = vector.load %arg27[%c32_318, %c0_319] : memref<288x1024xbf16, #tpu.memory_space<vmem>>, vector<32x1024xbf16>
    tpu.vector_store %arg27[%c32_318, %c0_319], %402 {strides = array<i32>} : memref<288x1024xbf16, #tpu.memory_space<vmem>>, vector<32x1024xbf16>,
    %c0_320 = arith.constant 0 : index
    %c97 = arith.constant 97 : index
    %404 = vector.load %arg26[%c0_320, %c97] : memref<32x1280xf32, #tpu.memory_space<vmem>>, vector<32x1024xf32>
    %405 = vector.broadcast %395 : vector<1x1024xf32> to vector<32x1024xf32>
    %406 = arith.mulf %404, %405 : vector<32x1024xf32>
    %407 = arith.truncf %406 : vector<32x1024xf32> to vector<32x1024xbf16>
    %c64_321 = arith.constant 64 : index
    %c0_322 = arith.constant 0 : index
    %408 = vector.load %arg27[%c64_321, %c0_322] : memref<288x1024xbf16, #tpu.memory_space<vmem>>, vector<32x1024xbf16>
    tpu.vector_store %arg27[%c64_321, %c0_322], %407 {strides = array<i32>} : memref<288x1024xbf16, #tpu.memory_space<vmem>>, vector<32x1024xbf16>,
    %c0_323 = arith.constant 0 : index
    %c127_324 = arith.constant 127 : index
    %409 = vector.load %arg26[%c0_323, %c127_324] : memref<32x1280xf32, #tpu.memory_space<vmem>>, vector<32x1024xf32>
    %410 = vector.broadcast %394 : vector<1x1024xf32> to vector<32x1024xf32>
    %411 = arith.mulf %409, %410 : vector<32x1024xf32>
    %412 = arith.truncf %411 : vector<32x1024xf32> to vector<32x1024xbf16>
    %c96_325 = arith.constant 96 : index
    %c0_326 = arith.constant 0 : index
    %413 = vector.load %arg27[%c96_325, %c0_326] : memref<288x1024xbf16, #tpu.memory_space<vmem>>, vector<32x1024xbf16>
    tpu.vector_store %arg27[%c96_325, %c0_326], %412 {strides = array<i32>} : memref<288x1024xbf16, #tpu.memory_space<vmem>>, vector<32x1024xbf16>,
    %c0_327 = arith.constant 0 : index
    %c128_328 = arith.constant 128 : index
    %414 = vector.load %arg26[%c0_327, %c128_328] : memref<32x1280xf32, #tpu.memory_space<vmem>>, vector<32x1024xf32>
    %415 = arith.truncf %414 : vector<32x1024xf32> to vector<32x1024xbf16>
    %c128_329 = arith.constant 128 : index
    %c0_330 = arith.constant 0 : index
    %416 = vector.load %arg27[%c128_329, %c0_330] : memref<288x1024xbf16, #tpu.memory_space<vmem>>, vector<32x1024xbf16>
    tpu.vector_store %arg27[%c128_329, %c0_330], %415 {strides = array<i32>} : memref<288x1024xbf16, #tpu.memory_space<vmem>>, vector<32x1024xbf16>,
    %c0_331 = arith.constant 0 : index
    %c129_332 = arith.constant 129 : index
    %417 = vector.load %arg26[%c0_331, %c129_332] : memref<32x1280xf32, #tpu.memory_space<vmem>>, vector<32x1024xf32>
    %418 = vector.broadcast %395 : vector<1x1024xf32> to vector<32x1024xf32>
    %419 = arith.mulf %417, %418 : vector<32x1024xf32>
    %420 = arith.truncf %419 : vector<32x1024xf32> to vector<32x1024xbf16>
    %c160_333 = arith.constant 160 : index
    %c0_334 = arith.constant 0 : index
    %421 = vector.load %arg27[%c160_333, %c0_334] : memref<288x1024xbf16, #tpu.memory_space<vmem>>, vector<32x1024xbf16>
    tpu.vector_store %arg27[%c160_333, %c0_334], %420 {strides = array<i32>} : memref<288x1024xbf16, #tpu.memory_space<vmem>>, vector<32x1024xbf16>,
    %c0_335 = arith.constant 0 : index
    %c159 = arith.constant 159 : index
    %422 = vector.load %arg26[%c0_335, %c159] : memref<32x1280xf32, #tpu.memory_space<vmem>>, vector<32x1024xf32>
    %423 = vector.broadcast %394 : vector<1x1024xf32> to vector<32x1024xf32>
    %424 = arith.mulf %422, %423 : vector<32x1024xf32>
    %425 = arith.truncf %424 : vector<32x1024xf32> to vector<32x1024xbf16>
    %c192_336 = arith.constant 192 : index
    %c0_337 = arith.constant 0 : index
    %426 = vector.load %arg27[%c192_336, %c0_337] : memref<288x1024xbf16, #tpu.memory_space<vmem>>, vector<32x1024xbf16>
    tpu.vector_store %arg27[%c192_336, %c0_337], %425 {strides = array<i32>} : memref<288x1024xbf16, #tpu.memory_space<vmem>>, vector<32x1024xbf16>,
    %c0_338 = arith.constant 0 : index
    %c160_339 = arith.constant 160 : index
    %427 = vector.load %arg26[%c0_338, %c160_339] : memref<32x1280xf32, #tpu.memory_space<vmem>>, vector<32x1024xf32>
    %428 = arith.truncf %427 : vector<32x1024xf32> to vector<32x1024xbf16>
    %c224_340 = arith.constant 224 : index
    %c0_341 = arith.constant 0 : index
    %429 = vector.load %arg27[%c224_340, %c0_341] : memref<288x1024xbf16, #tpu.memory_space<vmem>>, vector<32x1024xbf16>
    tpu.vector_store %arg27[%c224_340, %c0_341], %428 {strides = array<i32>} : memref<288x1024xbf16, #tpu.memory_space<vmem>>, vector<32x1024xbf16>,
    %c0_342 = arith.constant 0 : index
    %c161 = arith.constant 161 : index
    %430 = vector.load %arg26[%c0_342, %c161] : memref<32x1280xf32, #tpu.memory_space<vmem>>, vector<32x1024xf32>
    %431 = vector.broadcast %395 : vector<1x1024xf32> to vector<32x1024xf32>
    %432 = arith.mulf %430, %431 : vector<32x1024xf32>
    %433 = arith.truncf %432 : vector<32x1024xf32> to vector<32x1024xbf16>
    %c256_343 = arith.constant 256 : index
    %c0_344 = arith.constant 0 : index
    %434 = vector.load %arg27[%c256_343, %c0_344] : memref<288x1024xbf16, #tpu.memory_space<vmem>>, vector<32x1024xbf16>
    tpu.vector_store %arg27[%c256_343, %c0_344], %433 {strides = array<i32>} : memref<288x1024xbf16, #tpu.memory_space<vmem>>, vector<32x1024xbf16>,
    %c5 = arith.constant 5 : index
    %c0_345 = arith.constant 0 : index
    %c0_346 = arith.constant 0 : index
    %435 = vector.load %arg12[%c5, %c0_345, %c0_346] : memref<6x32x288xbf16, #tpu.memory_space<vmem>>, vector<1x32x288xbf16>
    %436 = vector.shape_cast %435 : vector<1x32x288xbf16> to vector<32x288xbf16>
    %c0_347 = arith.constant 0 : index
    %c0_348 = arith.constant 0 : index
    %437 = vector.load %arg27[%c0_347, %c0_348] : memref<288x1024xbf16, #tpu.memory_space<vmem>>, vector<288x1024xbf16>
    %cst_349 = arith.constant dense<0.000000e+00> : vector<32x1024xf32>
    %438 = tpu.matmul %436, %437, %cst_349 {dimension_numbers = #tpu.dot_dimension_numbers<[1], [0], [0], [1], [0, 0, 1, 1], [], []>} : vector<32x288xbf16>, vector<288x1024xbf16>, vector<32x1024xf32> -> vector<32x1024xf32>
    %c5_350 = arith.constant 5 : index
    %c0_351 = arith.constant 0 : index
    %c0_352 = arith.constant 0 : index
    %439 = vector.load %arg13[%c5_350, %c0_351, %c0_352] : memref<6x32x1xf32, #tpu.memory_space<vmem>>, vector<1x32x1xf32>
    %440 = vector.shape_cast %439 : vector<1x32x1xf32> to vector<32x1xf32>
    %441 = vector.broadcast %440 : vector<32x1xf32> to vector<32x1024xf32>
    %442 = arith.addf %438, %441 : vector<32x1024xf32>
    %cst_353 = arith.constant 0.000000e+00 : f32
    %443 = vector.broadcast %cst_353 : f32 to vector<32x1024xf32>
    %444 = arith.maximumf %442, %443 : vector<32x1024xf32>
    %c3_354 = arith.constant 3 : index
    %c0_355 = arith.constant 0 : index
    %c0_356 = arith.constant 0 : index
    %445 = vector.load %arg14[%c3_354, %c0_355, %c0_356] : memref<4x32x1xf32, #tpu.memory_space<vmem>>, vector<1x32x1xf32>
    %446 = vector.shape_cast %445 : vector<1x32x1xf32> to vector<32x1xf32>
    %447 = vector.broadcast %446 : vector<32x1xf32> to vector<32x1024xf32>
    %448 = arith.mulf %444, %447 : vector<32x1024xf32>
    %cst_357 = arith.constant dense<0.000000e+00> : vector<1024xf32>
    %449 = vector.multi_reduction <add>, %448, %cst_357 [0] : vector<32x1024xf32> to vector<1024xf32>
    %450 = vector.shape_cast %449 : vector<1024xf32> to vector<1x1024xf32>
    %c3_358 = arith.constant 3 : index
    %c0_359 = arith.constant 0 : index
    %c0_360 = arith.constant 0 : index
    %451 = vector.load %arg15[%c3_358, %c0_359, %c0_360] : memref<4x1x1xf32, #tpu.memory_space<vmem>>, vector<1x1x1xf32>
    %452 = vector.shape_cast %451 : vector<1x1x1xf32> to vector<1x1xf32>
    %453 = vector.broadcast %452 : vector<1x1xf32> to vector<1x1024xf32>
    %454 = arith.addf %450, %453 : vector<1x1024xf32>
    %c0_361 = arith.constant 0 : index
    %c0_362 = arith.constant 0 : index
    %c0_363 = arith.constant 0 : index
    %455 = vector.load %arg18[%c0_361, %c0_362, %c0_363] : memref<1x32x1024xf32, #tpu.memory_space<vmem>>, vector<1x32x1024xf32>
    %456 = vector.shape_cast %455 : vector<1x32x1024xf32> to vector<32x1024xf32>
    %457 = vector.shape_cast %444 : vector<32x1024xf32> to vector<1x32x1024xf32>
    tpu.vector_store %arg18[%c0_361, %c0_362, %c0_363], %457 {strides = array<i32>} : memref<1x32x1024xf32, #tpu.memory_space<vmem>>, vector<1x32x1024xf32>,
    %c0_364 = arith.constant 0 : index
    %c0_365 = arith.constant 0 : index
    %c0_366 = arith.constant 0 : index
    %458 = vector.load %arg22[%c0_364, %c0_365, %c0_366] : memref<1x1x1024xf32, #tpu.memory_space<vmem>>, vector<1x1x1024xf32>
    %459 = vector.shape_cast %458 : vector<1x1x1024xf32> to vector<1x1024xf32>
    %460 = vector.shape_cast %454 : vector<1x1024xf32> to vector<1x1x1024xf32>
    tpu.vector_store %arg22[%c0_364, %c0_365, %c0_366], %460 {strides = array<i32>} : memref<1x1x1024xf32, #tpu.memory_space<vmem>>, vector<1x1x1024xf32>,
    return
  }
  func.func @transform_0(%arg0: i32) -> (i32, i32, i32) {
    %c0_i32 = arith.constant 0 : i32
    %c0_i32_0 = arith.constant 0 : i32
    %c0_i32_1 = arith.constant 0 : i32
    return %arg0, %c0_i32, %c0_i32_0 : i32, i32, i32
  }
  func.func @transform_1(%arg0: i32) -> (i32, i32, i32) {
    %c0_i32 = arith.constant 0 : i32
    %c0_i32_0 = arith.constant 0 : i32
    %c0_i32_1 = arith.constant 0 : i32
    return %arg0, %c0_i32, %c0_i32_0 : i32, i32, i32
  }
  func.func @transform_2(%arg0: i32) -> (i32, i32, i32) {
    %c0_i32 = arith.constant 0 : i32
    %c0_i32_0 = arith.constant 0 : i32
    %c0_i32_1 = arith.constant 0 : i32
    return %arg0, %c0_i32, %c0_i32_0 : i32, i32, i32
  }
  func.func @transform_3(%arg0: i32) -> (i32, i32, i32) {
    %c0_i32 = arith.constant 0 : i32
    %c0_i32_0 = arith.constant 0 : i32
    %c0_i32_1 = arith.constant 0 : i32
    return %arg0, %c0_i32, %c0_i32_0 : i32, i32, i32
  }
  func.func @transform_4(%arg0: i32) -> (i32, i32) {
    %c0_i32 = arith.constant 0 : i32
    %c0_i32_0 = arith.constant 0 : i32
    %c0_i32_1 = arith.constant 0 : i32
    return %c0_i32, %c0_i32_0 : i32, i32
  }
  func.func @transform_5(%arg0: i32) -> (i32, i32) {
    %c0_i32 = arith.constant 0 : i32
    %c0_i32_0 = arith.constant 0 : i32
    %c0_i32_1 = arith.constant 0 : i32
    return %c0_i32, %c0_i32_0 : i32, i32
  }
  func.func @transform_6(%arg0: i32) -> (i32, i32) {
    %c0_i32 = arith.constant 0 : i32
    %c0_i32_0 = arith.constant 0 : i32
    %c0_i32_1 = arith.constant 0 : i32
    return %c0_i32, %c0_i32_0 : i32, i32
  }
  func.func @transform_7(%arg0: i32) -> (i32, i32) {
    %c0_i32 = arith.constant 0 : i32
    %c0_i32_0 = arith.constant 0 : i32
    %c0_i32_1 = arith.constant 0 : i32
    return %c0_i32, %c0_i32_0 : i32, i32
  }
  func.func @transform_8(%arg0: i32) -> (i32, i32) {
    %c0_i32 = arith.constant 0 : i32
    %c0_i32_0 = arith.constant 0 : i32
    %c0_i32_1 = arith.constant 0 : i32
    return %c0_i32, %c0_i32_0 : i32, i32
  }
  func.func @transform_9(%arg0: i32) -> (i32, i32) {
    %c0_i32 = arith.constant 0 : i32
    %c0_i32_0 = arith.constant 0 : i32
    %c0_i32_1 = arith.constant 0 : i32
    return %c0_i32, %c0_i32_0 : i32, i32
  }
  func.func @transform_10(%arg0: i32) -> (i32, i32) {
    %c0_i32 = arith.constant 0 : i32
    %c0_i32_0 = arith.constant 0 : i32
    %c0_i32_1 = arith.constant 0 : i32
    return %c0_i32, %c0_i32_0 : i32, i32
  }
  func.func @transform_11(%arg0: i32) -> (i32, i32, i32) {
    %c0_i32 = arith.constant 0 : i32
    %c0_i32_0 = arith.constant 0 : i32
    %c0_i32_1 = arith.constant 0 : i32
    %c0_i32_2 = arith.constant 0 : i32
    return %c0_i32, %c0_i32_0, %c0_i32_1 : i32, i32, i32
  }
  func.func @transform_12(%arg0: i32) -> (i32, i32, i32) {
    %c0_i32 = arith.constant 0 : i32
    %c0_i32_0 = arith.constant 0 : i32
    %c0_i32_1 = arith.constant 0 : i32
    %c0_i32_2 = arith.constant 0 : i32
    return %c0_i32, %c0_i32_0, %c0_i32_1 : i32, i32, i32
  }
  func.func @transform_13(%arg0: i32) -> (i32, i32, i32) {
    %c0_i32 = arith.constant 0 : i32
    %c0_i32_0 = arith.constant 0 : i32
    %c0_i32_1 = arith.constant 0 : i32
    %c0_i32_2 = arith.constant 0 : i32
    return %c0_i32, %c0_i32_0, %c0_i32_1 : i32, i32, i32
  }
  func.func @transform_14(%arg0: i32) -> (i32, i32, i32) {
    %c0_i32 = arith.constant 0 : i32
    %c0_i32_0 = arith.constant 0 : i32
    %c0_i32_1 = arith.constant 0 : i32
    %c0_i32_2 = arith.constant 0 : i32
    return %c0_i32, %c0_i32_0, %c0_i32_1 : i32, i32, i32
  }
  func.func @transform_15(%arg0: i32) -> (i32, i32, i32) {
    %c0_i32 = arith.constant 0 : i32
    %c0_i32_0 = arith.constant 0 : i32
    %c0_i32_1 = arith.constant 0 : i32
    %c0_i32_2 = arith.constant 0 : i32
    return %c0_i32, %c0_i32_0, %c0_i32_1 : i32, i32, i32
  }
  func.func @transform_16(%arg0: i32) -> (i32, i32, i32) {
    %c0_i32 = arith.constant 0 : i32
    %c0_i32_0 = arith.constant 0 : i32
    %c0_i32_1 = arith.constant 0 : i32
    %c0_i32_2 = arith.constant 0 : i32
    return %c0_i32, %c0_i32_0, %c0_i32_1 : i32, i32, i32
  }
  func.func @transform_17(%arg0: i32) -> (i32, i32, i32) {
    %c0_i32 = arith.constant 0 : i32
    %c0_i32_0 = arith.constant 0 : i32
    %c0_i32_1 = arith.constant 0 : i32
    return %arg0, %c0_i32, %c0_i32_0 : i32, i32, i32
  }
  func.func @transform_18(%arg0: i32) -> (i32, i32, i32) {
    %c0_i32 = arith.constant 0 : i32
    %c0_i32_0 = arith.constant 0 : i32
    %c0_i32_1 = arith.constant 0 : i32
    return %arg0, %c0_i32, %c0_i32_0 : i32, i32, i32
  }
  func.func @transform_19(%arg0: i32) -> (i32, i32, i32) {
    %c0_i32 = arith.constant 0 : i32
    %c0_i32_0 = arith.constant 0 : i32
    %c0_i32_1 = arith.constant 0 : i32
    return %arg0, %c0_i32, %c0_i32_0 : i32, i32, i32
  }
  func.func @transform_20(%arg0: i32) -> (i32, i32, i32) {
    %c0_i32 = arith.constant 0 : i32
    %c0_i32_0 = arith.constant 0 : i32
    %c0_i32_1 = arith.constant 0 : i32
    return %arg0, %c0_i32, %c0_i32_0 : i32, i32, i32
  }
  func.func @transform_21(%arg0: i32) -> (i32, i32, i32) {
    %c0_i32 = arith.constant 0 : i32
    %c0_i32_0 = arith.constant 0 : i32
    %c0_i32_1 = arith.constant 0 : i32
    return %arg0, %c0_i32, %c0_i32_0 : i32, i32, i32
  }
  func.func @transform_22(%arg0: i32) -> (i32, i32, i32) {
    %c0_i32 = arith.constant 0 : i32
    %c0_i32_0 = arith.constant 0 : i32
    %c0_i32_1 = arith.constant 0 : i32
    return %arg0, %c0_i32, %c0_i32_0 : i32, i32, i32
  }
  func.func @transform_23(%arg0: i32) -> (i32, i32, i32) {
    %c0_i32 = arith.constant 0 : i32
    %c0_i32_0 = arith.constant 0 : i32
    %c0_i32_1 = arith.constant 0 : i32
    return %arg0, %c0_i32, %c0_i32_0 : i32, i32, i32
  }
  func.func @transform_24(%arg0: i32) -> (i32, i32, i32) {
    %c0_i32 = arith.constant 0 : i32
    %c0_i32_0 = arith.constant 0 : i32
    %c0_i32_1 = arith.constant 0 : i32
    return %arg0, %c0_i32, %c0_i32_0 : i32, i32, i32
  }
}

</mosaic_0001>

<llo_original>
// kernel: tpu_custom_call.1
$region0: #{tpu_custom_call.1}
  #allocation0 [shape = 'u32[]', space=smem, size = 0x4, offset = 0x4, fixed_abs, tag = 'smem constant byte address 0x4 - core index']
  #allocation1 [shape = 'u32[144,128]{1,0:T(1,128)}', space=vmem, size = 0x12000, scoped, tag = 'internal scratch']
  #allocation2 [shape = 'f32[32,1280]{1,0:T(8,128)}', space=vmem, size = 0x28000, scoped, tag = 'scratch operand']
  #allocation3 [shape = 'bf16[288,1024]{1,0:T(16,128)(2,1)}', space=vmem, size = 0x90000, scoped, tag = 'scratch operand']
  %s0 = inlined_call_operand.vmem [shape: f32[2,32,1024], index: 0, kind: input, shape index: {}]
  %s1 = inlined_call_operand.hbm [shape: f32[2,32,256], index: 1, kind: input, shape index: {}]
  %s2 = inlined_call_operand.vmem [shape: f32[2,32,64], index: 2, kind: input, shape index: {}]
  %s3 = inlined_call_operand.vmem [shape: f32[2,32,16], index: 3, kind: input, shape index: {}]
  %s4 = inlined_call_operand.hbm [shape: bf16[16,64], index: 4, kind: input, shape index: {}]
  %s5 = inlined_call_operand.vmem [shape: bf16[64,256], index: 5, kind: input, shape index: {}]
  %s6 = inlined_call_operand.hbm [shape: bf16[256,1024], index: 6, kind: input, shape index: {}]
  %s7 = inlined_call_operand.hbm [shape: f32[2,16], index: 7, kind: input, shape index: {}]
  %s8 = inlined_call_operand.hbm [shape: f32[2,64], index: 8, kind: input, shape index: {}]
  %s9 = inlined_call_operand.hbm [shape: f32[2,256], index: 9, kind: input, shape index: {}]
  %s10 = inlined_call_operand.vmem [shape: f32[2,1024], index: 10, kind: input, shape index: {}]
  %s11 = inlined_call_operand.hbm [shape: bf16[6,32,288], index: 11, kind: input, shape index: {}]
  %s12 = inlined_call_operand.vmem [shape: f32[6,32,1], index: 12, kind: input, shape index: {}]
  %s13 = inlined_call_operand.vmem [shape: f32[4,32,1], index: 13, kind: input, shape index: {}]
  %s14 = inlined_call_operand.vmem [shape: f32[4,1,1], index: 14, kind: input, shape index: {}]
  %s15 = inlined_call_operand.vmem [shape: f32[3,32,1], index: 15, kind: input, shape index: {}]
  %s16 = inlined_call_operand.vmem [shape: f32[3,32,1], index: 16, kind: input, shape index: {}]
  %s17 = inlined_call_operand.hbm [shape: f32[2,32,1024], index: 17, kind: output, shape index: {0}]
  %s18 = inlined_call_operand.hbm [shape: f32[2,32,256], index: 18, kind: output, shape index: {1}]
  %s19 = inlined_call_operand.hbm [shape: f32[2,32,64], index: 19, kind: output, shape index: {2}]
  %s20 = inlined_call_operand.vmem [shape: f32[2,32,16], index: 20, kind: output, shape index: {3}]
  %s21 = inlined_call_operand.hbm [shape: f32[2,1,1024], index: 21, kind: output, shape index: {4}]
  %s22 = inlined_call_operand.hbm [shape: f32[2,1,256], index: 22, kind: output, shape index: {5}]
  %s23 = inlined_call_operand.hbm [shape: f32[2,1,64], index: 23, kind: output, shape index: {6}]
  %s24 = inlined_call_operand.hbm [shape: f32[2,1,16], index: 24, kind: output, shape index: {7}]
  %25 = xla_tuple %s17, %s18, %s19, %s20, %s21, %s22, %s23, %s24
  %s26 = sld [smem:[#allocation0]]
  $region185: #{tpu_custom_call.1} parent=0
    _
  %s28 = ssub.s32 1, %s26
  %s29 = scalar_select 0, %s28, %s26
  $region1: #{tpu_custom_call.1} parent=0
    #allocation4 [shape = 'u8[65536]{0}', space=vmem, size = 0x10000, scoped, tag = 'input window, operand 1']
    #allocation5 [shape = 's32[2]{0}', space=sflag, size = 0x8, scoped, tag = 'scoped memory for tpu_custom_call.1']
    #allocation6 [shape = 's32[2]{0}', space=sflag, size = 0x8, scoped, tag = 'scoped memory for tpu_custom_call.1']
    #allocation7 [shape = 'u8[4096]{0}', space=vmem, size = 0x1000, scoped, tag = 'input window, operand 4, single buffered']
    #allocation8 [shape = 's32[1]{0}', space=sflag, size = 0x4, scoped, tag = 'scoped memory for tpu_custom_call.1']
    #allocation9 [shape = 'u8[524288]{0}', space=vmem, size = 0x80000, scoped, tag = 'input window, operand 6, single buffered']
    #allocation10 [shape = 'u8[1024]{0}', space=vmem, size = 0x400, scoped, tag = 'input window, operand 7, single buffered']
    #allocation11 [shape = 's32[1]{0}', space=sflag, size = 0x4, scoped, tag = 'scoped memory for tpu_custom_call.1']
    #allocation12 [shape = 'u8[1024]{0}', space=vmem, size = 0x400, scoped, tag = 'input window, operand 8, single buffered']
    #allocation13 [shape = 'u8[2048]{0}', space=vmem, size = 0x800, scoped, tag = 'input window, operand 9, single buffered']
    #allocation14 [shape = 's32[1]{0}', space=sflag, size = 0x4, scoped, tag = 'scoped memory for tpu_custom_call.1']
    #allocation15 [shape = 'u8[147456]{0}', space=vmem, size = 0x24000, scoped, tag = 'input window, operand 11, single buffered']
    #allocation16 [shape = 'u8[262144]{0}', space=vmem, size = 0x40000, scoped, tag = 'output window, operand 0']
    #allocation17 [shape = 'u8[65536]{0}', space=vmem, size = 0x10000, scoped, tag = 'output window, operand 1']
    #allocation18 [shape = 's32[2]{0}', space=sflag, size = 0x8, scoped, tag = 'scoped memory for tpu_custom_call.1']
    #allocation19 [shape = 'u8[32768]{0}', space=vmem, size = 0x8000, scoped, tag = 'output window, operand 2']
    #allocation20 [shape = 'u8[8192]{0}', space=vmem, size = 0x2000, scoped, tag = 'output window, operand 4']
    #allocation21 [shape = 's32[2]{0}', space=sflag, size = 0x8, scoped, tag = 'scoped memory for tpu_custom_call.1']
    #allocation22 [shape = 'u8[2048]{0}', space=vmem, size = 0x800, scoped, tag = 'output window, operand 5']
    #allocation23 [shape = 'u8[1024]{0}', space=vmem, size = 0x400, scoped, tag = 'output window, operand 6']
    #allocation24 [shape = 's32[2]{0}', space=sflag, size = 0x8, scoped, tag = 'scoped memory for tpu_custom_call.1']
    #allocation25 [shape = 'u8[1024]{0}', space=vmem, size = 0x400, scoped, tag = 'output window, operand 7']
    %30 = vsyncpa [#allocation5], 0
    %s31 = scalar_lea.sflag [#allocation5], 1
    %32 = vsyncpa %s31, 0
    %33 = vsyncpa [#allocation8], 0
    %34 = vsyncpa [#allocation11], 0
    %35 = vsyncpa [#allocation14], 0
    %36 = vsyncpa [#allocation6], 0
    %s37 = scalar_lea.sflag [#allocation6], 1
    %38 = vsyncpa %s37, 0
    %39 = vsyncpa [#allocation18], 0
    %s40 = scalar_lea.sflag [#allocation18], 1
    %41 = vsyncpa %s40, 0
    %42 = vsyncpa [#allocation21], 0
    %s43 = scalar_lea.sflag [#allocation21], 1
    %44 = vsyncpa %s43, 0
    %45 = vsyncpa [#allocation24], 0
    %s46 = scalar_lea.sflag [#allocation24], 1
    %47 = vsyncpa %s46, 0
    loop: start=0, step=1, limit=4
    $region2: #{tpu_custom_call.1} parent=1 // loop_pre_header
      _
    $region3: #{tpu_custom_call.1} parent=1 // loop_header
      %s49 = sphi 0, %s53
      %p50 = scmp.ge.s32.totalorder %s49, 4
      %s59 = sphi 0, %s61
      %s62 = sphi 0, %s59
      %s63 = sphi 0, %s62
      %s79 = sphi 0, %s63
      %s85 = sphi 0, %s87
      %s88 = sphi 0, %s85
      %s89 = sphi 0, %s88
      %s105 = sphi 0, %s89
      %s111 = sphi 0, %s113
      %s114 = sphi 0, %s111
      %s115 = sphi 0, %s114
      %s131 = sphi 0, %s115
      %s137 = sphi 0, %s139
      %s140 = sphi 0, %s137
      %s141 = sphi 0, %s140
      %s157 = sphi 0, %s141
      %s161 = sphi 0, %s161
      %s163 = sphi 0, %s161
      %s164 = sphi 0, %s163
      %s178 = sphi 0, %s164
      %s182 = sphi 0, %s182
      %s184 = sphi 0, %s182
      %s185 = sphi 0, %s184
      %s199 = sphi 0, %s185
      %s203 = sphi 0, %s203
      %s205 = sphi 0, %s203
      %s206 = sphi 0, %s205
      %s220 = sphi 0, %s206
      %s224 = sphi 0, %s224
      %s226 = sphi 0, %s224
      %s227 = sphi 0, %s226
      %s241 = sphi 0, %s227
      %s245 = sphi 0, %s245
      %s247 = sphi 0, %s245
      %s248 = sphi 0, %s247
      %s262 = sphi 0, %s248
      %s266 = sphi 0, %s266
      %s268 = sphi 0, %s266
      %s269 = sphi 0, %s268
      %s283 = sphi 0, %s269
      %s287 = sphi 0, %s287
      %s289 = sphi 0, %s287
      %s290 = sphi 0, %s289
      %s304 = sphi 0, %s290
      %s308 = sphi 0, %s308
      %s310 = sphi 0, %s308
      %s311 = sphi 0, %s310
      %s325 = sphi 0, %s311
      %s329 = sphi 0, %s329
      %s331 = sphi 0, %s329
      %s332 = sphi 0, %s331
      %s346 = sphi 0, %s332
      %s350 = sphi 0, %s350
      %s352 = sphi 0, %s350
      %s353 = sphi 0, %s352
      %s367 = sphi 0, %s353
      %s371 = sphi 0, %s371
      %s373 = sphi 0, %s371
      %s374 = sphi 0, %s373
      %s388 = sphi 0, %s374
      %s392 = sphi 0, %s392
      %s394 = sphi 0, %s392
      %s395 = sphi 0, %s394
      %s409 = sphi 0, %s395
      %s413 = sphi 0, %s413
      %s415 = sphi 0, %s413
      %s416 = sphi 0, %s415
      %s430 = sphi 0, %s416
      %s436 = sphi 0, %s438
      %s439 = sphi 0, %s436
      %s440 = sphi 0, %s439
      %s456 = sphi 0, %s440
      %s462 = sphi 0, %s464
      %s465 = sphi 0, %s462
      %s466 = sphi 0, %s465
      %s482 = sphi 0, %s466
      %s488 = sphi 0, %s490
      %s491 = sphi 0, %s488
      %s492 = sphi 0, %s491
      %s508 = sphi 0, %s492
      %s514 = sphi 0, %s516
      %s517 = sphi 0, %s514
      %s518 = sphi 0, %s517
      %s534 = sphi 0, %s518
      %s540 = sphi 0, %s542
      %s543 = sphi 0, %s540
      %s544 = sphi 0, %s543
      %s560 = sphi 0, %s544
      %s566 = sphi 0, %s568
      %s569 = sphi 0, %s566
      %s570 = sphi 0, %s569
      %s586 = sphi 0, %s570
      %s592 = sphi 0, %s594
      %s595 = sphi 0, %s592
      %s596 = sphi 0, %s595
      %s612 = sphi 0, %s596
      %s618 = sphi 0, %s620
      %s621 = sphi 0, %s618
      %s622 = sphi 0, %s621
      %s638 = sphi 0, %s622
    $region4: #{tpu_custom_call.1} parent=1 // loop_header_branch
      %52 = sbr.rel (%p50) target = $region8
    $region5: #{tpu_custom_call.1} parent=1 // loop_body
      %s54 = ssub.s32 %s49, 1
      %s55 = ssub.s32 %s49, 2
      %s56 = sadd.s32 %s49, 1
      %s57 = ssub.s32 %s49, %s56
      %p58 = scmp.eq.s32.totalorder %s57, 0
      %s60 = sadd.s32 %s59, 1
      %s61 = scalar_select %p58, %s59, %s60
      %p64 = pneg %p58
      %p65 = scmp.eq.s32.totalorder %s49, 1
      %p66 = por %p64, %p65
      %p67 = scmp.ne.s32.totalorder %s59, %s62
      %p68 = scmp.eq.s32.totalorder %s49, 0
      %p69 = por %p67, %p68
      %p70 = scmp.ne.s32.totalorder %s59, %s62
      %p71 = scmp.eq.s32.totalorder %s54, 1
      %p72 = por %p70, %p71
      %p73 = scmp.ne.s32.totalorder %s62, %s63
      %p74 = scmp.eq.s32.totalorder %s54, 0
      %p75 = por %p73, %p74
      %p76 = scmp.ne.s32.totalorder %s62, %s63
      %p77 = scmp.eq.s32.totalorder %s55, 1
      %p78 = por %p76, %p77
      %p80 = scmp.ne.s32.totalorder %s63, %s79
      %p81 = scmp.eq.s32.totalorder %s55, 0
      %p82 = por %p80, %p81
      %s83 = ssub.s32 %s49, %s56
      %p84 = scmp.eq.s32.totalorder %s83, 0
      %s86 = sadd.s32 %s85, 1
      %s87 = scalar_select %p84, %s85, %s86
      %p90 = pneg %p84
      %p91 = scmp.eq.s32.totalorder %s49, 1
      %p92 = por %p90, %p91
      %p93 = scmp.ne.s32.totalorder %s85, %s88
      %p94 = scmp.eq.s32.totalorder %s49, 0
      %p95 = por %p93, %p94
      %p96 = scmp.ne.s32.totalorder %s85, %s88
      %p97 = scmp.eq.s32.totalorder %s54, 1
      %p98 = por %p96, %p97
      %p99 = scmp.ne.s32.totalorder %s88, %s89
      %p100 = scmp.eq.s32.totalorder %s54, 0
      %p101 = por %p99, %p100
      %p102 = scmp.ne.s32.totalorder %s88, %s89
      %p103 = scmp.eq.s32.totalorder %s55, 1
      %p104 = por %p102, %p103
      %p106 = scmp.ne.s32.totalorder %s89, %s105
      %p107 = scmp.eq.s32.totalorder %s55, 0
      %p108 = por %p106, %p107
      %s109 = ssub.s32 %s49, %s56
      %p110 = scmp.eq.s32.totalorder %s109, 0
      %s112 = sadd.s32 %s111, 1
      %s113 = scalar_select %p110, %s111, %s112
      %p116 = pneg %p110
      %p117 = scmp.eq.s32.totalorder %s49, 1
      %p118 = por %p116, %p117
      %p119 = scmp.ne.s32.totalorder %s111, %s114
      %p120 = scmp.eq.s32.totalorder %s49, 0
      %p121 = por %p119, %p120
      %p122 = scmp.ne.s32.totalorder %s111, %s114
      %p123 = scmp.eq.s32.totalorder %s54, 1
      %p124 = por %p122, %p123
      %p125 = scmp.ne.s32.totalorder %s114, %s115
      %p126 = scmp.eq.s32.totalorder %s54, 0
      %p127 = por %p125, %p126
      %p128 = scmp.ne.s32.totalorder %s114, %s115
      %p129 = scmp.eq.s32.totalorder %s55, 1
      %p130 = por %p128, %p129
      %p132 = scmp.ne.s32.totalorder %s115, %s131
      %p133 = scmp.eq.s32.totalorder %s55, 0
      %p134 = por %p132, %p133
      %s135 = ssub.s32 %s49, %s56
      %p136 = scmp.eq.s32.totalorder %s135, 0
      %s138 = sadd.s32 %s137, 1
      %s139 = scalar_select %p136, %s137, %s138
      %p142 = pneg %p136
      %p143 = scmp.eq.s32.totalorder %s49, 1
      %p144 = por %p142, %p143
      %p145 = scmp.ne.s32.totalorder %s137, %s140
      %p146 = scmp.eq.s32.totalorder %s49, 0
      %p147 = por %p145, %p146
      %p148 = scmp.ne.s32.totalorder %s137, %s140
      %p149 = scmp.eq.s32.totalorder %s54, 1
      %p150 = por %p148, %p149
      %p151 = scmp.ne.s32.totalorder %s140, %s141
      %p152 = scmp.eq.s32.totalorder %s54, 0
      %p153 = por %p151, %p152
      %p154 = scmp.ne.s32.totalorder %s140, %s141
      %p155 = scmp.eq.s32.totalorder %s55, 1
      %p156 = por %p154, %p155
      %p158 = scmp.ne.s32.totalorder %s141, %s157
      %p159 = scmp.eq.s32.totalorder %s55, 0
      %p160 = por %p158, %p159
      %s162 = sadd.s32 %s161, 1
      %p165 = scmp.eq.s32.totalorder %s49, 1
      %p166 = scmp.ne.s32.totalorder %s161, %s163
      %p167 = scmp.eq.s32.totalorder %s49, 0
      %p168 = por %p166, %p167
      %p169 = scmp.ne.s32.totalorder %s161, %s163
      %p170 = scmp.eq.s32.totalorder %s54, 1
      %p171 = por %p169, %p170
      %p172 = scmp.ne.s32.totalorder %s163, %s164
      %p173 = scmp.eq.s32.totalorder %s54, 0
      %p174 = por %p172, %p173
      %p175 = scmp.ne.s32.totalorder %s163, %s164
      %p176 = scmp.eq.s32.totalorder %s55, 1
      %p177 = por %p175, %p176
      %p179 = scmp.ne.s32.totalorder %s164, %s178
      %p180 = scmp.eq.s32.totalorder %s55, 0
      %p181 = por %p179, %p180
      %s183 = sadd.s32 %s182, 1
      %p186 = scmp.eq.s32.totalorder %s49, 1
      %p187 = scmp.ne.s32.totalorder %s182, %s184
      %p188 = scmp.eq.s32.totalorder %s49, 0
      %p189 = por %p187, %p188
      %p190 = scmp.ne.s32.totalorder %s182, %s184
      %p191 = scmp.eq.s32.totalorder %s54, 1
      %p192 = por %p190, %p191
      %p193 = scmp.ne.s32.totalorder %s184, %s185
      %p194 = scmp.eq.s32.totalorder %s54, 0
      %p195 = por %p193, %p194
      %p196 = scmp.ne.s32.totalorder %s184, %s185
      %p197 = scmp.eq.s32.totalorder %s55, 1
      %p198 = por %p196, %p197
      %p200 = scmp.ne.s32.totalorder %s185, %s199
      %p201 = scmp.eq.s32.totalorder %s55, 0
      %p202 = por %p200, %p201
      %s204 = sadd.s32 %s203, 1
      %p207 = scmp.eq.s32.totalorder %s49, 1
      %p208 = scmp.ne.s32.totalorder %s203, %s205
      %p209 = scmp.eq.s32.totalorder %s49, 0
      %p210 = por %p208, %p209
      %p211 = scmp.ne.s32.totalorder %s203, %s205
      %p212 = scmp.eq.s32.totalorder %s54, 1
      %p213 = por %p211, %p212
      %p214 = scmp.ne.s32.totalorder %s205, %s206
      %p215 = scmp.eq.s32.totalorder %s54, 0
      %p216 = por %p214, %p215
      %p217 = scmp.ne.s32.totalorder %s205, %s206
      %p218 = scmp.eq.s32.totalorder %s55, 1
      %p219 = por %p217, %p218
      %p221 = scmp.ne.s32.totalorder %s206, %s220
      %p222 = scmp.eq.s32.totalorder %s55, 0
      %p223 = por %p221, %p222
      %s225 = sadd.s32 %s224, 1
      %p228 = scmp.eq.s32.totalorder %s49, 1
      %p229 = scmp.ne.s32.totalorder %s224, %s226
      %p230 = scmp.eq.s32.totalorder %s49, 0
      %p231 = por %p229, %p230
      %p232 = scmp.ne.s32.totalorder %s224, %s226
      %p233 = scmp.eq.s32.totalorder %s54, 1
      %p234 = por %p232, %p233
      %p235 = scmp.ne.s32.totalorder %s226, %s227
      %p236 = scmp.eq.s32.totalorder %s54, 0
      %p237 = por %p235, %p236
      %p238 = scmp.ne.s32.totalorder %s226, %s227
      %p239 = scmp.eq.s32.totalorder %s55, 1
      %p240 = por %p238, %p239
      %p242 = scmp.ne.s32.totalorder %s227, %s241
      %p243 = scmp.eq.s32.totalorder %s55, 0
      %p244 = por %p242, %p243
      %s246 = sadd.s32 %s245, 1
      %p249 = scmp.eq.s32.totalorder %s49, 1
      %p250 = scmp.ne.s32.totalorder %s245, %s247
      %p251 = scmp.eq.s32.totalorder %s49, 0
      %p252 = por %p250, %p251
      %p253 = scmp.ne.s32.totalorder %s245, %s247
      %p254 = scmp.eq.s32.totalorder %s54, 1
      %p255 = por %p253, %p254
      %p256 = scmp.ne.s32.totalorder %s247, %s248
      %p257 = scmp.eq.s32.totalorder %s54, 0
      %p258 = por %p256, %p257
      %p259 = scmp.ne.s32.totalorder %s247, %s248
      %p260 = scmp.eq.s32.totalorder %s55, 1
      %p261 = por %p259, %p260
      %p263 = scmp.ne.s32.totalorder %s248, %s262
      %p264 = scmp.eq.s32.totalorder %s55, 0
      %p265 = por %p263, %p264
      %s267 = sadd.s32 %s266, 1
      %p270 = scmp.eq.s32.totalorder %s49, 1
      %p271 = scmp.ne.s32.totalorder %s266, %s268
      %p272 = scmp.eq.s32.totalorder %s49, 0
      %p273 = por %p271, %p272
      %p274 = scmp.ne.s32.totalorder %s266, %s268
      %p275 = scmp.eq.s32.totalorder %s54, 1
      %p276 = por %p274, %p275
      %p277 = scmp.ne.s32.totalorder %s268, %s269
      %p278 = scmp.eq.s32.totalorder %s54, 0
      %p279 = por %p277, %p278
      %p280 = scmp.ne.s32.totalorder %s268, %s269
      %p281 = scmp.eq.s32.totalorder %s55, 1
      %p282 = por %p280, %p281
      %p284 = scmp.ne.s32.totalorder %s269, %s283
      %p285 = scmp.eq.s32.totalorder %s55, 0
      %p286 = por %p284, %p285
      %s288 = sadd.s32 %s287, 1
      %p291 = scmp.eq.s32.totalorder %s49, 1
      %p292 = scmp.ne.s32.totalorder %s287, %s289
      %p293 = scmp.eq.s32.totalorder %s49, 0
      %p294 = por %p292, %p293
      %p295 = scmp.ne.s32.totalorder %s287, %s289
      %p296 = scmp.eq.s32.totalorder %s54, 1
      %p297 = por %p295, %p296
      %p298 = scmp.ne.s32.totalorder %s289, %s290
      %p299 = scmp.eq.s32.totalorder %s54, 0
      %p300 = por %p298, %p299
      %p301 = scmp.ne.s32.totalorder %s289, %s290
      %p302 = scmp.eq.s32.totalorder %s55, 1
      %p303 = por %p301, %p302
      %p305 = scmp.ne.s32.totalorder %s290, %s304
      %p306 = scmp.eq.s32.totalorder %s55, 0
      %p307 = por %p305, %p306
      %s309 = sadd.s32 %s308, 1
      %p312 = scmp.eq.s32.totalorder %s49, 1
      %p313 = scmp.ne.s32.totalorder %s308, %s310
      %p314 = scmp.eq.s32.totalorder %s49, 0
      %p315 = por %p313, %p314
      %p316 = scmp.ne.s32.totalorder %s308, %s310
      %p317 = scmp.eq.s32.totalorder %s54, 1
      %p318 = por %p316, %p317
      %p319 = scmp.ne.s32.totalorder %s310, %s311
      %p320 = scmp.eq.s32.totalorder %s54, 0
      %p321 = por %p319, %p320
      %p322 = scmp.ne.s32.totalorder %s310, %s311
      %p323 = scmp.eq.s32.totalorder %s55, 1
      %p324 = por %p322, %p323
      %p326 = scmp.ne.s32.totalorder %s311, %s325
      %p327 = scmp.eq.s32.totalorder %s55, 0
      %p328 = por %p326, %p327
      %s330 = sadd.s32 %s329, 1
      %p333 = scmp.eq.s32.totalorder %s49, 1
      %p334 = scmp.ne.s32.totalorder %s329, %s331
      %p335 = scmp.eq.s32.totalorder %s49, 0
      %p336 = por %p334, %p335
      %p337 = scmp.ne.s32.totalorder %s329, %s331
      %p338 = scmp.eq.s32.totalorder %s54, 1
      %p339 = por %p337, %p338
      %p340 = scmp.ne.s32.totalorder %s331, %s332
      %p341 = scmp.eq.s32.totalorder %s54, 0
      %p342 = por %p340, %p341
      %p343 = scmp.ne.s32.totalorder %s331, %s332
      %p344 = scmp.eq.s32.totalorder %s55, 1
      %p345 = por %p343, %p344
      %p347 = scmp.ne.s32.totalorder %s332, %s346
      %p348 = scmp.eq.s32.totalorder %s55, 0
      %p349 = por %p347, %p348
      %s351 = sadd.s32 %s350, 1
      %p354 = scmp.eq.s32.totalorder %s49, 1
      %p355 = scmp.ne.s32.totalorder %s350, %s352
      %p356 = scmp.eq.s32.totalorder %s49, 0
      %p357 = por %p355, %p356
      %p358 = scmp.ne.s32.totalorder %s350, %s352
      %p359 = scmp.eq.s32.totalorder %s54, 1
      %p360 = por %p358, %p359
      %p361 = scmp.ne.s32.totalorder %s352, %s353
      %p362 = scmp.eq.s32.totalorder %s54, 0
      %p363 = por %p361, %p362
      %p364 = scmp.ne.s32.totalorder %s352, %s353
      %p365 = scmp.eq.s32.totalorder %s55, 1
      %p366 = por %p364, %p365
      %p368 = scmp.ne.s32.totalorder %s353, %s367
      %p369 = scmp.eq.s32.totalorder %s55, 0
      %p370 = por %p368, %p369
      %s372 = sadd.s32 %s371, 1
      %p375 = scmp.eq.s32.totalorder %s49, 1
      %p376 = scmp.ne.s32.totalorder %s371, %s373
      %p377 = scmp.eq.s32.totalorder %s49, 0
      %p378 = por %p376, %p377
      %p379 = scmp.ne.s32.totalorder %s371, %s373
      %p380 = scmp.eq.s32.totalorder %s54, 1
      %p381 = por %p379, %p380
      %p382 = scmp.ne.s32.totalorder %s373, %s374
      %p383 = scmp.eq.s32.totalorder %s54, 0
      %p384 = por %p382, %p383
      %p385 = scmp.ne.s32.totalorder %s373, %s374
      %p386 = scmp.eq.s32.totalorder %s55, 1
      %p387 = por %p385, %p386
      %p389 = scmp.ne.s32.totalorder %s374, %s388
      %p390 = scmp.eq.s32.totalorder %s55, 0
      %p391 = por %p389, %p390
      %s393 = sadd.s32 %s392, 1
      %p396 = scmp.eq.s32.totalorder %s49, 1
      %p397 = scmp.ne.s32.totalorder %s392, %s394
      %p398 = scmp.eq.s32.totalorder %s49, 0
      %p399 = por %p397, %p398
      %p400 = scmp.ne.s32.totalorder %s392, %s394
      %p401 = scmp.eq.s32.totalorder %s54, 1
      %p402 = por %p400, %p401
      %p403 = scmp.ne.s32.totalorder %s394, %s395
      %p404 = scmp.eq.s32.totalorder %s54, 0
      %p405 = por %p403, %p404
      %p406 = scmp.ne.s32.totalorder %s394, %s395
      %p407 = scmp.eq.s32.totalorder %s55, 1
      %p408 = por %p406, %p407
      %p410 = scmp.ne.s32.totalorder %s395, %s409
      %p411 = scmp.eq.s32.totalorder %s55, 0
      %p412 = por %p410, %p411
      %s414 = sadd.s32 %s413, 1
      %p417 = scmp.eq.s32.totalorder %s49, 1
      %p418 = scmp.ne.s32.totalorder %s413, %s415
      %p419 = scmp.eq.s32.totalorder %s49, 0
      %p420 = por %p418, %p419
      %p421 = scmp.ne.s32.totalorder %s413, %s415
      %p422 = scmp.eq.s32.totalorder %s54, 1
      %p423 = por %p421, %p422
      %p424 = scmp.ne.s32.totalorder %s415, %s416
      %p425 = scmp.eq.s32.totalorder %s54, 0
      %p426 = por %p424, %p425
      %p427 = scmp.ne.s32.totalorder %s415, %s416
      %p428 = scmp.eq.s32.totalorder %s55, 1
      %p429 = por %p427, %p428
      %p431 = scmp.ne.s32.totalorder %s416, %s430
      %p432 = scmp.eq.s32.totalorder %s55, 0
      %p433 = por %p431, %p432
      %s434 = ssub.s32 %s49, %s56
      %p435 = scmp.eq.s32.totalorder %s434, 0
      %s437 = sadd.s32 %s436, 1
      %s438 = scalar_select %p435, %s436, %s437
      %p441 = pneg %p435
      %p442 = scmp.eq.s32.totalorder %s49, 1
      %p443 = por %p441, %p442
      %p444 = scmp.ne.s32.totalorder %s436, %s439
      %p445 = scmp.eq.s32.totalorder %s49, 0
      %p446 = por %p444, %p445
      %p447 = scmp.ne.s32.totalorder %s436, %s439
      %p448 = scmp.eq.s32.totalorder %s54, 1
      %p449 = por %p447, %p448
      %p450 = scmp.ne.s32.totalorder %s439, %s440
      %p451 = scmp.eq.s32.totalorder %s54, 0
      %p452 = por %p450, %p451
      %p453 = scmp.ne.s32.totalorder %s439, %s440
      %p454 = scmp.eq.s32.totalorder %s55, 1
      %p455 = por %p453, %p454
      %p457 = scmp.ne.s32.totalorder %s440, %s456
      %p458 = scmp.eq.s32.totalorder %s55, 0
      %p459 = por %p457, %p458
      %s460 = ssub.s32 %s49, %s56
      %p461 = scmp.eq.s32.totalorder %s460, 0
      %s463 = sadd.s32 %s462, 1
      %s464 = scalar_select %p461, %s462, %s463
      %p467 = pneg %p461
      %p468 = scmp.eq.s32.totalorder %s49, 1
      %p469 = por %p467, %p468
      %p470 = scmp.ne.s32.totalorder %s462, %s465
      %p471 = scmp.eq.s32.totalorder %s49, 0
      %p472 = por %p470, %p471
      %p473 = scmp.ne.s32.totalorder %s462, %s465
      %p474 = scmp.eq.s32.totalorder %s54, 1
      %p475 = por %p473, %p474
      %p476 = scmp.ne.s32.totalorder %s465, %s466
      %p477 = scmp.eq.s32.totalorder %s54, 0
      %p478 = por %p476, %p477
      %p479 = scmp.ne.s32.totalorder %s465, %s466
      %p480 = scmp.eq.s32.totalorder %s55, 1
      %p481 = por %p479, %p480
      %p483 = scmp.ne.s32.totalorder %s466, %s482
      %p484 = scmp.eq.s32.totalorder %s55, 0
      %p485 = por %p483, %p484
      %s486 = ssub.s32 %s49, %s56
      %p487 = scmp.eq.s32.totalorder %s486, 0
      %s489 = sadd.s32 %s488, 1
      %s490 = scalar_select %p487, %s488, %s489
      %p493 = pneg %p487
      %p494 = scmp.eq.s32.totalorder %s49, 1
      %p495 = por %p493, %p494
      %p496 = scmp.ne.s32.totalorder %s488, %s491
      %p497 = scmp.eq.s32.totalorder %s49, 0
      %p498 = por %p496, %p497
      %p499 = scmp.ne.s32.totalorder %s488, %s491
      %p500 = scmp.eq.s32.totalorder %s54, 1
      %p501 = por %p499, %p500
      %p502 = scmp.ne.s32.totalorder %s491, %s492
      %p503 = scmp.eq.s32.totalorder %s54, 0
      %p504 = por %p502, %p503
      %p505 = scmp.ne.s32.totalorder %s491, %s492
      %p506 = scmp.eq.s32.totalorder %s55, 1
      %p507 = por %p505, %p506
      %p509 = scmp.ne.s32.totalorder %s492, %s508
      %p510 = scmp.eq.s32.totalorder %s55, 0
      %p511 = por %p509, %p510
      %s512 = ssub.s32 %s49, %s56
      %p513 = scmp.eq.s32.totalorder %s512, 0
      %s515 = sadd.s32 %s514, 1
      %s516 = scalar_select %p513, %s514, %s515
      %p519 = pneg %p513
      %p520 = scmp.eq.s32.totalorder %s49, 1
      %p521 = por %p519, %p520
      %p522 = scmp.ne.s32.totalorder %s514, %s517
      %p523 = scmp.eq.s32.totalorder %s49, 0
      %p524 = por %p522, %p523
      %p525 = scmp.ne.s32.totalorder %s514, %s517
      %p526 = scmp.eq.s32.totalorder %s54, 1
      %p527 = por %p525, %p526
      %p528 = scmp.ne.s32.totalorder %s517, %s518
      %p529 = scmp.eq.s32.totalorder %s54, 0
      %p530 = por %p528, %p529
      %p531 = scmp.ne.s32.totalorder %s517, %s518
      %p532 = scmp.eq.s32.totalorder %s55, 1
      %p533 = por %p531, %p532
      %p535 = scmp.ne.s32.totalorder %s518, %s534
      %p536 = scmp.eq.s32.totalorder %s55, 0
      %p537 = por %p535, %p536
      %s538 = ssub.s32 %s49, %s56
      %p539 = scmp.eq.s32.totalorder %s538, 0
      %s541 = sadd.s32 %s540, 1
      %s542 = scalar_select %p539, %s540, %s541
      %p545 = pneg %p539
      %p546 = scmp.eq.s32.totalorder %s49, 1
      %p547 = por %p545, %p546
      %p548 = scmp.ne.s32.totalorder %s540, %s543
      %p549 = scmp.eq.s32.totalorder %s49, 0
      %p550 = por %p548, %p549
      %p551 = scmp.ne.s32.totalorder %s540, %s543
      %p552 = scmp.eq.s32.totalorder %s54, 1
      %p553 = por %p551, %p552
      %p554 = scmp.ne.s32.totalorder %s543, %s544
      %p555 = scmp.eq.s32.totalorder %s54, 0
      %p556 = por %p554, %p555
      %p557 = scmp.ne.s32.totalorder %s543, %s544
      %p558 = scmp.eq.s32.totalorder %s55, 1
      %p559 = por %p557, %p558
      %p561 = scmp.ne.s32.totalorder %s544, %s560
      %p562 = scmp.eq.s32.totalorder %s55, 0
      %p563 = por %p561, %p562
      %s564 = ssub.s32 %s49, %s56
      %p565 = scmp.eq.s32.totalorder %s564, 0
      %s567 = sadd.s32 %s566, 1
      %s568 = scalar_select %p565, %s566, %s567
      %p571 = pneg %p565
      %p572 = scmp.eq.s32.totalorder %s49, 1
      %p573 = por %p571, %p572
      %p574 = scmp.ne.s32.totalorder %s566, %s569
      %p575 = scmp.eq.s32.totalorder %s49, 0
      %p576 = por %p574, %p575
      %p577 = scmp.ne.s32.totalorder %s566, %s569
      %p578 = scmp.eq.s32.totalorder %s54, 1
      %p579 = por %p577, %p578
      %p580 = scmp.ne.s32.totalorder %s569, %s570
      %p581 = scmp.eq.s32.totalorder %s54, 0
      %p582 = por %p580, %p581
      %p583 = scmp.ne.s32.totalorder %s569, %s570
      %p584 = scmp.eq.s32.totalorder %s55, 1
      %p585 = por %p583, %p584
      %p587 = scmp.ne.s32.totalorder %s570, %s586
      %p588 = scmp.eq.s32.totalorder %s55, 0
      %p589 = por %p587, %p588
      %s590 = ssub.s32 %s49, %s56
      %p591 = scmp.eq.s32.totalorder %s590, 0
      %s593 = sadd.s32 %s592, 1
      %s594 = scalar_select %p591, %s592, %s593
      %p597 = pneg %p591
      %p598 = scmp.eq.s32.totalorder %s49, 1
      %p599 = por %p597, %p598
      %p600 = scmp.ne.s32.totalorder %s592, %s595
      %p601 = scmp.eq.s32.totalorder %s49, 0
      %p602 = por %p600, %p601
      %p603 = scmp.ne.s32.totalorder %s592, %s595
      %p604 = scmp.eq.s32.totalorder %s54, 1
      %p605 = por %p603, %p604
      %p606 = scmp.ne.s32.totalorder %s595, %s596
      %p607 = scmp.eq.s32.totalorder %s54, 0
      %p608 = por %p606, %p607
      %p609 = scmp.ne.s32.totalorder %s595, %s596
      %p610 = scmp.eq.s32.totalorder %s55, 1
      %p611 = por %p609, %p610
      %p613 = scmp.ne.s32.totalorder %s596, %s612
      %p614 = scmp.eq.s32.totalorder %s55, 0
      %p615 = por %p613, %p614
      %s616 = ssub.s32 %s49, %s56
      %p617 = scmp.eq.s32.totalorder %s616, 0
      %s619 = sadd.s32 %s618, 1
      %s620 = scalar_select %p617, %s618, %s619
      %p623 = pneg %p617
      %p624 = scmp.eq.s32.totalorder %s49, 1
      %p625 = por %p623, %p624
      %p626 = scmp.ne.s32.totalorder %s618, %s621
      %p627 = scmp.eq.s32.totalorder %s49, 0
      %p628 = por %p626, %p627
      %p629 = scmp.ne.s32.totalorder %s618, %s621
      %p630 = scmp.eq.s32.totalorder %s54, 1
      %p631 = por %p629, %p630
      %p632 = scmp.ne.s32.totalorder %s621, %s622
      %p633 = scmp.eq.s32.totalorder %s54, 0
      %p634 = por %p632, %p633
      %p635 = scmp.ne.s32.totalorder %s621, %s622
      %p636 = scmp.eq.s32.totalorder %s55, 1
      %p637 = por %p635, %p636
      %p639 = scmp.ne.s32.totalorder %s622, %s638
      %p640 = scmp.eq.s32.totalorder %s55, 0
      %p641 = por %p639, %p640
      %p642 = scmp.le.s32.totalorder 1, %s49
      %p643 = scmp.lt.s32.totalorder %s49, 3
      %p644 = pnand %p642, %p643
      %p645 = pneg %p644
      // Predicated region
      $region9: #{tpu_custom_call.1} parent=5 // pred_check
        _
      $region10: #{tpu_custom_call.1} parent=5 // pred_check_branch
        %647 = sbr.rel (%p644) target = $region12
      $region11: #{tpu_custom_call.1} parent=5 // pred_region
        %s648 = ssub.s32 %s49, 1
        // Predicated region
        $region13: #{tpu_custom_call.1} parent=11 // pred_check
          %p649 = pneg %p174
        $region14: #{tpu_custom_call.1} parent=11 // pred_check_branch
          %651 = sbr.rel (%p649) target = $region16
        $region15: #{tpu_custom_call.1} parent=11 // pred_region
          %s653 = ssub.s32 128, 128
          %654 = vsyncadd [#allocation8], %s653
          %s655 = sshll.u32 [#allocation7], 4
          %s656 = int_to_ptr.vmem [resolvable:$true] %s655
          %661 = dma.hbm_to_vmem [thread:$0]  %s4, 128, %s656, [#allocation8], 64, 64, 4
        $region16: #{tpu_custom_call.1} parent=11 // pred_fallthru
          _
        // Predicated region
        $region17: #{tpu_custom_call.1} parent=11 // pred_check
          %p662 = pneg %p195
        $region18: #{tpu_custom_call.1} parent=11 // pred_check_branch
          %664 = sbr.rel (%p662) target = $region20
        $region19: #{tpu_custom_call.1} parent=11 // pred_region
          _
        $region20: #{tpu_custom_call.1} parent=11 // pred_fallthru
          _
        // Predicated region
        $region21: #{tpu_custom_call.1} parent=11 // pred_check
          %p665 = pneg %p216
        $region22: #{tpu_custom_call.1} parent=11 // pred_check_branch
          %667 = sbr.rel (%p665) target = $region24
        $region23: #{tpu_custom_call.1} parent=11 // pred_region
          %s669 = ssub.s32 16384, 16384
          %670 = vsyncadd [#allocation8], %s669
          %s671 = sshll.u32 [#allocation9], 4
          %s672 = int_to_ptr.vmem [resolvable:$true] %s671
          %677 = dma.hbm_to_vmem [thread:$0]  %s6, 16384, %s672, [#allocation8], 512, 512, 32
        $region24: #{tpu_custom_call.1} parent=11 // pred_fallthru
          _
        // Predicated region
        $region25: #{tpu_custom_call.1} parent=11 // pred_check
          %p678 = pneg %p237
        $region26: #{tpu_custom_call.1} parent=11 // pred_check_branch
          %680 = sbr.rel (%p678) target = $region28
        $region27: #{tpu_custom_call.1} parent=11 // pred_region
          %s682 = ssub.s32 32, 32
          %683 = vsyncadd [#allocation11], %s682
          %s685 = sshll.u32 [#allocation10], 4
          %s686 = int_to_ptr.vmem [resolvable:$true] %s685
          %688 = dma.hbm_to_vmem [thread:$0]  %s7, 32, %s686, [#allocation11]
        $region28: #{tpu_custom_call.1} parent=11 // pred_fallthru
          _
        // Predicated region
        $region29: #{tpu_custom_call.1} parent=11 // pred_check
          %p689 = pneg %p258
        $region30: #{tpu_custom_call.1} parent=11 // pred_check_branch
          %691 = sbr.rel (%p689) target = $region32
        $region31: #{tpu_custom_call.1} parent=11 // pred_region
          %s693 = ssub.s32 32, 32
          %694 = vsyncadd [#allocation11], %s693
          %s696 = sshll.u32 [#allocation12], 4
          %s697 = int_to_ptr.vmem [resolvable:$true] %s696
          %699 = dma.hbm_to_vmem [thread:$0]  %s8, 32, %s697, [#allocation11]
        $region32: #{tpu_custom_call.1} parent=11 // pred_fallthru
          _
        // Predicated region
        $region33: #{tpu_custom_call.1} parent=11 // pred_check
          %p700 = pneg %p279
        $region34: #{tpu_custom_call.1} parent=11 // pred_check_branch
          %702 = sbr.rel (%p700) target = $region36
        $region35: #{tpu_custom_call.1} parent=11 // pred_region
          %s704 = ssub.s32 64, 64
          %705 = vsyncadd [#allocation14], %s704
          %s707 = sshll.u32 [#allocation13], 4
          %s708 = int_to_ptr.vmem [resolvable:$true] %s707
          %710 = dma.hbm_to_vmem [thread:$0]  %s9, 64, %s708, [#allocation14]
        $region36: #{tpu_custom_call.1} parent=11 // pred_fallthru
          _
        // Predicated region
        $region37: #{tpu_custom_call.1} parent=11 // pred_check
          %p711 = pneg %p300
        $region38: #{tpu_custom_call.1} parent=11 // pred_check_branch
          %713 = sbr.rel (%p711) target = $region40
        $region39: #{tpu_custom_call.1} parent=11 // pred_region
          _
        $region40: #{tpu_custom_call.1} parent=11 // pred_fallthru
          _
        // Predicated region
        $region41: #{tpu_custom_call.1} parent=11 // pred_check
          %p714 = pneg %p321
        $region42: #{tpu_custom_call.1} parent=11 // pred_check_branch
          %716 = sbr.rel (%p714) target = $region44
        $region43: #{tpu_custom_call.1} parent=11 // pred_region
          %s718 = ssub.s32 4608, 4608
          %719 = vsyncadd [#allocation14], %s718
          %s720 = sshll.u32 [#allocation15], 4
          %s721 = int_to_ptr.vmem [resolvable:$true] %s720
          %726 = dma.hbm_to_vmem [thread:$0]  %s11, 4608, %s721, [#allocation14], 192, 192, 12
        $region44: #{tpu_custom_call.1} parent=11 // pred_fallthru
          _
        // Predicated region
        $region45: #{tpu_custom_call.1} parent=11 // pred_check
          %p727 = pneg %p342
        $region46: #{tpu_custom_call.1} parent=11 // pred_check_branch
          %729 = sbr.rel (%p727) target = $region48
        $region47: #{tpu_custom_call.1} parent=11 // pred_region
          _
        $region48: #{tpu_custom_call.1} parent=11 // pred_fallthru
          _
        // Predicated region
        $region49: #{tpu_custom_call.1} parent=11 // pred_check
          %p730 = pneg %p363
        $region50: #{tpu_custom_call.1} parent=11 // pred_check_branch
          %732 = sbr.rel (%p730) target = $region52
        $region51: #{tpu_custom_call.1} parent=11 // pred_region
          _
        $region52: #{tpu_custom_call.1} parent=11 // pred_fallthru
          _
        // Predicated region
        $region53: #{tpu_custom_call.1} parent=11 // pred_check
          %p733 = pneg %p384
        $region54: #{tpu_custom_call.1} parent=11 // pred_check_branch
          %735 = sbr.rel (%p733) target = $region56
        $region55: #{tpu_custom_call.1} parent=11 // pred_region
          _
        $region56: #{tpu_custom_call.1} parent=11 // pred_fallthru
          _
        // Predicated region
        $region57: #{tpu_custom_call.1} parent=11 // pred_check
          %p736 = pneg %p405
        $region58: #{tpu_custom_call.1} parent=11 // pred_check_branch
          %738 = sbr.rel (%p736) target = $region60
        $region59: #{tpu_custom_call.1} parent=11 // pred_region
          _
        $region60: #{tpu_custom_call.1} parent=11 // pred_fallthru
          _
        // Predicated region
        $region61: #{tpu_custom_call.1} parent=11 // pred_check
          %p739 = pneg %p426
        $region62: #{tpu_custom_call.1} parent=11 // pred_check_branch
          %741 = sbr.rel (%p739) target = $region64
        $region63: #{tpu_custom_call.1} parent=11 // pred_region
          _
        $region64: #{tpu_custom_call.1} parent=11 // pred_fallthru
          _
      $region12: #{tpu_custom_call.1} parent=5 // pred_fallthru
        _
      %p742 = scmp.lt.s32.totalorder %s49, 2
      // Predicated region
      $region65: #{tpu_custom_call.1} parent=5 // pred_check
        %p743 = pneg %p742
      $region66: #{tpu_custom_call.1} parent=5 // pred_check_branch
        %745 = sbr.rel (%p743) target = $region68
      $region67: #{tpu_custom_call.1} parent=5 // pred_region
        // Predicated region
        $region69: #{tpu_custom_call.1} parent=67 // pred_check
          %p746 = pneg %p69
        $region70: #{tpu_custom_call.1} parent=67 // pred_check_branch
          %748 = sbr.rel (%p746) target = $region72
        $region71: #{tpu_custom_call.1} parent=67 // pred_region
          %p749 = scmp.lt.s32.totalorder %s49, 1
          %s750 = scalar_select %p749, %s49, 1
          %s751 = smul.addr %s750, 32
          %s752 = smul.addr %s751, 8
          %s753 = scalar_lea.vmem %s0, %s752
        $region72: #{tpu_custom_call.1} parent=67 // pred_fallthru
          _
        // Predicated region
        $region73: #{tpu_custom_call.1} parent=67 // pred_check
          %p754 = pneg %p95
        $region74: #{tpu_custom_call.1} parent=67 // pred_check_branch
          %756 = sbr.rel (%p754) target = $region76
        $region75: #{tpu_custom_call.1} parent=67 // pred_region
          %s757 = sand.u32 %s85, 1
          %s758 = scalar_lea.sflag [#allocation5], %s757
          %s759 = sand.u32 %s85, 1
          %s760 = smul.addr %s759, 64
          %s761 = scalar_lea.vmem [#allocation4], %s760
          %s763 = ssub.s32 1024, 1024
          %764 = vsyncadd %s758, %s763
          %s765 = smul.addr %s49, 8
          %s766 = smul.addr %s765, 128
          %s767 = scalar_lea.hbm %s1, %s766
          %s768 = sshll.u32 %s761, 4
          %s769 = int_to_ptr.vmem [resolvable:$true] %s768
          %774 = dma.hbm_to_vmem [thread:$0]  %s767, 1024, %s769, %s758, 256, 256, 16
        $region76: #{tpu_custom_call.1} parent=67 // pred_fallthru
          _
        // Predicated region
        $region77: #{tpu_custom_call.1} parent=67 // pred_check
          %p775 = pneg %p121
        $region78: #{tpu_custom_call.1} parent=67 // pred_check_branch
          %777 = sbr.rel (%p775) target = $region80
        $region79: #{tpu_custom_call.1} parent=67 // pred_region
          %p778 = scmp.lt.s32.totalorder %s49, 1
          %s779 = scalar_select %p778, %s49, 1
          %s780 = smul.addr %s779, 4
          %s781 = smul.addr %s780, 8
          %s782 = scalar_lea.vmem %s2, %s781
        $region80: #{tpu_custom_call.1} parent=67 // pred_fallthru
          _
        // Predicated region
        $region81: #{tpu_custom_call.1} parent=67 // pred_check
          %p783 = pneg %p147
        $region82: #{tpu_custom_call.1} parent=67 // pred_check_branch
          %785 = sbr.rel (%p783) target = $region84
        $region83: #{tpu_custom_call.1} parent=67 // pred_region
          %p786 = scmp.lt.s32.totalorder %s49, 1
          %s787 = scalar_select %p786, %s49, 1
          %s788 = smul.addr %s787, 4
          %s789 = smul.addr %s788, 8
          %s790 = scalar_lea.vmem %s3, %s789
        $region84: #{tpu_custom_call.1} parent=67 // pred_fallthru
          _
      $region68: #{tpu_custom_call.1} parent=5 // pred_fallthru
        _
      %p791 = scmp.le.s32.totalorder 1, %s49
      %p792 = scmp.lt.s32.totalorder %s49, 3
      %p793 = pnand %p791, %p792
      %p794 = pneg %p793
      // Predicated region
      $region85: #{tpu_custom_call.1} parent=5 // pred_check
        _
      $region86: #{tpu_custom_call.1} parent=5 // pred_check_branch
        %796 = sbr.rel (%p793) target = $region88
      $region87: #{tpu_custom_call.1} parent=5 // pred_region
        %s797 = ssub.s32 %s49, 1
        %s798 = sand.u32 %s88, 1
        %s799 = scalar_lea.sflag [#allocation5], %s798
        %s800 = sand.u32 %s88, 1
        %s801 = smul.addr %s800, 64
        %s802 = scalar_lea.vmem [#allocation4], %s801
        // Predicated region
        $region89: #{tpu_custom_call.1} parent=87 // pred_check
          %p803 = pneg %p101
        $region90: #{tpu_custom_call.1} parent=87 // pred_check_branch
          %805 = sbr.rel (%p803) target = $region92
        $region91: #{tpu_custom_call.1} parent=87 // pred_region
          %806 = dma.done %s799, 1024
        $region92: #{tpu_custom_call.1} parent=87 // pred_fallthru
          _
        // Predicated region
        $region93: #{tpu_custom_call.1} parent=87 // pred_check
          %p807 = pneg %p174
        $region94: #{tpu_custom_call.1} parent=87 // pred_check_branch
          %809 = sbr.rel (%p807) target = $region96
        $region95: #{tpu_custom_call.1} parent=87 // pred_region
          %810 = dma.done [#allocation8], 128
        $region96: #{tpu_custom_call.1} parent=87 // pred_fallthru
          _
        // Predicated region
        $region97: #{tpu_custom_call.1} parent=87 // pred_check
          %p811 = pneg %p216
        $region98: #{tpu_custom_call.1} parent=87 // pred_check_branch
          %813 = sbr.rel (%p811) target = $region100
        $region99: #{tpu_custom_call.1} parent=87 // pred_region
          %814 = dma.done [#allocation8], 16384
        $region100: #{tpu_custom_call.1} parent=87 // pred_fallthru
          _
        // Predicated region
        $region101: #{tpu_custom_call.1} parent=87 // pred_check
          %p815 = pneg %p237
        $region102: #{tpu_custom_call.1} parent=87 // pred_check_branch
          %817 = sbr.rel (%p815) target = $region104
        $region103: #{tpu_custom_call.1} parent=87 // pred_region
          %818 = dma.done [#allocation11], 32
        $region104: #{tpu_custom_call.1} parent=87 // pred_fallthru
          _
        // Predicated region
        $region105: #{tpu_custom_call.1} parent=87 // pred_check
          %p819 = pneg %p258
        $region106: #{tpu_custom_call.1} parent=87 // pred_check_branch
          %821 = sbr.rel (%p819) target = $region108
        $region107: #{tpu_custom_call.1} parent=87 // pred_region
          %822 = dma.done [#allocation11], 32
        $region108: #{tpu_custom_call.1} parent=87 // pred_fallthru
          _
        // Predicated region
        $region109: #{tpu_custom_call.1} parent=87 // pred_check
          %p823 = pneg %p279
        $region110: #{tpu_custom_call.1} parent=87 // pred_check_branch
          %825 = sbr.rel (%p823) target = $region112
        $region111: #{tpu_custom_call.1} parent=87 // pred_region
          %826 = dma.done [#allocation14], 64
        $region112: #{tpu_custom_call.1} parent=87 // pred_fallthru
          _
        // Predicated region
        $region113: #{tpu_custom_call.1} parent=87 // pred_check
          %p827 = pneg %p321
        $region114: #{tpu_custom_call.1} parent=87 // pred_check_branch
          %829 = sbr.rel (%p827) target = $region116
        $region115: #{tpu_custom_call.1} parent=87 // pred_region
          %830 = dma.done [#allocation14], 4608
        $region116: #{tpu_custom_call.1} parent=87 // pred_fallthru
          _
        %p831 = scmp.lt.s32.totalorder %s54, 1
        %s832 = scalar_select %p831, %s54, 1
        %s833 = smul.addr %s832, 32
        %s834 = smul.addr %s833, 8
        %s835 = scalar_lea.vmem %s0, %s834
        %p836 = pneg %p75
        %p837 = pneg %p72
        %s838 = sand.u32 %s88, 1
        %s839 = scalar_lea.sflag [#allocation5], %s838
        %s840 = sand.u32 %s88, 1
        %s841 = smul.addr %s840, 64
        %s842 = scalar_lea.vmem [#allocation4], %s841
        %p843 = pneg %p101
        %p844 = pneg %p98
        %p845 = scmp.lt.s32.totalorder %s54, 1
        %s846 = scalar_select %p845, %s54, 1
        %s847 = smul.addr %s846, 4
        %s848 = smul.addr %s847, 8
        %s849 = scalar_lea.vmem %s2, %s848
        %p850 = pneg %p127
        %p851 = pneg %p124
        %p852 = scmp.lt.s32.totalorder %s54, 1
        %s853 = scalar_select %p852, %s54, 1
        %s854 = smul.addr %s853, 4
        %s855 = smul.addr %s854, 8
        %s856 = scalar_lea.vmem %s3, %s855
        %p857 = pneg %p153
        %p858 = pneg %p150
        %p859 = pneg %p174
        %p860 = pneg %p171
        %p861 = pneg %p195
        %p862 = pneg %p192
        %p863 = pneg %p216
        %p864 = pneg %p213
        %p865 = pneg %p237
        %p866 = pneg %p234
        %p867 = pneg %p258
        %p868 = pneg %p255
        %p869 = pneg %p279
        %p870 = pneg %p276
        %p871 = pneg %p300
        %p872 = pneg %p297
        %p873 = pneg %p321
        %p874 = pneg %p318
        %p875 = pneg %p342
        %p876 = pneg %p339
        %p877 = pneg %p363
        %p878 = pneg %p360
        %p879 = pneg %p384
        %p880 = pneg %p381
        %p881 = pneg %p405
        %p882 = pneg %p402
        %p883 = pneg %p426
        %p884 = pneg %p423
        %p885 = pneg %p452
        %p886 = pneg %p449
        %s887 = sand.u32 %s439, 1
        %s888 = scalar_lea.sflag [#allocation6], %s887
        %s889 = sand.u32 %s439, 1
        %s890 = smul.addr %s889, 256
        %s891 = scalar_lea.vmem [#allocation16], %s890
        %p892 = pneg %p478
        %p893 = pneg %p475
        %s894 = sand.u32 %s54, 1
        %s895 = scalar_lea.sflag [#allocation18], %s894
        %s896 = sand.u32 %s465, 1
        %s897 = smul.addr %s896, 64
        %s898 = scalar_lea.vmem [#allocation17], %s897
        %p899 = pneg %p504
        %p900 = pneg %p501
        %s901 = sand.u32 %s54, 1
        %s902 = scalar_lea.sflag [#allocation18], %s901
        %s903 = sand.u32 %s491, 1
        %s904 = smul.addr %s903, 32
        %s905 = scalar_lea.vmem [#allocation19], %s904
        %p906 = pneg %p530
        %p907 = pneg %p527
        %p908 = scmp.lt.s32.totalorder %s54, 1
        %s909 = scalar_select %p908, %s54, 1
        %s910 = smul.addr %s909, 4
        %s911 = smul.addr %s910, 8
        %s912 = scalar_lea.vmem %s20, %s911
        %p913 = pneg %p556
        %p914 = pneg %p553
        %s915 = sand.u32 %s54, 1
        %s916 = scalar_lea.sflag [#allocation21], %s915
        %s917 = sand.u32 %s543, 1
        %s918 = smul.addr %s917, 8
        %s919 = scalar_lea.vmem [#allocation20], %s918
        %p920 = pneg %p582
        %p921 = pneg %p579
        %s922 = sand.u32 %s54, 1
        %s923 = scalar_lea.sflag [#allocation21], %s922
        %s924 = sand.u32 %s569, 1
        %s925 = smul.addr %s924, 2
        %s926 = scalar_lea.vmem [#allocation22], %s925
        %p927 = pneg %p608
        %p928 = pneg %p605
        %s929 = sand.u32 %s54, 1
        %s930 = scalar_lea.sflag [#allocation24], %s929
        %s931 = sand.u32 %s595, 1
        %s932 = scalar_lea.vmem [#allocation23], %s931
        %p933 = pneg %p634
        %p934 = pneg %p631
        %s935 = sand.u32 %s54, 1
        %s936 = scalar_lea.sflag [#allocation24], %s935
        %s937 = sand.u32 %s621, 1
        %s938 = scalar_lea.vmem [#allocation25], %s937
        %p939 = scmp.lt.s32.totalorder %s54, 1
        %s940 = scalar_select %p939, %s54, 1
        %s941 = smul.addr %s940, 32
        %s942 = smul.addr %s941, 8
        %s943 = scalar_lea.vmem %s0, %s942
        %p944 = scmp.lt.s32.totalorder %s54, 1
        %s945 = scalar_select %p944, %s54, 1
        %s946 = smul.addr %s945, 4
        %s947 = smul.addr %s946, 8
        %s948 = scalar_lea.vmem %s2, %s947
        %p949 = scmp.lt.s32.totalorder %s54, 1
        %s950 = scalar_select %p949, %s54, 1
        %s951 = smul.addr %s950, 4
        %s952 = smul.addr %s951, 8
        %s953 = scalar_lea.vmem %s3, %s952
        %p954 = scmp.lt.s32.totalorder %s54, 1
        %s955 = scalar_select %p954, %s54, 1
        %s956 = smul.addr %s955, 4
        %s957 = smul.addr %s956, 8
        %s958 = scalar_lea.vmem %s20, %s957
        %960 = vst [vmem:[#allocation2] sm:$0xff] 0.0
        %961 = vst [vmem:[#allocation2 + $0x8] sm:$0xff] 0.0
        %962 = vst [vmem:[#allocation2 + $0x10] sm:$0xff] 0.0
        %963 = vst [vmem:[#allocation2 + $0x18] sm:$0xff] 0.0
        %964 = vst [vmem:[#allocation2 + $0x20] sm:$0xff] 0.0
        %965 = vst [vmem:[#allocation2 + $0x28] sm:$0xff] 0.0
        %966 = vst [vmem:[#allocation2 + $0x30] sm:$0xff] 0.0
        %967 = vst [vmem:[#allocation2 + $0x38] sm:$0xff] 0.0
        %968 = vst [vmem:[#allocation2 + $0x40] sm:$0xff] 0.0
        %969 = vst [vmem:[#allocation2 + $0x48] sm:$0xff] 0.0
        %970 = vst [vmem:[#allocation2 + $0x50] sm:$0xff] 0.0
        %971 = vst [vmem:[#allocation2 + $0x58] sm:$0xff] 0.0
        %972 = vst [vmem:[#allocation2 + $0x60] sm:$0xff] 0.0
        %973 = vst [vmem:[#allocation2 + $0x68] sm:$0xff] 0.0
        %974 = vst [vmem:[#allocation2 + $0x70] sm:$0xff] 0.0
        %975 = vst [vmem:[#allocation2 + $0x78] sm:$0xff] 0.0
        %976 = vst [vmem:[#allocation2 + $0x80] sm:$0xff] 0.0
        %977 = vst [vmem:[#allocation2 + $0x88] sm:$0xff] 0.0
        %978 = vst [vmem:[#allocation2 + $0x90] sm:$0xff] 0.0
        %979 = vst [vmem:[#allocation2 + $0x98] sm:$0xff] 0.0
        %980 = vst [vmem:[#allocation2 + $0xa0] sm:$0xff] 0.0
        %981 = vst [vmem:[#allocation2 + $0xa8] sm:$0xff] 0.0
        %982 = vst [vmem:[#allocation2 + $0xb0] sm:$0xff] 0.0
        %983 = vst [vmem:[#allocation2 + $0xb8] sm:$0xff] 0.0
        %984 = vst [vmem:[#allocation2 + $0xc0] sm:$0xff] 0.0
        %985 = vst [vmem:[#allocation2 + $0xc8] sm:$0xff] 0.0
        %986 = vst [vmem:[#allocation2 + $0xd0] sm:$0xff] 0.0
        %987 = vst [vmem:[#allocation2 + $0xd8] sm:$0xff] 0.0
        %988 = vst [vmem:[#allocation2 + $0xe0] sm:$0xff] 0.0
        %989 = vst [vmem:[#allocation2 + $0xe8] sm:$0xff] 0.0
        %990 = vst [vmem:[#allocation2 + $0xf0] sm:$0xff] 0.0
        %991 = vst [vmem:[#allocation2 + $0xf8] sm:$0xff] 0.0
        %992 = vst [vmem:[#allocation2 + $0x100] sm:$0xff] 0.0
        %993 = vst [vmem:[#allocation2 + $0x108] sm:$0xff] 0.0
        %994 = vst [vmem:[#allocation2 + $0x110] sm:$0xff] 0.0
        %995 = vst [vmem:[#allocation2 + $0x118] sm:$0xff] 0.0
        %996 = vst [vmem:[#allocation2 + $0x120] sm:$0xff] 0.0
        %997 = vst [vmem:[#allocation2 + $0x128] sm:$0xff] 0.0
        %998 = vst [vmem:[#allocation2 + $0x130] sm:$0xff] 0.0
        %999 = vst [vmem:[#allocation2 + $0x138] sm:$0xff] 0.0
        %v1000 = vld [vmem:[%s953] sm:$0xff]
        %v1001 = vld [vmem:[%s953 + $0x8] sm:$0xff]
        %v1002 = vld [vmem:[%s953 + $0x10] sm:$0xff]
        %v1003 = vld [vmem:[%s953 + $0x18] sm:$0xff]
        %v1004 = vld [vmem:[%s13] sm:$0xff]
        %v1005 = vld [vmem:[%s13 + $0x8] sm:$0xff]
        %v1006 = vld [vmem:[%s13 + $0x10] sm:$0xff]
        %v1007 = vld [vmem:[%s13 + $0x18] sm:$0xff]
        %1009 = vset.pattern.permute.xlu0 0
        %1010 = vperm.xlu0 %1009, %v1004
        %v1011 = vpop.permute.xlu0 %1010
        %1014 = vset.pattern.permute.xlu0 0
        %1015 = vperm.xlu0 %1014, %v1005
        %v1016 = vpop.permute.xlu0 %1015
        %1019 = vset.pattern.permute.xlu0 0
        %1020 = vperm.xlu0 %1019, %v1006
        %v1021 = vpop.permute.xlu0 %1020
        %1024 = vset.pattern.permute.xlu0 0
        %1025 = vperm.xlu0 %1024, %v1007
        %v1026 = vpop.permute.xlu0 %1025
        %v1028 = vmul.f32 %v1000, %v1011
        %v1029 = vmul.f32 %v1001, %v1016
        %v1030 = vmul.f32 %v1002, %v1021
        %v1031 = vmul.f32 %v1003, %v1026
        %vm1032 = vcmask 130048
        %v1033 = vsel %vm1032, %v1028, 0.0
        %v1034 = vsel %vm1032, %v1029, 0.0
        %v1035 = vadd.f32 %v1033, %v1034
        %v1036 = vsel %vm1032, %v1030, 0.0
        %v1037 = vadd.f32 %v1035, %v1036
        %v1038 = vsel %vm1032, %v1031, 0.0
        %v1039 = vadd.f32 %v1037, %v1038
        %v1040 = vrot.slane %v1039, 4
        %v1041 = vadd.f32 %v1039, %v1040
        %v1042 = vrot.slane %v1041, 2
        %v1043 = vadd.f32 %v1041, %v1042
        %v1044 = vrot.slane %v1043, 1
        %v1045 = vadd.f32 %v1043, %v1044
        %v1046 = vld [vmem:[%s14] sm:$0x1]
        %1048 = vset.pattern.permute.xlu0 0
        %1049 = vperm.xlu0 %1048, %v1046
        %v1050 = vpop.permute.xlu0 %1049
        %v1052 = vlaneseq
        %v1053 = vshrl.u32 %v1052, 7
        %v1054 = vsub.s32 0, %v1053
        %v1055 = vrot.slane %v1050, %v1054
        %v1056 = vadd.f32 %v1045, %v1055
        %v1057 = vsub.f32 0.0, %v1056
        %v1058 = vmul.f32 %v1057, 1.442695
        %v1059 = vpow.pop %v1058
        %v1060 = vadd.f32 %v1059, 1.0
        %v1061 = vrcp.pop %v1060
        %v1062 = vmul.f32 1.0, %v1061
        %v1063 = vld [vmem:[%s15] sm:$0xff]
        %v1064 = vld [vmem:[%s15 + $0x8] sm:$0xff]
        %v1065 = vld [vmem:[%s15 + $0x10] sm:$0xff]
        %v1066 = vld [vmem:[%s15 + $0x18] sm:$0xff]
        %1068 = vset.pattern.permute.xlu0 0
        %1069 = vperm.xlu0 %1068, %v1063
        %v1070 = vpop.permute.xlu0 %1069
        %1073 = vset.pattern.permute.xlu0 0
        %1074 = vperm.xlu0 %1073, %v1064
        %v1075 = vpop.permute.xlu0 %1074
        %1078 = vset.pattern.permute.xlu0 0
        %1079 = vperm.xlu0 %1078, %v1065
        %v1080 = vpop.permute.xlu0 %1079
        %1083 = vset.pattern.permute.xlu0 0
        %1084 = vperm.xlu0 %1083, %v1066
        %v1085 = vpop.permute.xlu0 %1084
        %v1087 = vmul.f32 %v1062, %v1070
        %v1088 = vmul.f32 %v1062, %v1075
        %v1089 = vmul.f32 %v1062, %v1080
        %v1090 = vmul.f32 %v1062, %v1085
        %v1091 = vld [vmem:[%s16] sm:$0xff]
        %v1092 = vld [vmem:[%s16 + $0x8] sm:$0xff]
        %v1093 = vld [vmem:[%s16 + $0x10] sm:$0xff]
        %v1094 = vld [vmem:[%s16 + $0x18] sm:$0xff]
        %1096 = vset.pattern.permute.xlu0 0
        %1097 = vperm.xlu0 %1096, %v1091
        %v1098 = vpop.permute.xlu0 %1097
        %1101 = vset.pattern.permute.xlu0 0
        %1102 = vperm.xlu0 %1101, %v1092
        %v1103 = vpop.permute.xlu0 %1102
        %1106 = vset.pattern.permute.xlu0 0
        %1107 = vperm.xlu0 %1106, %v1093
        %v1108 = vpop.permute.xlu0 %1107
        %1111 = vset.pattern.permute.xlu0 0
        %1112 = vperm.xlu0 %1111, %v1094
        %v1113 = vpop.permute.xlu0 %1112
        %v1115 = vadd.f32 %v1087, %v1098
        %v1116 = vadd.f32 %v1088, %v1103
        %v1117 = vadd.f32 %v1089, %v1108
        %v1118 = vadd.f32 %v1090, %v1113
        %v1119 = vmax.f32 %v1115, 0.0
        %v1120 = vmax.f32 %v1116, 0.0
        %v1121 = vmax.f32 %v1117, 0.0
        %v1122 = vmax.f32 %v1118, 0.0
        %v1123 = vmul.f32 %v1000, %v1119
        %v1124 = vmul.f32 %v1001, %v1120
        %v1125 = vmul.f32 %v1002, %v1121
        %v1126 = vmul.f32 %v1003, %v1122
        %1127 = vst.msk [vmem:[#allocation2 + $0x8] sm:$0xff] %vm1032, %v1123
        %1128 = vst.msk [vmem:[#allocation2 + $0x58] sm:$0xff] %vm1032, %v1124
        %1129 = vst.msk [vmem:[#allocation2 + $0xa8] sm:$0xff] %vm1032, %v1125
        %1130 = vst.msk [vmem:[#allocation2 + $0xf8] sm:$0xff] %vm1032, %v1126
        %v1131 = vld [vmem:[#allocation10] sm:$0x3]
        %v1132 = vld [vmem:[#allocation2] sm:$0xff]
        %v1133 = vld [vmem:[#allocation2 + $0x8] sm:$0xff]
        %v1134 = vld [vmem:[#allocation2 + $0x50] sm:$0xff]
        %v1135 = vld [vmem:[#allocation2 + $0x58] sm:$0xff]
        %v1136 = vld [vmem:[#allocation2 + $0xa0] sm:$0xff]
        %v1137 = vld [vmem:[#allocation2 + $0xa8] sm:$0xff]
        %v1138 = vld [vmem:[#allocation2 + $0xf0] sm:$0xff]
        %v1139 = vld [vmem:[#allocation2 + $0xf8] sm:$0xff]
        %v1140 = vlaneseq
        %v1141 = vshrl.u32 %v1140, 7
        %v1142 = vsub.s32 0, %v1141
        %v1143 = vrot.slane %v1131, %v1142
        %1145 = vrot.lane.b32.xlu0 %v1143, 123
        %v1146 = vpop.permute.xlu0 %1145
        %v1148 = vmul.f32 %v1132, %v1146
        %v1149 = vmul.f32 %v1133, %v1146
        %v1150 = vmul.f32 %v1134, %v1146
        %v1151 = vmul.f32 %v1135, %v1146
        %v1152 = vmul.f32 %v1136, %v1146
        %v1153 = vmul.f32 %v1137, %v1146
        %v1154 = vmul.f32 %v1138, %v1146
        %v1155 = vmul.f32 %v1139, %v1146
        %v1156 = vpack.c.bf16 %v1150, %v1148
        %v1157 = vpack.c.bf16 %v1151, %v1149
        %v1158 = vpack.c.bf16 %v1154, %v1152
        %v1159 = vpack.c.bf16 %v1155, %v1153
        %1164 = vrot.lane.b32.xlu0 %v1156, 5
        %v1165 = vpop.permute.xlu0 %1164
        %1166 = vrot.lane.b32.xlu0 %v1157, 5
        %v1167 = vpop.permute.xlu0 %1166
        %1168 = vrot.lane.b32.xlu0 %v1158, 5
        %v1169 = vpop.permute.xlu0 %1168
        %1170 = vrot.lane.b32.xlu0 %v1159, 5
        %v1171 = vpop.permute.xlu0 %1170
        %vm1172 = vcmask 39936
        %v1173 = vsel %vm1172, %v1165, %v1167
        %v1174 = vsel %vm1172, %v1169, %v1171
        %1177 = vst.msk [vmem:[#allocation3] sm:$0xff] %vm1032, %v1173
        %1178 = vst.msk [vmem:[#allocation3 + $0x40] sm:$0xff] %vm1032, %v1174
        %v1179 = vld [vmem:[#allocation2] sm:$0xff]
        %v1180 = vld [vmem:[#allocation2 + $0x8] sm:$0xff]
        %v1181 = vld [vmem:[#allocation2 + $0x50] sm:$0xff]
        %v1182 = vld [vmem:[#allocation2 + $0x58] sm:$0xff]
        %v1183 = vld [vmem:[#allocation2 + $0xa0] sm:$0xff]
        %v1184 = vld [vmem:[#allocation2 + $0xa8] sm:$0xff]
        %v1185 = vld [vmem:[#allocation2 + $0xf0] sm:$0xff]
        %v1186 = vld [vmem:[#allocation2 + $0xf8] sm:$0xff]
        %v1187 = vpack.c.bf16 %v1181, %v1179
        %v1188 = vpack.c.bf16 %v1182, %v1180
        %v1189 = vpack.c.bf16 %v1185, %v1183
        %v1190 = vpack.c.bf16 %v1186, %v1184
        %1195 = vrot.lane.b32.xlu0 %v1187, 4
        %v1196 = vpop.permute.xlu0 %1195
        %1197 = vrot.lane.b32.xlu0 %v1188, 4
        %v1198 = vpop.permute.xlu0 %1197
        %1199 = vrot.lane.b32.xlu0 %v1189, 4
        %v1200 = vpop.permute.xlu0 %1199
        %1201 = vrot.lane.b32.xlu0 %v1190, 4
        %v1202 = vpop.permute.xlu0 %1201
        %vm1203 = vcmask 31744
        %v1204 = vsel %vm1203, %v1196, %v1198
        %v1205 = vsel %vm1203, %v1200, %v1202
        %1208 = vst.msk [vmem:[#allocation3 + $0x80] sm:$0xff] %vm1032, %v1204
        %1209 = vst.msk [vmem:[#allocation3 + $0xc0] sm:$0xff] %vm1032, %v1205
        %v1210 = vld [vmem:[#allocation2] sm:$0xff]
        %v1211 = vld [vmem:[#allocation2 + $0x8] sm:$0xff]
        %v1212 = vld [vmem:[#allocation2 + $0x50] sm:$0xff]
        %v1213 = vld [vmem:[#allocation2 + $0x58] sm:$0xff]
        %v1214 = vld [vmem:[#allocation2 + $0xa0] sm:$0xff]
        %v1215 = vld [vmem:[#allocation2 + $0xa8] sm:$0xff]
        %v1216 = vld [vmem:[#allocation2 + $0xf0] sm:$0xff]
        %v1217 = vld [vmem:[#allocation2 + $0xf8] sm:$0xff]
        %v1218 = vlaneseq
        %v1219 = vshrl.u32 %v1218, 7
        %v1220 = vsub.s32 1, %v1219
        %v1221 = vrot.slane %v1131, %v1220
        %1223 = vrot.lane.b32.xlu0 %v1221, 125
        %v1224 = vpop.permute.xlu0 %1223
        %v1226 = vmul.f32 %v1210, %v1224
        %v1227 = vmul.f32 %v1211, %v1224
        %v1228 = vmul.f32 %v1212, %v1224
        %v1229 = vmul.f32 %v1213, %v1224
        %v1230 = vmul.f32 %v1214, %v1224
        %v1231 = vmul.f32 %v1215, %v1224
        %v1232 = vmul.f32 %v1216, %v1224
        %v1233 = vmul.f32 %v1217, %v1224
        %v1234 = vpack.c.bf16 %v1228, %v1226
        %v1235 = vpack.c.bf16 %v1229, %v1227
        %v1236 = vpack.c.bf16 %v1232, %v1230
        %v1237 = vpack.c.bf16 %v1233, %v1231
        %1242 = vrot.lane.b32.xlu0 %v1234, 3
        %v1243 = vpop.permute.xlu0 %1242
        %1244 = vrot.lane.b32.xlu0 %v1235, 3
        %v1245 = vpop.permute.xlu0 %1244
        %1246 = vrot.lane.b32.xlu0 %v1236, 3
        %v1247 = vpop.permute.xlu0 %1246
        %1248 = vrot.lane.b32.xlu0 %v1237, 3
        %v1249 = vpop.permute.xlu0 %1248
        %vm1250 = vcmask 23552
        %v1251 = vsel %vm1250, %v1243, %v1245
        %v1252 = vsel %vm1250, %v1247, %v1249
        %1255 = vst.msk [vmem:[#allocation3 + $0x100] sm:$0xff] %vm1032, %v1251
        %1256 = vst.msk [vmem:[#allocation3 + $0x140] sm:$0xff] %vm1032, %v1252
        %v1257 = vld [vmem:[#allocation2] sm:$0xff]
        %v1258 = vld [vmem:[#allocation2 + $0x8] sm:$0xff]
        %v1259 = vld [vmem:[#allocation2 + $0x50] sm:$0xff]
        %v1260 = vld [vmem:[#allocation2 + $0x58] sm:$0xff]
        %v1261 = vld [vmem:[#allocation2 + $0xa0] sm:$0xff]
        %v1262 = vld [vmem:[#allocation2 + $0xa8] sm:$0xff]
        %v1263 = vld [vmem:[#allocation2 + $0xf0] sm:$0xff]
        %v1264 = vld [vmem:[#allocation2 + $0xf8] sm:$0xff]
        %1265 = vrot.lane.b32.xlu0 %v1143, 127
        %v1266 = vpop.permute.xlu0 %1265
        %v1268 = vmul.f32 %v1257, %v1266
        %v1269 = vmul.f32 %v1258, %v1266
        %v1270 = vmul.f32 %v1259, %v1266
        %v1271 = vmul.f32 %v1260, %v1266
        %v1272 = vmul.f32 %v1261, %v1266
        %v1273 = vmul.f32 %v1262, %v1266
        %v1274 = vmul.f32 %v1263, %v1266
        %v1275 = vmul.f32 %v1264, %v1266
        %v1276 = vpack.c.bf16 %v1270, %v1268
        %v1277 = vpack.c.bf16 %v1271, %v1269
        %v1278 = vpack.c.bf16 %v1274, %v1272
        %v1279 = vpack.c.bf16 %v1275, %v1273
        %1284 = vrot.lane.b32.xlu0 %v1276, 1
        %v1285 = vpop.permute.xlu0 %1284
        %1286 = vrot.lane.b32.xlu0 %v1277, 1
        %v1287 = vpop.permute.xlu0 %1286
        %1288 = vrot.lane.b32.xlu0 %v1278, 1
        %v1289 = vpop.permute.xlu0 %1288
        %1290 = vrot.lane.b32.xlu0 %v1279, 1
        %v1291 = vpop.permute.xlu0 %1290
        %vm1292 = vcmask 7168
        %v1293 = vsel %vm1292, %v1285, %v1287
        %v1294 = vsel %vm1292, %v1289, %v1291
        %1297 = vst.msk [vmem:[#allocation3 + $0x180] sm:$0xff] %vm1032, %v1293
        %1298 = vst.msk [vmem:[#allocation3 + $0x1c0] sm:$0xff] %vm1032, %v1294
        %v1299 = vld [vmem:[#allocation2 + $0x8] sm:$0xff]
        %v1300 = vld [vmem:[#allocation2 + $0x58] sm:$0xff]
        %v1301 = vld [vmem:[#allocation2 + $0xa8] sm:$0xff]
        %v1302 = vld [vmem:[#allocation2 + $0xf8] sm:$0xff]
        %v1303 = vpack.c.bf16 %v1300, %v1299
        %v1304 = vpack.c.bf16 %v1302, %v1301
        %1305 = vst.msk [vmem:[#allocation3 + $0x200] sm:$0xff] %vm1032, %v1303
        %1306 = vst.msk [vmem:[#allocation3 + $0x240] sm:$0xff] %vm1032, %v1304
        %v1307 = vld [vmem:[#allocation2 + $0x8] sm:$0xff]
        %v1308 = vld [vmem:[#allocation2 + $0x58] sm:$0xff]
        %v1309 = vld [vmem:[#allocation2 + $0xa8] sm:$0xff]
        %v1310 = vld [vmem:[#allocation2 + $0xf8] sm:$0xff]
        %1311 = vrot.lane.b32.xlu0 %v1221, 1
        %v1312 = vpop.permute.xlu0 %1311
        %v1314 = vmul.f32 %v1307, %v1312
        %v1315 = vmul.f32 %v1308, %v1312
        %v1316 = vmul.f32 %v1309, %v1312
        %v1317 = vmul.f32 %v1310, %v1312
        %v1318 = vpack.c.bf16 %v1315, %v1314
        %v1319 = vpack.c.bf16 %v1317, %v1316
        %1322 = vrot.lane.b32.xlu0 %v1318, 127
        %v1323 = vpop.permute.xlu0 %1322
        %1324 = vrot.lane.b32.xlu0 %v1319, 127
        %v1325 = vpop.permute.xlu0 %1324
        %1328 = vst.msk [vmem:[#allocation3 + $0x280] sm:$0xff] %vm1032, %v1323
        %1329 = vst.msk [vmem:[#allocation3 + $0x2c0] sm:$0xff] %vm1032, %v1325
        %v1330 = vld [vmem:[#allocation2 + $0x8] sm:$0xff]
        %v1331 = vld [vmem:[#allocation2 + $0x58] sm:$0xff]
        %v1332 = vld [vmem:[#allocation2 + $0xa8] sm:$0xff]
        %v1333 = vld [vmem:[#allocation2 + $0xf8] sm:$0xff]
        %1334 = vrot.lane.b32.xlu0 %v1143, 3
        %v1335 = vpop.permute.xlu0 %1334
        %v1337 = vmul.f32 %v1330, %v1335
        %v1338 = vmul.f32 %v1331, %v1335
        %v1339 = vmul.f32 %v1332, %v1335
        %v1340 = vmul.f32 %v1333, %v1335
        %v1341 = vpack.c.bf16 %v1338, %v1337
        %v1342 = vpack.c.bf16 %v1340, %v1339
        %1345 = vrot.lane.b32.xlu0 %v1341, 125
        %v1346 = vpop.permute.xlu0 %1345
        %1347 = vrot.lane.b32.xlu0 %v1342, 125
        %v1348 = vpop.permute.xlu0 %1347
        %1351 = vst.msk [vmem:[#allocation3 + $0x300] sm:$0xff] %vm1032, %v1346
        %1352 = vst.msk [vmem:[#allocation3 + $0x340] sm:$0xff] %vm1032, %v1348
        %v1353 = vld [vmem:[#allocation2 + $0x8] sm:$0xff]
        %v1354 = vld [vmem:[#allocation2 + $0x58] sm:$0xff]
        %v1355 = vld [vmem:[#allocation2 + $0xa8] sm:$0xff]
        %v1356 = vld [vmem:[#allocation2 + $0xf8] sm:$0xff]
        %v1357 = vpack.c.bf16 %v1354, %v1353
        %v1358 = vpack.c.bf16 %v1356, %v1355
        %1361 = vrot.lane.b32.xlu0 %v1357, 124
        %v1362 = vpop.permute.xlu0 %1361
        %1363 = vrot.lane.b32.xlu0 %v1358, 124
        %v1364 = vpop.permute.xlu0 %1363
        %1367 = vst.msk [vmem:[#allocation3 + $0x380] sm:$0xff] %vm1032, %v1362
        %1368 = vst.msk [vmem:[#allocation3 + $0x3c0] sm:$0xff] %vm1032, %v1364
        %v1369 = vld [vmem:[#allocation2 + $0x8] sm:$0xff]
        %v1370 = vld [vmem:[#allocation2 + $0x58] sm:$0xff]
        %v1371 = vld [vmem:[#allocation2 + $0xa8] sm:$0xff]
        %v1372 = vld [vmem:[#allocation2 + $0xf8] sm:$0xff]
        %1373 = vrot.lane.b32.xlu0 %v1221, 5
        %v1374 = vpop.permute.xlu0 %1373
        %v1376 = vmul.f32 %v1369, %v1374
        %v1377 = vmul.f32 %v1370, %v1374
        %v1378 = vmul.f32 %v1371, %v1374
        %v1379 = vmul.f32 %v1372, %v1374
        %v1380 = vpack.c.bf16 %v1377, %v1376
        %v1381 = vpack.c.bf16 %v1379, %v1378
        %1384 = vrot.lane.b32.xlu0 %v1380, 123
        %v1385 = vpop.permute.xlu0 %1384
        %1386 = vrot.lane.b32.xlu0 %v1381, 123
        %v1387 = vpop.permute.xlu0 %1386
        %1390 = vst.msk [vmem:[#allocation3 + $0x400] sm:$0xff] %vm1032, %v1385
        %1391 = vst.msk [vmem:[#allocation3 + $0x440] sm:$0xff] %vm1032, %v1387
        %v1392 = vld [vmem:[#allocation15] sm:$0xff]
        %v1393 = vld [vmem:[#allocation15 + $0x8] sm:$0xf]
        %v1394 = vld [vmem:[#allocation15 + $0xc] sm:$0xff]
        %v1395 = vld [vmem:[#allocation15 + $0x14] sm:$0xf]
        %v1396 = vld [vmem:[#allocation15 + $0x18] sm:$0xff]
        %v1397 = vld [vmem:[#allocation15 + $0x20] sm:$0xf]
        %v1398 = vld [vmem:[#allocation15 + $0x24] sm:$0xff]
        %v1399 = vld [vmem:[#allocation15 + $0x2c] sm:$0xf]
        %v1400 = vld [vmem:[#allocation3] sm:$0xff]
        %v1401 = vld [vmem:[#allocation3 + $0x40] sm:$0xff]
        %v1402 = vld [vmem:[#allocation3 + $0x80] sm:$0xff]
        %v1403 = vld [vmem:[#allocation3 + $0xc0] sm:$0xff]
        %v1404 = vld [vmem:[#allocation3 + $0x100] sm:$0xff]
        %v1405 = vld [vmem:[#allocation3 + $0x140] sm:$0xff]
        %v1406 = vld [vmem:[#allocation3 + $0x180] sm:$0xff]
        %v1407 = vld [vmem:[#allocation3 + $0x1c0] sm:$0xff]
        %v1408 = vld [vmem:[#allocation3 + $0x200] sm:$0xff]
        %v1409 = vld [vmem:[#allocation3 + $0x240] sm:$0xff]
        %v1410 = vld [vmem:[#allocation3 + $0x280] sm:$0xff]
        %v1411 = vld [vmem:[#allocation3 + $0x2c0] sm:$0xff]
        %v1412 = vld [vmem:[#allocation3 + $0x300] sm:$0xff]
        %v1413 = vld [vmem:[#allocation3 + $0x340] sm:$0xff]
        %v1414 = vld [vmem:[#allocation3 + $0x380] sm:$0xff]
        %v1415 = vld [vmem:[#allocation3 + $0x3c0] sm:$0xff]
        %v1416 = vld [vmem:[#allocation3 + $0x400] sm:$0xff]
        %v1417 = vld [vmem:[#allocation3 + $0x440] sm:$0xff]
        %v1418 = vld [vmem:[%s12] sm:$0xff]
        %v1419 = vld [vmem:[%s12 + $0x8] sm:$0xff]
        %v1420 = vld [vmem:[%s12 + $0x10] sm:$0xff]
        %v1421 = vld [vmem:[%s12 + $0x18] sm:$0xff]
        %1423 = vset.pattern.permute.xlu0 0
        %1424 = vperm.xlu0 %1423, %v1418
        %v1425 = vpop.permute.xlu0 %1424
        %1428 = vset.pattern.permute.xlu0 0
        %1429 = vperm.xlu0 %1428, %v1419
        %v1430 = vpop.permute.xlu0 %1429
        %1433 = vset.pattern.permute.xlu0 0
        %1434 = vperm.xlu0 %1433, %v1420
        %v1435 = vpop.permute.xlu0 %1434
        %1438 = vset.pattern.permute.xlu0 0
        %1439 = vperm.xlu0 %1438, %v1421
        %v1440 = vpop.permute.xlu0 %1439
        %v1450 = vunpack.c.l.b16 %v1392
        %v1451 = vunpack.c.h.b16 %v1392
        %v1452 = vunpack.c.l.b16 %v1393
        %v1453 = vunpack.c.l.b16 %v1394
        %v1454 = vunpack.c.h.b16 %v1394
        %v1455 = vunpack.c.l.b16 %v1395
        %v1456 = vunpack.c.l.b16 %v1396
        %v1457 = vunpack.c.h.b16 %v1396
        %v1458 = vunpack.c.l.b16 %v1397
        %v1459 = vunpack.c.l.b16 %v1398
        %v1460 = vunpack.c.h.b16 %v1398
        %v1461 = vunpack.c.l.b16 %v1399
        %v1462 = vpack.c.b16 %v1453, %v1450
        %v1463 = vpack.c.b16 %v1454, %v1451
        %v1464 = vpack.c.b16 %v1455, %v1452
        %v1465 = vpack.c.b16 %v1459, %v1456
        %v1466 = vpack.c.b16 %v1460, %v1457
        %v1467 = vpack.c.b16 %v1461, %v1458
        %vm1472 = vcmask 261120
        %v1474 = vsel %vm1472, %v1464, 0
        %v1477 = vsel %vm1472, %v1467, 0
        %1479 = vmatprep.subr.bf16.mxu0 0
        %1480 = vmatpush1.bf16.msra.mxu0 %v1400
        %1481 = vmatprep.subr.bf16.mxu0 0
        %1482 = vmatpush1.bf16.msra.mxu0 %v1401
        %1483 = vmatprep.subr.bf16.mxu0 0
        %1484 = vmatpush1.bf16.msra.mxu0 %v1402
        %1485 = vmatprep.subr.bf16.mxu0 0
        %1486 = vmatpush1.bf16.msra.mxu0 %v1403
        %1487 = vmatprep.subr.bf16.mxu0 0
        %1488 = vmatpush1.bf16.msra.mxu0 %v1404
        %1489 = vmatprep.subr.bf16.mxu0 0
        %1490 = vmatpush1.bf16.msra.mxu0 %v1405
        %1491 = vmatprep.subr.bf16.mxu0 0
        %1492 = vmatpush1.bf16.msra.mxu0 %v1406
        %1493 = vmatprep.subr.bf16.mxu0 0
        %1494 = vmatpush1.bf16.msra.mxu0 %v1407
        %1495 = vmatprep.subr.bf16.mxu0 0
        %1496 = vmatpush1.bf16.msra.mxu0 %v1408
        %1497 = vmatprep.subr.bf16.mxu0 0
        %1498 = vmatpush1.bf16.msra.mxu0 %v1409
        %1499 = vmatprep.subr.bf16.mxu0 0
        %1500 = vmatpush1.bf16.msra.mxu0 %v1410
        %1501 = vmatprep.subr.bf16.mxu0 0
        %1502 = vmatpush1.bf16.msra.mxu0 %v1411
        %1503 = vmatprep.subr.bf16.mxu0 0
        %1504 = vmatpush1.bf16.msra.mxu0 %v1412
        %1505 = vmatprep.subr.bf16.mxu0 0
        %1506 = vmatpush1.bf16.msra.mxu0 %v1413
        %1507 = vmatprep.subr.bf16.mxu0 0
        %1508 = vmatpush1.bf16.msra.mxu0 %v1414
        %1509 = vmatprep.subr.bf16.mxu0 0
        %1510 = vmatpush1.bf16.msra.mxu0 %v1415
        %1511 = vmatprep.mubr.bf16.mxu0 %v1463
        %1512 = vmatmul.mubr.bf16.gmra.mrb[0].mxu0 %v1462
        %v1513 = vpop.f32.mrb[0].mxu0
        %v1514 = vadd.f32 %v1425, %v1513
        %v1515 = vpop.f32.mrb[0].mxu0
        %v1516 = vpop.f32.mrb[0].mxu0
        %v1517 = vadd.f32 %v1430, %v1516
        %v1518 = vpop.f32.mrb[0].mxu0
        %1519 = vmatprep.mubr.bf16.mxu0 %v1466
        %1520 = vmatmul.mubr.bf16.gmra.mrb[0].mxu0 %v1465
        %v1521 = vpop.f32.mrb[0].mxu0
        %v1522 = vadd.f32 %v1435, %v1521
        %v1523 = vpop.f32.mrb[0].mxu0
        %v1524 = vpop.f32.mrb[0].mxu0
        %v1525 = vadd.f32 %v1440, %v1524
        %v1526 = vpop.f32.mrb[0].mxu0
        %1527 = vdwg.mxu0
        %1528 = vmatprep.subr.bf16.mxu0 0
        %1529 = vmatpush1.bf16.msra.mxu0 %v1416
        %1530 = vmatprep.subr.bf16.mxu0 0
        %1531 = vmatpush1.bf16.msra.mxu0 %v1417
        %1532 = vmatprep.subr.bf16.mxu0 0
        %1533 = vmatpush1.bf16.msra.mxu0 0
        %1534 = vmatprep.subr.bf16.mxu0 0
        %1535 = vmatpush1.bf16.msra.mxu0 0
        %1536 = vmatprep.subr.bf16.mxu0 0
        %1537 = vmatpush1.bf16.msra.mxu0 0
        %1538 = vmatprep.subr.bf16.mxu0 0
        %1539 = vmatpush1.bf16.msra.mxu0 0
        %1540 = vmatprep.subr.bf16.mxu0 0
        %1541 = vmatpush1.bf16.msra.mxu0 0
        %1542 = vmatprep.subr.bf16.mxu0 0
        %1543 = vmatpush1.bf16.msra.mxu0 0
        %1544 = vmatprep.subr.bf16.mxu0 0
        %1545 = vmatpush1.bf16.msra.mxu0 0
        %1546 = vmatprep.subr.bf16.mxu0 0
        %1547 = vmatpush1.bf16.msra.mxu0 0
        %1548 = vmatprep.subr.bf16.mxu0 0
        %1549 = vmatpush1.bf16.msra.mxu0 0
        %1550 = vmatprep.subr.bf16.mxu0 0
        %1551 = vmatpush1.bf16.msra.mxu0 0
        %1552 = vmatprep.subr.bf16.mxu0 0
        %1553 = vmatpush1.bf16.msra.mxu0 0
        %1554 = vmatprep.subr.bf16.mxu0 0
        %1555 = vmatpush1.bf16.msra.mxu0 0
        %1556 = vmatprep.subr.bf16.mxu0 0
        %1557 = vmatpush1.bf16.msra.mxu0 0
        %1558 = vmatprep.subr.bf16.mxu0 0
        %1559 = vmatpush1.bf16.msra.mxu0 0
        %1560 = vmatprep.mubr.bf16.mxu0 0
        %1561 = vmatmul.mubr.bf16.gmra.mrb[0].mxu0 %v1474
        %v1562 = vpop.f32.mrb[0].mxu0
        %v1563 = vadd.f32 %v1514, %v1562
        %v1564 = vpop.f32.mrb[0].mxu0
        %v1565 = vpop.f32.mrb[0].mxu0
        %v1566 = vadd.f32 %v1517, %v1565
        %v1567 = vpop.f32.mrb[0].mxu0
        %1568 = vmatprep.mubr.bf16.mxu0 0
        %1569 = vmatmul.mubr.bf16.gmra.mrb[0].mxu0 %v1477
        %v1570 = vpop.f32.mrb[0].mxu0
        %v1571 = vadd.f32 %v1522, %v1570
        %v1572 = vpop.f32.mrb[0].mxu0
        %v1573 = vpop.f32.mrb[0].mxu0
        %v1574 = vadd.f32 %v1525, %v1573
        %v1575 = vpop.f32.mrb[0].mxu0
        %1576 = vdwg.mxu0
        %v1577 = vmax.f32 %v1563, 0.0
        %v1578 = vmax.f32 %v1566, 0.0
        %v1579 = vmax.f32 %v1571, 0.0
        %v1580 = vmax.f32 %v1574, 0.0
        %1581 = vst.msk [vmem:[%s958] sm:$0xff] %vm1032, %v1577
        %1582 = vst.msk [vmem:[%s958 + $0x8] sm:$0xff] %vm1032, %v1578
        %1583 = vst.msk [vmem:[%s958 + $0x10] sm:$0xff] %vm1032, %v1579
        %1584 = vst.msk [vmem:[%s958 + $0x18] sm:$0xff] %vm1032, %v1580
        %vm1585 = vcmask 122880
        %1586 = vst.msk [vmem:[%s938] sm:$0x1] %vm1585, %v1056
        %v1587 = vpack.c.bf16 %v1578, %v1577
        %v1588 = vpack.c.bf16 %v1580, %v1579
        %v1589 = vld [vmem:[#allocation7] sm:$0xf]
        %v1590 = vld [vmem:[#allocation7 + $0x4] sm:$0xf]
        %v1591 = vld [vmem:[%s948] sm:$0xff]
        %v1592 = vld [vmem:[%s948 + $0x8] sm:$0xff]
        %v1593 = vld [vmem:[%s948 + $0x10] sm:$0xff]
        %v1594 = vld [vmem:[%s948 + $0x18] sm:$0xff]
        %v1597 = vunpack.c.l.b16 %v1589
        %v1598 = vunpack.c.l.b16 %v1590
        %v1599 = vpack.c.b16 %v1598, %v1597
        %v1602 = vsel %vm1032, %v1587, 0
        %v1605 = vsel %vm1032, %v1588, 0
        %1607 = vmatprep.subr.bf16.mxu0 0
        %1608 = vmatpush1.bf16.msra.mxu0 %v1599
        %1609 = vmatprep.subr.bf16.mxu0 0
        %1610 = vmatpush1.bf16.msra.mxu0 0
        %1611 = vmatprep.subr.bf16.mxu0 0
        %1612 = vmatpush1.bf16.msra.mxu0 0
        %1613 = vmatprep.subr.bf16.mxu0 0
        %1614 = vmatpush1.bf16.msra.mxu0 0
        %1615 = vmatprep.subr.bf16.mxu0 0
        %1616 = vmatpush1.bf16.msra.mxu0 0
        %1617 = vmatprep.subr.bf16.mxu0 0
        %1618 = vmatpush1.bf16.msra.mxu0 0
        %1619 = vmatprep.subr.bf16.mxu0 0
        %1620 = vmatpush1.bf16.msra.mxu0 0
        %1621 = vmatprep.subr.bf16.mxu0 0
        %1622 = vmatpush1.bf16.msra.mxu0 0
        %1623 = vmatprep.subr.bf16.mxu0 0
        %1624 = vmatpush1.bf16.msra.mxu0 0
        %1625 = vmatprep.subr.bf16.mxu0 0
        %1626 = vmatpush1.bf16.msra.mxu0 0
        %1627 = vmatprep.subr.bf16.mxu0 0
        %1628 = vmatpush1.bf16.msra.mxu0 0
        %1629 = vmatprep.subr.bf16.mxu0 0
        %1630 = vmatpush1.bf16.msra.mxu0 0
        %1631 = vmatprep.subr.bf16.mxu0 0
        %1632 = vmatpush1.bf16.msra.mxu0 0
        %1633 = vmatprep.subr.bf16.mxu0 0
        %1634 = vmatpush1.bf16.msra.mxu0 0
        %1635 = vmatprep.subr.bf16.mxu0 0
        %1636 = vmatpush1.bf16.msra.mxu0 0
        %1637 = vmatprep.subr.bf16.mxu0 0
        %1638 = vmatpush1.bf16.msra.mxu0 0
        %1639 = vmatprep.mubr.bf16.mxu0 0
        %1640 = vmatmul.mubr.bf16.gmra.mrb[0].mxu0 %v1602
        %v1641 = vpop.f32.mrb[0].mxu0
        %v1642 = vadd.f32 %v1591, %v1641
        %v1643 = vpop.f32.mrb[0].mxu0
        %v1644 = vpop.f32.mrb[0].mxu0
        %v1645 = vadd.f32 %v1592, %v1644
        %v1646 = vpop.f32.mrb[0].mxu0
        %1647 = vmatprep.mubr.bf16.mxu0 0
        %1648 = vmatmul.mubr.bf16.gmra.mrb[0].mxu0 %v1605
        %v1649 = vpop.f32.mrb[0].mxu0
        %v1650 = vadd.f32 %v1593, %v1649
        %v1651 = vpop.f32.mrb[0].mxu0
        %v1652 = vpop.f32.mrb[0].mxu0
        %v1653 = vadd.f32 %v1594, %v1652
        %v1654 = vpop.f32.mrb[0].mxu0
        %1655 = vdwg.mxu0
        %vm1656 = vcmask 523264
        %1657 = vst.msk [vmem:[#allocation2 + $0x8] sm:$0xff] %vm1656, %v1642
        %1658 = vst.msk [vmem:[#allocation2 + $0x58] sm:$0xff] %vm1656, %v1645
        %1659 = vst.msk [vmem:[#allocation2 + $0xa8] sm:$0xff] %vm1656, %v1650
        %1660 = vst.msk [vmem:[#allocation2 + $0xf8] sm:$0xff] %vm1656, %v1653
        %v1661 = vld [vmem:[#allocation12] sm:$0x3]
        %v1662 = vld [vmem:[#allocation2] sm:$0xff]
        %v1663 = vld [vmem:[#allocation2 + $0x8] sm:$0xff]
        %v1664 = vld [vmem:[#allocation2 + $0x50] sm:$0xff]
        %v1665 = vld [vmem:[#allocation2 + $0x58] sm:$0xff]
        %v1666 = vld [vmem:[#allocation2 + $0xa0] sm:$0xff]
        %v1667 = vld [vmem:[#allocation2 + $0xa8] sm:$0xff]
        %v1668 = vld [vmem:[#allocation2 + $0xf0] sm:$0xff]
        %v1669 = vld [vmem:[#allocation2 + $0xf8] sm:$0xff]
        %v1670 = vlaneseq
        %v1671 = vshrl.u32 %v1670, 7
        %v1672 = vsub.s32 0, %v1671
        %v1673 = vrot.slane %v1661, %v1672
        %1675 = vrot.lane.b32.xlu0 %v1673, 119
        %v1676 = vpop.permute.xlu0 %1675
        %v1678 = vmul.f32 %v1662, %v1676
        %v1679 = vmul.f32 %v1663, %v1676
        %v1680 = vmul.f32 %v1664, %v1676
        %v1681 = vmul.f32 %v1665, %v1676
        %v1682 = vmul.f32 %v1666, %v1676
        %v1683 = vmul.f32 %v1667, %v1676
        %v1684 = vmul.f32 %v1668, %v1676
        %v1685 = vmul.f32 %v1669, %v1676
        %v1686 = vpack.c.bf16 %v1680, %v1678
        %v1687 = vpack.c.bf16 %v1681, %v1679
        %v1688 = vpack.c.bf16 %v1684, %v1682
        %v1689 = vpack.c.bf16 %v1685, %v1683
        %1694 = vrot.lane.b32.xlu0 %v1686, 9
        %v1695 = vpop.permute.xlu0 %1694
        %1696 = vrot.lane.b32.xlu0 %v1687, 9
        %v1697 = vpop.permute.xlu0 %1696
        %1698 = vrot.lane.b32.xlu0 %v1688, 9
        %v1699 = vpop.permute.xlu0 %1698
        %1700 = vrot.lane.b32.xlu0 %v1689, 9
        %v1701 = vpop.permute.xlu0 %1700
        %vm1702 = vcmask 72704
        %v1703 = vsel %vm1702, %v1695, %v1697
        %v1704 = vsel %vm1702, %v1699, %v1701
        %1707 = vst.msk [vmem:[#allocation3] sm:$0xff] %vm1656, %v1703
        %1708 = vst.msk [vmem:[#allocation3 + $0x40] sm:$0xff] %vm1656, %v1704
        %v1709 = vld [vmem:[#allocation2] sm:$0xff]
        %v1710 = vld [vmem:[#allocation2 + $0x8] sm:$0xff]
        %v1711 = vld [vmem:[#allocation2 + $0x50] sm:$0xff]
        %v1712 = vld [vmem:[#allocation2 + $0x58] sm:$0xff]
        %v1713 = vld [vmem:[#allocation2 + $0xa0] sm:$0xff]
        %v1714 = vld [vmem:[#allocation2 + $0xa8] sm:$0xff]
        %v1715 = vld [vmem:[#allocation2 + $0xf0] sm:$0xff]
        %v1716 = vld [vmem:[#allocation2 + $0xf8] sm:$0xff]
        %v1717 = vpack.c.bf16 %v1711, %v1709
        %v1718 = vpack.c.bf16 %v1712, %v1710
        %v1719 = vpack.c.bf16 %v1715, %v1713
        %v1720 = vpack.c.bf16 %v1716, %v1714
        %1725 = vrot.lane.b32.xlu0 %v1717, 8
        %v1726 = vpop.permute.xlu0 %1725
        %1727 = vrot.lane.b32.xlu0 %v1718, 8
        %v1728 = vpop.permute.xlu0 %1727
        %1729 = vrot.lane.b32.xlu0 %v1719, 8
        %v1730 = vpop.permute.xlu0 %1729
        %1731 = vrot.lane.b32.xlu0 %v1720, 8
        %v1732 = vpop.permute.xlu0 %1731
        %vm1733 = vcmask 64512
        %v1734 = vsel %vm1733, %v1726, %v1728
        %v1735 = vsel %vm1733, %v1730, %v1732
        %1738 = vst.msk [vmem:[#allocation3 + $0x80] sm:$0xff] %vm1656, %v1734
        %1739 = vst.msk [vmem:[#allocation3 + $0xc0] sm:$0xff] %vm1656, %v1735
        %v1740 = vld [vmem:[#allocation2] sm:$0xff]
        %v1741 = vld [vmem:[#allocation2 + $0x8] sm:$0xff]
        %v1742 = vld [vmem:[#allocation2 + $0x50] sm:$0xff]
        %v1743 = vld [vmem:[#allocation2 + $0x58] sm:$0xff]
        %v1744 = vld [vmem:[#allocation2 + $0xa0] sm:$0xff]
        %v1745 = vld [vmem:[#allocation2 + $0xa8] sm:$0xff]
        %v1746 = vld [vmem:[#allocation2 + $0xf0] sm:$0xff]
        %v1747 = vld [vmem:[#allocation2 + $0xf8] sm:$0xff]
        %v1748 = vlaneseq
        %v1749 = vshrl.u32 %v1748, 7
        %v1750 = vsub.s32 1, %v1749
        %v1751 = vrot.slane %v1661, %v1750
        %1753 = vrot.lane.b32.xlu0 %v1751, 121
        %v1754 = vpop.permute.xlu0 %1753
        %v1756 = vmul.f32 %v1740, %v1754
        %v1757 = vmul.f32 %v1741, %v1754
        %v1758 = vmul.f32 %v1742, %v1754
        %v1759 = vmul.f32 %v1743, %v1754
        %v1760 = vmul.f32 %v1744, %v1754
        %v1761 = vmul.f32 %v1745, %v1754
        %v1762 = vmul.f32 %v1746, %v1754
        %v1763 = vmul.f32 %v1747, %v1754
        %v1764 = vpack.c.bf16 %v1758, %v1756
        %v1765 = vpack.c.bf16 %v1759, %v1757
        %v1766 = vpack.c.bf16 %v1762, %v1760
        %v1767 = vpack.c.bf16 %v1763, %v1761
        %1772 = vrot.lane.b32.xlu0 %v1764, 7
        %v1773 = vpop.permute.xlu0 %1772
        %1774 = vrot.lane.b32.xlu0 %v1765, 7
        %v1775 = vpop.permute.xlu0 %1774
        %1776 = vrot.lane.b32.xlu0 %v1766, 7
        %v1777 = vpop.permute.xlu0 %1776
        %1778 = vrot.lane.b32.xlu0 %v1767, 7
        %v1779 = vpop.permute.xlu0 %1778
        %vm1780 = vcmask 56320
        %v1781 = vsel %vm1780, %v1773, %v1775
        %v1782 = vsel %vm1780, %v1777, %v1779
        %1785 = vst.msk [vmem:[#allocation3 + $0x100] sm:$0xff] %vm1656, %v1781
        %1786 = vst.msk [vmem:[#allocation3 + $0x140] sm:$0xff] %vm1656, %v1782
        %v1787 = vld [vmem:[#allocation2] sm:$0xff]
        %v1788 = vld [vmem:[#allocation2 + $0x8] sm:$0xff]
        %v1789 = vld [vmem:[#allocation2 + $0x50] sm:$0xff]
        %v1790 = vld [vmem:[#allocation2 + $0x58] sm:$0xff]
        %v1791 = vld [vmem:[#allocation2 + $0xa0] sm:$0xff]
        %v1792 = vld [vmem:[#allocation2 + $0xa8] sm:$0xff]
        %v1793 = vld [vmem:[#allocation2 + $0xf0] sm:$0xff]
        %v1794 = vld [vmem:[#allocation2 + $0xf8] sm:$0xff]
        %1795 = vrot.lane.b32.xlu0 %v1673, 127
        %v1796 = vpop.permute.xlu0 %1795
        %v1798 = vmul.f32 %v1787, %v1796
        %v1799 = vmul.f32 %v1788, %v1796
        %v1800 = vmul.f32 %v1789, %v1796
        %v1801 = vmul.f32 %v1790, %v1796
        %v1802 = vmul.f32 %v1791, %v1796
        %v1803 = vmul.f32 %v1792, %v1796
        %v1804 = vmul.f32 %v1793, %v1796
        %v1805 = vmul.f32 %v1794, %v1796
        %v1806 = vpack.c.bf16 %v1800, %v1798
        %v1807 = vpack.c.bf16 %v1801, %v1799
        %v1808 = vpack.c.bf16 %v1804, %v1802
        %v1809 = vpack.c.bf16 %v1805, %v1803
        %1814 = vrot.lane.b32.xlu0 %v1806, 1
        %v1815 = vpop.permute.xlu0 %1814
        %1816 = vrot.lane.b32.xlu0 %v1807, 1
        %v1817 = vpop.permute.xlu0 %1816
        %1818 = vrot.lane.b32.xlu0 %v1808, 1
        %v1819 = vpop.permute.xlu0 %1818
        %1820 = vrot.lane.b32.xlu0 %v1809, 1
        %v1821 = vpop.permute.xlu0 %1820
        %v1822 = vsel %vm1292, %v1815, %v1817
        %v1823 = vsel %vm1292, %v1819, %v1821
        %1826 = vst.msk [vmem:[#allocation3 + $0x180] sm:$0xff] %vm1656, %v1822
        %1827 = vst.msk [vmem:[#allocation3 + $0x1c0] sm:$0xff] %vm1656, %v1823
        %v1828 = vld [vmem:[#allocation2 + $0x8] sm:$0xff]
        %v1829 = vld [vmem:[#allocation2 + $0x58] sm:$0xff]
        %v1830 = vld [vmem:[#allocation2 + $0xa8] sm:$0xff]
        %v1831 = vld [vmem:[#allocation2 + $0xf8] sm:$0xff]
        %v1832 = vpack.c.bf16 %v1829, %v1828
        %v1833 = vpack.c.bf16 %v1831, %v1830
        %1834 = vst.msk [vmem:[#allocation3 + $0x200] sm:$0xff] %vm1656, %v1832
        %1835 = vst.msk [vmem:[#allocation3 + $0x240] sm:$0xff] %vm1656, %v1833
        %v1836 = vld [vmem:[#allocation2 + $0x8] sm:$0xff]
        %v1837 = vld [vmem:[#allocation2 + $0x58] sm:$0xff]
        %v1838 = vld [vmem:[#allocation2 + $0xa8] sm:$0xff]
        %v1839 = vld [vmem:[#allocation2 + $0xf8] sm:$0xff]
        %1840 = vrot.lane.b32.xlu0 %v1751, 1
        %v1841 = vpop.permute.xlu0 %1840
        %v1843 = vmul.f32 %v1836, %v1841
        %v1844 = vmul.f32 %v1837, %v1841
        %v1845 = vmul.f32 %v1838, %v1841
        %v1846 = vmul.f32 %v1839, %v1841
        %v1847 = vpack.c.bf16 %v1844, %v1843
        %v1848 = vpack.c.bf16 %v1846, %v1845
        %1851 = vrot.lane.b32.xlu0 %v1847, 127
        %v1852 = vpop.permute.xlu0 %1851
        %1853 = vrot.lane.b32.xlu0 %v1848, 127
        %v1854 = vpop.permute.xlu0 %1853
        %1857 = vst.msk [vmem:[#allocation3 + $0x280] sm:$0xff] %vm1656, %v1852
        %1858 = vst.msk [vmem:[#allocation3 + $0x2c0] sm:$0xff] %vm1656, %v1854
        %v1859 = vld [vmem:[#allocation2 + $0x8] sm:$0xff]
        %v1860 = vld [vmem:[#allocation2 + $0x58] sm:$0xff]
        %v1861 = vld [vmem:[#allocation2 + $0xa8] sm:$0xff]
        %v1862 = vld [vmem:[#allocation2 + $0xf8] sm:$0xff]
        %1863 = vrot.lane.b32.xlu0 %v1673, 7
        %v1864 = vpop.permute.xlu0 %1863
        %v1866 = vmul.f32 %v1859, %v1864
        %v1867 = vmul.f32 %v1860, %v1864
        %v1868 = vmul.f32 %v1861, %v1864
        %v1869 = vmul.f32 %v1862, %v1864
        %v1870 = vpack.c.bf16 %v1867, %v1866
        %v1871 = vpack.c.bf16 %v1869, %v1868
        %1874 = vrot.lane.b32.xlu0 %v1870, 121
        %v1875 = vpop.permute.xlu0 %1874
        %1876 = vrot.lane.b32.xlu0 %v1871, 121
        %v1877 = vpop.permute.xlu0 %1876
        %1880 = vst.msk [vmem:[#allocation3 + $0x300] sm:$0xff] %vm1656, %v1875
        %1881 = vst.msk [vmem:[#allocation3 + $0x340] sm:$0xff] %vm1656, %v1877
        %v1882 = vld [vmem:[#allocation2 + $0x8] sm:$0xff]
        %v1883 = vld [vmem:[#allocation2 + $0x58] sm:$0xff]
        %v1884 = vld [vmem:[#allocation2 + $0xa8] sm:$0xff]
        %v1885 = vld [vmem:[#allocation2 + $0xf8] sm:$0xff]
        %v1886 = vpack.c.bf16 %v1883, %v1882
        %v1887 = vpack.c.bf16 %v1885, %v1884
        %1890 = vrot.lane.b32.xlu0 %v1886, 120
        %v1891 = vpop.permute.xlu0 %1890
        %1892 = vrot.lane.b32.xlu0 %v1887, 120
        %v1893 = vpop.permute.xlu0 %1892
        %1896 = vst.msk [vmem:[#allocation3 + $0x380] sm:$0xff] %vm1656, %v1891
        %1897 = vst.msk [vmem:[#allocation3 + $0x3c0] sm:$0xff] %vm1656, %v1893
        %v1898 = vld [vmem:[#allocation2 + $0x8] sm:$0xff]
        %v1899 = vld [vmem:[#allocation2 + $0x58] sm:$0xff]
        %v1900 = vld [vmem:[#allocation2 + $0xa8] sm:$0xff]
        %v1901 = vld [vmem:[#allocation2 + $0xf8] sm:$0xff]
        %1902 = vrot.lane.b32.xlu0 %v1751, 9
        %v1903 = vpop.permute.xlu0 %1902
        %v1905 = vmul.f32 %v1898, %v1903
        %v1906 = vmul.f32 %v1899, %v1903
        %v1907 = vmul.f32 %v1900, %v1903
        %v1908 = vmul.f32 %v1901, %v1903
        %v1909 = vpack.c.bf16 %v1906, %v1905
        %v1910 = vpack.c.bf16 %v1908, %v1907
        %1913 = vrot.lane.b32.xlu0 %v1909, 119
        %v1914 = vpop.permute.xlu0 %1913
        %1915 = vrot.lane.b32.xlu0 %v1910, 119
        %v1916 = vpop.permute.xlu0 %1915
        %1919 = vst.msk [vmem:[#allocation3 + $0x400] sm:$0xff] %vm1656, %v1914
        %1920 = vst.msk [vmem:[#allocation3 + $0x440] sm:$0xff] %vm1656, %v1916
        %s1921 = scalar_lea.vmem [#allocation15], 48
        %v1922 = vld [vmem:[%s1921] sm:$0xff]
        %v1923 = vld [vmem:[%s1921 + $0x8] sm:$0xf]
        %v1924 = vld [vmem:[%s1921 + $0xc] sm:$0xff]
        %v1925 = vld [vmem:[%s1921 + $0x14] sm:$0xf]
        %v1926 = vld [vmem:[%s1921 + $0x18] sm:$0xff]
        %v1927 = vld [vmem:[%s1921 + $0x20] sm:$0xf]
        %v1928 = vld [vmem:[%s1921 + $0x24] sm:$0xff]
        %v1929 = vld [vmem:[%s1921 + $0x2c] sm:$0xf]
        %v1930 = vld [vmem:[#allocation3] sm:$0xff]
        %v1931 = vld [vmem:[#allocation3 + $0x40] sm:$0xff]
        %v1932 = vld [vmem:[#allocation3 + $0x80] sm:$0xff]
        %v1933 = vld [vmem:[#allocation3 + $0xc0] sm:$0xff]
        %v1934 = vld [vmem:[#allocation3 + $0x100] sm:$0xff]
        %v1935 = vld [vmem:[#allocation3 + $0x140] sm:$0xff]
        %v1936 = vld [vmem:[#allocation3 + $0x180] sm:$0xff]
        %v1937 = vld [vmem:[#allocation3 + $0x1c0] sm:$0xff]
        %v1938 = vld [vmem:[#allocation3 + $0x200] sm:$0xff]
        %v1939 = vld [vmem:[#allocation3 + $0x240] sm:$0xff]
        %v1940 = vld [vmem:[#allocation3 + $0x280] sm:$0xff]
        %v1941 = vld [vmem:[#allocation3 + $0x2c0] sm:$0xff]
        %v1942 = vld [vmem:[#allocation3 + $0x300] sm:$0xff]
        %v1943 = vld [vmem:[#allocation3 + $0x340] sm:$0xff]
        %v1944 = vld [vmem:[#allocation3 + $0x380] sm:$0xff]
        %v1945 = vld [vmem:[#allocation3 + $0x3c0] sm:$0xff]
        %v1946 = vld [vmem:[#allocation3 + $0x400] sm:$0xff]
        %v1947 = vld [vmem:[#allocation3 + $0x440] sm:$0xff]
        %s1948 = scalar_lea.vmem %s12, 32
        %v1949 = vld [vmem:[%s1948] sm:$0xff]
        %v1950 = vld [vmem:[%s1948 + $0x8] sm:$0xff]
        %v1951 = vld [vmem:[%s1948 + $0x10] sm:$0xff]
        %v1952 = vld [vmem:[%s1948 + $0x18] sm:$0xff]
        %1954 = vset.pattern.permute.xlu0 0
        %1955 = vperm.xlu0 %1954, %v1949
        %v1956 = vpop.permute.xlu0 %1955
        %1959 = vset.pattern.permute.xlu0 0
        %1960 = vperm.xlu0 %1959, %v1950
        %v1961 = vpop.permute.xlu0 %1960
        %1964 = vset.pattern.permute.xlu0 0
        %1965 = vperm.xlu0 %1964, %v1951
        %v1966 = vpop.permute.xlu0 %1965
        %1969 = vset.pattern.permute.xlu0 0
        %1970 = vperm.xlu0 %1969, %v1952
        %v1971 = vpop.permute.xlu0 %1970
        %v1981 = vunpack.c.l.b16 %v1922
        %v1982 = vunpack.c.h.b16 %v1922
        %v1983 = vunpack.c.l.b16 %v1923
        %v1984 = vunpack.c.l.b16 %v1924
        %v1985 = vunpack.c.h.b16 %v1924
        %v1986 = vunpack.c.l.b16 %v1925
        %v1987 = vunpack.c.l.b16 %v1926
        %v1988 = vunpack.c.h.b16 %v1926
        %v1989 = vunpack.c.l.b16 %v1927
        %v1990 = vunpack.c.l.b16 %v1928
        %v1991 = vunpack.c.h.b16 %v1928
        %v1992 = vunpack.c.l.b16 %v1929
        %v1993 = vpack.c.b16 %v1984, %v1981
        %v1994 = vpack.c.b16 %v1985, %v1982
        %v1995 = vpack.c.b16 %v1986, %v1983
        %v1996 = vpack.c.b16 %v1990, %v1987
        %v1997 = vpack.c.b16 %v1991, %v1988
        %v1998 = vpack.c.b16 %v1992, %v1989
        %v2004 = vsel %vm1472, %v1995, 0
        %v2007 = vsel %vm1472, %v1998, 0
        %2009 = vmatprep.subr.bf16.mxu0 0
        %2010 = vmatpush1.bf16.msra.mxu0 %v1930
        %2011 = vmatprep.subr.bf16.mxu0 0
        %2012 = vmatpush1.bf16.msra.mxu0 %v1931
        %2013 = vmatprep.subr.bf16.mxu0 0
        %2014 = vmatpush1.bf16.msra.mxu0 %v1932
        %2015 = vmatprep.subr.bf16.mxu0 0
        %2016 = vmatpush1.bf16.msra.mxu0 %v1933
        %2017 = vmatprep.subr.bf16.mxu0 0
        %2018 = vmatpush1.bf16.msra.mxu0 %v1934
        %2019 = vmatprep.subr.bf16.mxu0 0
        %2020 = vmatpush1.bf16.msra.mxu0 %v1935
        %2021 = vmatprep.subr.bf16.mxu0 0
        %2022 = vmatpush1.bf16.msra.mxu0 %v1936
        %2023 = vmatprep.subr.bf16.mxu0 0
        %2024 = vmatpush1.bf16.msra.mxu0 %v1937
        %2025 = vmatprep.subr.bf16.mxu0 0
        %2026 = vmatpush1.bf16.msra.mxu0 %v1938
        %2027 = vmatprep.subr.bf16.mxu0 0
        %2028 = vmatpush1.bf16.msra.mxu0 %v1939
        %2029 = vmatprep.subr.bf16.mxu0 0
        %2030 = vmatpush1.bf16.msra.mxu0 %v1940
        %2031 = vmatprep.subr.bf16.mxu0 0
        %2032 = vmatpush1.bf16.msra.mxu0 %v1941
        %2033 = vmatprep.subr.bf16.mxu0 0
        %2034 = vmatpush1.bf16.msra.mxu0 %v1942
        %2035 = vmatprep.subr.bf16.mxu0 0
        %2036 = vmatpush1.bf16.msra.mxu0 %v1943
        %2037 = vmatprep.subr.bf16.mxu0 0
        %2038 = vmatpush1.bf16.msra.mxu0 %v1944
        %2039 = vmatprep.subr.bf16.mxu0 0
        %2040 = vmatpush1.bf16.msra.mxu0 %v1945
        %2041 = vmatprep.mubr.bf16.mxu0 %v1994
        %2042 = vmatmul.mubr.bf16.gmra.mrb[0].mxu0 %v1993
        %v2043 = vpop.f32.mrb[0].mxu0
        %v2044 = vadd.f32 %v1956, %v2043
        %v2045 = vpop.f32.mrb[0].mxu0
        %v2046 = vpop.f32.mrb[0].mxu0
        %v2047 = vadd.f32 %v1961, %v2046
        %v2048 = vpop.f32.mrb[0].mxu0
        %2049 = vmatprep.mubr.bf16.mxu0 %v1997
        %2050 = vmatmul.mubr.bf16.gmra.mrb[0].mxu0 %v1996
        %v2051 = vpop.f32.mrb[0].mxu0
        %v2052 = vadd.f32 %v1966, %v2051
        %v2053 = vpop.f32.mrb[0].mxu0
        %v2054 = vpop.f32.mrb[0].mxu0
        %v2055 = vadd.f32 %v1971, %v2054
        %v2056 = vpop.f32.mrb[0].mxu0
        %2057 = vdwg.mxu0
        %2058 = vmatprep.subr.bf16.mxu0 0
        %2059 = vmatpush1.bf16.msra.mxu0 %v1946
        %2060 = vmatprep.subr.bf16.mxu0 0
        %2061 = vmatpush1.bf16.msra.mxu0 %v1947
        %2062 = vmatprep.subr.bf16.mxu0 0
        %2063 = vmatpush1.bf16.msra.mxu0 0
        %2064 = vmatprep.subr.bf16.mxu0 0
        %2065 = vmatpush1.bf16.msra.mxu0 0
        %2066 = vmatprep.subr.bf16.mxu0 0
        %2067 = vmatpush1.bf16.msra.mxu0 0
        %2068 = vmatprep.subr.bf16.mxu0 0
        %2069 = vmatpush1.bf16.msra.mxu0 0
        %2070 = vmatprep.subr.bf16.mxu0 0
        %2071 = vmatpush1.bf16.msra.mxu0 0
        %2072 = vmatprep.subr.bf16.mxu0 0
        %2073 = vmatpush1.bf16.msra.mxu0 0
        %2074 = vmatprep.subr.bf16.mxu0 0
        %2075 = vmatpush1.bf16.msra.mxu0 0
        %2076 = vmatprep.subr.bf16.mxu0 0
        %2077 = vmatpush1.bf16.msra.mxu0 0
        %2078 = vmatprep.subr.bf16.mxu0 0
        %2079 = vmatpush1.bf16.msra.mxu0 0
        %2080 = vmatprep.subr.bf16.mxu0 0
        %2081 = vmatpush1.bf16.msra.mxu0 0
        %2082 = vmatprep.subr.bf16.mxu0 0
        %2083 = vmatpush1.bf16.msra.mxu0 0
        %2084 = vmatprep.subr.bf16.mxu0 0
        %2085 = vmatpush1.bf16.msra.mxu0 0
        %2086 = vmatprep.subr.bf16.mxu0 0
        %2087 = vmatpush1.bf16.msra.mxu0 0
        %2088 = vmatprep.subr.bf16.mxu0 0
        %2089 = vmatpush1.bf16.msra.mxu0 0
        %2090 = vmatprep.mubr.bf16.mxu0 0
        %2091 = vmatmul.mubr.bf16.gmra.mrb[0].mxu0 %v2004
        %v2092 = vpop.f32.mrb[0].mxu0
        %v2093 = vadd.f32 %v2044, %v2092
        %v2094 = vpop.f32.mrb[0].mxu0
        %v2095 = vpop.f32.mrb[0].mxu0
        %v2096 = vadd.f32 %v2047, %v2095
        %v2097 = vpop.f32.mrb[0].mxu0
        %2098 = vmatprep.mubr.bf16.mxu0 0
        %2099 = vmatmul.mubr.bf16.gmra.mrb[0].mxu0 %v2007
        %v2100 = vpop.f32.mrb[0].mxu0
        %v2101 = vadd.f32 %v2052, %v2100
        %v2102 = vpop.f32.mrb[0].mxu0
        %v2103 = vpop.f32.mrb[0].mxu0
        %v2104 = vadd.f32 %v2055, %v2103
        %v2105 = vpop.f32.mrb[0].mxu0
        %2106 = vdwg.mxu0
        %v2107 = vmax.f32 %v2093, 0.0
        %v2108 = vmax.f32 %v2096, 0.0
        %v2109 = vmax.f32 %v2101, 0.0
        %v2110 = vmax.f32 %v2104, 0.0
        %s2111 = scalar_lea.vmem %s13, 32
        %v2112 = vld [vmem:[%s2111] sm:$0xff]
        %v2113 = vld [vmem:[%s2111 + $0x8] sm:$0xff]
        %v2114 = vld [vmem:[%s2111 + $0x10] sm:$0xff]
        %v2115 = vld [vmem:[%s2111 + $0x18] sm:$0xff]
        %2117 = vset.pattern.permute.xlu0 0
        %2118 = vperm.xlu0 %2117, %v2112
        %v2119 = vpop.permute.xlu0 %2118
        %2122 = vset.pattern.permute.xlu0 0
        %2123 = vperm.xlu0 %2122, %v2113
        %v2124 = vpop.permute.xlu0 %2123
        %2127 = vset.pattern.permute.xlu0 0
        %2128 = vperm.xlu0 %2127, %v2114
        %v2129 = vpop.permute.xlu0 %2128
        %2132 = vset.pattern.permute.xlu0 0
        %2133 = vperm.xlu0 %2132, %v2115
        %v2134 = vpop.permute.xlu0 %2133
        %v2136 = vmul.f32 %v2107, %v2119
        %v2137 = vmul.f32 %v2108, %v2124
        %v2138 = vmul.f32 %v2109, %v2129
        %v2139 = vmul.f32 %v2110, %v2134
        %v2140 = vsel %vm1656, %v2136, 0.0
        %v2141 = vsel %vm1656, %v2137, 0.0
        %v2142 = vadd.f32 %v2140, %v2141
        %v2143 = vsel %vm1656, %v2138, 0.0
        %v2144 = vadd.f32 %v2142, %v2143
        %v2145 = vsel %vm1656, %v2139, 0.0
        %v2146 = vadd.f32 %v2144, %v2145
        %v2147 = vrot.slane %v2146, 4
        %v2148 = vadd.f32 %v2146, %v2147
        %v2149 = vrot.slane %v2148, 2
        %v2150 = vadd.f32 %v2148, %v2149
        %v2151 = vrot.slane %v2150, 1
        %v2152 = vadd.f32 %v2150, %v2151
        %s2153 = scalar_lea.vmem %s14, 1
        %v2154 = vld [vmem:[%s2153] sm:$0x1]
        %2156 = vset.pattern.permute.xlu0 0
        %2157 = vperm.xlu0 %2156, %v2154
        %v2158 = vpop.permute.xlu0 %2157
        %v2160 = vlaneseq
        %v2161 = vshrl.u32 %v2160, 7
        %v2162 = vsub.s32 0, %v2161
        %v2163 = vrot.slane %v2158, %v2162
        %v2164 = vadd.f32 %v2152, %v2163
        %v2165 = vsub.f32 0.0, %v2164
        %v2166 = vmul.f32 %v2165, 1.442695
        %v2167 = vpow.pop %v2166
        %v2168 = vadd.f32 %v2167, 1.0
        %v2169 = vrcp.pop %v2168
        %v2170 = vmul.f32 1.0, %v2169
        %s2171 = scalar_lea.vmem %s15, 32
        %v2172 = vld [vmem:[%s2171] sm:$0xff]
        %v2173 = vld [vmem:[%s2171 + $0x8] sm:$0xff]
        %v2174 = vld [vmem:[%s2171 + $0x10] sm:$0xff]
        %v2175 = vld [vmem:[%s2171 + $0x18] sm:$0xff]
        %2177 = vset.pattern.permute.xlu0 0
        %2178 = vperm.xlu0 %2177, %v2172
        %v2179 = vpop.permute.xlu0 %2178
        %2182 = vset.pattern.permute.xlu0 0
        %2183 = vperm.xlu0 %2182, %v2173
        %v2184 = vpop.permute.xlu0 %2183
        %2187 = vset.pattern.permute.xlu0 0
        %2188 = vperm.xlu0 %2187, %v2174
        %v2189 = vpop.permute.xlu0 %2188
        %2192 = vset.pattern.permute.xlu0 0
        %2193 = vperm.xlu0 %2192, %v2175
        %v2194 = vpop.permute.xlu0 %2193
        %v2196 = vmul.f32 %v2170, %v2179
        %v2197 = vmul.f32 %v2170, %v2184
        %v2198 = vmul.f32 %v2170, %v2189
        %v2199 = vmul.f32 %v2170, %v2194
        %s2200 = scalar_lea.vmem %s16, 32
        %v2201 = vld [vmem:[%s2200] sm:$0xff]
        %v2202 = vld [vmem:[%s2200 + $0x8] sm:$0xff]
        %v2203 = vld [vmem:[%s2200 + $0x10] sm:$0xff]
        %v2204 = vld [vmem:[%s2200 + $0x18] sm:$0xff]
        %2206 = vset.pattern.permute.xlu0 0
        %2207 = vperm.xlu0 %2206, %v2201
        %v2208 = vpop.permute.xlu0 %2207
        %2211 = vset.pattern.permute.xlu0 0
        %2212 = vperm.xlu0 %2211, %v2202
        %v2213 = vpop.permute.xlu0 %2212
        %2216 = vset.pattern.permute.xlu0 0
        %2217 = vperm.xlu0 %2216, %v2203
        %v2218 = vpop.permute.xlu0 %2217
        %2221 = vset.pattern.permute.xlu0 0
        %2222 = vperm.xlu0 %2221, %v2204
        %v2223 = vpop.permute.xlu0 %2222
        %v2225 = vadd.f32 %v2196, %v2208
        %v2226 = vadd.f32 %v2197, %v2213
        %v2227 = vadd.f32 %v2198, %v2218
        %v2228 = vadd.f32 %v2199, %v2223
        %v2229 = vmax.f32 %v2225, 0.0
        %v2230 = vmax.f32 %v2226, 0.0
        %v2231 = vmax.f32 %v2227, 0.0
        %v2232 = vmax.f32 %v2228, 0.0
        %v2233 = vmul.f32 %v2107, %v2229
        %v2234 = vmul.f32 %v2108, %v2230
        %v2235 = vmul.f32 %v2109, %v2231
        %v2236 = vmul.f32 %v2110, %v2232
        %2237 = vst.msk [vmem:[#allocation2 + $0x8] sm:$0xff] %vm1656, %v2233
        %2238 = vst.msk [vmem:[#allocation2 + $0x58] sm:$0xff] %vm1656, %v2234
        %2239 = vst.msk [vmem:[#allocation2 + $0xa8] sm:$0xff] %vm1656, %v2235
        %2240 = vst.msk [vmem:[#allocation2 + $0xf8] sm:$0xff] %vm1656, %v2236
        %v2241 = vld [vmem:[#allocation12] sm:$0x3]
        %v2242 = vld [vmem:[#allocation2] sm:$0xff]
        %v2243 = vld [vmem:[#allocation2 + $0x8] sm:$0xff]
        %v2244 = vld [vmem:[#allocation2 + $0x50] sm:$0xff]
        %v2245 = vld [vmem:[#allocation2 + $0x58] sm:$0xff]
        %v2246 = vld [vmem:[#allocation2 + $0xa0] sm:$0xff]
        %v2247 = vld [vmem:[#allocation2 + $0xa8] sm:$0xff]
        %v2248 = vld [vmem:[#allocation2 + $0xf0] sm:$0xff]
        %v2249 = vld [vmem:[#allocation2 + $0xf8] sm:$0xff]
        %v2250 = vlaneseq
        %v2251 = vshrl.u32 %v2250, 7
        %v2252 = vsub.s32 0, %v2251
        %v2253 = vrot.slane %v2241, %v2252
        %2255 = vrot.lane.b32.xlu0 %v2253, 119
        %v2256 = vpop.permute.xlu0 %2255
        %v2258 = vmul.f32 %v2242, %v2256
        %v2259 = vmul.f32 %v2243, %v2256
        %v2260 = vmul.f32 %v2244, %v2256
        %v2261 = vmul.f32 %v2245, %v2256
        %v2262 = vmul.f32 %v2246, %v2256
        %v2263 = vmul.f32 %v2247, %v2256
        %v2264 = vmul.f32 %v2248, %v2256
        %v2265 = vmul.f32 %v2249, %v2256
        %v2266 = vpack.c.bf16 %v2260, %v2258
        %v2267 = vpack.c.bf16 %v2261, %v2259
        %v2268 = vpack.c.bf16 %v2264, %v2262
        %v2269 = vpack.c.bf16 %v2265, %v2263
        %2274 = vrot.lane.b32.xlu0 %v2266, 9
        %v2275 = vpop.permute.xlu0 %2274
        %2276 = vrot.lane.b32.xlu0 %v2267, 9
        %v2277 = vpop.permute.xlu0 %2276
        %2278 = vrot.lane.b32.xlu0 %v2268, 9
        %v2279 = vpop.permute.xlu0 %2278
        %2280 = vrot.lane.b32.xlu0 %v2269, 9
        %v2281 = vpop.permute.xlu0 %2280
        %v2282 = vsel %vm1702, %v2275, %v2277
        %v2283 = vsel %vm1702, %v2279, %v2281
        %2286 = vst.msk [vmem:[#allocation3] sm:$0xff] %vm1656, %v2282
        %2287 = vst.msk [vmem:[#allocation3 + $0x40] sm:$0xff] %vm1656, %v2283
        %v2288 = vld [vmem:[#allocation2] sm:$0xff]
        %v2289 = vld [vmem:[#allocation2 + $0x8] sm:$0xff]
        %v2290 = vld [vmem:[#allocation2 + $0x50] sm:$0xff]
        %v2291 = vld [vmem:[#allocation2 + $0x58] sm:$0xff]
        %v2292 = vld [vmem:[#allocation2 + $0xa0] sm:$0xff]
        %v2293 = vld [vmem:[#allocation2 + $0xa8] sm:$0xff]
        %v2294 = vld [vmem:[#allocation2 + $0xf0] sm:$0xff]
        %v2295 = vld [vmem:[#allocation2 + $0xf8] sm:$0xff]
        %v2296 = vpack.c.bf16 %v2290, %v2288
        %v2297 = vpack.c.bf16 %v2291, %v2289
        %v2298 = vpack.c.bf16 %v2294, %v2292
        %v2299 = vpack.c.bf16 %v2295, %v2293
        %2304 = vrot.lane.b32.xlu0 %v2296, 8
        %v2305 = vpop.permute.xlu0 %2304
        %2306 = vrot.lane.b32.xlu0 %v2297, 8
        %v2307 = vpop.permute.xlu0 %2306
        %2308 = vrot.lane.b32.xlu0 %v2298, 8
        %v2309 = vpop.permute.xlu0 %2308
        %2310 = vrot.lane.b32.xlu0 %v2299, 8
        %v2311 = vpop.permute.xlu0 %2310
        %v2312 = vsel %vm1733, %v2305, %v2307
        %v2313 = vsel %vm1733, %v2309, %v2311
        %2316 = vst.msk [vmem:[#allocation3 + $0x80] sm:$0xff] %vm1656, %v2312
        %2317 = vst.msk [vmem:[#allocation3 + $0xc0] sm:$0xff] %vm1656, %v2313
        %v2318 = vld [vmem:[#allocation2] sm:$0xff]
        %v2319 = vld [vmem:[#allocation2 + $0x8] sm:$0xff]
        %v2320 = vld [vmem:[#allocation2 + $0x50] sm:$0xff]
        %v2321 = vld [vmem:[#allocation2 + $0x58] sm:$0xff]
        %v2322 = vld [vmem:[#allocation2 + $0xa0] sm:$0xff]
        %v2323 = vld [vmem:[#allocation2 + $0xa8] sm:$0xff]
        %v2324 = vld [vmem:[#allocation2 + $0xf0] sm:$0xff]
        %v2325 = vld [vmem:[#allocation2 + $0xf8] sm:$0xff]
        %v2326 = vlaneseq
        %v2327 = vshrl.u32 %v2326, 7
        %v2328 = vsub.s32 1, %v2327
        %v2329 = vrot.slane %v2241, %v2328
        %2331 = vrot.lane.b32.xlu0 %v2329, 121
        %v2332 = vpop.permute.xlu0 %2331
        %v2334 = vmul.f32 %v2318, %v2332
        %v2335 = vmul.f32 %v2319, %v2332
        %v2336 = vmul.f32 %v2320, %v2332
        %v2337 = vmul.f32 %v2321, %v2332
        %v2338 = vmul.f32 %v2322, %v2332
        %v2339 = vmul.f32 %v2323, %v2332
        %v2340 = vmul.f32 %v2324, %v2332
        %v2341 = vmul.f32 %v2325, %v2332
        %v2342 = vpack.c.bf16 %v2336, %v2334
        %v2343 = vpack.c.bf16 %v2337, %v2335
        %v2344 = vpack.c.bf16 %v2340, %v2338
        %v2345 = vpack.c.bf16 %v2341, %v2339
        %2350 = vrot.lane.b32.xlu0 %v2342, 7
        %v2351 = vpop.permute.xlu0 %2350
        %2352 = vrot.lane.b32.xlu0 %v2343, 7
        %v2353 = vpop.permute.xlu0 %2352
        %2354 = vrot.lane.b32.xlu0 %v2344, 7
        %v2355 = vpop.permute.xlu0 %2354
        %2356 = vrot.lane.b32.xlu0 %v2345, 7
        %v2357 = vpop.permute.xlu0 %2356
        %v2358 = vsel %vm1780, %v2351, %v2353
        %v2359 = vsel %vm1780, %v2355, %v2357
        %2362 = vst.msk [vmem:[#allocation3 + $0x100] sm:$0xff] %vm1656, %v2358
        %2363 = vst.msk [vmem:[#allocation3 + $0x140] sm:$0xff] %vm1656, %v2359
        %v2364 = vld [vmem:[#allocation2] sm:$0xff]
        %v2365 = vld [vmem:[#allocation2 + $0x8] sm:$0xff]
        %v2366 = vld [vmem:[#allocation2 + $0x50] sm:$0xff]
        %v2367 = vld [vmem:[#allocation2 + $0x58] sm:$0xff]
        %v2368 = vld [vmem:[#allocation2 + $0xa0] sm:$0xff]
        %v2369 = vld [vmem:[#allocation2 + $0xa8] sm:$0xff]
        %v2370 = vld [vmem:[#allocation2 + $0xf0] sm:$0xff]
        %v2371 = vld [vmem:[#allocation2 + $0xf8] sm:$0xff]
        %2372 = vrot.lane.b32.xlu0 %v2253, 127
        %v2373 = vpop.permute.xlu0 %2372
        %v2375 = vmul.f32 %v2364, %v2373
        %v2376 = vmul.f32 %v2365, %v2373
        %v2377 = vmul.f32 %v2366, %v2373
        %v2378 = vmul.f32 %v2367, %v2373
        %v2379 = vmul.f32 %v2368, %v2373
        %v2380 = vmul.f32 %v2369, %v2373
        %v2381 = vmul.f32 %v2370, %v2373
        %v2382 = vmul.f32 %v2371, %v2373
        %v2383 = vpack.c.bf16 %v2377, %v2375
        %v2384 = vpack.c.bf16 %v2378, %v2376
        %v2385 = vpack.c.bf16 %v2381, %v2379
        %v2386 = vpack.c.bf16 %v2382, %v2380
        %2391 = vrot.lane.b32.xlu0 %v2383, 1
        %v2392 = vpop.permute.xlu0 %2391
        %2393 = vrot.lane.b32.xlu0 %v2384, 1
        %v2394 = vpop.permute.xlu0 %2393
        %2395 = vrot.lane.b32.xlu0 %v2385, 1
        %v2396 = vpop.permute.xlu0 %2395
        %2397 = vrot.lane.b32.xlu0 %v2386, 1
        %v2398 = vpop.permute.xlu0 %2397
        %v2399 = vsel %vm1292, %v2392, %v2394
        %v2400 = vsel %vm1292, %v2396, %v2398
        %2403 = vst.msk [vmem:[#allocation3 + $0x180] sm:$0xff] %vm1656, %v2399
        %2404 = vst.msk [vmem:[#allocation3 + $0x1c0] sm:$0xff] %vm1656, %v2400
        %v2405 = vld [vmem:[#allocation2 + $0x8] sm:$0xff]
        %v2406 = vld [vmem:[#allocation2 + $0x58] sm:$0xff]
        %v2407 = vld [vmem:[#allocation2 + $0xa8] sm:$0xff]
        %v2408 = vld [vmem:[#allocation2 + $0xf8] sm:$0xff]
        %v2409 = vpack.c.bf16 %v2406, %v2405
        %v2410 = vpack.c.bf16 %v2408, %v2407
        %2411 = vst.msk [vmem:[#allocation3 + $0x200] sm:$0xff] %vm1656, %v2409
        %2412 = vst.msk [vmem:[#allocation3 + $0x240] sm:$0xff] %vm1656, %v2410
        %v2413 = vld [vmem:[#allocation2 + $0x8] sm:$0xff]
        %v2414 = vld [vmem:[#allocation2 + $0x58] sm:$0xff]
        %v2415 = vld [vmem:[#allocation2 + $0xa8] sm:$0xff]
        %v2416 = vld [vmem:[#allocation2 + $0xf8] sm:$0xff]
        %2417 = vrot.lane.b32.xlu0 %v2329, 1
        %v2418 = vpop.permute.xlu0 %2417
        %v2420 = vmul.f32 %v2413, %v2418
        %v2421 = vmul.f32 %v2414, %v2418
        %v2422 = vmul.f32 %v2415, %v2418
        %v2423 = vmul.f32 %v2416, %v2418
        %v2424 = vpack.c.bf16 %v2421, %v2420
        %v2425 = vpack.c.bf16 %v2423, %v2422
        %2428 = vrot.lane.b32.xlu0 %v2424, 127
        %v2429 = vpop.permute.xlu0 %2428
        %2430 = vrot.lane.b32.xlu0 %v2425, 127
        %v2431 = vpop.permute.xlu0 %2430
        %2434 = vst.msk [vmem:[#allocation3 + $0x280] sm:$0xff] %vm1656, %v2429
        %2435 = vst.msk [vmem:[#allocation3 + $0x2c0] sm:$0xff] %vm1656, %v2431
        %v2436 = vld [vmem:[#allocation2 + $0x8] sm:$0xff]
        %v2437 = vld [vmem:[#allocation2 + $0x58] sm:$0xff]
        %v2438 = vld [vmem:[#allocation2 + $0xa8] sm:$0xff]
        %v2439 = vld [vmem:[#allocation2 + $0xf8] sm:$0xff]
        %2440 = vrot.lane.b32.xlu0 %v2253, 7
        %v2441 = vpop.permute.xlu0 %2440
        %v2443 = vmul.f32 %v2436, %v2441
        %v2444 = vmul.f32 %v2437, %v2441
        %v2445 = vmul.f32 %v2438, %v2441
        %v2446 = vmul.f32 %v2439, %v2441
        %v2447 = vpack.c.bf16 %v2444, %v2443
        %v2448 = vpack.c.bf16 %v2446, %v2445
        %2451 = vrot.lane.b32.xlu0 %v2447, 121
        %v2452 = vpop.permute.xlu0 %2451
        %2453 = vrot.lane.b32.xlu0 %v2448, 121
        %v2454 = vpop.permute.xlu0 %2453
        %2457 = vst.msk [vmem:[#allocation3 + $0x300] sm:$0xff] %vm1656, %v2452
        %2458 = vst.msk [vmem:[#allocation3 + $0x340] sm:$0xff] %vm1656, %v2454
        %v2459 = vld [vmem:[#allocation2 + $0x8] sm:$0xff]
        %v2460 = vld [vmem:[#allocation2 + $0x58] sm:$0xff]
        %v2461 = vld [vmem:[#allocation2 + $0xa8] sm:$0xff]
        %v2462 = vld [vmem:[#allocation2 + $0xf8] sm:$0xff]
        %v2463 = vpack.c.bf16 %v2460, %v2459
        %v2464 = vpack.c.bf16 %v2462, %v2461
        %2467 = vrot.lane.b32.xlu0 %v2463, 120
        %v2468 = vpop.permute.xlu0 %2467
        %2469 = vrot.lane.b32.xlu0 %v2464, 120
        %v2470 = vpop.permute.xlu0 %2469
        %2473 = vst.msk [vmem:[#allocation3 + $0x380] sm:$0xff] %vm1656, %v2468
        %2474 = vst.msk [vmem:[#allocation3 + $0x3c0] sm:$0xff] %vm1656, %v2470
        %v2475 = vld [vmem:[#allocation2 + $0x8] sm:$0xff]
        %v2476 = vld [vmem:[#allocation2 + $0x58] sm:$0xff]
        %v2477 = vld [vmem:[#allocation2 + $0xa8] sm:$0xff]
        %v2478 = vld [vmem:[#allocation2 + $0xf8] sm:$0xff]
        %2479 = vrot.lane.b32.xlu0 %v2329, 9
        %v2480 = vpop.permute.xlu0 %2479
        %v2482 = vmul.f32 %v2475, %v2480
        %v2483 = vmul.f32 %v2476, %v2480
        %v2484 = vmul.f32 %v2477, %v2480
        %v2485 = vmul.f32 %v2478, %v2480
        %v2486 = vpack.c.bf16 %v2483, %v2482
        %v2487 = vpack.c.bf16 %v2485, %v2484
        %2490 = vrot.lane.b32.xlu0 %v2486, 119
        %v2491 = vpop.permute.xlu0 %2490
        %2492 = vrot.lane.b32.xlu0 %v2487, 119
        %v2493 = vpop.permute.xlu0 %2492
        %2496 = vst.msk [vmem:[#allocation3 + $0x400] sm:$0xff] %vm1656, %v2491
        %2497 = vst.msk [vmem:[#allocation3 + $0x440] sm:$0xff] %vm1656, %v2493
        %s2498 = scalar_lea.vmem [#allocation15], 96
        %v2499 = vld [vmem:[%s2498] sm:$0xff]
        %v2500 = vld [vmem:[%s2498 + $0x8] sm:$0xf]
        %v2501 = vld [vmem:[%s2498 + $0xc] sm:$0xff]
        %v2502 = vld [vmem:[%s2498 + $0x14] sm:$0xf]
        %v2503 = vld [vmem:[%s2498 + $0x18] sm:$0xff]
        %v2504 = vld [vmem:[%s2498 + $0x20] sm:$0xf]
        %v2505 = vld [vmem:[%s2498 + $0x24] sm:$0xff]
        %v2506 = vld [vmem:[%s2498 + $0x2c] sm:$0xf]
        %v2507 = vld [vmem:[#allocation3] sm:$0xff]
        %v2508 = vld [vmem:[#allocation3 + $0x40] sm:$0xff]
        %v2509 = vld [vmem:[#allocation3 + $0x80] sm:$0xff]
        %v2510 = vld [vmem:[#allocation3 + $0xc0] sm:$0xff]
        %v2511 = vld [vmem:[#allocation3 + $0x100] sm:$0xff]
        %v2512 = vld [vmem:[#allocation3 + $0x140] sm:$0xff]
        %v2513 = vld [vmem:[#allocation3 + $0x180] sm:$0xff]
        %v2514 = vld [vmem:[#allocation3 + $0x1c0] sm:$0xff]
        %v2515 = vld [vmem:[#allocation3 + $0x200] sm:$0xff]
        %v2516 = vld [vmem:[#allocation3 + $0x240] sm:$0xff]
        %v2517 = vld [vmem:[#allocation3 + $0x280] sm:$0xff]
        %v2518 = vld [vmem:[#allocation3 + $0x2c0] sm:$0xff]
        %v2519 = vld [vmem:[#allocation3 + $0x300] sm:$0xff]
        %v2520 = vld [vmem:[#allocation3 + $0x340] sm:$0xff]
        %v2521 = vld [vmem:[#allocation3 + $0x380] sm:$0xff]
        %v2522 = vld [vmem:[#allocation3 + $0x3c0] sm:$0xff]
        %v2523 = vld [vmem:[#allocation3 + $0x400] sm:$0xff]
        %v2524 = vld [vmem:[#allocation3 + $0x440] sm:$0xff]
        %s2525 = scalar_lea.vmem %s12, 64
        %v2526 = vld [vmem:[%s2525] sm:$0xff]
        %v2527 = vld [vmem:[%s2525 + $0x8] sm:$0xff]
        %v2528 = vld [vmem:[%s2525 + $0x10] sm:$0xff]
        %v2529 = vld [vmem:[%s2525 + $0x18] sm:$0xff]
        %2531 = vset.pattern.permute.xlu0 0
        %2532 = vperm.xlu0 %2531, %v2526
        %v2533 = vpop.permute.xlu0 %2532
        %2536 = vset.pattern.permute.xlu0 0
        %2537 = vperm.xlu0 %2536, %v2527
        %v2538 = vpop.permute.xlu0 %2537
        %2541 = vset.pattern.permute.xlu0 0
        %2542 = vperm.xlu0 %2541, %v2528
        %v2543 = vpop.permute.xlu0 %2542
        %2546 = vset.pattern.permute.xlu0 0
        %2547 = vperm.xlu0 %2546, %v2529
        %v2548 = vpop.permute.xlu0 %2547
        %v2558 = vunpack.c.l.b16 %v2499
        %v2559 = vunpack.c.h.b16 %v2499
        %v2560 = vunpack.c.l.b16 %v2500
        %v2561 = vunpack.c.l.b16 %v2501
        %v2562 = vunpack.c.h.b16 %v2501
        %v2563 = vunpack.c.l.b16 %v2502
        %v2564 = vunpack.c.l.b16 %v2503
        %v2565 = vunpack.c.h.b16 %v2503
        %v2566 = vunpack.c.l.b16 %v2504
        %v2567 = vunpack.c.l.b16 %v2505
        %v2568 = vunpack.c.h.b16 %v2505
        %v2569 = vunpack.c.l.b16 %v2506
        %v2570 = vpack.c.b16 %v2561, %v2558
        %v2571 = vpack.c.b16 %v2562, %v2559
        %v2572 = vpack.c.b16 %v2563, %v2560
        %v2573 = vpack.c.b16 %v2567, %v2564
        %v2574 = vpack.c.b16 %v2568, %v2565
        %v2575 = vpack.c.b16 %v2569, %v2566
        %v2581 = vsel %vm1472, %v2572, 0
        %v2584 = vsel %vm1472, %v2575, 0
        %2586 = vmatprep.subr.bf16.mxu0 0
        %2587 = vmatpush1.bf16.msra.mxu0 %v2507
        %2588 = vmatprep.subr.bf16.mxu0 0
        %2589 = vmatpush1.bf16.msra.mxu0 %v2508
        %2590 = vmatprep.subr.bf16.mxu0 0
        %2591 = vmatpush1.bf16.msra.mxu0 %v2509
        %2592 = vmatprep.subr.bf16.mxu0 0
        %2593 = vmatpush1.bf16.msra.mxu0 %v2510
        %2594 = vmatprep.subr.bf16.mxu0 0
        %2595 = vmatpush1.bf16.msra.mxu0 %v2511
        %2596 = vmatprep.subr.bf16.mxu0 0
        %2597 = vmatpush1.bf16.msra.mxu0 %v2512
        %2598 = vmatprep.subr.bf16.mxu0 0
        %2599 = vmatpush1.bf16.msra.mxu0 %v2513
        %2600 = vmatprep.subr.bf16.mxu0 0
        %2601 = vmatpush1.bf16.msra.mxu0 %v2514
        %2602 = vmatprep.subr.bf16.mxu0 0
        %2603 = vmatpush1.bf16.msra.mxu0 %v2515
        %2604 = vmatprep.subr.bf16.mxu0 0
        %2605 = vmatpush1.bf16.msra.mxu0 %v2516
        %2606 = vmatprep.subr.bf16.mxu0 0
        %2607 = vmatpush1.bf16.msra.mxu0 %v2517
        %2608 = vmatprep.subr.bf16.mxu0 0
        %2609 = vmatpush1.bf16.msra.mxu0 %v2518
        %2610 = vmatprep.subr.bf16.mxu0 0
        %2611 = vmatpush1.bf16.msra.mxu0 %v2519
        %2612 = vmatprep.subr.bf16.mxu0 0
        %2613 = vmatpush1.bf16.msra.mxu0 %v2520
        %2614 = vmatprep.subr.bf16.mxu0 0
        %2615 = vmatpush1.bf16.msra.mxu0 %v2521
        %2616 = vmatprep.subr.bf16.mxu0 0
        %2617 = vmatpush1.bf16.msra.mxu0 %v2522
        %2618 = vmatprep.mubr.bf16.mxu0 %v2571
        %2619 = vmatmul.mubr.bf16.gmra.mrb[0].mxu0 %v2570
        %v2620 = vpop.f32.mrb[0].mxu0
        %v2621 = vadd.f32 %v2533, %v2620
        %v2622 = vpop.f32.mrb[0].mxu0
        %v2623 = vpop.f32.mrb[0].mxu0
        %v2624 = vadd.f32 %v2538, %v2623
        %v2625 = vpop.f32.mrb[0].mxu0
        %2626 = vmatprep.mubr.bf16.mxu0 %v2574
        %2627 = vmatmul.mubr.bf16.gmra.mrb[0].mxu0 %v2573
        %v2628 = vpop.f32.mrb[0].mxu0
        %v2629 = vadd.f32 %v2543, %v2628
        %v2630 = vpop.f32.mrb[0].mxu0
        %v2631 = vpop.f32.mrb[0].mxu0
        %v2632 = vadd.f32 %v2548, %v2631
        %v2633 = vpop.f32.mrb[0].mxu0
        %2634 = vdwg.mxu0
        %2635 = vmatprep.subr.bf16.mxu0 0
        %2636 = vmatpush1.bf16.msra.mxu0 %v2523
        %2637 = vmatprep.subr.bf16.mxu0 0
        %2638 = vmatpush1.bf16.msra.mxu0 %v2524
        %2639 = vmatprep.subr.bf16.mxu0 0
        %2640 = vmatpush1.bf16.msra.mxu0 0
        %2641 = vmatprep.subr.bf16.mxu0 0
        %2642 = vmatpush1.bf16.msra.mxu0 0
        %2643 = vmatprep.subr.bf16.mxu0 0
        %2644 = vmatpush1.bf16.msra.mxu0 0
        %2645 = vmatprep.subr.bf16.mxu0 0
        %2646 = vmatpush1.bf16.msra.mxu0 0
        %2647 = vmatprep.subr.bf16.mxu0 0
        %2648 = vmatpush1.bf16.msra.mxu0 0
        %2649 = vmatprep.subr.bf16.mxu0 0
        %2650 = vmatpush1.bf16.msra.mxu0 0
        %2651 = vmatprep.subr.bf16.mxu0 0
        %2652 = vmatpush1.bf16.msra.mxu0 0
        %2653 = vmatprep.subr.bf16.mxu0 0
        %2654 = vmatpush1.bf16.msra.mxu0 0
        %2655 = vmatprep.subr.bf16.mxu0 0
        %2656 = vmatpush1.bf16.msra.mxu0 0
        %2657 = vmatprep.subr.bf16.mxu0 0
        %2658 = vmatpush1.bf16.msra.mxu0 0
        %2659 = vmatprep.subr.bf16.mxu0 0
        %2660 = vmatpush1.bf16.msra.mxu0 0
        %2661 = vmatprep.subr.bf16.mxu0 0
        %2662 = vmatpush1.bf16.msra.mxu0 0
        %2663 = vmatprep.subr.bf16.mxu0 0
        %2664 = vmatpush1.bf16.msra.mxu0 0
        %2665 = vmatprep.subr.bf16.mxu0 0
        %2666 = vmatpush1.bf16.msra.mxu0 0
        %2667 = vmatprep.mubr.bf16.mxu0 0
        %2668 = vmatmul.mubr.bf16.gmra.mrb[0].mxu0 %v2581
        %v2669 = vpop.f32.mrb[0].mxu0
        %v2670 = vadd.f32 %v2621, %v2669
        %v2671 = vpop.f32.mrb[0].mxu0
        %v2672 = vpop.f32.mrb[0].mxu0
        %v2673 = vadd.f32 %v2624, %v2672
        %v2674 = vpop.f32.mrb[0].mxu0
        %2675 = vmatprep.mubr.bf16.mxu0 0
        %2676 = vmatmul.mubr.bf16.gmra.mrb[0].mxu0 %v2584
        %v2677 = vpop.f32.mrb[0].mxu0
        %v2678 = vadd.f32 %v2629, %v2677
        %v2679 = vpop.f32.mrb[0].mxu0
        %v2680 = vpop.f32.mrb[0].mxu0
        %v2681 = vadd.f32 %v2632, %v2680
        %v2682 = vpop.f32.mrb[0].mxu0
        %2683 = vdwg.mxu0
        %v2684 = vmax.f32 %v2670, 0.0
        %v2685 = vmax.f32 %v2673, 0.0
        %v2686 = vmax.f32 %v2678, 0.0
        %v2687 = vmax.f32 %v2681, 0.0
        %2688 = vst.msk [vmem:[%s905] sm:$0xff] %vm1656, %v2684
        %2689 = vst.msk [vmem:[%s905 + $0x8] sm:$0xff] %vm1656, %v2685
        %2690 = vst.msk [vmem:[%s905 + $0x10] sm:$0xff] %vm1656, %v2686
        %2691 = vst.msk [vmem:[%s905 + $0x18] sm:$0xff] %vm1656, %v2687
        %vm2692 = vcmask 516096
        %2693 = vst.msk [vmem:[%s932] sm:$0x1] %vm2692, %v2164
        %v2694 = vpack.c.bf16 %v2685, %v2684
        %v2695 = vpack.c.bf16 %v2687, %v2686
        %v2696 = vld [vmem:[%s5] sm:$0xff]
        %v2697 = vld [vmem:[%s5 + $0x8] sm:$0xff]
        %v2698 = vld [vmem:[%s5 + $0x10] sm:$0xff]
        %v2699 = vld [vmem:[%s5 + $0x18] sm:$0xff]
        %v2700 = vld [vmem:[%s5 + $0x20] sm:$0xff]
        %v2701 = vld [vmem:[%s5 + $0x28] sm:$0xff]
        %v2702 = vld [vmem:[%s5 + $0x30] sm:$0xff]
        %v2703 = vld [vmem:[%s5 + $0x38] sm:$0xff]
        %v2704 = vld [vmem:[%s802] sm:$0xff]
        %v2705 = vld [vmem:[%s802 + $0x8] sm:$0xff]
        %v2706 = vld [vmem:[%s802 + $0x10] sm:$0xff]
        %v2707 = vld [vmem:[%s802 + $0x18] sm:$0xff]
        %v2708 = vld [vmem:[%s802 + $0x20] sm:$0xff]
        %v2709 = vld [vmem:[%s802 + $0x28] sm:$0xff]
        %v2710 = vld [vmem:[%s802 + $0x30] sm:$0xff]
        %v2711 = vld [vmem:[%s802 + $0x38] sm:$0xff]
        %v2720 = vunpack.c.l.b16 %v2696
        %v2721 = vunpack.c.h.b16 %v2696
        %v2722 = vunpack.c.l.b16 %v2697
        %v2723 = vunpack.c.h.b16 %v2697
        %v2724 = vunpack.c.l.b16 %v2698
        %v2725 = vunpack.c.h.b16 %v2698
        %v2726 = vunpack.c.l.b16 %v2699
        %v2727 = vunpack.c.h.b16 %v2699
        %v2728 = vunpack.c.l.b16 %v2700
        %v2729 = vunpack.c.h.b16 %v2700
        %v2730 = vunpack.c.l.b16 %v2701
        %v2731 = vunpack.c.h.b16 %v2701
        %v2732 = vunpack.c.l.b16 %v2702
        %v2733 = vunpack.c.h.b16 %v2702
        %v2734 = vunpack.c.l.b16 %v2703
        %v2735 = vunpack.c.h.b16 %v2703
        %v2736 = vpack.c.b16 %v2722, %v2720
        %v2737 = vpack.c.b16 %v2723, %v2721
        %v2738 = vpack.c.b16 %v2726, %v2724
        %v2739 = vpack.c.b16 %v2727, %v2725
        %v2740 = vpack.c.b16 %v2730, %v2728
        %v2741 = vpack.c.b16 %v2731, %v2729
        %v2742 = vpack.c.b16 %v2734, %v2732
        %v2743 = vpack.c.b16 %v2735, %v2733
        %v2753 = vsel %vm1656, %v2694, 0
        %v2756 = vsel %vm1656, %v2695, 0
        %2758 = vmatprep.subr.bf16.mxu0 %v2737
        %2759 = vmatpush1.bf16.msra.mxu0 %v2736
        %2760 = vmatprep.subr.bf16.mxu0 %v2739
        %2761 = vmatpush1.bf16.msra.mxu0 %v2738
        %2762 = vmatprep.subr.bf16.mxu0 %v2741
        %2763 = vmatpush1.bf16.msra.mxu0 %v2740
        %2764 = vmatprep.subr.bf16.mxu0 %v2743
        %2765 = vmatpush1.bf16.msra.mxu0 %v2742
        %2766 = vmatprep.subr.bf16.mxu0 0
        %2767 = vmatpush1.bf16.msra.mxu0 0
        %2768 = vmatprep.subr.bf16.mxu0 0
        %2769 = vmatpush1.bf16.msra.mxu0 0
        %2770 = vmatprep.subr.bf16.mxu0 0
        %2771 = vmatpush1.bf16.msra.mxu0 0
        %2772 = vmatprep.subr.bf16.mxu0 0
        %2773 = vmatpush1.bf16.msra.mxu0 0
        %2774 = vmatprep.subr.bf16.mxu0 0
        %2775 = vmatpush1.bf16.msra.mxu0 0
        %2776 = vmatprep.subr.bf16.mxu0 0
        %2777 = vmatpush1.bf16.msra.mxu0 0
        %2778 = vmatprep.subr.bf16.mxu0 0
        %2779 = vmatpush1.bf16.msra.mxu0 0
        %2780 = vmatprep.subr.bf16.mxu0 0
        %2781 = vmatpush1.bf16.msra.mxu0 0
        %2782 = vmatprep.subr.bf16.mxu0 0
        %2783 = vmatpush1.bf16.msra.mxu0 0
        %2784 = vmatprep.subr.bf16.mxu0 0
        %2785 = vmatpush1.bf16.msra.mxu0 0
        %2786 = vmatprep.subr.bf16.mxu0 0
        %2787 = vmatpush1.bf16.msra.mxu0 0
        %2788 = vmatprep.subr.bf16.mxu0 0
        %2789 = vmatpush1.bf16.msra.mxu0 0
        %2790 = vmatprep.mubr.bf16.mxu0 0
        %2791 = vmatmul.mubr.bf16.gmra.mrb[0].mxu0 %v2753
        %v2792 = vpop.f32.mrb[0].mxu0
        %v2793 = vadd.f32 %v2704, %v2792
        %v2794 = vpop.f32.mrb[0].mxu0
        %v2795 = vadd.f32 %v2705, %v2794
        %v2796 = vpop.f32.mrb[0].mxu0
        %v2797 = vadd.f32 %v2706, %v2796
        %v2798 = vpop.f32.mrb[0].mxu0
        %v2799 = vadd.f32 %v2707, %v2798
        %2800 = vmatprep.mubr.bf16.mxu0 0
        %2801 = vmatmul.mubr.bf16.gmra.mrb[0].mxu0 %v2756
        %v2802 = vpop.f32.mrb[0].mxu0
        %v2803 = vadd.f32 %v2708, %v2802
        %v2804 = vpop.f32.mrb[0].mxu0
        %v2805 = vadd.f32 %v2709, %v2804
        %v2806 = vpop.f32.mrb[0].mxu0
        %v2807 = vadd.f32 %v2710, %v2806
        %v2808 = vpop.f32.mrb[0].mxu0
        %v2809 = vadd.f32 %v2711, %v2808
        %2810 = vdwg.mxu0
        %2811 = vst [vmem:[#allocation2 + $0x8] sm:$0xff] %v2793
        %2812 = vst [vmem:[#allocation2 + $0x10] sm:$0xff] %v2795
        %2813 = vst [vmem:[#allocation2 + $0x58] sm:$0xff] %v2797
        %2814 = vst [vmem:[#allocation2 + $0x60] sm:$0xff] %v2799
        %2815 = vst [vmem:[#allocation2 + $0xa8] sm:$0xff] %v2803
        %2816 = vst [vmem:[#allocation2 + $0xb0] sm:$0xff] %v2805
        %2817 = vst [vmem:[#allocation2 + $0xf8] sm:$0xff] %v2807
        %2818 = vst [vmem:[#allocation2 + $0x100] sm:$0xff] %v2809
        %v2819 = vld [vmem:[#allocation13] sm:$0xf]
        %v2820 = vld [vmem:[#allocation2] sm:$0xff]
        %v2821 = vld [vmem:[#allocation2 + $0x8] sm:$0xff]
        %v2822 = vld [vmem:[#allocation2 + $0x10] sm:$0xff]
        %v2823 = vld [vmem:[#allocation2 + $0x50] sm:$0xff]
        %v2824 = vld [vmem:[#allocation2 + $0x58] sm:$0xff]
        %v2825 = vld [vmem:[#allocation2 + $0x60] sm:$0xff]
        %v2826 = vld [vmem:[#allocation2 + $0xa0] sm:$0xff]
        %v2827 = vld [vmem:[#allocation2 + $0xa8] sm:$0xff]
        %v2828 = vld [vmem:[#allocation2 + $0xb0] sm:$0xff]
        %v2829 = vld [vmem:[#allocation2 + $0xf0] sm:$0xff]
        %v2830 = vld [vmem:[#allocation2 + $0xf8] sm:$0xff]
        %v2831 = vld [vmem:[#allocation2 + $0x100] sm:$0xff]
        %v2833 = vlaneseq
        %v2834 = vshrl.u32 %v2833, 7
        %v2835 = vsub.s32 0, %v2834
        %v2836 = vrot.slane %v2819, %v2835
        %v2837 = vlaneseq
        %v2838 = vshrl.u32 %v2837, 7
        %v2839 = vsub.s32 2, %v2838
        %v2840 = vrot.slane %v2819, %v2839
        %v2843 = vlaneseq
        %v2844 = vshrl.u32 %v2843, 7
        %v2845 = vsub.s32 0, %v2844
        %v2846 = vrot.slane %v2836, %v2845
        %v2847 = vlaneseq
        %v2848 = vshrl.u32 %v2847, 7
        %v2849 = vsub.s32 0, %v2848
        %v2850 = vrot.slane %v2840, %v2849
        %2853 = vrot.lane.b32.xlu0 %v2846, 111
        %v2854 = vpop.permute.xlu0 %2853
        %2855 = vrot.lane.b32.xlu0 %v2850, 111
        %v2856 = vpop.permute.xlu0 %2855
        %vm2857 = vcmask 908288
        %v2858 = vsel %vm2857, %v2854, %v2856
        %v2862 = vmul.f32 %v2820, %v2854
        %v2863 = vmul.f32 %v2821, %v2858
        %v2864 = vmul.f32 %v2822, %v2856
        %v2865 = vmul.f32 %v2823, %v2854
        %v2866 = vmul.f32 %v2824, %v2858
        %v2867 = vmul.f32 %v2825, %v2856
        %v2868 = vmul.f32 %v2826, %v2854
        %v2869 = vmul.f32 %v2827, %v2858
        %v2870 = vmul.f32 %v2828, %v2856
        %v2871 = vmul.f32 %v2829, %v2854
        %v2872 = vmul.f32 %v2830, %v2858
        %v2873 = vmul.f32 %v2831, %v2856
        %v2874 = vpack.c.bf16 %v2865, %v2862
        %v2875 = vpack.c.bf16 %v2866, %v2863
        %v2876 = vpack.c.bf16 %v2867, %v2864
        %v2877 = vpack.c.bf16 %v2871, %v2868
        %v2878 = vpack.c.bf16 %v2872, %v2869
        %v2879 = vpack.c.bf16 %v2873, %v2870
        %2886 = vrot.lane.b32.xlu0 %v2874, 17
        %v2887 = vpop.permute.xlu0 %2886
        %2888 = vrot.lane.b32.xlu0 %v2875, 17
        %v2889 = vpop.permute.xlu0 %2888
        %2890 = vrot.lane.b32.xlu0 %v2876, 17
        %v2891 = vpop.permute.xlu0 %2890
        %2892 = vrot.lane.b32.xlu0 %v2877, 17
        %v2893 = vpop.permute.xlu0 %2892
        %2894 = vrot.lane.b32.xlu0 %v2878, 17
        %v2895 = vpop.permute.xlu0 %2894
        %2896 = vrot.lane.b32.xlu0 %v2879, 17
        %v2897 = vpop.permute.xlu0 %2896
        %vm2898 = vcmask 138240
        %v2899 = vsel %vm2898, %v2887, %v2889
        %v2900 = vsel %vm2898, %v2889, %v2891
        %v2901 = vsel %vm2898, %v2893, %v2895
        %v2902 = vsel %vm2898, %v2895, %v2897
        %2907 = vst [vmem:[#allocation3] sm:$0xff] %v2899
        %2908 = vst [vmem:[#allocation3 + $0x8] sm:$0xff] %v2900
        %2909 = vst [vmem:[#allocation3 + $0x40] sm:$0xff] %v2901
        %2910 = vst [vmem:[#allocation3 + $0x48] sm:$0xff] %v2902
        %v2911 = vld [vmem:[#allocation2] sm:$0xff]
        %v2912 = vld [vmem:[#allocation2 + $0x8] sm:$0xff]
        %v2913 = vld [vmem:[#allocation2 + $0x10] sm:$0xff]
        %v2914 = vld [vmem:[#allocation2 + $0x50] sm:$0xff]
        %v2915 = vld [vmem:[#allocation2 + $0x58] sm:$0xff]
        %v2916 = vld [vmem:[#allocation2 + $0x60] sm:$0xff]
        %v2917 = vld [vmem:[#allocation2 + $0xa0] sm:$0xff]
        %v2918 = vld [vmem:[#allocation2 + $0xa8] sm:$0xff]
        %v2919 = vld [vmem:[#allocation2 + $0xb0] sm:$0xff]
        %v2920 = vld [vmem:[#allocation2 + $0xf0] sm:$0xff]
        %v2921 = vld [vmem:[#allocation2 + $0xf8] sm:$0xff]
        %v2922 = vld [vmem:[#allocation2 + $0x100] sm:$0xff]
        %v2923 = vpack.c.bf16 %v2914, %v2911
        %v2924 = vpack.c.bf16 %v2915, %v2912
        %v2925 = vpack.c.bf16 %v2916, %v2913
        %v2926 = vpack.c.bf16 %v2920, %v2917
        %v2927 = vpack.c.bf16 %v2921, %v2918
        %v2928 = vpack.c.bf16 %v2922, %v2919
        %2935 = vrot.lane.b32.xlu0 %v2923, 16
        %v2936 = vpop.permute.xlu0 %2935
        %2937 = vrot.lane.b32.xlu0 %v2924, 16
        %v2938 = vpop.permute.xlu0 %2937
        %2939 = vrot.lane.b32.xlu0 %v2925, 16
        %v2940 = vpop.permute.xlu0 %2939
        %2941 = vrot.lane.b32.xlu0 %v2926, 16
        %v2942 = vpop.permute.xlu0 %2941
        %2943 = vrot.lane.b32.xlu0 %v2927, 16
        %v2944 = vpop.permute.xlu0 %2943
        %2945 = vrot.lane.b32.xlu0 %v2928, 16
        %v2946 = vpop.permute.xlu0 %2945
        %vm2947 = vcmask 130048
        %v2948 = vsel %vm2947, %v2936, %v2938
        %v2949 = vsel %vm2947, %v2938, %v2940
        %v2950 = vsel %vm2947, %v2942, %v2944
        %v2951 = vsel %vm2947, %v2944, %v2946
        %2956 = vst [vmem:[#allocation3 + $0x80] sm:$0xff] %v2948
        %2957 = vst [vmem:[#allocation3 + $0x88] sm:$0xff] %v2949
        %2958 = vst [vmem:[#allocation3 + $0xc0] sm:$0xff] %v2950
        %2959 = vst [vmem:[#allocation3 + $0xc8] sm:$0xff] %v2951
        %v2960 = vld [vmem:[#allocation2] sm:$0xff]
        %v2961 = vld [vmem:[#allocation2 + $0x8] sm:$0xff]
        %v2962 = vld [vmem:[#allocation2 + $0x10] sm:$0xff]
        %v2963 = vld [vmem:[#allocation2 + $0x50] sm:$0xff]
        %v2964 = vld [vmem:[#allocation2 + $0x58] sm:$0xff]
        %v2965 = vld [vmem:[#allocation2 + $0x60] sm:$0xff]
        %v2966 = vld [vmem:[#allocation2 + $0xa0] sm:$0xff]
        %v2967 = vld [vmem:[#allocation2 + $0xa8] sm:$0xff]
        %v2968 = vld [vmem:[#allocation2 + $0xb0] sm:$0xff]
        %v2969 = vld [vmem:[#allocation2 + $0xf0] sm:$0xff]
        %v2970 = vld [vmem:[#allocation2 + $0xf8] sm:$0xff]
        %v2971 = vld [vmem:[#allocation2 + $0x100] sm:$0xff]
        %v2972 = vlaneseq
        %v2973 = vshrl.u32 %v2972, 7
        %v2974 = vsub.s32 1, %v2973
        %v2975 = vrot.slane %v2819, %v2974
        %v2976 = vlaneseq
        %v2977 = vshrl.u32 %v2976, 7
        %v2978 = vsub.s32 3, %v2977
        %v2979 = vrot.slane %v2819, %v2978
        %v2982 = vlaneseq
        %v2983 = vshrl.u32 %v2982, 7
        %v2984 = vsub.s32 1, %v2983
        %v2985 = vrot.slane %v2975, %v2984
        %v2986 = vlaneseq
        %v2987 = vshrl.u32 %v2986, 7
        %v2988 = vsub.s32 1, %v2987
        %v2989 = vrot.slane %v2979, %v2988
        %2992 = vrot.lane.b32.xlu0 %v2985, 113
        %v2993 = vpop.permute.xlu0 %2992
        %2994 = vrot.lane.b32.xlu0 %v2989, 113
        %v2995 = vpop.permute.xlu0 %2994
        %vm2996 = vcmask 924672
        %v2997 = vsel %vm2996, %v2993, %v2995
        %v3001 = vmul.f32 %v2960, %v2993
        %v3002 = vmul.f32 %v2961, %v2997
        %v3003 = vmul.f32 %v2962, %v2995
        %v3004 = vmul.f32 %v2963, %v2993
        %v3005 = vmul.f32 %v2964, %v2997
        %v3006 = vmul.f32 %v2965, %v2995
        %v3007 = vmul.f32 %v2966, %v2993
        %v3008 = vmul.f32 %v2967, %v2997
        %v3009 = vmul.f32 %v2968, %v2995
        %v3010 = vmul.f32 %v2969, %v2993
        %v3011 = vmul.f32 %v2970, %v2997
        %v3012 = vmul.f32 %v2971, %v2995
        %v3013 = vpack.c.bf16 %v3004, %v3001
        %v3014 = vpack.c.bf16 %v3005, %v3002
        %v3015 = vpack.c.bf16 %v3006, %v3003
        %v3016 = vpack.c.bf16 %v3010, %v3007
        %v3017 = vpack.c.bf16 %v3011, %v3008
        %v3018 = vpack.c.bf16 %v3012, %v3009
        %3025 = vrot.lane.b32.xlu0 %v3013, 15
        %v3026 = vpop.permute.xlu0 %3025
        %3027 = vrot.lane.b32.xlu0 %v3014, 15
        %v3028 = vpop.permute.xlu0 %3027
        %3029 = vrot.lane.b32.xlu0 %v3015, 15
        %v3030 = vpop.permute.xlu0 %3029
        %3031 = vrot.lane.b32.xlu0 %v3016, 15
        %v3032 = vpop.permute.xlu0 %3031
        %3033 = vrot.lane.b32.xlu0 %v3017, 15
        %v3034 = vpop.permute.xlu0 %3033
        %3035 = vrot.lane.b32.xlu0 %v3018, 15
        %v3036 = vpop.permute.xlu0 %3035
        %vm3037 = vcmask 121856
        %v3038 = vsel %vm3037, %v3026, %v3028
        %v3039 = vsel %vm3037, %v3028, %v3030
        %v3040 = vsel %vm3037, %v3032, %v3034
        %v3041 = vsel %vm3037, %v3034, %v3036
        %3046 = vst [vmem:[#allocation3 + $0x100] sm:$0xff] %v3038
        %3047 = vst [vmem:[#allocation3 + $0x108] sm:$0xff] %v3039
        %3048 = vst [vmem:[#allocation3 + $0x140] sm:$0xff] %v3040
        %3049 = vst [vmem:[#allocation3 + $0x148] sm:$0xff] %v3041
        %v3050 = vld [vmem:[#allocation2] sm:$0xff]
        %v3051 = vld [vmem:[#allocation2 + $0x8] sm:$0xff]
        %v3052 = vld [vmem:[#allocation2 + $0x10] sm:$0xff]
        %v3053 = vld [vmem:[#allocation2 + $0x50] sm:$0xff]
        %v3054 = vld [vmem:[#allocation2 + $0x58] sm:$0xff]
        %v3055 = vld [vmem:[#allocation2 + $0x60] sm:$0xff]
        %v3056 = vld [vmem:[#allocation2 + $0xa0] sm:$0xff]
        %v3057 = vld [vmem:[#allocation2 + $0xa8] sm:$0xff]
        %v3058 = vld [vmem:[#allocation2 + $0xb0] sm:$0xff]
        %v3059 = vld [vmem:[#allocation2 + $0xf0] sm:$0xff]
        %v3060 = vld [vmem:[#allocation2 + $0xf8] sm:$0xff]
        %v3061 = vld [vmem:[#allocation2 + $0x100] sm:$0xff]
        %3062 = vrot.lane.b32.xlu0 %v2846, 127
        %v3063 = vpop.permute.xlu0 %3062
        %3064 = vrot.lane.b32.xlu0 %v2850, 127
        %v3065 = vpop.permute.xlu0 %3064
        %vm3066 = vcmask 1039360
        %v3067 = vsel %vm3066, %v3063, %v3065
        %v3071 = vmul.f32 %v3050, %v3063
        %v3072 = vmul.f32 %v3051, %v3067
        %v3073 = vmul.f32 %v3052, %v3065
        %v3074 = vmul.f32 %v3053, %v3063
        %v3075 = vmul.f32 %v3054, %v3067
        %v3076 = vmul.f32 %v3055, %v3065
        %v3077 = vmul.f32 %v3056, %v3063
        %v3078 = vmul.f32 %v3057, %v3067
        %v3079 = vmul.f32 %v3058, %v3065
        %v3080 = vmul.f32 %v3059, %v3063
        %v3081 = vmul.f32 %v3060, %v3067
        %v3082 = vmul.f32 %v3061, %v3065
        %v3083 = vpack.c.bf16 %v3074, %v3071
        %v3084 = vpack.c.bf16 %v3075, %v3072
        %v3085 = vpack.c.bf16 %v3076, %v3073
        %v3086 = vpack.c.bf16 %v3080, %v3077
        %v3087 = vpack.c.bf16 %v3081, %v3078
        %v3088 = vpack.c.bf16 %v3082, %v3079
        %3095 = vrot.lane.b32.xlu0 %v3083, 1
        %v3096 = vpop.permute.xlu0 %3095
        %3097 = vrot.lane.b32.xlu0 %v3084, 1
        %v3098 = vpop.permute.xlu0 %3097
        %3099 = vrot.lane.b32.xlu0 %v3085, 1
        %v3100 = vpop.permute.xlu0 %3099
        %3101 = vrot.lane.b32.xlu0 %v3086, 1
        %v3102 = vpop.permute.xlu0 %3101
        %3103 = vrot.lane.b32.xlu0 %v3087, 1
        %v3104 = vpop.permute.xlu0 %3103
        %3105 = vrot.lane.b32.xlu0 %v3088, 1
        %v3106 = vpop.permute.xlu0 %3105
        %v3107 = vsel %vm1292, %v3096, %v3098
        %v3108 = vsel %vm1292, %v3098, %v3100
        %v3109 = vsel %vm1292, %v3102, %v3104
        %v3110 = vsel %vm1292, %v3104, %v3106
        %3115 = vst [vmem:[#allocation3 + $0x180] sm:$0xff] %v3107
        %3116 = vst [vmem:[#allocation3 + $0x188] sm:$0xff] %v3108
        %3117 = vst [vmem:[#allocation3 + $0x1c0] sm:$0xff] %v3109
        %3118 = vst [vmem:[#allocation3 + $0x1c8] sm:$0xff] %v3110
        %v3119 = vld [vmem:[#allocation2 + $0x8] sm:$0xff]
        %v3120 = vld [vmem:[#allocation2 + $0x10] sm:$0xff]
        %v3121 = vld [vmem:[#allocation2 + $0x58] sm:$0xff]
        %v3122 = vld [vmem:[#allocation2 + $0x60] sm:$0xff]
        %v3123 = vld [vmem:[#allocation2 + $0xa8] sm:$0xff]
        %v3124 = vld [vmem:[#allocation2 + $0xb0] sm:$0xff]
        %v3125 = vld [vmem:[#allocation2 + $0xf8] sm:$0xff]
        %v3126 = vld [vmem:[#allocation2 + $0x100] sm:$0xff]
        %v3127 = vpack.c.bf16 %v3121, %v3119
        %v3128 = vpack.c.bf16 %v3122, %v3120
        %v3129 = vpack.c.bf16 %v3125, %v3123
        %v3130 = vpack.c.bf16 %v3126, %v3124
        %3131 = vst [vmem:[#allocation3 + $0x200] sm:$0xff] %v3127
        %3132 = vst [vmem:[#allocation3 + $0x208] sm:$0xff] %v3128
        %3133 = vst [vmem:[#allocation3 + $0x240] sm:$0xff] %v3129
        %3134 = vst [vmem:[#allocation3 + $0x248] sm:$0xff] %v3130
        %v3135 = vld [vmem:[#allocation2 + $0x8] sm:$0xff]
        %v3136 = vld [vmem:[#allocation2 + $0x10] sm:$0xff]
        %v3137 = vld [vmem:[#allocation2 + $0x18] sm:$0xff]
        %v3138 = vld [vmem:[#allocation2 + $0x58] sm:$0xff]
        %v3139 = vld [vmem:[#allocation2 + $0x60] sm:$0xff]
        %v3140 = vld [vmem:[#allocation2 + $0x68] sm:$0xff]
        %v3141 = vld [vmem:[#allocation2 + $0xa8] sm:$0xff]
        %v3142 = vld [vmem:[#allocation2 + $0xb0] sm:$0xff]
        %v3143 = vld [vmem:[#allocation2 + $0xb8] sm:$0xff]
        %v3144 = vld [vmem:[#allocation2 + $0xf8] sm:$0xff]
        %v3145 = vld [vmem:[#allocation2 + $0x100] sm:$0xff]
        %v3146 = vld [vmem:[#allocation2 + $0x108] sm:$0xff]
        %3147 = vrot.lane.b32.xlu0 %v2985, 1
        %v3148 = vpop.permute.xlu0 %3147
        %3149 = vrot.lane.b32.xlu0 %v2989, 1
        %v3150 = vpop.permute.xlu0 %3149
        %vm3151 = vcmask 7168
        %v3152 = vsel %vm3151, %v3148, %v3150
        %v3156 = vmul.f32 %v3135, %v3148
        %v3157 = vmul.f32 %v3136, %v3152
        %v3158 = vmul.f32 %v3137, %v3150
        %v3159 = vmul.f32 %v3138, %v3148
        %v3160 = vmul.f32 %v3139, %v3152
        %v3161 = vmul.f32 %v3140, %v3150
        %v3162 = vmul.f32 %v3141, %v3148
        %v3163 = vmul.f32 %v3142, %v3152
        %v3164 = vmul.f32 %v3143, %v3150
        %v3165 = vmul.f32 %v3144, %v3148
        %v3166 = vmul.f32 %v3145, %v3152
        %v3167 = vmul.f32 %v3146, %v3150
        %v3168 = vpack.c.bf16 %v3159, %v3156
        %v3169 = vpack.c.bf16 %v3160, %v3157
        %v3170 = vpack.c.bf16 %v3161, %v3158
        %v3171 = vpack.c.bf16 %v3165, %v3162
        %v3172 = vpack.c.bf16 %v3166, %v3163
        %v3173 = vpack.c.bf16 %v3167, %v3164
        %3180 = vrot.lane.b32.xlu0 %v3168, 127
        %v3181 = vpop.permute.xlu0 %3180
        %3182 = vrot.lane.b32.xlu0 %v3169, 127
        %v3183 = vpop.permute.xlu0 %3182
        %3184 = vrot.lane.b32.xlu0 %v3170, 127
        %v3185 = vpop.permute.xlu0 %3184
        %3186 = vrot.lane.b32.xlu0 %v3171, 127
        %v3187 = vpop.permute.xlu0 %3186
        %3188 = vrot.lane.b32.xlu0 %v3172, 127
        %v3189 = vpop.permute.xlu0 %3188
        %3190 = vrot.lane.b32.xlu0 %v3173, 127
        %v3191 = vpop.permute.xlu0 %3190
        %vm3192 = vcmask 1039360
        %v3193 = vsel %vm3192, %v3181, %v3183
        %v3194 = vsel %vm3192, %v3183, %v3185
        %v3195 = vsel %vm3192, %v3187, %v3189
        %v3196 = vsel %vm3192, %v3189, %v3191
        %3201 = vst [vmem:[#allocation3 + $0x280] sm:$0xff] %v3193
        %3202 = vst [vmem:[#allocation3 + $0x288] sm:$0xff] %v3194
        %3203 = vst [vmem:[#allocation3 + $0x2c0] sm:$0xff] %v3195
        %3204 = vst [vmem:[#allocation3 + $0x2c8] sm:$0xff] %v3196
        %v3205 = vld [vmem:[#allocation2 + $0x8] sm:$0xff]
        %v3206 = vld [vmem:[#allocation2 + $0x10] sm:$0xff]
        %v3207 = vld [vmem:[#allocation2 + $0x18] sm:$0xff]
        %v3208 = vld [vmem:[#allocation2 + $0x58] sm:$0xff]
        %v3209 = vld [vmem:[#allocation2 + $0x60] sm:$0xff]
        %v3210 = vld [vmem:[#allocation2 + $0x68] sm:$0xff]
        %v3211 = vld [vmem:[#allocation2 + $0xa8] sm:$0xff]
        %v3212 = vld [vmem:[#allocation2 + $0xb0] sm:$0xff]
        %v3213 = vld [vmem:[#allocation2 + $0xb8] sm:$0xff]
        %v3214 = vld [vmem:[#allocation2 + $0xf8] sm:$0xff]
        %v3215 = vld [vmem:[#allocation2 + $0x100] sm:$0xff]
        %v3216 = vld [vmem:[#allocation2 + $0x108] sm:$0xff]
        %3217 = vrot.lane.b32.xlu0 %v2846, 15
        %v3218 = vpop.permute.xlu0 %3217
        %3219 = vrot.lane.b32.xlu0 %v2850, 15
        %v3220 = vpop.permute.xlu0 %3219
        %vm3221 = vcmask 121856
        %v3222 = vsel %vm3221, %v3218, %v3220
        %v3226 = vmul.f32 %v3205, %v3218
        %v3227 = vmul.f32 %v3206, %v3222
        %v3228 = vmul.f32 %v3207, %v3220
        %v3229 = vmul.f32 %v3208, %v3218
        %v3230 = vmul.f32 %v3209, %v3222
        %v3231 = vmul.f32 %v3210, %v3220
        %v3232 = vmul.f32 %v3211, %v3218
        %v3233 = vmul.f32 %v3212, %v3222
        %v3234 = vmul.f32 %v3213, %v3220
        %v3235 = vmul.f32 %v3214, %v3218
        %v3236 = vmul.f32 %v3215, %v3222
        %v3237 = vmul.f32 %v3216, %v3220
        %v3238 = vpack.c.bf16 %v3229, %v3226
        %v3239 = vpack.c.bf16 %v3230, %v3227
        %v3240 = vpack.c.bf16 %v3231, %v3228
        %v3241 = vpack.c.bf16 %v3235, %v3232
        %v3242 = vpack.c.bf16 %v3236, %v3233
        %v3243 = vpack.c.bf16 %v3237, %v3234
        %3250 = vrot.lane.b32.xlu0 %v3238, 113
        %v3251 = vpop.permute.xlu0 %3250
        %3252 = vrot.lane.b32.xlu0 %v3239, 113
        %v3253 = vpop.permute.xlu0 %3252
        %3254 = vrot.lane.b32.xlu0 %v3240, 113
        %v3255 = vpop.permute.xlu0 %3254
        %3256 = vrot.lane.b32.xlu0 %v3241, 113
        %v3257 = vpop.permute.xlu0 %3256
        %3258 = vrot.lane.b32.xlu0 %v3242, 113
        %v3259 = vpop.permute.xlu0 %3258
        %3260 = vrot.lane.b32.xlu0 %v3243, 113
        %v3261 = vpop.permute.xlu0 %3260
        %vm3262 = vcmask 924672
        %v3263 = vsel %vm3262, %v3251, %v3253
        %v3264 = vsel %vm3262, %v3253, %v3255
        %v3265 = vsel %vm3262, %v3257, %v3259
        %v3266 = vsel %vm3262, %v3259, %v3261
        %3271 = vst [vmem:[#allocation3 + $0x300] sm:$0xff] %v3263
        %3272 = vst [vmem:[#allocation3 + $0x308] sm:$0xff] %v3264
        %3273 = vst [vmem:[#allocation3 + $0x340] sm:$0xff] %v3265
        %3274 = vst [vmem:[#allocation3 + $0x348] sm:$0xff] %v3266
        %v3275 = vld [vmem:[#allocation2 + $0x8] sm:$0xff]
        %v3276 = vld [vmem:[#allocation2 + $0x10] sm:$0xff]
        %v3277 = vld [vmem:[#allocation2 + $0x18] sm:$0xff]
        %v3278 = vld [vmem:[#allocation2 + $0x58] sm:$0xff]
        %v3279 = vld [vmem:[#allocation2 + $0x60] sm:$0xff]
        %v3280 = vld [vmem:[#allocation2 + $0x68] sm:$0xff]
        %v3281 = vld [vmem:[#allocation2 + $0xa8] sm:$0xff]
        %v3282 = vld [vmem:[#allocation2 + $0xb0] sm:$0xff]
        %v3283 = vld [vmem:[#allocation2 + $0xb8] sm:$0xff]
        %v3284 = vld [vmem:[#allocation2 + $0xf8] sm:$0xff]
        %v3285 = vld [vmem:[#allocation2 + $0x100] sm:$0xff]
        %v3286 = vld [vmem:[#allocation2 + $0x108] sm:$0xff]
        %v3287 = vpack.c.bf16 %v3278, %v3275
        %v3288 = vpack.c.bf16 %v3279, %v3276
        %v3289 = vpack.c.bf16 %v3280, %v3277
        %v3290 = vpack.c.bf16 %v3284, %v3281
        %v3291 = vpack.c.bf16 %v3285, %v3282
        %v3292 = vpack.c.bf16 %v3286, %v3283
        %3299 = vrot.lane.b32.xlu0 %v3287, 112
        %v3300 = vpop.permute.xlu0 %3299
        %3301 = vrot.lane.b32.xlu0 %v3288, 112
        %v3302 = vpop.permute.xlu0 %3301
        %3303 = vrot.lane.b32.xlu0 %v3289, 112
        %v3304 = vpop.permute.xlu0 %3303
        %3305 = vrot.lane.b32.xlu0 %v3290, 112
        %v3306 = vpop.permute.xlu0 %3305
        %3307 = vrot.lane.b32.xlu0 %v3291, 112
        %v3308 = vpop.permute.xlu0 %3307
        %3309 = vrot.lane.b32.xlu0 %v3292, 112
        %v3310 = vpop.permute.xlu0 %3309
        %vm3311 = vcmask 916480
        %v3312 = vsel %vm3311, %v3300, %v3302
        %v3313 = vsel %vm3311, %v3302, %v3304
        %v3314 = vsel %vm3311, %v3306, %v3308
        %v3315 = vsel %vm3311, %v3308, %v3310
        %3320 = vst [vmem:[#allocation3 + $0x380] sm:$0xff] %v3312
        %3321 = vst [vmem:[#allocation3 + $0x388] sm:$0xff] %v3313
        %3322 = vst [vmem:[#allocation3 + $0x3c0] sm:$0xff] %v3314
        %3323 = vst [vmem:[#allocation3 + $0x3c8] sm:$0xff] %v3315
        %v3324 = vld [vmem:[#allocation2 + $0x8] sm:$0xff]
        %v3325 = vld [vmem:[#allocation2 + $0x10] sm:$0xff]
        %v3326 = vld [vmem:[#allocation2 + $0x18] sm:$0xff]
        %v3327 = vld [vmem:[#allocation2 + $0x58] sm:$0xff]
        %v3328 = vld [vmem:[#allocation2 + $0x60] sm:$0xff]
        %v3329 = vld [vmem:[#allocation2 + $0x68] sm:$0xff]
        %v3330 = vld [vmem:[#allocation2 + $0xa8] sm:$0xff]
        %v3331 = vld [vmem:[#allocation2 + $0xb0] sm:$0xff]
        %v3332 = vld [vmem:[#allocation2 + $0xb8] sm:$0xff]
        %v3333 = vld [vmem:[#allocation2 + $0xf8] sm:$0xff]
        %v3334 = vld [vmem:[#allocation2 + $0x100] sm:$0xff]
        %v3335 = vld [vmem:[#allocation2 + $0x108] sm:$0xff]
        %3336 = vrot.lane.b32.xlu0 %v2985, 17
        %v3337 = vpop.permute.xlu0 %3336
        %3338 = vrot.lane.b32.xlu0 %v2989, 17
        %v3339 = vpop.permute.xlu0 %3338
        %vm3340 = vcmask 138240
        %v3341 = vsel %vm3340, %v3337, %v3339
        %v3345 = vmul.f32 %v3324, %v3337
        %v3346 = vmul.f32 %v3325, %v3341
        %v3347 = vmul.f32 %v3326, %v3339
        %v3348 = vmul.f32 %v3327, %v3337
        %v3349 = vmul.f32 %v3328, %v3341
        %v3350 = vmul.f32 %v3329, %v3339
        %v3351 = vmul.f32 %v3330, %v3337
        %v3352 = vmul.f32 %v3331, %v3341
        %v3353 = vmul.f32 %v3332, %v3339
        %v3354 = vmul.f32 %v3333, %v3337
        %v3355 = vmul.f32 %v3334, %v3341
        %v3356 = vmul.f32 %v3335, %v3339
        %v3357 = vpack.c.bf16 %v3348, %v3345
        %v3358 = vpack.c.bf16 %v3349, %v3346
        %v3359 = vpack.c.bf16 %v3350, %v3347
        %v3360 = vpack.c.bf16 %v3354, %v3351
        %v3361 = vpack.c.bf16 %v3355, %v3352
        %v3362 = vpack.c.bf16 %v3356, %v3353
        %3369 = vrot.lane.b32.xlu0 %v3357, 111
        %v3370 = vpop.permute.xlu0 %3369
        %3371 = vrot.lane.b32.xlu0 %v3358, 111
        %v3372 = vpop.permute.xlu0 %3371
        %3373 = vrot.lane.b32.xlu0 %v3359, 111
        %v3374 = vpop.permute.xlu0 %3373
        %3375 = vrot.lane.b32.xlu0 %v3360, 111
        %v3376 = vpop.permute.xlu0 %3375
        %3377 = vrot.lane.b32.xlu0 %v3361, 111
        %v3378 = vpop.permute.xlu0 %3377
        %3379 = vrot.lane.b32.xlu0 %v3362, 111
        %v3380 = vpop.permute.xlu0 %3379
        %vm3381 = vcmask 908288
        %v3382 = vsel %vm3381, %v3370, %v3372
        %v3383 = vsel %vm3381, %v3372, %v3374
        %v3384 = vsel %vm3381, %v3376, %v3378
        %v3385 = vsel %vm3381, %v3378, %v3380
        %3390 = vst [vmem:[#allocation3 + $0x400] sm:$0xff] %v3382
        %3391 = vst [vmem:[#allocation3 + $0x408] sm:$0xff] %v3383
        %3392 = vst [vmem:[#allocation3 + $0x440] sm:$0xff] %v3384
        %3393 = vst [vmem:[#allocation3 + $0x448] sm:$0xff] %v3385
        %s3394 = scalar_lea.vmem [#allocation15], 144
        %v3395 = vld [vmem:[%s3394] sm:$0xff]
        %v3396 = vld [vmem:[%s3394 + $0x8] sm:$0xf]
        %v3397 = vld [vmem:[%s3394 + $0xc] sm:$0xff]
        %v3398 = vld [vmem:[%s3394 + $0x14] sm:$0xf]
        %v3399 = vld [vmem:[%s3394 + $0x18] sm:$0xff]
        %v3400 = vld [vmem:[%s3394 + $0x20] sm:$0xf]
        %v3401 = vld [vmem:[%s3394 + $0x24] sm:$0xff]
        %v3402 = vld [vmem:[%s3394 + $0x2c] sm:$0xf]
        %v3403 = vld [vmem:[#allocation3] sm:$0xff]
        %v3404 = vld [vmem:[#allocation3 + $0x8] sm:$0xff]
        %v3405 = vld [vmem:[#allocation3 + $0x40] sm:$0xff]
        %v3406 = vld [vmem:[#allocation3 + $0x48] sm:$0xff]
        %v3407 = vld [vmem:[#allocation3 + $0x80] sm:$0xff]
        %v3408 = vld [vmem:[#allocation3 + $0x88] sm:$0xff]
        %v3409 = vld [vmem:[#allocation3 + $0xc0] sm:$0xff]
        %v3410 = vld [vmem:[#allocation3 + $0xc8] sm:$0xff]
        %v3411 = vld [vmem:[#allocation3 + $0x100] sm:$0xff]
        %v3412 = vld [vmem:[#allocation3 + $0x108] sm:$0xff]
        %v3413 = vld [vmem:[#allocation3 + $0x140] sm:$0xff]
        %v3414 = vld [vmem:[#allocation3 + $0x148] sm:$0xff]
        %v3415 = vld [vmem:[#allocation3 + $0x180] sm:$0xff]
        %v3416 = vld [vmem:[#allocation3 + $0x188] sm:$0xff]
        %v3417 = vld [vmem:[#allocation3 + $0x1c0] sm:$0xff]
        %v3418 = vld [vmem:[#allocation3 + $0x1c8] sm:$0xff]
        %v3419 = vld [vmem:[#allocation3 + $0x200] sm:$0xff]
        %v3420 = vld [vmem:[#allocation3 + $0x208] sm:$0xff]
        %v3421 = vld [vmem:[#allocation3 + $0x240] sm:$0xff]
        %v3422 = vld [vmem:[#allocation3 + $0x248] sm:$0xff]
        %v3423 = vld [vmem:[#allocation3 + $0x280] sm:$0xff]
        %v3424 = vld [vmem:[#allocation3 + $0x288] sm:$0xff]
        %v3425 = vld [vmem:[#allocation3 + $0x2c0] sm:$0xff]
        %v3426 = vld [vmem:[#allocation3 + $0x2c8] sm:$0xff]
        %v3427 = vld [vmem:[#allocation3 + $0x300] sm:$0xff]
        %v3428 = vld [vmem:[#allocation3 + $0x308] sm:$0xff]
        %v3429 = vld [vmem:[#allocation3 + $0x340] sm:$0xff]
        %v3430 = vld [vmem:[#allocation3 + $0x348] sm:$0xff]
        %v3431 = vld [vmem:[#allocation3 + $0x380] sm:$0xff]
        %v3432 = vld [vmem:[#allocation3 + $0x388] sm:$0xff]
        %v3433 = vld [vmem:[#allocation3 + $0x3c0] sm:$0xff]
        %v3434 = vld [vmem:[#allocation3 + $0x3c8] sm:$0xff]
        %v3435 = vld [vmem:[#allocation3 + $0x400] sm:$0xff]
        %v3436 = vld [vmem:[#allocation3 + $0x408] sm:$0xff]
        %v3437 = vld [vmem:[#allocation3 + $0x440] sm:$0xff]
        %v3438 = vld [vmem:[#allocation3 + $0x448] sm:$0xff]
        %s3439 = scalar_lea.vmem %s12, 96
        %v3440 = vld [vmem:[%s3439] sm:$0xff]
        %v3441 = vld [vmem:[%s3439 + $0x8] sm:$0xff]
        %v3442 = vld [vmem:[%s3439 + $0x10] sm:$0xff]
        %v3443 = vld [vmem:[%s3439 + $0x18] sm:$0xff]
        %3445 = vset.pattern.permute.xlu0 0
        %3446 = vperm.xlu0 %3445, %v3440
        %v3447 = vpop.permute.xlu0 %3446
        %3450 = vset.pattern.permute.xlu0 0
        %3451 = vperm.xlu0 %3450, %v3441
        %v3452 = vpop.permute.xlu0 %3451
        %3455 = vset.pattern.permute.xlu0 0
        %3456 = vperm.xlu0 %3455, %v3442
        %v3457 = vpop.permute.xlu0 %3456
        %3460 = vset.pattern.permute.xlu0 0
        %3461 = vperm.xlu0 %3460, %v3443
        %v3462 = vpop.permute.xlu0 %3461
        %v3472 = vunpack.c.l.b16 %v3395
        %v3473 = vunpack.c.h.b16 %v3395
        %v3474 = vunpack.c.l.b16 %v3396
        %v3475 = vunpack.c.l.b16 %v3397
        %v3476 = vunpack.c.h.b16 %v3397
        %v3477 = vunpack.c.l.b16 %v3398
        %v3478 = vunpack.c.l.b16 %v3399
        %v3479 = vunpack.c.h.b16 %v3399
        %v3480 = vunpack.c.l.b16 %v3400
        %v3481 = vunpack.c.l.b16 %v3401
        %v3482 = vunpack.c.h.b16 %v3401
        %v3483 = vunpack.c.l.b16 %v3402
        %v3484 = vpack.c.b16 %v3475, %v3472
        %v3485 = vpack.c.b16 %v3476, %v3473
        %v3486 = vpack.c.b16 %v3477, %v3474
        %v3487 = vpack.c.b16 %v3481, %v3478
        %v3488 = vpack.c.b16 %v3482, %v3479
        %v3489 = vpack.c.b16 %v3483, %v3480
        %v3495 = vsel %vm1472, %v3486, 0
        %v3498 = vsel %vm1472, %v3489, 0
        %3500 = vmatprep.subr.bf16.mxu0 %v3404
        %3501 = vmatpush1.bf16.msra.mxu0 %v3403
        %3502 = vmatprep.subr.bf16.mxu0 %v3406
        %3503 = vmatpush1.bf16.msra.mxu0 %v3405
        %3504 = vmatprep.subr.bf16.mxu0 %v3408
        %3505 = vmatpush1.bf16.msra.mxu0 %v3407
        %3506 = vmatprep.subr.bf16.mxu0 %v3410
        %3507 = vmatpush1.bf16.msra.mxu0 %v3409
        %3508 = vmatprep.subr.bf16.mxu0 %v3412
        %3509 = vmatpush1.bf16.msra.mxu0 %v3411
        %3510 = vmatprep.subr.bf16.mxu0 %v3414
        %3511 = vmatpush1.bf16.msra.mxu0 %v3413
        %3512 = vmatprep.subr.bf16.mxu0 %v3416
        %3513 = vmatpush1.bf16.msra.mxu0 %v3415
        %3514 = vmatprep.subr.bf16.mxu0 %v3418
        %3515 = vmatpush1.bf16.msra.mxu0 %v3417
        %3516 = vmatprep.subr.bf16.mxu0 %v3420
        %3517 = vmatpush1.bf16.msra.mxu0 %v3419
        %3518 = vmatprep.subr.bf16.mxu0 %v3422
        %3519 = vmatpush1.bf16.msra.mxu0 %v3421
        %3520 = vmatprep.subr.bf16.mxu0 %v3424
        %3521 = vmatpush1.bf16.msra.mxu0 %v3423
        %3522 = vmatprep.subr.bf16.mxu0 %v3426
        %3523 = vmatpush1.bf16.msra.mxu0 %v3425
        %3524 = vmatprep.subr.bf16.mxu0 %v3428
        %3525 = vmatpush1.bf16.msra.mxu0 %v3427
        %3526 = vmatprep.subr.bf16.mxu0 %v3430
        %3527 = vmatpush1.bf16.msra.mxu0 %v3429
        %3528 = vmatprep.subr.bf16.mxu0 %v3432
        %3529 = vmatpush1.bf16.msra.mxu0 %v3431
        %3530 = vmatprep.subr.bf16.mxu0 %v3434
        %3531 = vmatpush1.bf16.msra.mxu0 %v3433
        %3532 = vmatprep.mubr.bf16.mxu0 %v3485
        %3533 = vmatmul.mubr.bf16.gmra.mrb[0].mxu0 %v3484
        %v3534 = vpop.f32.mrb[0].mxu0
        %v3535 = vadd.f32 %v3447, %v3534
        %v3536 = vpop.f32.mrb[0].mxu0
        %v3537 = vadd.f32 %v3447, %v3536
        %v3538 = vpop.f32.mrb[0].mxu0
        %v3539 = vadd.f32 %v3452, %v3538
        %v3540 = vpop.f32.mrb[0].mxu0
        %v3541 = vadd.f32 %v3452, %v3540
        %3542 = vmatprep.mubr.bf16.mxu0 %v3488
        %3543 = vmatmul.mubr.bf16.gmra.mrb[0].mxu0 %v3487
        %v3544 = vpop.f32.mrb[0].mxu0
        %v3545 = vadd.f32 %v3457, %v3544
        %v3546 = vpop.f32.mrb[0].mxu0
        %v3547 = vadd.f32 %v3457, %v3546
        %v3548 = vpop.f32.mrb[0].mxu0
        %v3549 = vadd.f32 %v3462, %v3548
        %v3550 = vpop.f32.mrb[0].mxu0
        %v3551 = vadd.f32 %v3462, %v3550
        %3552 = vdwg.mxu0
        %3553 = vmatprep.subr.bf16.mxu0 %v3436
        %3554 = vmatpush1.bf16.msra.mxu0 %v3435
        %3555 = vmatprep.subr.bf16.mxu0 %v3438
        %3556 = vmatpush1.bf16.msra.mxu0 %v3437
        %3557 = vmatprep.subr.bf16.mxu0 0
        %3558 = vmatpush1.bf16.msra.mxu0 0
        %3559 = vmatprep.subr.bf16.mxu0 0
        %3560 = vmatpush1.bf16.msra.mxu0 0
        %3561 = vmatprep.subr.bf16.mxu0 0
        %3562 = vmatpush1.bf16.msra.mxu0 0
        %3563 = vmatprep.subr.bf16.mxu0 0
        %3564 = vmatpush1.bf16.msra.mxu0 0
        %3565 = vmatprep.subr.bf16.mxu0 0
        %3566 = vmatpush1.bf16.msra.mxu0 0
        %3567 = vmatprep.subr.bf16.mxu0 0
        %3568 = vmatpush1.bf16.msra.mxu0 0
        %3569 = vmatprep.subr.bf16.mxu0 0
        %3570 = vmatpush1.bf16.msra.mxu0 0
        %3571 = vmatprep.subr.bf16.mxu0 0
        %3572 = vmatpush1.bf16.msra.mxu0 0
        %3573 = vmatprep.subr.bf16.mxu0 0
        %3574 = vmatpush1.bf16.msra.mxu0 0
        %3575 = vmatprep.subr.bf16.mxu0 0
        %3576 = vmatpush1.bf16.msra.mxu0 0
        %3577 = vmatprep.subr.bf16.mxu0 0
        %3578 = vmatpush1.bf16.msra.mxu0 0
        %3579 = vmatprep.subr.bf16.mxu0 0
        %3580 = vmatpush1.bf16.msra.mxu0 0
        %3581 = vmatprep.subr.bf16.mxu0 0
        %3582 = vmatpush1.bf16.msra.mxu0 0
        %3583 = vmatprep.subr.bf16.mxu0 0
        %3584 = vmatpush1.bf16.msra.mxu0 0
        %3585 = vmatprep.mubr.bf16.mxu0 0
        %3586 = vmatmul.mubr.bf16.gmra.mrb[0].mxu0 %v3495
        %v3587 = vpop.f32.mrb[0].mxu0
        %v3588 = vadd.f32 %v3535, %v3587
        %v3589 = vpop.f32.mrb[0].mxu0
        %v3590 = vadd.f32 %v3537, %v3589
        %v3591 = vpop.f32.mrb[0].mxu0
        %v3592 = vadd.f32 %v3539, %v3591
        %v3593 = vpop.f32.mrb[0].mxu0
        %v3594 = vadd.f32 %v3541, %v3593
        %3595 = vmatprep.mubr.bf16.mxu0 0
        %3596 = vmatmul.mubr.bf16.gmra.mrb[0].mxu0 %v3498
        %v3597 = vpop.f32.mrb[0].mxu0
        %v3598 = vadd.f32 %v3545, %v3597
        %v3599 = vpop.f32.mrb[0].mxu0
        %v3600 = vadd.f32 %v3547, %v3599
        %v3601 = vpop.f32.mrb[0].mxu0
        %v3602 = vadd.f32 %v3549, %v3601
        %v3603 = vpop.f32.mrb[0].mxu0
        %v3604 = vadd.f32 %v3551, %v3603
        %3605 = vdwg.mxu0
        %v3606 = vmax.f32 %v3588, 0.0
        %v3607 = vmax.f32 %v3590, 0.0
        %v3608 = vmax.f32 %v3592, 0.0
        %v3609 = vmax.f32 %v3594, 0.0
        %v3610 = vmax.f32 %v3598, 0.0
        %v3611 = vmax.f32 %v3600, 0.0
        %v3612 = vmax.f32 %v3602, 0.0
        %v3613 = vmax.f32 %v3604, 0.0
        %s3614 = scalar_lea.vmem %s13, 64
        %v3615 = vld [vmem:[%s3614] sm:$0xff]
        %v3616 = vld [vmem:[%s3614 + $0x8] sm:$0xff]
        %v3617 = vld [vmem:[%s3614 + $0x10] sm:$0xff]
        %v3618 = vld [vmem:[%s3614 + $0x18] sm:$0xff]
        %3620 = vset.pattern.permute.xlu0 0
        %3621 = vperm.xlu0 %3620, %v3615
        %v3622 = vpop.permute.xlu0 %3621
        %3625 = vset.pattern.permute.xlu0 0
        %3626 = vperm.xlu0 %3625, %v3616
        %v3627 = vpop.permute.xlu0 %3626
        %3630 = vset.pattern.permute.xlu0 0
        %3631 = vperm.xlu0 %3630, %v3617
        %v3632 = vpop.permute.xlu0 %3631
        %3635 = vset.pattern.permute.xlu0 0
        %3636 = vperm.xlu0 %3635, %v3618
        %v3637 = vpop.permute.xlu0 %3636
        %v3639 = vmul.f32 %v3606, %v3622
        %v3640 = vmul.f32 %v3607, %v3622
        %v3641 = vmul.f32 %v3608, %v3627
        %v3642 = vmul.f32 %v3609, %v3627
        %v3643 = vmul.f32 %v3610, %v3632
        %v3644 = vmul.f32 %v3611, %v3632
        %v3645 = vmul.f32 %v3612, %v3637
        %v3646 = vmul.f32 %v3613, %v3637
        %v3647 = vadd.f32 %v3639, %v3641
        %v3648 = vadd.f32 %v3647, %v3643
        %v3649 = vadd.f32 %v3648, %v3645
        %v3650 = vrot.slane %v3649, 4
        %v3651 = vadd.f32 %v3649, %v3650
        %v3652 = vrot.slane %v3651, 2
        %v3653 = vadd.f32 %v3651, %v3652
        %v3654 = vrot.slane %v3653, 1
        %v3655 = vadd.f32 %v3653, %v3654
        %v3656 = vadd.f32 %v3640, %v3642
        %v3657 = vadd.f32 %v3656, %v3644
        %v3658 = vadd.f32 %v3657, %v3646
        %v3659 = vrot.slane %v3658, 4
        %v3660 = vadd.f32 %v3658, %v3659
        %v3661 = vrot.slane %v3660, 2
        %v3662 = vadd.f32 %v3660, %v3661
        %v3663 = vrot.slane %v3662, 1
        %v3664 = vadd.f32 %v3662, %v3663
        %s3665 = scalar_lea.vmem %s14, 2
        %v3666 = vld [vmem:[%s3665] sm:$0x1]
        %3668 = vset.pattern.permute.xlu0 0
        %3669 = vperm.xlu0 %3668, %v3666
        %v3670 = vpop.permute.xlu0 %3669
        %v3672 = vlaneseq
        %v3673 = vshrl.u32 %v3672, 7
        %v3674 = vsub.s32 0, %v3673
        %v3675 = vrot.slane %v3670, %v3674
        %v3676 = vadd.f32 %v3655, %v3675
        %v3677 = vadd.f32 %v3664, %v3675
        %v3678 = vsub.f32 0.0, %v3676
        %v3679 = vsub.f32 0.0, %v3677
        %v3680 = vmul.f32 %v3678, 1.442695
        %v3681 = vpow.pop %v3680
        %v3682 = vmul.f32 %v3679, 1.442695
        %v3683 = vpow.pop %v3682
        %v3684 = vadd.f32 %v3681, 1.0
        %v3685 = vadd.f32 %v3683, 1.0
        %v3686 = vrcp.pop %v3684
        %v3687 = vmul.f32 1.0, %v3686
        %v3688 = vrcp.pop %v3685
        %v3689 = vmul.f32 1.0, %v3688
        %s3690 = scalar_lea.vmem %s15, 64
        %v3691 = vld [vmem:[%s3690] sm:$0xff]
        %v3692 = vld [vmem:[%s3690 + $0x8] sm:$0xff]
        %v3693 = vld [vmem:[%s3690 + $0x10] sm:$0xff]
        %v3694 = vld [vmem:[%s3690 + $0x18] sm:$0xff]
        %3696 = vset.pattern.permute.xlu0 0
        %3697 = vperm.xlu0 %3696, %v3691
        %v3698 = vpop.permute.xlu0 %3697
        %3701 = vset.pattern.permute.xlu0 0
        %3702 = vperm.xlu0 %3701, %v3692
        %v3703 = vpop.permute.xlu0 %3702
        %3706 = vset.pattern.permute.xlu0 0
        %3707 = vperm.xlu0 %3706, %v3693
        %v3708 = vpop.permute.xlu0 %3707
        %3711 = vset.pattern.permute.xlu0 0
        %3712 = vperm.xlu0 %3711, %v3694
        %v3713 = vpop.permute.xlu0 %3712
        %v3715 = vmul.f32 %v3687, %v3698
        %v3716 = vmul.f32 %v3689, %v3698
        %v3717 = vmul.f32 %v3687, %v3703
        %v3718 = vmul.f32 %v3689, %v3703
        %v3719 = vmul.f32 %v3687, %v3708
        %v3720 = vmul.f32 %v3689, %v3708
        %v3721 = vmul.f32 %v3687, %v3713
        %v3722 = vmul.f32 %v3689, %v3713
        %s3723 = scalar_lea.vmem %s16, 64
        %v3724 = vld [vmem:[%s3723] sm:$0xff]
        %v3725 = vld [vmem:[%s3723 + $0x8] sm:$0xff]
        %v3726 = vld [vmem:[%s3723 + $0x10] sm:$0xff]
        %v3727 = vld [vmem:[%s3723 + $0x18] sm:$0xff]
        %3729 = vset.pattern.permute.xlu0 0
        %3730 = vperm.xlu0 %3729, %v3724
        %v3731 = vpop.permute.xlu0 %3730
        %3734 = vset.pattern.permute.xlu0 0
        %3735 = vperm.xlu0 %3734, %v3725
        %v3736 = vpop.permute.xlu0 %3735
        %3739 = vset.pattern.permute.xlu0 0
        %3740 = vperm.xlu0 %3739, %v3726
        %v3741 = vpop.permute.xlu0 %3740
        %3744 = vset.pattern.permute.xlu0 0
        %3745 = vperm.xlu0 %3744, %v3727
        %v3746 = vpop.permute.xlu0 %3745
        %v3748 = vadd.f32 %v3715, %v3731
        %v3749 = vadd.f32 %v3716, %v3731
        %v3750 = vadd.f32 %v3717, %v3736
        %v3751 = vadd.f32 %v3718, %v3736
        %v3752 = vadd.f32 %v3719, %v3741
        %v3753 = vadd.f32 %v3720, %v3741
        %v3754 = vadd.f32 %v3721, %v3746
        %v3755 = vadd.f32 %v3722, %v3746
        %v3756 = vmax.f32 %v3748, 0.0
        %v3757 = vmax.f32 %v3749, 0.0
        %v3758 = vmax.f32 %v3750, 0.0
        %v3759 = vmax.f32 %v3751, 0.0
        %v3760 = vmax.f32 %v3752, 0.0
        %v3761 = vmax.f32 %v3753, 0.0
        %v3762 = vmax.f32 %v3754, 0.0
        %v3763 = vmax.f32 %v3755, 0.0
        %v3764 = vmul.f32 %v3606, %v3756
        %v3765 = vmul.f32 %v3607, %v3757
        %v3766 = vmul.f32 %v3608, %v3758
        %v3767 = vmul.f32 %v3609, %v3759
        %v3768 = vmul.f32 %v3610, %v3760
        %v3769 = vmul.f32 %v3611, %v3761
        %v3770 = vmul.f32 %v3612, %v3762
        %v3771 = vmul.f32 %v3613, %v3763
        %3772 = vst [vmem:[#allocation2 + $0x8] sm:$0xff] %v3764
        %3773 = vst [vmem:[#allocation2 + $0x10] sm:$0xff] %v3765
        %3774 = vst [vmem:[#allocation2 + $0x58] sm:$0xff] %v3766
        %3775 = vst [vmem:[#allocation2 + $0x60] sm:$0xff] %v3767
        %3776 = vst [vmem:[#allocation2 + $0xa8] sm:$0xff] %v3768
        %3777 = vst [vmem:[#allocation2 + $0xb0] sm:$0xff] %v3769
        %3778 = vst [vmem:[#allocation2 + $0xf8] sm:$0xff] %v3770
        %3779 = vst [vmem:[#allocation2 + $0x100] sm:$0xff] %v3771
        %v3780 = vld [vmem:[#allocation13] sm:$0xf]
        %v3781 = vld [vmem:[#allocation2] sm:$0xff]
        %v3782 = vld [vmem:[#allocation2 + $0x8] sm:$0xff]
        %v3783 = vld [vmem:[#allocation2 + $0x10] sm:$0xff]
        %v3784 = vld [vmem:[#allocation2 + $0x50] sm:$0xff]
        %v3785 = vld [vmem:[#allocation2 + $0x58] sm:$0xff]
        %v3786 = vld [vmem:[#allocation2 + $0x60] sm:$0xff]
        %v3787 = vld [vmem:[#allocation2 + $0xa0] sm:$0xff]
        %v3788 = vld [vmem:[#allocation2 + $0xa8] sm:$0xff]
        %v3789 = vld [vmem:[#allocation2 + $0xb0] sm:$0xff]
        %v3790 = vld [vmem:[#allocation2 + $0xf0] sm:$0xff]
        %v3791 = vld [vmem:[#allocation2 + $0xf8] sm:$0xff]
        %v3792 = vld [vmem:[#allocation2 + $0x100] sm:$0xff]
        %v3794 = vlaneseq
        %v3795 = vshrl.u32 %v3794, 7
        %v3796 = vsub.s32 0, %v3795
        %v3797 = vrot.slane %v3780, %v3796
        %v3798 = vlaneseq
        %v3799 = vshrl.u32 %v3798, 7
        %v3800 = vsub.s32 2, %v3799
        %v3801 = vrot.slane %v3780, %v3800
        %v3804 = vlaneseq
        %v3805 = vshrl.u32 %v3804, 7
        %v3806 = vsub.s32 0, %v3805
        %v3807 = vrot.slane %v3797, %v3806
        %v3808 = vlaneseq
        %v3809 = vshrl.u32 %v3808, 7
        %v3810 = vsub.s32 0, %v3809
        %v3811 = vrot.slane %v3801, %v3810
        %3814 = vrot.lane.b32.xlu0 %v3807, 111
        %v3815 = vpop.permute.xlu0 %3814
        %3816 = vrot.lane.b32.xlu0 %v3811, 111
        %v3817 = vpop.permute.xlu0 %3816
        %v3818 = vsel %vm2857, %v3815, %v3817
        %v3822 = vmul.f32 %v3781, %v3815
        %v3823 = vmul.f32 %v3782, %v3818
        %v3824 = vmul.f32 %v3783, %v3817
        %v3825 = vmul.f32 %v3784, %v3815
        %v3826 = vmul.f32 %v3785, %v3818
        %v3827 = vmul.f32 %v3786, %v3817
        %v3828 = vmul.f32 %v3787, %v3815
        %v3829 = vmul.f32 %v3788, %v3818
        %v3830 = vmul.f32 %v3789, %v3817
        %v3831 = vmul.f32 %v3790, %v3815
        %v3832 = vmul.f32 %v3791, %v3818
        %v3833 = vmul.f32 %v3792, %v3817
        %v3834 = vpack.c.bf16 %v3825, %v3822
        %v3835 = vpack.c.bf16 %v3826, %v3823
        %v3836 = vpack.c.bf16 %v3827, %v3824
        %v3837 = vpack.c.bf16 %v3831, %v3828
        %v3838 = vpack.c.bf16 %v3832, %v3829
        %v3839 = vpack.c.bf16 %v3833, %v3830
        %3846 = vrot.lane.b32.xlu0 %v3834, 17
        %v3847 = vpop.permute.xlu0 %3846
        %3848 = vrot.lane.b32.xlu0 %v3835, 17
        %v3849 = vpop.permute.xlu0 %3848
        %3850 = vrot.lane.b32.xlu0 %v3836, 17
        %v3851 = vpop.permute.xlu0 %3850
        %3852 = vrot.lane.b32.xlu0 %v3837, 17
        %v3853 = vpop.permute.xlu0 %3852
        %3854 = vrot.lane.b32.xlu0 %v3838, 17
        %v3855 = vpop.permute.xlu0 %3854
        %3856 = vrot.lane.b32.xlu0 %v3839, 17
        %v3857 = vpop.permute.xlu0 %3856
        %v3858 = vsel %vm2898, %v3847, %v3849
        %v3859 = vsel %vm2898, %v3849, %v3851
        %v3860 = vsel %vm2898, %v3853, %v3855
        %v3861 = vsel %vm2898, %v3855, %v3857
        %3866 = vst [vmem:[#allocation3] sm:$0xff] %v3858
        %3867 = vst [vmem:[#allocation3 + $0x8] sm:$0xff] %v3859
        %3868 = vst [vmem:[#allocation3 + $0x40] sm:$0xff] %v3860
        %3869 = vst [vmem:[#allocation3 + $0x48] sm:$0xff] %v3861
        %v3870 = vld [vmem:[#allocation2] sm:$0xff]
        %v3871 = vld [vmem:[#allocation2 + $0x8] sm:$0xff]
        %v3872 = vld [vmem:[#allocation2 + $0x10] sm:$0xff]
        %v3873 = vld [vmem:[#allocation2 + $0x50] sm:$0xff]
        %v3874 = vld [vmem:[#allocation2 + $0x58] sm:$0xff]
        %v3875 = vld [vmem:[#allocation2 + $0x60] sm:$0xff]
        %v3876 = vld [vmem:[#allocation2 + $0xa0] sm:$0xff]
        %v3877 = vld [vmem:[#allocation2 + $0xa8] sm:$0xff]
        %v3878 = vld [vmem:[#allocation2 + $0xb0] sm:$0xff]
        %v3879 = vld [vmem:[#allocation2 + $0xf0] sm:$0xff]
        %v3880 = vld [vmem:[#allocation2 + $0xf8] sm:$0xff]
        %v3881 = vld [vmem:[#allocation2 + $0x100] sm:$0xff]
        %v3882 = vpack.c.bf16 %v3873, %v3870
        %v3883 = vpack.c.bf16 %v3874, %v3871
        %v3884 = vpack.c.bf16 %v3875, %v3872
        %v3885 = vpack.c.bf16 %v3879, %v3876
        %v3886 = vpack.c.bf16 %v3880, %v3877
        %v3887 = vpack.c.bf16 %v3881, %v3878
        %3894 = vrot.lane.b32.xlu0 %v3882, 16
        %v3895 = vpop.permute.xlu0 %3894
        %3896 = vrot.lane.b32.xlu0 %v3883, 16
        %v3897 = vpop.permute.xlu0 %3896
        %3898 = vrot.lane.b32.xlu0 %v3884, 16
        %v3899 = vpop.permute.xlu0 %3898
        %3900 = vrot.lane.b32.xlu0 %v3885, 16
        %v3901 = vpop.permute.xlu0 %3900
        %3902 = vrot.lane.b32.xlu0 %v3886, 16
        %v3903 = vpop.permute.xlu0 %3902
        %3904 = vrot.lane.b32.xlu0 %v3887, 16
        %v3905 = vpop.permute.xlu0 %3904
        %v3906 = vsel %vm2947, %v3895, %v3897
        %v3907 = vsel %vm2947, %v3897, %v3899
        %v3908 = vsel %vm2947, %v3901, %v3903
        %v3909 = vsel %vm2947, %v3903, %v3905
        %3914 = vst [vmem:[#allocation3 + $0x80] sm:$0xff] %v3906
        %3915 = vst [vmem:[#allocation3 + $0x88] sm:$0xff] %v3907
        %3916 = vst [vmem:[#allocation3 + $0xc0] sm:$0xff] %v3908
        %3917 = vst [vmem:[#allocation3 + $0xc8] sm:$0xff] %v3909
        %v3918 = vld [vmem:[#allocation2] sm:$0xff]
        %v3919 = vld [vmem:[#allocation2 + $0x8] sm:$0xff]
        %v3920 = vld [vmem:[#allocation2 + $0x10] sm:$0xff]
        %v3921 = vld [vmem:[#allocation2 + $0x50] sm:$0xff]
        %v3922 = vld [vmem:[#allocation2 + $0x58] sm:$0xff]
        %v3923 = vld [vmem:[#allocation2 + $0x60] sm:$0xff]
        %v3924 = vld [vmem:[#allocation2 + $0xa0] sm:$0xff]
        %v3925 = vld [vmem:[#allocation2 + $0xa8] sm:$0xff]
        %v3926 = vld [vmem:[#allocation2 + $0xb0] sm:$0xff]
        %v3927 = vld [vmem:[#allocation2 + $0xf0] sm:$0xff]
        %v3928 = vld [vmem:[#allocation2 + $0xf8] sm:$0xff]
        %v3929 = vld [vmem:[#allocation2 + $0x100] sm:$0xff]
        %v3930 = vlaneseq
        %v3931 = vshrl.u32 %v3930, 7
        %v3932 = vsub.s32 1, %v3931
        %v3933 = vrot.slane %v3780, %v3932
        %v3934 = vlaneseq
        %v3935 = vshrl.u32 %v3934, 7
        %v3936 = vsub.s32 3, %v3935
        %v3937 = vrot.slane %v3780, %v3936
        %v3940 = vlaneseq
        %v3941 = vshrl.u32 %v3940, 7
        %v3942 = vsub.s32 1, %v3941
        %v3943 = vrot.slane %v3933, %v3942
        %v3944 = vlaneseq
        %v3945 = vshrl.u32 %v3944, 7
        %v3946 = vsub.s32 1, %v3945
        %v3947 = vrot.slane %v3937, %v3946
        %3950 = vrot.lane.b32.xlu0 %v3943, 113
        %v3951 = vpop.permute.xlu0 %3950
        %3952 = vrot.lane.b32.xlu0 %v3947, 113
        %v3953 = vpop.permute.xlu0 %3952
        %v3954 = vsel %vm2996, %v3951, %v3953
        %v3958 = vmul.f32 %v3918, %v3951
        %v3959 = vmul.f32 %v3919, %v3954
        %v3960 = vmul.f32 %v3920, %v3953
        %v3961 = vmul.f32 %v3921, %v3951
        %v3962 = vmul.f32 %v3922, %v3954
        %v3963 = vmul.f32 %v3923, %v3953
        %v3964 = vmul.f32 %v3924, %v3951
        %v3965 = vmul.f32 %v3925, %v3954
        %v3966 = vmul.f32 %v3926, %v3953
        %v3967 = vmul.f32 %v3927, %v3951
        %v3968 = vmul.f32 %v3928, %v3954
        %v3969 = vmul.f32 %v3929, %v3953
        %v3970 = vpack.c.bf16 %v3961, %v3958
        %v3971 = vpack.c.bf16 %v3962, %v3959
        %v3972 = vpack.c.bf16 %v3963, %v3960
        %v3973 = vpack.c.bf16 %v3967, %v3964
        %v3974 = vpack.c.bf16 %v3968, %v3965
        %v3975 = vpack.c.bf16 %v3969, %v3966
        %3982 = vrot.lane.b32.xlu0 %v3970, 15
        %v3983 = vpop.permute.xlu0 %3982
        %3984 = vrot.lane.b32.xlu0 %v3971, 15
        %v3985 = vpop.permute.xlu0 %3984
        %3986 = vrot.lane.b32.xlu0 %v3972, 15
        %v3987 = vpop.permute.xlu0 %3986
        %3988 = vrot.lane.b32.xlu0 %v3973, 15
        %v3989 = vpop.permute.xlu0 %3988
        %3990 = vrot.lane.b32.xlu0 %v3974, 15
        %v3991 = vpop.permute.xlu0 %3990
        %3992 = vrot.lane.b32.xlu0 %v3975, 15
        %v3993 = vpop.permute.xlu0 %3992
        %v3994 = vsel %vm3037, %v3983, %v3985
        %v3995 = vsel %vm3037, %v3985, %v3987
        %v3996 = vsel %vm3037, %v3989, %v3991
        %v3997 = vsel %vm3037, %v3991, %v3993
        %4002 = vst [vmem:[#allocation3 + $0x100] sm:$0xff] %v3994
        %4003 = vst [vmem:[#allocation3 + $0x108] sm:$0xff] %v3995
        %4004 = vst [vmem:[#allocation3 + $0x140] sm:$0xff] %v3996
        %4005 = vst [vmem:[#allocation3 + $0x148] sm:$0xff] %v3997
        %v4006 = vld [vmem:[#allocation2] sm:$0xff]
        %v4007 = vld [vmem:[#allocation2 + $0x8] sm:$0xff]
        %v4008 = vld [vmem:[#allocation2 + $0x10] sm:$0xff]
        %v4009 = vld [vmem:[#allocation2 + $0x50] sm:$0xff]
        %v4010 = vld [vmem:[#allocation2 + $0x58] sm:$0xff]
        %v4011 = vld [vmem:[#allocation2 + $0x60] sm:$0xff]
        %v4012 = vld [vmem:[#allocation2 + $0xa0] sm:$0xff]
        %v4013 = vld [vmem:[#allocation2 + $0xa8] sm:$0xff]
        %v4014 = vld [vmem:[#allocation2 + $0xb0] sm:$0xff]
        %v4015 = vld [vmem:[#allocation2 + $0xf0] sm:$0xff]
        %v4016 = vld [vmem:[#allocation2 + $0xf8] sm:$0xff]
        %v4017 = vld [vmem:[#allocation2 + $0x100] sm:$0xff]
        %4018 = vrot.lane.b32.xlu0 %v3807, 127
        %v4019 = vpop.permute.xlu0 %4018
        %4020 = vrot.lane.b32.xlu0 %v3811, 127
        %v4021 = vpop.permute.xlu0 %4020
        %v4022 = vsel %vm3066, %v4019, %v4021
        %v4026 = vmul.f32 %v4006, %v4019
        %v4027 = vmul.f32 %v4007, %v4022
        %v4028 = vmul.f32 %v4008, %v4021
        %v4029 = vmul.f32 %v4009, %v4019
        %v4030 = vmul.f32 %v4010, %v4022
        %v4031 = vmul.f32 %v4011, %v4021
        %v4032 = vmul.f32 %v4012, %v4019
        %v4033 = vmul.f32 %v4013, %v4022
        %v4034 = vmul.f32 %v4014, %v4021
        %v4035 = vmul.f32 %v4015, %v4019
        %v4036 = vmul.f32 %v4016, %v4022
        %v4037 = vmul.f32 %v4017, %v4021
        %v4038 = vpack.c.bf16 %v4029, %v4026
        %v4039 = vpack.c.bf16 %v4030, %v4027
        %v4040 = vpack.c.bf16 %v4031, %v4028
        %v4041 = vpack.c.bf16 %v4035, %v4032
        %v4042 = vpack.c.bf16 %v4036, %v4033
        %v4043 = vpack.c.bf16 %v4037, %v4034
        %4050 = vrot.lane.b32.xlu0 %v4038, 1
        %v4051 = vpop.permute.xlu0 %4050
        %4052 = vrot.lane.b32.xlu0 %v4039, 1
        %v4053 = vpop.permute.xlu0 %4052
        %4054 = vrot.lane.b32.xlu0 %v4040, 1
        %v4055 = vpop.permute.xlu0 %4054
        %4056 = vrot.lane.b32.xlu0 %v4041, 1
        %v4057 = vpop.permute.xlu0 %4056
        %4058 = vrot.lane.b32.xlu0 %v4042, 1
        %v4059 = vpop.permute.xlu0 %4058
        %4060 = vrot.lane.b32.xlu0 %v4043, 1
        %v4061 = vpop.permute.xlu0 %4060
        %v4062 = vsel %vm1292, %v4051, %v4053
        %v4063 = vsel %vm1292, %v4053, %v4055
        %v4064 = vsel %vm1292, %v4057, %v4059
        %v4065 = vsel %vm1292, %v4059, %v4061
        %4070 = vst [vmem:[#allocation3 + $0x180] sm:$0xff] %v4062
        %4071 = vst [vmem:[#allocation3 + $0x188] sm:$0xff] %v4063
        %4072 = vst [vmem:[#allocation3 + $0x1c0] sm:$0xff] %v4064
        %4073 = vst [vmem:[#allocation3 + $0x1c8] sm:$0xff] %v4065
        %v4074 = vld [vmem:[#allocation2 + $0x8] sm:$0xff]
        %v4075 = vld [vmem:[#allocation2 + $0x10] sm:$0xff]
        %v4076 = vld [vmem:[#allocation2 + $0x58] sm:$0xff]
        %v4077 = vld [vmem:[#allocation2 + $0x60] sm:$0xff]
        %v4078 = vld [vmem:[#allocation2 + $0xa8] sm:$0xff]
        %v4079 = vld [vmem:[#allocation2 + $0xb0] sm:$0xff]
        %v4080 = vld [vmem:[#allocation2 + $0xf8] sm:$0xff]
        %v4081 = vld [vmem:[#allocation2 + $0x100] sm:$0xff]
        %v4082 = vpack.c.bf16 %v4076, %v4074
        %v4083 = vpack.c.bf16 %v4077, %v4075
        %v4084 = vpack.c.bf16 %v4080, %v4078
        %v4085 = vpack.c.bf16 %v4081, %v4079
        %4086 = vst [vmem:[#allocation3 + $0x200] sm:$0xff] %v4082
        %4087 = vst [vmem:[#allocation3 + $0x208] sm:$0xff] %v4083
        %4088 = vst [vmem:[#allocation3 + $0x240] sm:$0xff] %v4084
        %4089 = vst [vmem:[#allocation3 + $0x248] sm:$0xff] %v4085
        %v4090 = vld [vmem:[#allocation2 + $0x8] sm:$0xff]
        %v4091 = vld [vmem:[#allocation2 + $0x10] sm:$0xff]
        %v4092 = vld [vmem:[#allocation2 + $0x18] sm:$0xff]
        %v4093 = vld [vmem:[#allocation2 + $0x58] sm:$0xff]
        %v4094 = vld [vmem:[#allocation2 + $0x60] sm:$0xff]
        %v4095 = vld [vmem:[#allocation2 + $0x68] sm:$0xff]
        %v4096 = vld [vmem:[#allocation2 + $0xa8] sm:$0xff]
        %v4097 = vld [vmem:[#allocation2 + $0xb0] sm:$0xff]
        %v4098 = vld [vmem:[#allocation2 + $0xb8] sm:$0xff]
        %v4099 = vld [vmem:[#allocation2 + $0xf8] sm:$0xff]
        %v4100 = vld [vmem:[#allocation2 + $0x100] sm:$0xff]
        %v4101 = vld [vmem:[#allocation2 + $0x108] sm:$0xff]
        %4102 = vrot.lane.b32.xlu0 %v3943, 1
        %v4103 = vpop.permute.xlu0 %4102
        %4104 = vrot.lane.b32.xlu0 %v3947, 1
        %v4105 = vpop.permute.xlu0 %4104
        %v4106 = vsel %vm3151, %v4103, %v4105
        %v4110 = vmul.f32 %v4090, %v4103
        %v4111 = vmul.f32 %v4091, %v4106
        %v4112 = vmul.f32 %v4092, %v4105
        %v4113 = vmul.f32 %v4093, %v4103
        %v4114 = vmul.f32 %v4094, %v4106
        %v4115 = vmul.f32 %v4095, %v4105
        %v4116 = vmul.f32 %v4096, %v4103
        %v4117 = vmul.f32 %v4097, %v4106
        %v4118 = vmul.f32 %v4098, %v4105
        %v4119 = vmul.f32 %v4099, %v4103
        %v4120 = vmul.f32 %v4100, %v4106
        %v4121 = vmul.f32 %v4101, %v4105
        %v4122 = vpack.c.bf16 %v4113, %v4110
        %v4123 = vpack.c.bf16 %v4114, %v4111
        %v4124 = vpack.c.bf16 %v4115, %v4112
        %v4125 = vpack.c.bf16 %v4119, %v4116
        %v4126 = vpack.c.bf16 %v4120, %v4117
        %v4127 = vpack.c.bf16 %v4121, %v4118
        %4134 = vrot.lane.b32.xlu0 %v4122, 127
        %v4135 = vpop.permute.xlu0 %4134
        %4136 = vrot.lane.b32.xlu0 %v4123, 127
        %v4137 = vpop.permute.xlu0 %4136
        %4138 = vrot.lane.b32.xlu0 %v4124, 127
        %v4139 = vpop.permute.xlu0 %4138
        %4140 = vrot.lane.b32.xlu0 %v4125, 127
        %v4141 = vpop.permute.xlu0 %4140
        %4142 = vrot.lane.b32.xlu0 %v4126, 127
        %v4143 = vpop.permute.xlu0 %4142
        %4144 = vrot.lane.b32.xlu0 %v4127, 127
        %v4145 = vpop.permute.xlu0 %4144
        %v4146 = vsel %vm3192, %v4135, %v4137
        %v4147 = vsel %vm3192, %v4137, %v4139
        %v4148 = vsel %vm3192, %v4141, %v4143
        %v4149 = vsel %vm3192, %v4143, %v4145
        %4154 = vst [vmem:[#allocation3 + $0x280] sm:$0xff] %v4146
        %4155 = vst [vmem:[#allocation3 + $0x288] sm:$0xff] %v4147
        %4156 = vst [vmem:[#allocation3 + $0x2c0] sm:$0xff] %v4148
        %4157 = vst [vmem:[#allocation3 + $0x2c8] sm:$0xff] %v4149
        %v4158 = vld [vmem:[#allocation2 + $0x8] sm:$0xff]
        %v4159 = vld [vmem:[#allocation2 + $0x10] sm:$0xff]
        %v4160 = vld [vmem:[#allocation2 + $0x18] sm:$0xff]
        %v4161 = vld [vmem:[#allocation2 + $0x58] sm:$0xff]
        %v4162 = vld [vmem:[#allocation2 + $0x60] sm:$0xff]
        %v4163 = vld [vmem:[#allocation2 + $0x68] sm:$0xff]
        %v4164 = vld [vmem:[#allocation2 + $0xa8] sm:$0xff]
        %v4165 = vld [vmem:[#allocation2 + $0xb0] sm:$0xff]
        %v4166 = vld [vmem:[#allocation2 + $0xb8] sm:$0xff]
        %v4167 = vld [vmem:[#allocation2 + $0xf8] sm:$0xff]
        %v4168 = vld [vmem:[#allocation2 + $0x100] sm:$0xff]
        %v4169 = vld [vmem:[#allocation2 + $0x108] sm:$0xff]
        %4170 = vrot.lane.b32.xlu0 %v3807, 15
        %v4171 = vpop.permute.xlu0 %4170
        %4172 = vrot.lane.b32.xlu0 %v3811, 15
        %v4173 = vpop.permute.xlu0 %4172
        %v4174 = vsel %vm3221, %v4171, %v4173
        %v4178 = vmul.f32 %v4158, %v4171
        %v4179 = vmul.f32 %v4159, %v4174
        %v4180 = vmul.f32 %v4160, %v4173
        %v4181 = vmul.f32 %v4161, %v4171
        %v4182 = vmul.f32 %v4162, %v4174
        %v4183 = vmul.f32 %v4163, %v4173
        %v4184 = vmul.f32 %v4164, %v4171
        %v4185 = vmul.f32 %v4165, %v4174
        %v4186 = vmul.f32 %v4166, %v4173
        %v4187 = vmul.f32 %v4167, %v4171
        %v4188 = vmul.f32 %v4168, %v4174
        %v4189 = vmul.f32 %v4169, %v4173
        %v4190 = vpack.c.bf16 %v4181, %v4178
        %v4191 = vpack.c.bf16 %v4182, %v4179
        %v4192 = vpack.c.bf16 %v4183, %v4180
        %v4193 = vpack.c.bf16 %v4187, %v4184
        %v4194 = vpack.c.bf16 %v4188, %v4185
        %v4195 = vpack.c.bf16 %v4189, %v4186
        %4202 = vrot.lane.b32.xlu0 %v4190, 113
        %v4203 = vpop.permute.xlu0 %4202
        %4204 = vrot.lane.b32.xlu0 %v4191, 113
        %v4205 = vpop.permute.xlu0 %4204
        %4206 = vrot.lane.b32.xlu0 %v4192, 113
        %v4207 = vpop.permute.xlu0 %4206
        %4208 = vrot.lane.b32.xlu0 %v4193, 113
        %v4209 = vpop.permute.xlu0 %4208
        %4210 = vrot.lane.b32.xlu0 %v4194, 113
        %v4211 = vpop.permute.xlu0 %4210
        %4212 = vrot.lane.b32.xlu0 %v4195, 113
        %v4213 = vpop.permute.xlu0 %4212
        %v4214 = vsel %vm3262, %v4203, %v4205
        %v4215 = vsel %vm3262, %v4205, %v4207
        %v4216 = vsel %vm3262, %v4209, %v4211
        %v4217 = vsel %vm3262, %v4211, %v4213
        %4222 = vst [vmem:[#allocation3 + $0x300] sm:$0xff] %v4214
        %4223 = vst [vmem:[#allocation3 + $0x308] sm:$0xff] %v4215
        %4224 = vst [vmem:[#allocation3 + $0x340] sm:$0xff] %v4216
        %4225 = vst [vmem:[#allocation3 + $0x348] sm:$0xff] %v4217
        %v4226 = vld [vmem:[#allocation2 + $0x8] sm:$0xff]
        %v4227 = vld [vmem:[#allocation2 + $0x10] sm:$0xff]
        %v4228 = vld [vmem:[#allocation2 + $0x18] sm:$0xff]
        %v4229 = vld [vmem:[#allocation2 + $0x58] sm:$0xff]
        %v4230 = vld [vmem:[#allocation2 + $0x60] sm:$0xff]
        %v4231 = vld [vmem:[#allocation2 + $0x68] sm:$0xff]
        %v4232 = vld [vmem:[#allocation2 + $0xa8] sm:$0xff]
        %v4233 = vld [vmem:[#allocation2 + $0xb0] sm:$0xff]
        %v4234 = vld [vmem:[#allocation2 + $0xb8] sm:$0xff]
        %v4235 = vld [vmem:[#allocation2 + $0xf8] sm:$0xff]
        %v4236 = vld [vmem:[#allocation2 + $0x100] sm:$0xff]
        %v4237 = vld [vmem:[#allocation2 + $0x108] sm:$0xff]
        %v4238 = vpack.c.bf16 %v4229, %v4226
        %v4239 = vpack.c.bf16 %v4230, %v4227
        %v4240 = vpack.c.bf16 %v4231, %v4228
        %v4241 = vpack.c.bf16 %v4235, %v4232
        %v4242 = vpack.c.bf16 %v4236, %v4233
        %v4243 = vpack.c.bf16 %v4237, %v4234
        %4250 = vrot.lane.b32.xlu0 %v4238, 112
        %v4251 = vpop.permute.xlu0 %4250
        %4252 = vrot.lane.b32.xlu0 %v4239, 112
        %v4253 = vpop.permute.xlu0 %4252
        %4254 = vrot.lane.b32.xlu0 %v4240, 112
        %v4255 = vpop.permute.xlu0 %4254
        %4256 = vrot.lane.b32.xlu0 %v4241, 112
        %v4257 = vpop.permute.xlu0 %4256
        %4258 = vrot.lane.b32.xlu0 %v4242, 112
        %v4259 = vpop.permute.xlu0 %4258
        %4260 = vrot.lane.b32.xlu0 %v4243, 112
        %v4261 = vpop.permute.xlu0 %4260
        %v4262 = vsel %vm3311, %v4251, %v4253
        %v4263 = vsel %vm3311, %v4253, %v4255
        %v4264 = vsel %vm3311, %v4257, %v4259
        %v4265 = vsel %vm3311, %v4259, %v4261
        %4270 = vst [vmem:[#allocation3 + $0x380] sm:$0xff] %v4262
        %4271 = vst [vmem:[#allocation3 + $0x388] sm:$0xff] %v4263
        %4272 = vst [vmem:[#allocation3 + $0x3c0] sm:$0xff] %v4264
        %4273 = vst [vmem:[#allocation3 + $0x3c8] sm:$0xff] %v4265
        %v4274 = vld [vmem:[#allocation2 + $0x8] sm:$0xff]
        %v4275 = vld [vmem:[#allocation2 + $0x10] sm:$0xff]
        %v4276 = vld [vmem:[#allocation2 + $0x18] sm:$0xff]
        %v4277 = vld [vmem:[#allocation2 + $0x58] sm:$0xff]
        %v4278 = vld [vmem:[#allocation2 + $0x60] sm:$0xff]
        %v4279 = vld [vmem:[#allocation2 + $0x68] sm:$0xff]
        %v4280 = vld [vmem:[#allocation2 + $0xa8] sm:$0xff]
        %v4281 = vld [vmem:[#allocation2 + $0xb0] sm:$0xff]
        %v4282 = vld [vmem:[#allocation2 + $0xb8] sm:$0xff]
        %v4283 = vld [vmem:[#allocation2 + $0xf8] sm:$0xff]
        %v4284 = vld [vmem:[#allocation2 + $0x100] sm:$0xff]
        %v4285 = vld [vmem:[#allocation2 + $0x108] sm:$0xff]
        %4286 = vrot.lane.b32.xlu0 %v3943, 17
        %v4287 = vpop.permute.xlu0 %4286
        %4288 = vrot.lane.b32.xlu0 %v3947, 17
        %v4289 = vpop.permute.xlu0 %4288
        %v4290 = vsel %vm3340, %v4287, %v4289
        %v4294 = vmul.f32 %v4274, %v4287
        %v4295 = vmul.f32 %v4275, %v4290
        %v4296 = vmul.f32 %v4276, %v4289
        %v4297 = vmul.f32 %v4277, %v4287
        %v4298 = vmul.f32 %v4278, %v4290
        %v4299 = vmul.f32 %v4279, %v4289
        %v4300 = vmul.f32 %v4280, %v4287
        %v4301 = vmul.f32 %v4281, %v4290
        %v4302 = vmul.f32 %v4282, %v4289
        %v4303 = vmul.f32 %v4283, %v4287
        %v4304 = vmul.f32 %v4284, %v4290
        %v4305 = vmul.f32 %v4285, %v4289
        %v4306 = vpack.c.bf16 %v4297, %v4294
        %v4307 = vpack.c.bf16 %v4298, %v4295
        %v4308 = vpack.c.bf16 %v4299, %v4296
        %v4309 = vpack.c.bf16 %v4303, %v4300
        %v4310 = vpack.c.bf16 %v4304, %v4301
        %v4311 = vpack.c.bf16 %v4305, %v4302
        %4318 = vrot.lane.b32.xlu0 %v4306, 111
        %v4319 = vpop.permute.xlu0 %4318
        %4320 = vrot.lane.b32.xlu0 %v4307, 111
        %v4321 = vpop.permute.xlu0 %4320
        %4322 = vrot.lane.b32.xlu0 %v4308, 111
        %v4323 = vpop.permute.xlu0 %4322
        %4324 = vrot.lane.b32.xlu0 %v4309, 111
        %v4325 = vpop.permute.xlu0 %4324
        %4326 = vrot.lane.b32.xlu0 %v4310, 111
        %v4327 = vpop.permute.xlu0 %4326
        %4328 = vrot.lane.b32.xlu0 %v4311, 111
        %v4329 = vpop.permute.xlu0 %4328
        %v4330 = vsel %vm3381, %v4319, %v4321
        %v4331 = vsel %vm3381, %v4321, %v4323
        %v4332 = vsel %vm3381, %v4325, %v4327
        %v4333 = vsel %vm3381, %v4327, %v4329
        %4338 = vst [vmem:[#allocation3 + $0x400] sm:$0xff] %v4330
        %4339 = vst [vmem:[#allocation3 + $0x408] sm:$0xff] %v4331
        %4340 = vst [vmem:[#allocation3 + $0x440] sm:$0xff] %v4332
        %4341 = vst [vmem:[#allocation3 + $0x448] sm:$0xff] %v4333
        %s4342 = scalar_lea.vmem [#allocation15], 192
        %v4343 = vld [vmem:[%s4342] sm:$0xff]
        %v4344 = vld [vmem:[%s4342 + $0x8] sm:$0xf]
        %v4345 = vld [vmem:[%s4342 + $0xc] sm:$0xff]
        %v4346 = vld [vmem:[%s4342 + $0x14] sm:$0xf]
        %v4347 = vld [vmem:[%s4342 + $0x18] sm:$0xff]
        %v4348 = vld [vmem:[%s4342 + $0x20] sm:$0xf]
        %v4349 = vld [vmem:[%s4342 + $0x24] sm:$0xff]
        %v4350 = vld [vmem:[%s4342 + $0x2c] sm:$0xf]
        %v4351 = vld [vmem:[#allocation3] sm:$0xff]
        %v4352 = vld [vmem:[#allocation3 + $0x8] sm:$0xff]
        %v4353 = vld [vmem:[#allocation3 + $0x40] sm:$0xff]
        %v4354 = vld [vmem:[#allocation3 + $0x48] sm:$0xff]
        %v4355 = vld [vmem:[#allocation3 + $0x80] sm:$0xff]
        %v4356 = vld [vmem:[#allocation3 + $0x88] sm:$0xff]
        %v4357 = vld [vmem:[#allocation3 + $0xc0] sm:$0xff]
        %v4358 = vld [vmem:[#allocation3 + $0xc8] sm:$0xff]
        %v4359 = vld [vmem:[#allocation3 + $0x100] sm:$0xff]
        %v4360 = vld [vmem:[#allocation3 + $0x108] sm:$0xff]
        %v4361 = vld [vmem:[#allocation3 + $0x140] sm:$0xff]
        %v4362 = vld [vmem:[#allocation3 + $0x148] sm:$0xff]
        %v4363 = vld [vmem:[#allocation3 + $0x180] sm:$0xff]
        %v4364 = vld [vmem:[#allocation3 + $0x188] sm:$0xff]
        %v4365 = vld [vmem:[#allocation3 + $0x1c0] sm:$0xff]
        %v4366 = vld [vmem:[#allocation3 + $0x1c8] sm:$0xff]
        %v4367 = vld [vmem:[#allocation3 + $0x200] sm:$0xff]
        %v4368 = vld [vmem:[#allocation3 + $0x208] sm:$0xff]
        %v4369 = vld [vmem:[#allocation3 + $0x240] sm:$0xff]
        %v4370 = vld [vmem:[#allocation3 + $0x248] sm:$0xff]
        %v4371 = vld [vmem:[#allocation3 + $0x280] sm:$0xff]
        %v4372 = vld [vmem:[#allocation3 + $0x288] sm:$0xff]
        %v4373 = vld [vmem:[#allocation3 + $0x2c0] sm:$0xff]
        %v4374 = vld [vmem:[#allocation3 + $0x2c8] sm:$0xff]
        %v4375 = vld [vmem:[#allocation3 + $0x300] sm:$0xff]
        %v4376 = vld [vmem:[#allocation3 + $0x308] sm:$0xff]
        %v4377 = vld [vmem:[#allocation3 + $0x340] sm:$0xff]
        %v4378 = vld [vmem:[#allocation3 + $0x348] sm:$0xff]
        %v4379 = vld [vmem:[#allocation3 + $0x380] sm:$0xff]
        %v4380 = vld [vmem:[#allocation3 + $0x388] sm:$0xff]
        %v4381 = vld [vmem:[#allocation3 + $0x3c0] sm:$0xff]
        %v4382 = vld [vmem:[#allocation3 + $0x3c8] sm:$0xff]
        %v4383 = vld [vmem:[#allocation3 + $0x400] sm:$0xff]
        %v4384 = vld [vmem:[#allocation3 + $0x408] sm:$0xff]
        %v4385 = vld [vmem:[#allocation3 + $0x440] sm:$0xff]
        %v4386 = vld [vmem:[#allocation3 + $0x448] sm:$0xff]
        %s4387 = scalar_lea.vmem %s12, 128
        %v4388 = vld [vmem:[%s4387] sm:$0xff]
        %v4389 = vld [vmem:[%s4387 + $0x8] sm:$0xff]
        %v4390 = vld [vmem:[%s4387 + $0x10] sm:$0xff]
        %v4391 = vld [vmem:[%s4387 + $0x18] sm:$0xff]
        %4393 = vset.pattern.permute.xlu0 0
        %4394 = vperm.xlu0 %4393, %v4388
        %v4395 = vpop.permute.xlu0 %4394
        %4398 = vset.pattern.permute.xlu0 0
        %4399 = vperm.xlu0 %4398, %v4389
        %v4400 = vpop.permute.xlu0 %4399
        %4403 = vset.pattern.permute.xlu0 0
        %4404 = vperm.xlu0 %4403, %v4390
        %v4405 = vpop.permute.xlu0 %4404
        %4408 = vset.pattern.permute.xlu0 0
        %4409 = vperm.xlu0 %4408, %v4391
        %v4410 = vpop.permute.xlu0 %4409
        %v4420 = vunpack.c.l.b16 %v4343
        %v4421 = vunpack.c.h.b16 %v4343
        %v4422 = vunpack.c.l.b16 %v4344
        %v4423 = vunpack.c.l.b16 %v4345
        %v4424 = vunpack.c.h.b16 %v4345
        %v4425 = vunpack.c.l.b16 %v4346
        %v4426 = vunpack.c.l.b16 %v4347
        %v4427 = vunpack.c.h.b16 %v4347
        %v4428 = vunpack.c.l.b16 %v4348
        %v4429 = vunpack.c.l.b16 %v4349
        %v4430 = vunpack.c.h.b16 %v4349
        %v4431 = vunpack.c.l.b16 %v4350
        %v4432 = vpack.c.b16 %v4423, %v4420
        %v4433 = vpack.c.b16 %v4424, %v4421
        %v4434 = vpack.c.b16 %v4425, %v4422
        %v4435 = vpack.c.b16 %v4429, %v4426
        %v4436 = vpack.c.b16 %v4430, %v4427
        %v4437 = vpack.c.b16 %v4431, %v4428
        %v4443 = vsel %vm1472, %v4434, 0
        %v4446 = vsel %vm1472, %v4437, 0
        %4448 = vmatprep.subr.bf16.mxu0 %v4352
        %4449 = vmatpush1.bf16.msra.mxu0 %v4351
        %4450 = vmatprep.subr.bf16.mxu0 %v4354
        %4451 = vmatpush1.bf16.msra.mxu0 %v4353
        %4452 = vmatprep.subr.bf16.mxu0 %v4356
        %4453 = vmatpush1.bf16.msra.mxu0 %v4355
        %4454 = vmatprep.subr.bf16.mxu0 %v4358
        %4455 = vmatpush1.bf16.msra.mxu0 %v4357
        %4456 = vmatprep.subr.bf16.mxu0 %v4360
        %4457 = vmatpush1.bf16.msra.mxu0 %v4359
        %4458 = vmatprep.subr.bf16.mxu0 %v4362
        %4459 = vmatpush1.bf16.msra.mxu0 %v4361
        %4460 = vmatprep.subr.bf16.mxu0 %v4364
        %4461 = vmatpush1.bf16.msra.mxu0 %v4363
        %4462 = vmatprep.subr.bf16.mxu0 %v4366
        %4463 = vmatpush1.bf16.msra.mxu0 %v4365
        %4464 = vmatprep.subr.bf16.mxu0 %v4368
        %4465 = vmatpush1.bf16.msra.mxu0 %v4367
        %4466 = vmatprep.subr.bf16.mxu0 %v4370
        %4467 = vmatpush1.bf16.msra.mxu0 %v4369
        %4468 = vmatprep.subr.bf16.mxu0 %v4372
        %4469 = vmatpush1.bf16.msra.mxu0 %v4371
        %4470 = vmatprep.subr.bf16.mxu0 %v4374
        %4471 = vmatpush1.bf16.msra.mxu0 %v4373
        %4472 = vmatprep.subr.bf16.mxu0 %v4376
        %4473 = vmatpush1.bf16.msra.mxu0 %v4375
        %4474 = vmatprep.subr.bf16.mxu0 %v4378
        %4475 = vmatpush1.bf16.msra.mxu0 %v4377
        %4476 = vmatprep.subr.bf16.mxu0 %v4380
        %4477 = vmatpush1.bf16.msra.mxu0 %v4379
        %4478 = vmatprep.subr.bf16.mxu0 %v4382
        %4479 = vmatpush1.bf16.msra.mxu0 %v4381
        %4480 = vmatprep.mubr.bf16.mxu0 %v4433
        %4481 = vmatmul.mubr.bf16.gmra.mrb[0].mxu0 %v4432
        %v4482 = vpop.f32.mrb[0].mxu0
        %v4483 = vadd.f32 %v4395, %v4482
        %v4484 = vpop.f32.mrb[0].mxu0
        %v4485 = vadd.f32 %v4395, %v4484
        %v4486 = vpop.f32.mrb[0].mxu0
        %v4487 = vadd.f32 %v4400, %v4486
        %v4488 = vpop.f32.mrb[0].mxu0
        %v4489 = vadd.f32 %v4400, %v4488
        %4490 = vmatprep.mubr.bf16.mxu0 %v4436
        %4491 = vmatmul.mubr.bf16.gmra.mrb[0].mxu0 %v4435
        %v4492 = vpop.f32.mrb[0].mxu0
        %v4493 = vadd.f32 %v4405, %v4492
        %v4494 = vpop.f32.mrb[0].mxu0
        %v4495 = vadd.f32 %v4405, %v4494
        %v4496 = vpop.f32.mrb[0].mxu0
        %v4497 = vadd.f32 %v4410, %v4496
        %v4498 = vpop.f32.mrb[0].mxu0
        %v4499 = vadd.f32 %v4410, %v4498
        %4500 = vdwg.mxu0
        %4501 = vmatprep.subr.bf16.mxu0 %v4384
        %4502 = vmatpush1.bf16.msra.mxu0 %v4383
        %4503 = vmatprep.subr.bf16.mxu0 %v4386
        %4504 = vmatpush1.bf16.msra.mxu0 %v4385
        %4505 = vmatprep.subr.bf16.mxu0 0
        %4506 = vmatpush1.bf16.msra.mxu0 0
        %4507 = vmatprep.subr.bf16.mxu0 0
        %4508 = vmatpush1.bf16.msra.mxu0 0
        %4509 = vmatprep.subr.bf16.mxu0 0
        %4510 = vmatpush1.bf16.msra.mxu0 0
        %4511 = vmatprep.subr.bf16.mxu0 0
        %4512 = vmatpush1.bf16.msra.mxu0 0
        %4513 = vmatprep.subr.bf16.mxu0 0
        %4514 = vmatpush1.bf16.msra.mxu0 0
        %4515 = vmatprep.subr.bf16.mxu0 0
        %4516 = vmatpush1.bf16.msra.mxu0 0
        %4517 = vmatprep.subr.bf16.mxu0 0
        %4518 = vmatpush1.bf16.msra.mxu0 0
        %4519 = vmatprep.subr.bf16.mxu0 0
        %4520 = vmatpush1.bf16.msra.mxu0 0
        %4521 = vmatprep.subr.bf16.mxu0 0
        %4522 = vmatpush1.bf16.msra.mxu0 0
        %4523 = vmatprep.subr.bf16.mxu0 0
        %4524 = vmatpush1.bf16.msra.mxu0 0
        %4525 = vmatprep.subr.bf16.mxu0 0
        %4526 = vmatpush1.bf16.msra.mxu0 0
        %4527 = vmatprep.subr.bf16.mxu0 0
        %4528 = vmatpush1.bf16.msra.mxu0 0
        %4529 = vmatprep.subr.bf16.mxu0 0
        %4530 = vmatpush1.bf16.msra.mxu0 0
        %4531 = vmatprep.subr.bf16.mxu0 0
        %4532 = vmatpush1.bf16.msra.mxu0 0
        %4533 = vmatprep.mubr.bf16.mxu0 0
        %4534 = vmatmul.mubr.bf16.gmra.mrb[0].mxu0 %v4443
        %v4535 = vpop.f32.mrb[0].mxu0
        %v4536 = vadd.f32 %v4483, %v4535
        %v4537 = vpop.f32.mrb[0].mxu0
        %v4538 = vadd.f32 %v4485, %v4537
        %v4539 = vpop.f32.mrb[0].mxu0
        %v4540 = vadd.f32 %v4487, %v4539
        %v4541 = vpop.f32.mrb[0].mxu0
        %v4542 = vadd.f32 %v4489, %v4541
        %4543 = vmatprep.mubr.bf16.mxu0 0
        %4544 = vmatmul.mubr.bf16.gmra.mrb[0].mxu0 %v4446
        %v4545 = vpop.f32.mrb[0].mxu0
        %v4546 = vadd.f32 %v4493, %v4545
        %v4547 = vpop.f32.mrb[0].mxu0
        %v4548 = vadd.f32 %v4495, %v4547
        %v4549 = vpop.f32.mrb[0].mxu0
        %v4550 = vadd.f32 %v4497, %v4549
        %v4551 = vpop.f32.mrb[0].mxu0
        %v4552 = vadd.f32 %v4499, %v4551
        %4553 = vdwg.mxu0
        %v4554 = vmax.f32 %v4536, 0.0
        %v4555 = vmax.f32 %v4538, 0.0
        %v4556 = vmax.f32 %v4540, 0.0
        %v4557 = vmax.f32 %v4542, 0.0
        %v4558 = vmax.f32 %v4546, 0.0
        %v4559 = vmax.f32 %v4548, 0.0
        %v4560 = vmax.f32 %v4550, 0.0
        %v4561 = vmax.f32 %v4552, 0.0
        %4562 = vst [vmem:[%s898] sm:$0xff] %v4554
        %4563 = vst [vmem:[%s898 + $0x8] sm:$0xff] %v4555
        %4564 = vst [vmem:[%s898 + $0x10] sm:$0xff] %v4556
        %4565 = vst [vmem:[%s898 + $0x18] sm:$0xff] %v4557
        %4566 = vst [vmem:[%s898 + $0x20] sm:$0xff] %v4558
        %4567 = vst [vmem:[%s898 + $0x28] sm:$0xff] %v4559
        %4568 = vst [vmem:[%s898 + $0x30] sm:$0xff] %v4560
        %4569 = vst [vmem:[%s898 + $0x38] sm:$0xff] %v4561
        %v4572 = vcombine.low %v3676, %v3677
        %v4574 = vunpack.c.l.s4 1966171168
        %v4575 = vunpack.c.0.s8 %v4574
        %v4576 = vlaneseq
        %v4577 = vshrl.u32 %v4576, 7
        %v4578 = vsub.s32 %v4575, %v4577
        %v4579 = vrot.slane %v4572, %v4578
        %v4581 = vunpack.c.l.s4 1966171168
        %v4582 = vunpack.c.0.s8 %v4581
        %v4583 = vlaneseq
        %v4584 = vshrl.u32 %v4583, 7
        %v4585 = vsub.s32 %v4582, %v4584
        %v4586 = vrot.slane %v4579, %v4585
        %v4588 = vlaneseq
        %vm4589 = vcmp.ge.s32.totalorder %v4588, 0
        %vm4590 = vcmp.lt.s32.totalorder %v4588, 256
        %vm4591 = vmand %vm4589, %vm4590
        %4592 = vst.msk [vmem:[%s926] sm:$0x3] %vm4591, %v4586
        %v4593 = vpack.c.bf16 %v4556, %v4554
        %v4594 = vpack.c.bf16 %v4557, %v4555
        %v4595 = vpack.c.bf16 %v4560, %v4558
        %v4596 = vpack.c.bf16 %v4561, %v4559
        %v4597 = vld [vmem:[#allocation9] sm:$0xff]
        %v4598 = vld [vmem:[#allocation9 + $0x8] sm:$0xff]
        %v4599 = vld [vmem:[#allocation9 + $0x10] sm:$0xff]
        %v4600 = vld [vmem:[#allocation9 + $0x18] sm:$0xff]
        %v4601 = vld [vmem:[#allocation9 + $0x20] sm:$0xff]
        %v4602 = vld [vmem:[#allocation9 + $0x28] sm:$0xff]
        %v4603 = vld [vmem:[#allocation9 + $0x30] sm:$0xff]
        %v4604 = vld [vmem:[#allocation9 + $0x38] sm:$0xff]
        %v4605 = vld [vmem:[#allocation9 + $0x40] sm:$0xff]
        %v4606 = vld [vmem:[#allocation9 + $0x48] sm:$0xff]
        %v4607 = vld [vmem:[#allocation9 + $0x50] sm:$0xff]
        %v4608 = vld [vmem:[#allocation9 + $0x58] sm:$0xff]
        %v4609 = vld [vmem:[#allocation9 + $0x60] sm:$0xff]
        %v4610 = vld [vmem:[#allocation9 + $0x68] sm:$0xff]
        %v4611 = vld [vmem:[#allocation9 + $0x70] sm:$0xff]
        %v4612 = vld [vmem:[#allocation9 + $0x78] sm:$0xff]
        %v4613 = vld [vmem:[#allocation9 + $0x80] sm:$0xff]
        %v4614 = vld [vmem:[#allocation9 + $0x88] sm:$0xff]
        %v4615 = vld [vmem:[#allocation9 + $0x90] sm:$0xff]
        %v4616 = vld [vmem:[#allocation9 + $0x98] sm:$0xff]
        %v4617 = vld [vmem:[#allocation9 + $0xa0] sm:$0xff]
        %v4618 = vld [vmem:[#allocation9 + $0xa8] sm:$0xff]
        %v4619 = vld [vmem:[#allocation9 + $0xb0] sm:$0xff]
        %v4620 = vld [vmem:[#allocation9 + $0xb8] sm:$0xff]
        %v4621 = vld [vmem:[#allocation9 + $0xc0] sm:$0xff]
        %v4622 = vld [vmem:[#allocation9 + $0xc8] sm:$0xff]
        %v4623 = vld [vmem:[#allocation9 + $0xd0] sm:$0xff]
        %v4624 = vld [vmem:[#allocation9 + $0xd8] sm:$0xff]
        %v4625 = vld [vmem:[#allocation9 + $0xe0] sm:$0xff]
        %v4626 = vld [vmem:[#allocation9 + $0xe8] sm:$0xff]
        %v4627 = vld [vmem:[#allocation9 + $0xf0] sm:$0xff]
        %v4628 = vld [vmem:[#allocation9 + $0xf8] sm:$0xff]
        %v4629 = vld [vmem:[#allocation9 + $0x100] sm:$0xff]
        %v4630 = vld [vmem:[#allocation9 + $0x108] sm:$0xff]
        %v4631 = vld [vmem:[#allocation9 + $0x110] sm:$0xff]
        %v4632 = vld [vmem:[#allocation9 + $0x118] sm:$0xff]
        %v4633 = vld [vmem:[#allocation9 + $0x120] sm:$0xff]
        %v4634 = vld [vmem:[#allocation9 + $0x128] sm:$0xff]
        %v4635 = vld [vmem:[#allocation9 + $0x130] sm:$0xff]
        %v4636 = vld [vmem:[#allocation9 + $0x138] sm:$0xff]
        %v4637 = vld [vmem:[#allocation9 + $0x140] sm:$0xff]
        %v4638 = vld [vmem:[#allocation9 + $0x148] sm:$0xff]
        %v4639 = vld [vmem:[#allocation9 + $0x150] sm:$0xff]
        %v4640 = vld [vmem:[#allocation9 + $0x158] sm:$0xff]
        %v4641 = vld [vmem:[#allocation9 + $0x160] sm:$0xff]
        %v4642 = vld [vmem:[#allocation9 + $0x168] sm:$0xff]
        %v4643 = vld [vmem:[#allocation9 + $0x170] sm:$0xff]
        %v4644 = vld [vmem:[#allocation9 + $0x178] sm:$0xff]
        %v4645 = vld [vmem:[#allocation9 + $0x180] sm:$0xff]
        %v4646 = vld [vmem:[#allocation9 + $0x188] sm:$0xff]
        %v4647 = vld [vmem:[#allocation9 + $0x190] sm:$0xff]
        %v4648 = vld [vmem:[#allocation9 + $0x198] sm:$0xff]
        %v4649 = vld [vmem:[#allocation9 + $0x1a0] sm:$0xff]
        %v4650 = vld [vmem:[#allocation9 + $0x1a8] sm:$0xff]
        %v4651 = vld [vmem:[#allocation9 + $0x1b0] sm:$0xff]
        %v4652 = vld [vmem:[#allocation9 + $0x1b8] sm:$0xff]
        %v4653 = vld [vmem:[#allocation9 + $0x1c0] sm:$0xff]
        %v4654 = vld [vmem:[#allocation9 + $0x1c8] sm:$0xff]
        %v4655 = vld [vmem:[#allocation9 + $0x1d0] sm:$0xff]
        %v4656 = vld [vmem:[#allocation9 + $0x1d8] sm:$0xff]
        %v4657 = vld [vmem:[#allocation9 + $0x1e0] sm:$0xff]
        %v4658 = vld [vmem:[#allocation9 + $0x1e8] sm:$0xff]
        %v4659 = vld [vmem:[#allocation9 + $0x1f0] sm:$0xff]
        %v4660 = vld [vmem:[#allocation9 + $0x1f8] sm:$0xff]
        %v4661 = vld [vmem:[#allocation9 + $0x200] sm:$0xff]
        %v4662 = vld [vmem:[#allocation9 + $0x208] sm:$0xff]
        %v4663 = vld [vmem:[#allocation9 + $0x210] sm:$0xff]
        %v4664 = vld [vmem:[#allocation9 + $0x218] sm:$0xff]
        %v4665 = vld [vmem:[#allocation9 + $0x220] sm:$0xff]
        %v4666 = vld [vmem:[#allocation9 + $0x228] sm:$0xff]
        %v4667 = vld [vmem:[#allocation9 + $0x230] sm:$0xff]
        %v4668 = vld [vmem:[#allocation9 + $0x238] sm:$0xff]
        %v4669 = vld [vmem:[#allocation9 + $0x240] sm:$0xff]
        %v4670 = vld [vmem:[#allocation9 + $0x248] sm:$0xff]
        %v4671 = vld [vmem:[#allocation9 + $0x250] sm:$0xff]
        %v4672 = vld [vmem:[#allocation9 + $0x258] sm:$0xff]
        %v4673 = vld [vmem:[#allocation9 + $0x260] sm:$0xff]
        %v4674 = vld [vmem:[#allocation9 + $0x268] sm:$0xff]
        %v4675 = vld [vmem:[#allocation9 + $0x270] sm:$0xff]
        %v4676 = vld [vmem:[#allocation9 + $0x278] sm:$0xff]
        %v4677 = vld [vmem:[#allocation9 + $0x280] sm:$0xff]
        %v4678 = vld [vmem:[#allocation9 + $0x288] sm:$0xff]
        %v4679 = vld [vmem:[#allocation9 + $0x290] sm:$0xff]
        %v4680 = vld [vmem:[#allocation9 + $0x298] sm:$0xff]
        %v4681 = vld [vmem:[#allocation9 + $0x2a0] sm:$0xff]
        %v4682 = vld [vmem:[#allocation9 + $0x2a8] sm:$0xff]
        %v4683 = vld [vmem:[#allocation9 + $0x2b0] sm:$0xff]
        %v4684 = vld [vmem:[#allocation9 + $0x2b8] sm:$0xff]
        %v4685 = vld [vmem:[#allocation9 + $0x2c0] sm:$0xff]
        %v4686 = vld [vmem:[#allocation9 + $0x2c8] sm:$0xff]
        %v4687 = vld [vmem:[#allocation9 + $0x2d0] sm:$0xff]
        %v4688 = vld [vmem:[#allocation9 + $0x2d8] sm:$0xff]
        %v4689 = vld [vmem:[#allocation9 + $0x2e0] sm:$0xff]
        %v4690 = vld [vmem:[#allocation9 + $0x2e8] sm:$0xff]
        %v4691 = vld [vmem:[#allocation9 + $0x2f0] sm:$0xff]
        %v4692 = vld [vmem:[#allocation9 + $0x2f8] sm:$0xff]
        %v4693 = vld [vmem:[#allocation9 + $0x300] sm:$0xff]
        %v4694 = vld [vmem:[#allocation9 + $0x308] sm:$0xff]
        %v4695 = vld [vmem:[#allocation9 + $0x310] sm:$0xff]
        %v4696 = vld [vmem:[#allocation9 + $0x318] sm:$0xff]
        %v4697 = vld [vmem:[#allocation9 + $0x320] sm:$0xff]
        %v4698 = vld [vmem:[#allocation9 + $0x328] sm:$0xff]
        %v4699 = vld [vmem:[#allocation9 + $0x330] sm:$0xff]
        %v4700 = vld [vmem:[#allocation9 + $0x338] sm:$0xff]
        %v4701 = vld [vmem:[#allocation9 + $0x340] sm:$0xff]
        %v4702 = vld [vmem:[#allocation9 + $0x348] sm:$0xff]
        %v4703 = vld [vmem:[#allocation9 + $0x350] sm:$0xff]
        %v4704 = vld [vmem:[#allocation9 + $0x358] sm:$0xff]
        %v4705 = vld [vmem:[#allocation9 + $0x360] sm:$0xff]
        %v4706 = vld [vmem:[#allocation9 + $0x368] sm:$0xff]
        %v4707 = vld [vmem:[#allocation9 + $0x370] sm:$0xff]
        %v4708 = vld [vmem:[#allocation9 + $0x378] sm:$0xff]
        %v4709 = vld [vmem:[#allocation9 + $0x380] sm:$0xff]
        %v4710 = vld [vmem:[#allocation9 + $0x388] sm:$0xff]
        %v4711 = vld [vmem:[#allocation9 + $0x390] sm:$0xff]
        %v4712 = vld [vmem:[#allocation9 + $0x398] sm:$0xff]
        %v4713 = vld [vmem:[#allocation9 + $0x3a0] sm:$0xff]
        %v4714 = vld [vmem:[#allocation9 + $0x3a8] sm:$0xff]
        %v4715 = vld [vmem:[#allocation9 + $0x3b0] sm:$0xff]
        %v4716 = vld [vmem:[#allocation9 + $0x3b8] sm:$0xff]
        %v4717 = vld [vmem:[#allocation9 + $0x3c0] sm:$0xff]
        %v4718 = vld [vmem:[#allocation9 + $0x3c8] sm:$0xff]
        %v4719 = vld [vmem:[#allocation9 + $0x3d0] sm:$0xff]
        %v4720 = vld [vmem:[#allocation9 + $0x3d8] sm:$0xff]
        %v4721 = vld [vmem:[#allocation9 + $0x3e0] sm:$0xff]
        %v4722 = vld [vmem:[#allocation9 + $0x3e8] sm:$0xff]
        %v4723 = vld [vmem:[#allocation9 + $0x3f0] sm:$0xff]
        %v4724 = vld [vmem:[#allocation9 + $0x3f8] sm:$0xff]
        %v4725 = vld [vmem:[%s943] sm:$0xff]
        %v4726 = vld [vmem:[%s943 + $0x8] sm:$0xff]
        %v4727 = vld [vmem:[%s943 + $0x10] sm:$0xff]
        %v4728 = vld [vmem:[%s943 + $0x18] sm:$0xff]
        %v4729 = vld [vmem:[%s943 + $0x20] sm:$0xff]
        %v4730 = vld [vmem:[%s943 + $0x28] sm:$0xff]
        %v4731 = vld [vmem:[%s943 + $0x30] sm:$0xff]
        %v4732 = vld [vmem:[%s943 + $0x38] sm:$0xff]
        %v4733 = vld [vmem:[%s943 + $0x40] sm:$0xff]
        %v4734 = vld [vmem:[%s943 + $0x48] sm:$0xff]
        %v4735 = vld [vmem:[%s943 + $0x50] sm:$0xff]
        %v4736 = vld [vmem:[%s943 + $0x58] sm:$0xff]
        %v4737 = vld [vmem:[%s943 + $0x60] sm:$0xff]
        %v4738 = vld [vmem:[%s943 + $0x68] sm:$0xff]
        %v4739 = vld [vmem:[%s943 + $0x70] sm:$0xff]
        %v4740 = vld [vmem:[%s943 + $0x78] sm:$0xff]
        %v4741 = vld [vmem:[%s943 + $0x80] sm:$0xff]
        %v4742 = vld [vmem:[%s943 + $0x88] sm:$0xff]
        %v4743 = vld [vmem:[%s943 + $0x90] sm:$0xff]
        %v4744 = vld [vmem:[%s943 + $0x98] sm:$0xff]
        %v4745 = vld [vmem:[%s943 + $0xa0] sm:$0xff]
        %v4746 = vld [vmem:[%s943 + $0xa8] sm:$0xff]
        %v4747 = vld [vmem:[%s943 + $0xb0] sm:$0xff]
        %v4748 = vld [vmem:[%s943 + $0xb8] sm:$0xff]
        %v4749 = vld [vmem:[%s943 + $0xc0] sm:$0xff]
        %v4750 = vld [vmem:[%s943 + $0xc8] sm:$0xff]
        %v4751 = vld [vmem:[%s943 + $0xd0] sm:$0xff]
        %v4752 = vld [vmem:[%s943 + $0xd8] sm:$0xff]
        %v4753 = vld [vmem:[%s943 + $0xe0] sm:$0xff]
        %v4754 = vld [vmem:[%s943 + $0xe8] sm:$0xff]
        %v4755 = vld [vmem:[%s943 + $0xf0] sm:$0xff]
        %v4756 = vld [vmem:[%s943 + $0xf8] sm:$0xff]
        %v4885 = vunpack.c.l.b16 %v4597
        %v4886 = vunpack.c.h.b16 %v4597
        %v4887 = vunpack.c.l.b16 %v4598
        %v4888 = vunpack.c.h.b16 %v4598
        %v4889 = vunpack.c.l.b16 %v4599
        %v4890 = vunpack.c.h.b16 %v4599
        %v4891 = vunpack.c.l.b16 %v4600
        %v4892 = vunpack.c.h.b16 %v4600
        %v4893 = vunpack.c.l.b16 %v4601
        %v4894 = vunpack.c.h.b16 %v4601
        %v4895 = vunpack.c.l.b16 %v4602
        %v4896 = vunpack.c.h.b16 %v4602
        %v4897 = vunpack.c.l.b16 %v4603
        %v4898 = vunpack.c.h.b16 %v4603
        %v4899 = vunpack.c.l.b16 %v4604
        %v4900 = vunpack.c.h.b16 %v4604
        %v4901 = vunpack.c.l.b16 %v4605
        %v4902 = vunpack.c.h.b16 %v4605
        %v4903 = vunpack.c.l.b16 %v4606
        %v4904 = vunpack.c.h.b16 %v4606
        %v4905 = vunpack.c.l.b16 %v4607
        %v4906 = vunpack.c.h.b16 %v4607
        %v4907 = vunpack.c.l.b16 %v4608
        %v4908 = vunpack.c.h.b16 %v4608
        %v4909 = vunpack.c.l.b16 %v4609
        %v4910 = vunpack.c.h.b16 %v4609
        %v4911 = vunpack.c.l.b16 %v4610
        %v4912 = vunpack.c.h.b16 %v4610
        %v4913 = vunpack.c.l.b16 %v4611
        %v4914 = vunpack.c.h.b16 %v4611
        %v4915 = vunpack.c.l.b16 %v4612
        %v4916 = vunpack.c.h.b16 %v4612
        %v4917 = vunpack.c.l.b16 %v4613
        %v4918 = vunpack.c.h.b16 %v4613
        %v4919 = vunpack.c.l.b16 %v4614
        %v4920 = vunpack.c.h.b16 %v4614
        %v4921 = vunpack.c.l.b16 %v4615
        %v4922 = vunpack.c.h.b16 %v4615
        %v4923 = vunpack.c.l.b16 %v4616
        %v4924 = vunpack.c.h.b16 %v4616
        %v4925 = vunpack.c.l.b16 %v4617
        %v4926 = vunpack.c.h.b16 %v4617
        %v4927 = vunpack.c.l.b16 %v4618
        %v4928 = vunpack.c.h.b16 %v4618
        %v4929 = vunpack.c.l.b16 %v4619
        %v4930 = vunpack.c.h.b16 %v4619
        %v4931 = vunpack.c.l.b16 %v4620
        %v4932 = vunpack.c.h.b16 %v4620
        %v4933 = vunpack.c.l.b16 %v4621
        %v4934 = vunpack.c.h.b16 %v4621
        %v4935 = vunpack.c.l.b16 %v4622
        %v4936 = vunpack.c.h.b16 %v4622
        %v4937 = vunpack.c.l.b16 %v4623
        %v4938 = vunpack.c.h.b16 %v4623
        %v4939 = vunpack.c.l.b16 %v4624
        %v4940 = vunpack.c.h.b16 %v4624
        %v4941 = vunpack.c.l.b16 %v4625
        %v4942 = vunpack.c.h.b16 %v4625
        %v4943 = vunpack.c.l.b16 %v4626
        %v4944 = vunpack.c.h.b16 %v4626
        %v4945 = vunpack.c.l.b16 %v4627
        %v4946 = vunpack.c.h.b16 %v4627
        %v4947 = vunpack.c.l.b16 %v4628
        %v4948 = vunpack.c.h.b16 %v4628
        %v4949 = vunpack.c.l.b16 %v4629
        %v4950 = vunpack.c.h.b16 %v4629
        %v4951 = vunpack.c.l.b16 %v4630
        %v4952 = vunpack.c.h.b16 %v4630
        %v4953 = vunpack.c.l.b16 %v4631
        %v4954 = vunpack.c.h.b16 %v4631
        %v4955 = vunpack.c.l.b16 %v4632
        %v4956 = vunpack.c.h.b16 %v4632
        %v4957 = vunpack.c.l.b16 %v4633
        %v4958 = vunpack.c.h.b16 %v4633
        %v4959 = vunpack.c.l.b16 %v4634
        %v4960 = vunpack.c.h.b16 %v4634
        %v4961 = vunpack.c.l.b16 %v4635
        %v4962 = vunpack.c.h.b16 %v4635
        %v4963 = vunpack.c.l.b16 %v4636
        %v4964 = vunpack.c.h.b16 %v4636
        %v4965 = vunpack.c.l.b16 %v4637
        %v4966 = vunpack.c.h.b16 %v4637
        %v4967 = vunpack.c.l.b16 %v4638
        %v4968 = vunpack.c.h.b16 %v4638
        %v4969 = vunpack.c.l.b16 %v4639
        %v4970 = vunpack.c.h.b16 %v4639
        %v4971 = vunpack.c.l.b16 %v4640
        %v4972 = vunpack.c.h.b16 %v4640
        %v4973 = vunpack.c.l.b16 %v4641
        %v4974 = vunpack.c.h.b16 %v4641
        %v4975 = vunpack.c.l.b16 %v4642
        %v4976 = vunpack.c.h.b16 %v4642
        %v4977 = vunpack.c.l.b16 %v4643
        %v4978 = vunpack.c.h.b16 %v4643
        %v4979 = vunpack.c.l.b16 %v4644
        %v4980 = vunpack.c.h.b16 %v4644
        %v4981 = vunpack.c.l.b16 %v4645
        %v4982 = vunpack.c.h.b16 %v4645
        %v4983 = vunpack.c.l.b16 %v4646
        %v4984 = vunpack.c.h.b16 %v4646
        %v4985 = vunpack.c.l.b16 %v4647
        %v4986 = vunpack.c.h.b16 %v4647
        %v4987 = vunpack.c.l.b16 %v4648
        %v4988 = vunpack.c.h.b16 %v4648
        %v4989 = vunpack.c.l.b16 %v4649
        %v4990 = vunpack.c.h.b16 %v4649
        %v4991 = vunpack.c.l.b16 %v4650
        %v4992 = vunpack.c.h.b16 %v4650
        %v4993 = vunpack.c.l.b16 %v4651
        %v4994 = vunpack.c.h.b16 %v4651
        %v4995 = vunpack.c.l.b16 %v4652
        %v4996 = vunpack.c.h.b16 %v4652
        %v4997 = vunpack.c.l.b16 %v4653
        %v4998 = vunpack.c.h.b16 %v4653
        %v4999 = vunpack.c.l.b16 %v4654
        %v5000 = vunpack.c.h.b16 %v4654
        %v5001 = vunpack.c.l.b16 %v4655
        %v5002 = vunpack.c.h.b16 %v4655
        %v5003 = vunpack.c.l.b16 %v4656
        %v5004 = vunpack.c.h.b16 %v4656
        %v5005 = vunpack.c.l.b16 %v4657
        %v5006 = vunpack.c.h.b16 %v4657
        %v5007 = vunpack.c.l.b16 %v4658
        %v5008 = vunpack.c.h.b16 %v4658
        %v5009 = vunpack.c.l.b16 %v4659
        %v5010 = vunpack.c.h.b16 %v4659
        %v5011 = vunpack.c.l.b16 %v4660
        %v5012 = vunpack.c.h.b16 %v4660
        %v5013 = vunpack.c.l.b16 %v4661
        %v5014 = vunpack.c.h.b16 %v4661
        %v5015 = vunpack.c.l.b16 %v4662
        %v5016 = vunpack.c.h.b16 %v4662
        %v5017 = vunpack.c.l.b16 %v4663
        %v5018 = vunpack.c.h.b16 %v4663
        %v5019 = vunpack.c.l.b16 %v4664
        %v5020 = vunpack.c.h.b16 %v4664
        %v5021 = vunpack.c.l.b16 %v4665
        %v5022 = vunpack.c.h.b16 %v4665
        %v5023 = vunpack.c.l.b16 %v4666
        %v5024 = vunpack.c.h.b16 %v4666
        %v5025 = vunpack.c.l.b16 %v4667
        %v5026 = vunpack.c.h.b16 %v4667
        %v5027 = vunpack.c.l.b16 %v4668
        %v5028 = vunpack.c.h.b16 %v4668
        %v5029 = vunpack.c.l.b16 %v4669
        %v5030 = vunpack.c.h.b16 %v4669
        %v5031 = vunpack.c.l.b16 %v4670
        %v5032 = vunpack.c.h.b16 %v4670
        %v5033 = vunpack.c.l.b16 %v4671
        %v5034 = vunpack.c.h.b16 %v4671
        %v5035 = vunpack.c.l.b16 %v4672
        %v5036 = vunpack.c.h.b16 %v4672
        %v5037 = vunpack.c.l.b16 %v4673
        %v5038 = vunpack.c.h.b16 %v4673
        %v5039 = vunpack.c.l.b16 %v4674
        %v5040 = vunpack.c.h.b16 %v4674
        %v5041 = vunpack.c.l.b16 %v4675
        %v5042 = vunpack.c.h.b16 %v4675
        %v5043 = vunpack.c.l.b16 %v4676
        %v5044 = vunpack.c.h.b16 %v4676
        %v5045 = vunpack.c.l.b16 %v4677
        %v5046 = vunpack.c.h.b16 %v4677
        %v5047 = vunpack.c.l.b16 %v4678
        %v5048 = vunpack.c.h.b16 %v4678
        %v5049 = vunpack.c.l.b16 %v4679
        %v5050 = vunpack.c.h.b16 %v4679
        %v5051 = vunpack.c.l.b16 %v4680
        %v5052 = vunpack.c.h.b16 %v4680
        %v5053 = vunpack.c.l.b16 %v4681
        %v5054 = vunpack.c.h.b16 %v4681
        %v5055 = vunpack.c.l.b16 %v4682
        %v5056 = vunpack.c.h.b16 %v4682
        %v5057 = vunpack.c.l.b16 %v4683
        %v5058 = vunpack.c.h.b16 %v4683
        %v5059 = vunpack.c.l.b16 %v4684
        %v5060 = vunpack.c.h.b16 %v4684
        %v5061 = vunpack.c.l.b16 %v4685
        %v5062 = vunpack.c.h.b16 %v4685
        %v5063 = vunpack.c.l.b16 %v4686
        %v5064 = vunpack.c.h.b16 %v4686
        %v5065 = vunpack.c.l.b16 %v4687
        %v5066 = vunpack.c.h.b16 %v4687
        %v5067 = vunpack.c.l.b16 %v4688
        %v5068 = vunpack.c.h.b16 %v4688
        %v5069 = vunpack.c.l.b16 %v4689
        %v5070 = vunpack.c.h.b16 %v4689
        %v5071 = vunpack.c.l.b16 %v4690
        %v5072 = vunpack.c.h.b16 %v4690
        %v5073 = vunpack.c.l.b16 %v4691
        %v5074 = vunpack.c.h.b16 %v4691
        %v5075 = vunpack.c.l.b16 %v4692
        %v5076 = vunpack.c.h.b16 %v4692
        %v5077 = vunpack.c.l.b16 %v4693
        %v5078 = vunpack.c.h.b16 %v4693
        %v5079 = vunpack.c.l.b16 %v4694
        %v5080 = vunpack.c.h.b16 %v4694
        %v5081 = vunpack.c.l.b16 %v4695
        %v5082 = vunpack.c.h.b16 %v4695
        %v5083 = vunpack.c.l.b16 %v4696
        %v5084 = vunpack.c.h.b16 %v4696
        %v5085 = vunpack.c.l.b16 %v4697
        %v5086 = vunpack.c.h.b16 %v4697
        %v5087 = vunpack.c.l.b16 %v4698
        %v5088 = vunpack.c.h.b16 %v4698
        %v5089 = vunpack.c.l.b16 %v4699
        %v5090 = vunpack.c.h.b16 %v4699
        %v5091 = vunpack.c.l.b16 %v4700
        %v5092 = vunpack.c.h.b16 %v4700
        %v5093 = vunpack.c.l.b16 %v4701
        %v5094 = vunpack.c.h.b16 %v4701
        %v5095 = vunpack.c.l.b16 %v4702
        %v5096 = vunpack.c.h.b16 %v4702
        %v5097 = vunpack.c.l.b16 %v4703
        %v5098 = vunpack.c.h.b16 %v4703
        %v5099 = vunpack.c.l.b16 %v4704
        %v5100 = vunpack.c.h.b16 %v4704
        %v5101 = vunpack.c.l.b16 %v4705
        %v5102 = vunpack.c.h.b16 %v4705
        %v5103 = vunpack.c.l.b16 %v4706
        %v5104 = vunpack.c.h.b16 %v4706
        %v5105 = vunpack.c.l.b16 %v4707
        %v5106 = vunpack.c.h.b16 %v4707
        %v5107 = vunpack.c.l.b16 %v4708
        %v5108 = vunpack.c.h.b16 %v4708
        %v5109 = vunpack.c.l.b16 %v4709
        %v5110 = vunpack.c.h.b16 %v4709
        %v5111 = vunpack.c.l.b16 %v4710
        %v5112 = vunpack.c.h.b16 %v4710
        %v5113 = vunpack.c.l.b16 %v4711
        %v5114 = vunpack.c.h.b16 %v4711
        %v5115 = vunpack.c.l.b16 %v4712
        %v5116 = vunpack.c.h.b16 %v4712
        %v5117 = vunpack.c.l.b16 %v4713
        %v5118 = vunpack.c.h.b16 %v4713
        %v5119 = vunpack.c.l.b16 %v4714
        %v5120 = vunpack.c.h.b16 %v4714
        %v5121 = vunpack.c.l.b16 %v4715
        %v5122 = vunpack.c.h.b16 %v4715
        %v5123 = vunpack.c.l.b16 %v4716
        %v5124 = vunpack.c.h.b16 %v4716
        %v5125 = vunpack.c.l.b16 %v4717
        %v5126 = vunpack.c.h.b16 %v4717
        %v5127 = vunpack.c.l.b16 %v4718
        %v5128 = vunpack.c.h.b16 %v4718
        %v5129 = vunpack.c.l.b16 %v4719
        %v5130 = vunpack.c.h.b16 %v4719
        %v5131 = vunpack.c.l.b16 %v4720
        %v5132 = vunpack.c.h.b16 %v4720
        %v5133 = vunpack.c.l.b16 %v4721
        %v5134 = vunpack.c.h.b16 %v4721
        %v5135 = vunpack.c.l.b16 %v4722
        %v5136 = vunpack.c.h.b16 %v4722
        %v5137 = vunpack.c.l.b16 %v4723
        %v5138 = vunpack.c.h.b16 %v4723
        %v5139 = vunpack.c.l.b16 %v4724
        %v5140 = vunpack.c.h.b16 %v4724
        %v5141 = vpack.c.b16 %v4893, %v4885
        %v5142 = vpack.c.b16 %v4894, %v4886
        %v5143 = vpack.c.b16 %v4895, %v4887
        %v5144 = vpack.c.b16 %v4896, %v4888
        %v5145 = vpack.c.b16 %v4897, %v4889
        %v5146 = vpack.c.b16 %v4898, %v4890
        %v5147 = vpack.c.b16 %v4899, %v4891
        %v5148 = vpack.c.b16 %v4900, %v4892
        %v5149 = vpack.c.b16 %v4909, %v4901
        %v5150 = vpack.c.b16 %v4910, %v4902
        %v5151 = vpack.c.b16 %v4911, %v4903
        %v5152 = vpack.c.b16 %v4912, %v4904
        %v5153 = vpack.c.b16 %v4913, %v4905
        %v5154 = vpack.c.b16 %v4914, %v4906
        %v5155 = vpack.c.b16 %v4915, %v4907
        %v5156 = vpack.c.b16 %v4916, %v4908
        %v5157 = vpack.c.b16 %v4925, %v4917
        %v5158 = vpack.c.b16 %v4926, %v4918
        %v5159 = vpack.c.b16 %v4927, %v4919
        %v5160 = vpack.c.b16 %v4928, %v4920
        %v5161 = vpack.c.b16 %v4929, %v4921
        %v5162 = vpack.c.b16 %v4930, %v4922
        %v5163 = vpack.c.b16 %v4931, %v4923
        %v5164 = vpack.c.b16 %v4932, %v4924
        %v5165 = vpack.c.b16 %v4941, %v4933
        %v5166 = vpack.c.b16 %v4942, %v4934
        %v5167 = vpack.c.b16 %v4943, %v4935
        %v5168 = vpack.c.b16 %v4944, %v4936
        %v5169 = vpack.c.b16 %v4945, %v4937
        %v5170 = vpack.c.b16 %v4946, %v4938
        %v5171 = vpack.c.b16 %v4947, %v4939
        %v5172 = vpack.c.b16 %v4948, %v4940
        %v5173 = vpack.c.b16 %v4957, %v4949
        %v5174 = vpack.c.b16 %v4958, %v4950
        %v5175 = vpack.c.b16 %v4959, %v4951
        %v5176 = vpack.c.b16 %v4960, %v4952
        %v5177 = vpack.c.b16 %v4961, %v4953
        %v5178 = vpack.c.b16 %v4962, %v4954
        %v5179 = vpack.c.b16 %v4963, %v4955
        %v5180 = vpack.c.b16 %v4964, %v4956
        %v5181 = vpack.c.b16 %v4973, %v4965
        %v5182 = vpack.c.b16 %v4974, %v4966
        %v5183 = vpack.c.b16 %v4975, %v4967
        %v5184 = vpack.c.b16 %v4976, %v4968
        %v5185 = vpack.c.b16 %v4977, %v4969
        %v5186 = vpack.c.b16 %v4978, %v4970
        %v5187 = vpack.c.b16 %v4979, %v4971
        %v5188 = vpack.c.b16 %v4980, %v4972
        %v5189 = vpack.c.b16 %v4989, %v4981
        %v5190 = vpack.c.b16 %v4990, %v4982
        %v5191 = vpack.c.b16 %v4991, %v4983
        %v5192 = vpack.c.b16 %v4992, %v4984
        %v5193 = vpack.c.b16 %v4993, %v4985
        %v5194 = vpack.c.b16 %v4994, %v4986
        %v5195 = vpack.c.b16 %v4995, %v4987
        %v5196 = vpack.c.b16 %v4996, %v4988
        %v5197 = vpack.c.b16 %v5005, %v4997
        %v5198 = vpack.c.b16 %v5006, %v4998
        %v5199 = vpack.c.b16 %v5007, %v4999
        %v5200 = vpack.c.b16 %v5008, %v5000
        %v5201 = vpack.c.b16 %v5009, %v5001
        %v5202 = vpack.c.b16 %v5010, %v5002
        %v5203 = vpack.c.b16 %v5011, %v5003
        %v5204 = vpack.c.b16 %v5012, %v5004
        %v5205 = vpack.c.b16 %v5021, %v5013
        %v5206 = vpack.c.b16 %v5022, %v5014
        %v5207 = vpack.c.b16 %v5023, %v5015
        %v5208 = vpack.c.b16 %v5024, %v5016
        %v5209 = vpack.c.b16 %v5025, %v5017
        %v5210 = vpack.c.b16 %v5026, %v5018
        %v5211 = vpack.c.b16 %v5027, %v5019
        %v5212 = vpack.c.b16 %v5028, %v5020
        %v5213 = vpack.c.b16 %v5037, %v5029
        %v5214 = vpack.c.b16 %v5038, %v5030
        %v5215 = vpack.c.b16 %v5039, %v5031
        %v5216 = vpack.c.b16 %v5040, %v5032
        %v5217 = vpack.c.b16 %v5041, %v5033
        %v5218 = vpack.c.b16 %v5042, %v5034
        %v5219 = vpack.c.b16 %v5043, %v5035
        %v5220 = vpack.c.b16 %v5044, %v5036
        %v5221 = vpack.c.b16 %v5053, %v5045
        %v5222 = vpack.c.b16 %v5054, %v5046
        %v5223 = vpack.c.b16 %v5055, %v5047
        %v5224 = vpack.c.b16 %v5056, %v5048
        %v5225 = vpack.c.b16 %v5057, %v5049
        %v5226 = vpack.c.b16 %v5058, %v5050
        %v5227 = vpack.c.b16 %v5059, %v5051
        %v5228 = vpack.c.b16 %v5060, %v5052
        %v5229 = vpack.c.b16 %v5069, %v5061
        %v5230 = vpack.c.b16 %v5070, %v5062
        %v5231 = vpack.c.b16 %v5071, %v5063
        %v5232 = vpack.c.b16 %v5072, %v5064
        %v5233 = vpack.c.b16 %v5073, %v5065
        %v5234 = vpack.c.b16 %v5074, %v5066
        %v5235 = vpack.c.b16 %v5075, %v5067
        %v5236 = vpack.c.b16 %v5076, %v5068
        %v5237 = vpack.c.b16 %v5085, %v5077
        %v5238 = vpack.c.b16 %v5086, %v5078
        %v5239 = vpack.c.b16 %v5087, %v5079
        %v5240 = vpack.c.b16 %v5088, %v5080
        %v5241 = vpack.c.b16 %v5089, %v5081
        %v5242 = vpack.c.b16 %v5090, %v5082
        %v5243 = vpack.c.b16 %v5091, %v5083
        %v5244 = vpack.c.b16 %v5092, %v5084
        %v5245 = vpack.c.b16 %v5101, %v5093
        %v5246 = vpack.c.b16 %v5102, %v5094
        %v5247 = vpack.c.b16 %v5103, %v5095
        %v5248 = vpack.c.b16 %v5104, %v5096
        %v5249 = vpack.c.b16 %v5105, %v5097
        %v5250 = vpack.c.b16 %v5106, %v5098
        %v5251 = vpack.c.b16 %v5107, %v5099
        %v5252 = vpack.c.b16 %v5108, %v5100
        %v5253 = vpack.c.b16 %v5117, %v5109
        %v5254 = vpack.c.b16 %v5118, %v5110
        %v5255 = vpack.c.b16 %v5119, %v5111
        %v5256 = vpack.c.b16 %v5120, %v5112
        %v5257 = vpack.c.b16 %v5121, %v5113
        %v5258 = vpack.c.b16 %v5122, %v5114
        %v5259 = vpack.c.b16 %v5123, %v5115
        %v5260 = vpack.c.b16 %v5124, %v5116
        %v5261 = vpack.c.b16 %v5133, %v5125
        %v5262 = vpack.c.b16 %v5134, %v5126
        %v5263 = vpack.c.b16 %v5135, %v5127
        %v5264 = vpack.c.b16 %v5136, %v5128
        %v5265 = vpack.c.b16 %v5137, %v5129
        %v5266 = vpack.c.b16 %v5138, %v5130
        %v5267 = vpack.c.b16 %v5139, %v5131
        %v5268 = vpack.c.b16 %v5140, %v5132
        %5397 = vmatprep.subr.bf16.mxu0 %v5142
        %5398 = vmatpush1.bf16.msra.mxu0 %v5141
        %5399 = vmatprep.subr.bf16.mxu0 %v5150
        %5400 = vmatpush1.bf16.msra.mxu0 %v5149
        %5401 = vmatprep.subr.bf16.mxu0 %v5158
        %5402 = vmatpush1.bf16.msra.mxu0 %v5157
        %5403 = vmatprep.subr.bf16.mxu0 %v5166
        %5404 = vmatpush1.bf16.msra.mxu0 %v5165
        %5405 = vmatprep.subr.bf16.mxu0 %v5174
        %5406 = vmatpush1.bf16.msra.mxu0 %v5173
        %5407 = vmatprep.subr.bf16.mxu0 %v5182
        %5408 = vmatpush1.bf16.msra.mxu0 %v5181
        %5409 = vmatprep.subr.bf16.mxu0 %v5190
        %5410 = vmatpush1.bf16.msra.mxu0 %v5189
        %5411 = vmatprep.subr.bf16.mxu0 %v5198
        %5412 = vmatpush1.bf16.msra.mxu0 %v5197
        %5413 = vmatprep.subr.bf16.mxu0 %v5206
        %5414 = vmatpush1.bf16.msra.mxu0 %v5205
        %5415 = vmatprep.subr.bf16.mxu0 %v5214
        %5416 = vmatpush1.bf16.msra.mxu0 %v5213
        %5417 = vmatprep.subr.bf16.mxu0 %v5222
        %5418 = vmatpush1.bf16.msra.mxu0 %v5221
        %5419 = vmatprep.subr.bf16.mxu0 %v5230
        %5420 = vmatpush1.bf16.msra.mxu0 %v5229
        %5421 = vmatprep.subr.bf16.mxu0 %v5238
        %5422 = vmatpush1.bf16.msra.mxu0 %v5237
        %5423 = vmatprep.subr.bf16.mxu0 %v5246
        %5424 = vmatpush1.bf16.msra.mxu0 %v5245
        %5425 = vmatprep.subr.bf16.mxu0 %v5254
        %5426 = vmatpush1.bf16.msra.mxu0 %v5253
        %5427 = vmatprep.subr.bf16.mxu0 %v5262
        %5428 = vmatpush1.bf16.msra.mxu0 %v5261
        %5429 = vmatprep.mubr.bf16.mxu0 %v4594
        %5430 = vmatmul.mubr.bf16.gmra.mrb[0].mxu0 %v4593
        %v5431 = vpop.f32.mrb[0].mxu0
        %v5432 = vadd.f32 %v4725, %v5431
        %v5433 = vpop.f32.mrb[0].mxu0
        %v5434 = vadd.f32 %v4726, %v5433
        %v5435 = vpop.f32.mrb[0].mxu0
        %v5436 = vadd.f32 %v4733, %v5435
        %v5437 = vpop.f32.mrb[0].mxu0
        %v5438 = vadd.f32 %v4734, %v5437
        %5439 = vmatprep.mubr.bf16.mxu0 %v4596
        %5440 = vmatmul.mubr.bf16.gmra.mrb[0].mxu0 %v4595
        %v5441 = vpop.f32.mrb[0].mxu0
        %v5442 = vadd.f32 %v4741, %v5441
        %v5443 = vpop.f32.mrb[0].mxu0
        %v5444 = vadd.f32 %v4742, %v5443
        %v5445 = vpop.f32.mrb[0].mxu0
        %v5446 = vadd.f32 %v4749, %v5445
        %v5447 = vpop.f32.mrb[0].mxu0
        %v5448 = vadd.f32 %v4750, %v5447
        %5449 = vdwg.mxu0
        %5450 = vmatprep.subr.bf16.mxu0 %v5144
        %5451 = vmatpush1.bf16.msra.mxu0 %v5143
        %5452 = vmatprep.subr.bf16.mxu0 %v5152
        %5453 = vmatpush1.bf16.msra.mxu0 %v5151
        %5454 = vmatprep.subr.bf16.mxu0 %v5160
        %5455 = vmatpush1.bf16.msra.mxu0 %v5159
        %5456 = vmatprep.subr.bf16.mxu0 %v5168
        %5457 = vmatpush1.bf16.msra.mxu0 %v5167
        %5458 = vmatprep.subr.bf16.mxu0 %v5176
        %5459 = vmatpush1.bf16.msra.mxu0 %v5175
        %5460 = vmatprep.subr.bf16.mxu0 %v5184
        %5461 = vmatpush1.bf16.msra.mxu0 %v5183
        %5462 = vmatprep.subr.bf16.mxu0 %v5192
        %5463 = vmatpush1.bf16.msra.mxu0 %v5191
        %5464 = vmatprep.subr.bf16.mxu0 %v5200
        %5465 = vmatpush1.bf16.msra.mxu0 %v5199
        %5466 = vmatprep.subr.bf16.mxu0 %v5208
        %5467 = vmatpush1.bf16.msra.mxu0 %v5207
        %5468 = vmatprep.subr.bf16.mxu0 %v5216
        %5469 = vmatpush1.bf16.msra.mxu0 %v5215
        %5470 = vmatprep.subr.bf16.mxu0 %v5224
        %5471 = vmatpush1.bf16.msra.mxu0 %v5223
        %5472 = vmatprep.subr.bf16.mxu0 %v5232
        %5473 = vmatpush1.bf16.msra.mxu0 %v5231
        %5474 = vmatprep.subr.bf16.mxu0 %v5240
        %5475 = vmatpush1.bf16.msra.mxu0 %v5239
        %5476 = vmatprep.subr.bf16.mxu0 %v5248
        %5477 = vmatpush1.bf16.msra.mxu0 %v5247
        %5478 = vmatprep.subr.bf16.mxu0 %v5256
        %5479 = vmatpush1.bf16.msra.mxu0 %v5255
        %5480 = vmatprep.subr.bf16.mxu0 %v5264
        %5481 = vmatpush1.bf16.msra.mxu0 %v5263
        %5482 = vmatprep.mubr.bf16.mxu0 %v4594
        %5483 = vmatmul.mubr.bf16.gmra.mrb[0].mxu0 %v4593
        %v5484 = vpop.f32.mrb[0].mxu0
        %v5485 = vadd.f32 %v4727, %v5484
        %v5486 = vpop.f32.mrb[0].mxu0
        %v5487 = vadd.f32 %v4728, %v5486
        %v5488 = vpop.f32.mrb[0].mxu0
        %v5489 = vadd.f32 %v4735, %v5488
        %v5490 = vpop.f32.mrb[0].mxu0
        %v5491 = vadd.f32 %v4736, %v5490
        %5492 = vmatprep.mubr.bf16.mxu0 %v4596
        %5493 = vmatmul.mubr.bf16.gmra.mrb[0].mxu0 %v4595
        %v5494 = vpop.f32.mrb[0].mxu0
        %v5495 = vadd.f32 %v4743, %v5494
        %v5496 = vpop.f32.mrb[0].mxu0
        %v5497 = vadd.f32 %v4744, %v5496
        %v5498 = vpop.f32.mrb[0].mxu0
        %v5499 = vadd.f32 %v4751, %v5498
        %v5500 = vpop.f32.mrb[0].mxu0
        %v5501 = vadd.f32 %v4752, %v5500
        %5502 = vdwg.mxu0
        %5503 = vmatprep.subr.bf16.mxu0 %v5146
        %5504 = vmatpush1.bf16.msra.mxu0 %v5145
        %5505 = vmatprep.subr.bf16.mxu0 %v5154
        %5506 = vmatpush1.bf16.msra.mxu0 %v5153
        %5507 = vmatprep.subr.bf16.mxu0 %v5162
        %5508 = vmatpush1.bf16.msra.mxu0 %v5161
        %5509 = vmatprep.subr.bf16.mxu0 %v5170
        %5510 = vmatpush1.bf16.msra.mxu0 %v5169
        %5511 = vmatprep.subr.bf16.mxu0 %v5178
        %5512 = vmatpush1.bf16.msra.mxu0 %v5177
        %5513 = vmatprep.subr.bf16.mxu0 %v5186
        %5514 = vmatpush1.bf16.msra.mxu0 %v5185
        %5515 = vmatprep.subr.bf16.mxu0 %v5194
        %5516 = vmatpush1.bf16.msra.mxu0 %v5193
        %5517 = vmatprep.subr.bf16.mxu0 %v5202
        %5518 = vmatpush1.bf16.msra.mxu0 %v5201
        %5519 = vmatprep.subr.bf16.mxu0 %v5210
        %5520 = vmatpush1.bf16.msra.mxu0 %v5209
        %5521 = vmatprep.subr.bf16.mxu0 %v5218
        %5522 = vmatpush1.bf16.msra.mxu0 %v5217
        %5523 = vmatprep.subr.bf16.mxu0 %v5226
        %5524 = vmatpush1.bf16.msra.mxu0 %v5225
        %5525 = vmatprep.subr.bf16.mxu0 %v5234
        %5526 = vmatpush1.bf16.msra.mxu0 %v5233
        %5527 = vmatprep.subr.bf16.mxu0 %v5242
        %5528 = vmatpush1.bf16.msra.mxu0 %v5241
        %5529 = vmatprep.subr.bf16.mxu0 %v5250
        %5530 = vmatpush1.bf16.msra.mxu0 %v5249
        %5531 = vmatprep.subr.bf16.mxu0 %v5258
        %5532 = vmatpush1.bf16.msra.mxu0 %v5257
        %5533 = vmatprep.subr.bf16.mxu0 %v5266
        %5534 = vmatpush1.bf16.msra.mxu0 %v5265
        %5535 = vmatprep.mubr.bf16.mxu0 %v4594
        %5536 = vmatmul.mubr.bf16.gmra.mrb[0].mxu0 %v4593
        %v5537 = vpop.f32.mrb[0].mxu0
        %v5538 = vadd.f32 %v4729, %v5537
        %v5539 = vpop.f32.mrb[0].mxu0
        %v5540 = vadd.f32 %v4730, %v5539
        %v5541 = vpop.f32.mrb[0].mxu0
        %v5542 = vadd.f32 %v4737, %v5541
        %v5543 = vpop.f32.mrb[0].mxu0
        %v5544 = vadd.f32 %v4738, %v5543
        %5545 = vmatprep.mubr.bf16.mxu0 %v4596
        %5546 = vmatmul.mubr.bf16.gmra.mrb[0].mxu0 %v4595
        %v5547 = vpop.f32.mrb[0].mxu0
        %v5548 = vadd.f32 %v4745, %v5547
        %v5549 = vpop.f32.mrb[0].mxu0
        %v5550 = vadd.f32 %v4746, %v5549
        %v5551 = vpop.f32.mrb[0].mxu0
        %v5552 = vadd.f32 %v4753, %v5551
        %v5553 = vpop.f32.mrb[0].mxu0
        %v5554 = vadd.f32 %v4754, %v5553
        %5555 = vdwg.mxu0
        %5556 = vmatprep.subr.bf16.mxu0 %v5148
        %5557 = vmatpush1.bf16.msra.mxu0 %v5147
        %5558 = vmatprep.subr.bf16.mxu0 %v5156
        %5559 = vmatpush1.bf16.msra.mxu0 %v5155
        %5560 = vmatprep.subr.bf16.mxu0 %v5164
        %5561 = vmatpush1.bf16.msra.mxu0 %v5163
        %5562 = vmatprep.subr.bf16.mxu0 %v5172
        %5563 = vmatpush1.bf16.msra.mxu0 %v5171
        %5564 = vmatprep.subr.bf16.mxu0 %v5180
        %5565 = vmatpush1.bf16.msra.mxu0 %v5179
        %5566 = vmatprep.subr.bf16.mxu0 %v5188
        %5567 = vmatpush1.bf16.msra.mxu0 %v5187
        %5568 = vmatprep.subr.bf16.mxu0 %v5196
        %5569 = vmatpush1.bf16.msra.mxu0 %v5195
        %5570 = vmatprep.subr.bf16.mxu0 %v5204
        %5571 = vmatpush1.bf16.msra.mxu0 %v5203
        %5572 = vmatprep.subr.bf16.mxu0 %v5212
        %5573 = vmatpush1.bf16.msra.mxu0 %v5211
        %5574 = vmatprep.subr.bf16.mxu0 %v5220
        %5575 = vmatpush1.bf16.msra.mxu0 %v5219
        %5576 = vmatprep.subr.bf16.mxu0 %v5228
        %5577 = vmatpush1.bf16.msra.mxu0 %v5227
        %5578 = vmatprep.subr.bf16.mxu0 %v5236
        %5579 = vmatpush1.bf16.msra.mxu0 %v5235
        %5580 = vmatprep.subr.bf16.mxu0 %v5244
        %5581 = vmatpush1.bf16.msra.mxu0 %v5243
        %5582 = vmatprep.subr.bf16.mxu0 %v5252
        %5583 = vmatpush1.bf16.msra.mxu0 %v5251
        %5584 = vmatprep.subr.bf16.mxu0 %v5260
        %5585 = vmatpush1.bf16.msra.mxu0 %v5259
        %5586 = vmatprep.subr.bf16.mxu0 %v5268
        %5587 = vmatpush1.bf16.msra.mxu0 %v5267
        %5588 = vmatprep.mubr.bf16.mxu0 %v4594
        %5589 = vmatmul.mubr.bf16.gmra.mrb[0].mxu0 %v4593
        %v5590 = vpop.f32.mrb[0].mxu0
        %v5591 = vadd.f32 %v4731, %v5590
        %v5592 = vpop.f32.mrb[0].mxu0
        %v5593 = vadd.f32 %v4732, %v5592
        %v5594 = vpop.f32.mrb[0].mxu0
        %v5595 = vadd.f32 %v4739, %v5594
        %v5596 = vpop.f32.mrb[0].mxu0
        %v5597 = vadd.f32 %v4740, %v5596
        %5598 = vmatprep.mubr.bf16.mxu0 %v4596
        %5599 = vmatmul.mubr.bf16.gmra.mrb[0].mxu0 %v4595
        %v5600 = vpop.f32.mrb[0].mxu0
        %v5601 = vadd.f32 %v4747, %v5600
        %v5602 = vpop.f32.mrb[0].mxu0
        %v5603 = vadd.f32 %v4748, %v5602
        %v5604 = vpop.f32.mrb[0].mxu0
        %v5605 = vadd.f32 %v4755, %v5604
        %v5606 = vpop.f32.mrb[0].mxu0
        %v5607 = vadd.f32 %v4756, %v5606
        %5608 = vdwg.mxu0
        %5609 = vst [vmem:[#allocation2 + $0x8] sm:$0xff] %v5432
        %5610 = vst [vmem:[#allocation2 + $0x10] sm:$0xff] %v5434
        %5611 = vst [vmem:[#allocation2 + $0x18] sm:$0xff] %v5485
        %5612 = vst [vmem:[#allocation2 + $0x20] sm:$0xff] %v5487
        %5613 = vst [vmem:[#allocation2 + $0x28] sm:$0xff] %v5538
        %5614 = vst [vmem:[#allocation2 + $0x30] sm:$0xff] %v5540
        %5615 = vst [vmem:[#allocation2 + $0x38] sm:$0xff] %v5591
        %5616 = vst [vmem:[#allocation2 + $0x40] sm:$0xff] %v5593
        %5617 = vst [vmem:[#allocation2 + $0x58] sm:$0xff] %v5436
        %5618 = vst [vmem:[#allocation2 + $0x60] sm:$0xff] %v5438
        %5619 = vst [vmem:[#allocation2 + $0x68] sm:$0xff] %v5489
        %5620 = vst [vmem:[#allocation2 + $0x70] sm:$0xff] %v5491
        %5621 = vst [vmem:[#allocation2 + $0x78] sm:$0xff] %v5542
        %5622 = vst [vmem:[#allocation2 + $0x80] sm:$0xff] %v5544
        %5623 = vst [vmem:[#allocation2 + $0x88] sm:$0xff] %v5595
        %5624 = vst [vmem:[#allocation2 + $0x90] sm:$0xff] %v5597
        %5625 = vst [vmem:[#allocation2 + $0xa8] sm:$0xff] %v5442
        %5626 = vst [vmem:[#allocation2 + $0xb0] sm:$0xff] %v5444
        %5627 = vst [vmem:[#allocation2 + $0xb8] sm:$0xff] %v5495
        %5628 = vst [vmem:[#allocation2 + $0xc0] sm:$0xff] %v5497
        %5629 = vst [vmem:[#allocation2 + $0xc8] sm:$0xff] %v5548
        %5630 = vst [vmem:[#allocation2 + $0xd0] sm:$0xff] %v5550
        %5631 = vst [vmem:[#allocation2 + $0xd8] sm:$0xff] %v5601
        %5632 = vst [vmem:[#allocation2 + $0xe0] sm:$0xff] %v5603
        %5633 = vst [vmem:[#allocation2 + $0xf8] sm:$0xff] %v5446
        %5634 = vst [vmem:[#allocation2 + $0x100] sm:$0xff] %v5448
        %5635 = vst [vmem:[#allocation2 + $0x108] sm:$0xff] %v5499
        %5636 = vst [vmem:[#allocation2 + $0x110] sm:$0xff] %v5501
        %5637 = vst [vmem:[#allocation2 + $0x118] sm:$0xff] %v5552
        %5638 = vst [vmem:[#allocation2 + $0x120] sm:$0xff] %v5554
        %5639 = vst [vmem:[#allocation2 + $0x128] sm:$0xff] %v5605
        %5640 = vst [vmem:[#allocation2 + $0x130] sm:$0xff] %v5607
        %v5641 = vld [vmem:[%s10] sm:$0xff]
        %v5642 = vld [vmem:[%s10 + $0x8] sm:$0xff]
        %v5643 = vld [vmem:[#allocation2] sm:$0xff]
        %v5644 = vld [vmem:[#allocation2 + $0x8] sm:$0xff]
        %v5645 = vld [vmem:[#allocation2 + $0x10] sm:$0xff]
        %v5646 = vld [vmem:[#allocation2 + $0x18] sm:$0xff]
        %v5647 = vld [vmem:[#allocation2 + $0x20] sm:$0xff]
        %v5648 = vld [vmem:[#allocation2 + $0x28] sm:$0xff]
        %v5649 = vld [vmem:[#allocation2 + $0x30] sm:$0xff]
        %v5650 = vld [vmem:[#allocation2 + $0x38] sm:$0xff]
        %v5651 = vld [vmem:[#allocation2 + $0x40] sm:$0xff]
        %v5652 = vld [vmem:[#allocation2 + $0x50] sm:$0xff]
        %v5653 = vld [vmem:[#allocation2 + $0x58] sm:$0xff]
        %v5654 = vld [vmem:[#allocation2 + $0x60] sm:$0xff]
        %v5655 = vld [vmem:[#allocation2 + $0x68] sm:$0xff]
        %v5656 = vld [vmem:[#allocation2 + $0x70] sm:$0xff]
        %v5657 = vld [vmem:[#allocation2 + $0x78] sm:$0xff]
        %v5658 = vld [vmem:[#allocation2 + $0x80] sm:$0xff]
        %v5659 = vld [vmem:[#allocation2 + $0x88] sm:$0xff]
        %v5660 = vld [vmem:[#allocation2 + $0x90] sm:$0xff]
        %v5661 = vld [vmem:[#allocation2 + $0xa0] sm:$0xff]
        %v5662 = vld [vmem:[#allocation2 + $0xa8] sm:$0xff]
        %v5663 = vld [vmem:[#allocation2 + $0xb0] sm:$0xff]
        %v5664 = vld [vmem:[#allocation2 + $0xb8] sm:$0xff]
        %v5665 = vld [vmem:[#allocation2 + $0xc0] sm:$0xff]
        %v5666 = vld [vmem:[#allocation2 + $0xc8] sm:$0xff]
        %v5667 = vld [vmem:[#allocation2 + $0xd0] sm:$0xff]
        %v5668 = vld [vmem:[#allocation2 + $0xd8] sm:$0xff]
        %v5669 = vld [vmem:[#allocation2 + $0xe0] sm:$0xff]
        %v5670 = vld [vmem:[#allocation2 + $0xf0] sm:$0xff]
        %v5671 = vld [vmem:[#allocation2 + $0xf8] sm:$0xff]
        %v5672 = vld [vmem:[#allocation2 + $0x100] sm:$0xff]
        %v5673 = vld [vmem:[#allocation2 + $0x108] sm:$0xff]
        %v5674 = vld [vmem:[#allocation2 + $0x110] sm:$0xff]
        %v5675 = vld [vmem:[#allocation2 + $0x118] sm:$0xff]
        %v5676 = vld [vmem:[#allocation2 + $0x120] sm:$0xff]
        %v5677 = vld [vmem:[#allocation2 + $0x128] sm:$0xff]
        %v5678 = vld [vmem:[#allocation2 + $0x130] sm:$0xff]
        %v5681 = vlaneseq
        %v5682 = vshrl.u32 %v5681, 7
        %v5683 = vsub.s32 0, %v5682
        %v5684 = vrot.slane %v5641, %v5683
        %v5685 = vlaneseq
        %v5686 = vshrl.u32 %v5685, 7
        %v5687 = vsub.s32 2, %v5686
        %v5688 = vrot.slane %v5641, %v5687
        %v5689 = vlaneseq
        %v5690 = vshrl.u32 %v5689, 7
        %v5691 = vsub.s32 4, %v5690
        %v5692 = vrot.slane %v5641, %v5691
        %v5693 = vlaneseq
        %v5694 = vshrl.u32 %v5693, 7
        %v5695 = vsub.s32 6, %v5694
        %v5696 = vrot.slane %v5641, %v5695
        %v5697 = vlaneseq
        %v5698 = vshrl.u32 %v5697, 7
        %v5699 = vsub.s32 0, %v5698
        %v5700 = vrot.slane %v5642, %v5699
        %v5701 = vlaneseq
        %v5702 = vshrl.u32 %v5701, 7
        %v5703 = vsub.s32 2, %v5702
        %v5704 = vrot.slane %v5642, %v5703
        %v5705 = vlaneseq
        %v5706 = vshrl.u32 %v5705, 7
        %v5707 = vsub.s32 4, %v5706
        %v5708 = vrot.slane %v5642, %v5707
        %v5709 = vlaneseq
        %v5710 = vshrl.u32 %v5709, 7
        %v5711 = vsub.s32 6, %v5710
        %v5712 = vrot.slane %v5642, %v5711
        %v5721 = vlaneseq
        %v5722 = vshrl.u32 %v5721, 7
        %v5723 = vsub.s32 0, %v5722
        %v5724 = vrot.slane %v5684, %v5723
        %v5725 = vlaneseq
        %v5726 = vshrl.u32 %v5725, 7
        %v5727 = vsub.s32 0, %v5726
        %v5728 = vrot.slane %v5688, %v5727
        %v5729 = vlaneseq
        %v5730 = vshrl.u32 %v5729, 7
        %v5731 = vsub.s32 0, %v5730
        %v5732 = vrot.slane %v5692, %v5731
        %v5733 = vlaneseq
        %v5734 = vshrl.u32 %v5733, 7
        %v5735 = vsub.s32 0, %v5734
        %v5736 = vrot.slane %v5696, %v5735
        %v5737 = vlaneseq
        %v5738 = vshrl.u32 %v5737, 7
        %v5739 = vsub.s32 0, %v5738
        %v5740 = vrot.slane %v5700, %v5739
        %v5741 = vlaneseq
        %v5742 = vshrl.u32 %v5741, 7
        %v5743 = vsub.s32 0, %v5742
        %v5744 = vrot.slane %v5704, %v5743
        %v5745 = vlaneseq
        %v5746 = vshrl.u32 %v5745, 7
        %v5747 = vsub.s32 0, %v5746
        %v5748 = vrot.slane %v5708, %v5747
        %v5749 = vlaneseq
        %v5750 = vshrl.u32 %v5749, 7
        %v5751 = vsub.s32 0, %v5750
        %v5752 = vrot.slane %v5712, %v5751
        %5761 = vrot.lane.b32.xlu0 %v5724, 95
        %v5762 = vpop.permute.xlu0 %5761
        %5763 = vrot.lane.b32.xlu0 %v5728, 95
        %v5764 = vpop.permute.xlu0 %5763
        %5765 = vrot.lane.b32.xlu0 %v5732, 95
        %v5766 = vpop.permute.xlu0 %5765
        %5767 = vrot.lane.b32.xlu0 %v5736, 95
        %v5768 = vpop.permute.xlu0 %5767
        %5769 = vrot.lane.b32.xlu0 %v5740, 95
        %v5770 = vpop.permute.xlu0 %5769
        %5771 = vrot.lane.b32.xlu0 %v5744, 95
        %v5772 = vpop.permute.xlu0 %5771
        %5773 = vrot.lane.b32.xlu0 %v5748, 95
        %v5774 = vpop.permute.xlu0 %5773
        %5775 = vrot.lane.b32.xlu0 %v5752, 95
        %v5776 = vpop.permute.xlu0 %5775
        %vm5777 = vcmask 777216
        %v5778 = vsel %vm5777, %v5762, %v5764
        %v5779 = vsel %vm5777, %v5764, %v5766
        %v5780 = vsel %vm5777, %v5766, %v5768
        %v5781 = vsel %vm5777, %v5768, %v5770
        %v5782 = vsel %vm5777, %v5770, %v5772
        %v5783 = vsel %vm5777, %v5772, %v5774
        %v5784 = vsel %vm5777, %v5774, %v5776
        %v5794 = vmul.f32 %v5643, %v5762
        %v5795 = vmul.f32 %v5644, %v5778
        %v5796 = vmul.f32 %v5645, %v5779
        %v5797 = vmul.f32 %v5646, %v5780
        %v5798 = vmul.f32 %v5647, %v5781
        %v5799 = vmul.f32 %v5648, %v5782
        %v5800 = vmul.f32 %v5649, %v5783
        %v5801 = vmul.f32 %v5650, %v5784
        %v5802 = vmul.f32 %v5651, %v5776
        %v5803 = vmul.f32 %v5652, %v5762
        %v5804 = vmul.f32 %v5653, %v5778
        %v5805 = vmul.f32 %v5654, %v5779
        %v5806 = vmul.f32 %v5655, %v5780
        %v5807 = vmul.f32 %v5656, %v5781
        %v5808 = vmul.f32 %v5657, %v5782
        %v5809 = vmul.f32 %v5658, %v5783
        %v5810 = vmul.f32 %v5659, %v5784
        %v5811 = vmul.f32 %v5660, %v5776
        %v5812 = vmul.f32 %v5661, %v5762
        %v5813 = vmul.f32 %v5662, %v5778
        %v5814 = vmul.f32 %v5663, %v5779
        %v5815 = vmul.f32 %v5664, %v5780
        %v5816 = vmul.f32 %v5665, %v5781
        %v5817 = vmul.f32 %v5666, %v5782
        %v5818 = vmul.f32 %v5667, %v5783
        %v5819 = vmul.f32 %v5668, %v5784
        %v5820 = vmul.f32 %v5669, %v5776
        %v5821 = vmul.f32 %v5670, %v5762
        %v5822 = vmul.f32 %v5671, %v5778
        %v5823 = vmul.f32 %v5672, %v5779
        %v5824 = vmul.f32 %v5673, %v5780
        %v5825 = vmul.f32 %v5674, %v5781
        %v5826 = vmul.f32 %v5675, %v5782
        %v5827 = vmul.f32 %v5676, %v5783
        %v5828 = vmul.f32 %v5677, %v5784
        %v5829 = vmul.f32 %v5678, %v5776
        %v5830 = vpack.c.bf16 %v5803, %v5794
        %v5831 = vpack.c.bf16 %v5804, %v5795
        %v5832 = vpack.c.bf16 %v5805, %v5796
        %v5833 = vpack.c.bf16 %v5806, %v5797
        %v5834 = vpack.c.bf16 %v5807, %v5798
        %v5835 = vpack.c.bf16 %v5808, %v5799
        %v5836 = vpack.c.bf16 %v5809, %v5800
        %v5837 = vpack.c.bf16 %v5810, %v5801
        %v5838 = vpack.c.bf16 %v5811, %v5802
        %v5839 = vpack.c.bf16 %v5821, %v5812
        %v5840 = vpack.c.bf16 %v5822, %v5813
        %v5841 = vpack.c.bf16 %v5823, %v5814
        %v5842 = vpack.c.bf16 %v5824, %v5815
        %v5843 = vpack.c.bf16 %v5825, %v5816
        %v5844 = vpack.c.bf16 %v5826, %v5817
        %v5845 = vpack.c.bf16 %v5827, %v5818
        %v5846 = vpack.c.bf16 %v5828, %v5819
        %v5847 = vpack.c.bf16 %v5829, %v5820
        %5866 = vrot.lane.b32.xlu0 %v5830, 33
        %v5867 = vpop.permute.xlu0 %5866
        %5868 = vrot.lane.b32.xlu0 %v5831, 33
        %v5869 = vpop.permute.xlu0 %5868
        %5870 = vrot.lane.b32.xlu0 %v5832, 33
        %v5871 = vpop.permute.xlu0 %5870
        %5872 = vrot.lane.b32.xlu0 %v5833, 33
        %v5873 = vpop.permute.xlu0 %5872
        %5874 = vrot.lane.b32.xlu0 %v5834, 33
        %v5875 = vpop.permute.xlu0 %5874
        %5876 = vrot.lane.b32.xlu0 %v5835, 33
        %v5877 = vpop.permute.xlu0 %5876
        %5878 = vrot.lane.b32.xlu0 %v5836, 33
        %v5879 = vpop.permute.xlu0 %5878
        %5880 = vrot.lane.b32.xlu0 %v5837, 33
        %v5881 = vpop.permute.xlu0 %5880
        %5882 = vrot.lane.b32.xlu0 %v5838, 33
        %v5883 = vpop.permute.xlu0 %5882
        %5884 = vrot.lane.b32.xlu0 %v5839, 33
        %v5885 = vpop.permute.xlu0 %5884
        %5886 = vrot.lane.b32.xlu0 %v5840, 33
        %v5887 = vpop.permute.xlu0 %5886
        %5888 = vrot.lane.b32.xlu0 %v5841, 33
        %v5889 = vpop.permute.xlu0 %5888
        %5890 = vrot.lane.b32.xlu0 %v5842, 33
        %v5891 = vpop.permute.xlu0 %5890
        %5892 = vrot.lane.b32.xlu0 %v5843, 33
        %v5893 = vpop.permute.xlu0 %5892
        %5894 = vrot.lane.b32.xlu0 %v5844, 33
        %v5895 = vpop.permute.xlu0 %5894
        %5896 = vrot.lane.b32.xlu0 %v5845, 33
        %v5897 = vpop.permute.xlu0 %5896
        %5898 = vrot.lane.b32.xlu0 %v5846, 33
        %v5899 = vpop.permute.xlu0 %5898
        %5900 = vrot.lane.b32.xlu0 %v5847, 33
        %v5901 = vpop.permute.xlu0 %5900
        %vm5902 = vcmask 269312
        %v5903 = vsel %vm5902, %v5867, %v5869
        %v5904 = vsel %vm5902, %v5869, %v5871
        %v5905 = vsel %vm5902, %v5871, %v5873
        %v5906 = vsel %vm5902, %v5873, %v5875
        %v5907 = vsel %vm5902, %v5875, %v5877
        %v5908 = vsel %vm5902, %v5877, %v5879
        %v5909 = vsel %vm5902, %v5879, %v5881
        %v5910 = vsel %vm5902, %v5881, %v5883
        %v5911 = vsel %vm5902, %v5885, %v5887
        %v5912 = vsel %vm5902, %v5887, %v5889
        %v5913 = vsel %vm5902, %v5889, %v5891
        %v5914 = vsel %vm5902, %v5891, %v5893
        %v5915 = vsel %vm5902, %v5893, %v5895
        %v5916 = vsel %vm5902, %v5895, %v5897
        %v5917 = vsel %vm5902, %v5897, %v5899
        %v5918 = vsel %vm5902, %v5899, %v5901
        %5935 = vst [vmem:[#allocation3] sm:$0xff] %v5903
        %5936 = vst [vmem:[#allocation3 + $0x8] sm:$0xff] %v5904
        %5937 = vst [vmem:[#allocation3 + $0x10] sm:$0xff] %v5905
        %5938 = vst [vmem:[#allocation3 + $0x18] sm:$0xff] %v5906
        %5939 = vst [vmem:[#allocation3 + $0x20] sm:$0xff] %v5907
        %5940 = vst [vmem:[#allocation3 + $0x28] sm:$0xff] %v5908
        %5941 = vst [vmem:[#allocation3 + $0x30] sm:$0xff] %v5909
        %5942 = vst [vmem:[#allocation3 + $0x38] sm:$0xff] %v5910
        %5943 = vst [vmem:[#allocation3 + $0x40] sm:$0xff] %v5911
        %5944 = vst [vmem:[#allocation3 + $0x48] sm:$0xff] %v5912
        %5945 = vst [vmem:[#allocation3 + $0x50] sm:$0xff] %v5913
        %5946 = vst [vmem:[#allocation3 + $0x58] sm:$0xff] %v5914
        %5947 = vst [vmem:[#allocation3 + $0x60] sm:$0xff] %v5915
        %5948 = vst [vmem:[#allocation3 + $0x68] sm:$0xff] %v5916
        %5949 = vst [vmem:[#allocation3 + $0x70] sm:$0xff] %v5917
        %5950 = vst [vmem:[#allocation3 + $0x78] sm:$0xff] %v5918
        %v5951 = vld [vmem:[#allocation2] sm:$0xff]
        %v5952 = vld [vmem:[#allocation2 + $0x8] sm:$0xff]
        %v5953 = vld [vmem:[#allocation2 + $0x10] sm:$0xff]
        %v5954 = vld [vmem:[#allocation2 + $0x18] sm:$0xff]
        %v5955 = vld [vmem:[#allocation2 + $0x20] sm:$0xff]
        %v5956 = vld [vmem:[#allocation2 + $0x28] sm:$0xff]
        %v5957 = vld [vmem:[#allocation2 + $0x30] sm:$0xff]
        %v5958 = vld [vmem:[#allocation2 + $0x38] sm:$0xff]
        %v5959 = vld [vmem:[#allocation2 + $0x40] sm:$0xff]
        %v5960 = vld [vmem:[#allocation2 + $0x50] sm:$0xff]
        %v5961 = vld [vmem:[#allocation2 + $0x58] sm:$0xff]
        %v5962 = vld [vmem:[#allocation2 + $0x60] sm:$0xff]
        %v5963 = vld [vmem:[#allocation2 + $0x68] sm:$0xff]
        %v5964 = vld [vmem:[#allocation2 + $0x70] sm:$0xff]
        %v5965 = vld [vmem:[#allocation2 + $0x78] sm:$0xff]
        %v5966 = vld [vmem:[#allocation2 + $0x80] sm:$0xff]
        %v5967 = vld [vmem:[#allocation2 + $0x88] sm:$0xff]
        %v5968 = vld [vmem:[#allocation2 + $0x90] sm:$0xff]
        %v5969 = vld [vmem:[#allocation2 + $0xa0] sm:$0xff]
        %v5970 = vld [vmem:[#allocation2 + $0xa8] sm:$0xff]
        %v5971 = vld [vmem:[#allocation2 + $0xb0] sm:$0xff]
        %v5972 = vld [vmem:[#allocation2 + $0xb8] sm:$0xff]
        %v5973 = vld [vmem:[#allocation2 + $0xc0] sm:$0xff]
        %v5974 = vld [vmem:[#allocation2 + $0xc8] sm:$0xff]
        %v5975 = vld [vmem:[#allocation2 + $0xd0] sm:$0xff]
        %v5976 = vld [vmem:[#allocation2 + $0xd8] sm:$0xff]
        %v5977 = vld [vmem:[#allocation2 + $0xe0] sm:$0xff]
        %v5978 = vld [vmem:[#allocation2 + $0xf0] sm:$0xff]
        %v5979 = vld [vmem:[#allocation2 + $0xf8] sm:$0xff]
        %v5980 = vld [vmem:[#allocation2 + $0x100] sm:$0xff]
        %v5981 = vld [vmem:[#allocation2 + $0x108] sm:$0xff]
        %v5982 = vld [vmem:[#allocation2 + $0x110] sm:$0xff]
        %v5983 = vld [vmem:[#allocation2 + $0x118] sm:$0xff]
        %v5984 = vld [vmem:[#allocation2 + $0x120] sm:$0xff]
        %v5985 = vld [vmem:[#allocation2 + $0x128] sm:$0xff]
        %v5986 = vld [vmem:[#allocation2 + $0x130] sm:$0xff]
        %v5987 = vpack.c.bf16 %v5960, %v5951
        %v5988 = vpack.c.bf16 %v5961, %v5952
        %v5989 = vpack.c.bf16 %v5962, %v5953
        %v5990 = vpack.c.bf16 %v5963, %v5954
        %v5991 = vpack.c.bf16 %v5964, %v5955
        %v5992 = vpack.c.bf16 %v5965, %v5956
        %v5993 = vpack.c.bf16 %v5966, %v5957
        %v5994 = vpack.c.bf16 %v5967, %v5958
        %v5995 = vpack.c.bf16 %v5968, %v5959
        %v5996 = vpack.c.bf16 %v5978, %v5969
        %v5997 = vpack.c.bf16 %v5979, %v5970
        %v5998 = vpack.c.bf16 %v5980, %v5971
        %v5999 = vpack.c.bf16 %v5981, %v5972
        %v6000 = vpack.c.bf16 %v5982, %v5973
        %v6001 = vpack.c.bf16 %v5983, %v5974
        %v6002 = vpack.c.bf16 %v5984, %v5975
        %v6003 = vpack.c.bf16 %v5985, %v5976
        %v6004 = vpack.c.bf16 %v5986, %v5977
        %6023 = vrot.lane.b32.xlu0 %v5987, 32
        %v6024 = vpop.permute.xlu0 %6023
        %6025 = vrot.lane.b32.xlu0 %v5988, 32
        %v6026 = vpop.permute.xlu0 %6025
        %6027 = vrot.lane.b32.xlu0 %v5989, 32
        %v6028 = vpop.permute.xlu0 %6027
        %6029 = vrot.lane.b32.xlu0 %v5990, 32
        %v6030 = vpop.permute.xlu0 %6029
        %6031 = vrot.lane.b32.xlu0 %v5991, 32
        %v6032 = vpop.permute.xlu0 %6031
        %6033 = vrot.lane.b32.xlu0 %v5992, 32
        %v6034 = vpop.permute.xlu0 %6033
        %6035 = vrot.lane.b32.xlu0 %v5993, 32
        %v6036 = vpop.permute.xlu0 %6035
        %6037 = vrot.lane.b32.xlu0 %v5994, 32
        %v6038 = vpop.permute.xlu0 %6037
        %6039 = vrot.lane.b32.xlu0 %v5995, 32
        %v6040 = vpop.permute.xlu0 %6039
        %6041 = vrot.lane.b32.xlu0 %v5996, 32
        %v6042 = vpop.permute.xlu0 %6041
        %6043 = vrot.lane.b32.xlu0 %v5997, 32
        %v6044 = vpop.permute.xlu0 %6043
        %6045 = vrot.lane.b32.xlu0 %v5998, 32
        %v6046 = vpop.permute.xlu0 %6045
        %6047 = vrot.lane.b32.xlu0 %v5999, 32
        %v6048 = vpop.permute.xlu0 %6047
        %6049 = vrot.lane.b32.xlu0 %v6000, 32
        %v6050 = vpop.permute.xlu0 %6049
        %6051 = vrot.lane.b32.xlu0 %v6001, 32
        %v6052 = vpop.permute.xlu0 %6051
        %6053 = vrot.lane.b32.xlu0 %v6002, 32
        %v6054 = vpop.permute.xlu0 %6053
        %6055 = vrot.lane.b32.xlu0 %v6003, 32
        %v6056 = vpop.permute.xlu0 %6055
        %6057 = vrot.lane.b32.xlu0 %v6004, 32
        %v6058 = vpop.permute.xlu0 %6057
        %vm6059 = vcmask 261120
        %v6060 = vsel %vm6059, %v6024, %v6026
        %v6061 = vsel %vm6059, %v6026, %v6028
        %v6062 = vsel %vm6059, %v6028, %v6030
        %v6063 = vsel %vm6059, %v6030, %v6032
        %v6064 = vsel %vm6059, %v6032, %v6034
        %v6065 = vsel %vm6059, %v6034, %v6036
        %v6066 = vsel %vm6059, %v6036, %v6038
        %v6067 = vsel %vm6059, %v6038, %v6040
        %v6068 = vsel %vm6059, %v6042, %v6044
        %v6069 = vsel %vm6059, %v6044, %v6046
        %v6070 = vsel %vm6059, %v6046, %v6048
        %v6071 = vsel %vm6059, %v6048, %v6050
        %v6072 = vsel %vm6059, %v6050, %v6052
        %v6073 = vsel %vm6059, %v6052, %v6054
        %v6074 = vsel %vm6059, %v6054, %v6056
        %v6075 = vsel %vm6059, %v6056, %v6058
        %6092 = vst [vmem:[#allocation3 + $0x80] sm:$0xff] %v6060
        %6093 = vst [vmem:[#allocation3 + $0x88] sm:$0xff] %v6061
        %6094 = vst [vmem:[#allocation3 + $0x90] sm:$0xff] %v6062
        %6095 = vst [vmem:[#allocation3 + $0x98] sm:$0xff] %v6063
        %6096 = vst [vmem:[#allocation3 + $0xa0] sm:$0xff] %v6064
        %6097 = vst [vmem:[#allocation3 + $0xa8] sm:$0xff] %v6065
        %6098 = vst [vmem:[#allocation3 + $0xb0] sm:$0xff] %v6066
        %6099 = vst [vmem:[#allocation3 + $0xb8] sm:$0xff] %v6067
        %6100 = vst [vmem:[#allocation3 + $0xc0] sm:$0xff] %v6068
        %6101 = vst [vmem:[#allocation3 + $0xc8] sm:$0xff] %v6069
        %6102 = vst [vmem:[#allocation3 + $0xd0] sm:$0xff] %v6070
        %6103 = vst [vmem:[#allocation3 + $0xd8] sm:$0xff] %v6071
        %6104 = vst [vmem:[#allocation3 + $0xe0] sm:$0xff] %v6072
        %6105 = vst [vmem:[#allocation3 + $0xe8] sm:$0xff] %v6073
        %6106 = vst [vmem:[#allocation3 + $0xf0] sm:$0xff] %v6074
        %6107 = vst [vmem:[#allocation3 + $0xf8] sm:$0xff] %v6075
        %v6108 = vld [vmem:[#allocation2] sm:$0xff]
        %v6109 = vld [vmem:[#allocation2 + $0x8] sm:$0xff]
        %v6110 = vld [vmem:[#allocation2 + $0x10] sm:$0xff]
        %v6111 = vld [vmem:[#allocation2 + $0x18] sm:$0xff]
        %v6112 = vld [vmem:[#allocation2 + $0x20] sm:$0xff]
        %v6113 = vld [vmem:[#allocation2 + $0x28] sm:$0xff]
        %v6114 = vld [vmem:[#allocation2 + $0x30] sm:$0xff]
        %v6115 = vld [vmem:[#allocation2 + $0x38] sm:$0xff]
        %v6116 = vld [vmem:[#allocation2 + $0x40] sm:$0xff]
        %v6117 = vld [vmem:[#allocation2 + $0x50] sm:$0xff]
        %v6118 = vld [vmem:[#allocation2 + $0x58] sm:$0xff]
        %v6119 = vld [vmem:[#allocation2 + $0x60] sm:$0xff]
        %v6120 = vld [vmem:[#allocation2 + $0x68] sm:$0xff]
        %v6121 = vld [vmem:[#allocation2 + $0x70] sm:$0xff]
        %v6122 = vld [vmem:[#allocation2 + $0x78] sm:$0xff]
        %v6123 = vld [vmem:[#allocation2 + $0x80] sm:$0xff]
        %v6124 = vld [vmem:[#allocation2 + $0x88] sm:$0xff]
        %v6125 = vld [vmem:[#allocation2 + $0x90] sm:$0xff]
        %v6126 = vld [vmem:[#allocation2 + $0xa0] sm:$0xff]
        %v6127 = vld [vmem:[#allocation2 + $0xa8] sm:$0xff]
        %v6128 = vld [vmem:[#allocation2 + $0xb0] sm:$0xff]
        %v6129 = vld [vmem:[#allocation2 + $0xb8] sm:$0xff]
        %v6130 = vld [vmem:[#allocation2 + $0xc0] sm:$0xff]
        %v6131 = vld [vmem:[#allocation2 + $0xc8] sm:$0xff]
        %v6132 = vld [vmem:[#allocation2 + $0xd0] sm:$0xff]
        %v6133 = vld [vmem:[#allocation2 + $0xd8] sm:$0xff]
        %v6134 = vld [vmem:[#allocation2 + $0xe0] sm:$0xff]
        %v6135 = vld [vmem:[#allocation2 + $0xf0] sm:$0xff]
        %v6136 = vld [vmem:[#allocation2 + $0xf8] sm:$0xff]
        %v6137 = vld [vmem:[#allocation2 + $0x100] sm:$0xff]
        %v6138 = vld [vmem:[#allocation2 + $0x108] sm:$0xff]
        %v6139 = vld [vmem:[#allocation2 + $0x110] sm:$0xff]
        %v6140 = vld [vmem:[#allocation2 + $0x118] sm:$0xff]
        %v6141 = vld [vmem:[#allocation2 + $0x120] sm:$0xff]
        %v6142 = vld [vmem:[#allocation2 + $0x128] sm:$0xff]
        %v6143 = vld [vmem:[#allocation2 + $0x130] sm:$0xff]
        %v6144 = vlaneseq
        %v6145 = vshrl.u32 %v6144, 7
        %v6146 = vsub.s32 1, %v6145
        %v6147 = vrot.slane %v5641, %v6146
        %v6148 = vlaneseq
        %v6149 = vshrl.u32 %v6148, 7
        %v6150 = vsub.s32 3, %v6149
        %v6151 = vrot.slane %v5641, %v6150
        %v6152 = vlaneseq
        %v6153 = vshrl.u32 %v6152, 7
        %v6154 = vsub.s32 5, %v6153
        %v6155 = vrot.slane %v5641, %v6154
        %v6156 = vlaneseq
        %v6157 = vshrl.u32 %v6156, 7
        %v6158 = vsub.s32 7, %v6157
        %v6159 = vrot.slane %v5641, %v6158
        %v6160 = vlaneseq
        %v6161 = vshrl.u32 %v6160, 7
        %v6162 = vsub.s32 1, %v6161
        %v6163 = vrot.slane %v5642, %v6162
        %v6164 = vlaneseq
        %v6165 = vshrl.u32 %v6164, 7
        %v6166 = vsub.s32 3, %v6165
        %v6167 = vrot.slane %v5642, %v6166
        %v6168 = vlaneseq
        %v6169 = vshrl.u32 %v6168, 7
        %v6170 = vsub.s32 5, %v6169
        %v6171 = vrot.slane %v5642, %v6170
        %v6172 = vlaneseq
        %v6173 = vshrl.u32 %v6172, 7
        %v6174 = vsub.s32 7, %v6173
        %v6175 = vrot.slane %v5642, %v6174
        %v6184 = vlaneseq
        %v6185 = vshrl.u32 %v6184, 7
        %v6186 = vsub.s32 1, %v6185
        %v6187 = vrot.slane %v6147, %v6186
        %v6188 = vlaneseq
        %v6189 = vshrl.u32 %v6188, 7
        %v6190 = vsub.s32 1, %v6189
        %v6191 = vrot.slane %v6151, %v6190
        %v6192 = vlaneseq
        %v6193 = vshrl.u32 %v6192, 7
        %v6194 = vsub.s32 1, %v6193
        %v6195 = vrot.slane %v6155, %v6194
        %v6196 = vlaneseq
        %v6197 = vshrl.u32 %v6196, 7
        %v6198 = vsub.s32 1, %v6197
        %v6199 = vrot.slane %v6159, %v6198
        %v6200 = vlaneseq
        %v6201 = vshrl.u32 %v6200, 7
        %v6202 = vsub.s32 1, %v6201
        %v6203 = vrot.slane %v6163, %v6202
        %v6204 = vlaneseq
        %v6205 = vshrl.u32 %v6204, 7
        %v6206 = vsub.s32 1, %v6205
        %v6207 = vrot.slane %v6167, %v6206
        %v6208 = vlaneseq
        %v6209 = vshrl.u32 %v6208, 7
        %v6210 = vsub.s32 1, %v6209
        %v6211 = vrot.slane %v6171, %v6210
        %v6212 = vlaneseq
        %v6213 = vshrl.u32 %v6212, 7
        %v6214 = vsub.s32 1, %v6213
        %v6215 = vrot.slane %v6175, %v6214
        %6224 = vrot.lane.b32.xlu0 %v6187, 97
        %v6225 = vpop.permute.xlu0 %6224
        %6226 = vrot.lane.b32.xlu0 %v6191, 97
        %v6227 = vpop.permute.xlu0 %6226
        %6228 = vrot.lane.b32.xlu0 %v6195, 97
        %v6229 = vpop.permute.xlu0 %6228
        %6230 = vrot.lane.b32.xlu0 %v6199, 97
        %v6231 = vpop.permute.xlu0 %6230
        %6232 = vrot.lane.b32.xlu0 %v6203, 97
        %v6233 = vpop.permute.xlu0 %6232
        %6234 = vrot.lane.b32.xlu0 %v6207, 97
        %v6235 = vpop.permute.xlu0 %6234
        %6236 = vrot.lane.b32.xlu0 %v6211, 97
        %v6237 = vpop.permute.xlu0 %6236
        %6238 = vrot.lane.b32.xlu0 %v6215, 97
        %v6239 = vpop.permute.xlu0 %6238
        %vm6240 = vcmask 793600
        %v6241 = vsel %vm6240, %v6225, %v6227
        %v6242 = vsel %vm6240, %v6227, %v6229
        %v6243 = vsel %vm6240, %v6229, %v6231
        %v6244 = vsel %vm6240, %v6231, %v6233
        %v6245 = vsel %vm6240, %v6233, %v6235
        %v6246 = vsel %vm6240, %v6235, %v6237
        %v6247 = vsel %vm6240, %v6237, %v6239
        %v6257 = vmul.f32 %v6108, %v6225
        %v6258 = vmul.f32 %v6109, %v6241
        %v6259 = vmul.f32 %v6110, %v6242
        %v6260 = vmul.f32 %v6111, %v6243
        %v6261 = vmul.f32 %v6112, %v6244
        %v6262 = vmul.f32 %v6113, %v6245
        %v6263 = vmul.f32 %v6114, %v6246
        %v6264 = vmul.f32 %v6115, %v6247
        %v6265 = vmul.f32 %v6116, %v6239
        %v6266 = vmul.f32 %v6117, %v6225
        %v6267 = vmul.f32 %v6118, %v6241
        %v6268 = vmul.f32 %v6119, %v6242
        %v6269 = vmul.f32 %v6120, %v6243
        %v6270 = vmul.f32 %v6121, %v6244
        %v6271 = vmul.f32 %v6122, %v6245
        %v6272 = vmul.f32 %v6123, %v6246
        %v6273 = vmul.f32 %v6124, %v6247
        %v6274 = vmul.f32 %v6125, %v6239
        %v6275 = vmul.f32 %v6126, %v6225
        %v6276 = vmul.f32 %v6127, %v6241
        %v6277 = vmul.f32 %v6128, %v6242
        %v6278 = vmul.f32 %v6129, %v6243
        %v6279 = vmul.f32 %v6130, %v6244
        %v6280 = vmul.f32 %v6131, %v6245
        %v6281 = vmul.f32 %v6132, %v6246
        %v6282 = vmul.f32 %v6133, %v6247
        %v6283 = vmul.f32 %v6134, %v6239
        %v6284 = vmul.f32 %v6135, %v6225
        %v6285 = vmul.f32 %v6136, %v6241
        %v6286 = vmul.f32 %v6137, %v6242
        %v6287 = vmul.f32 %v6138, %v6243
        %v6288 = vmul.f32 %v6139, %v6244
        %v6289 = vmul.f32 %v6140, %v6245
        %v6290 = vmul.f32 %v6141, %v6246
        %v6291 = vmul.f32 %v6142, %v6247
        %v6292 = vmul.f32 %v6143, %v6239
        %v6293 = vpack.c.bf16 %v6266, %v6257
        %v6294 = vpack.c.bf16 %v6267, %v6258
        %v6295 = vpack.c.bf16 %v6268, %v6259
        %v6296 = vpack.c.bf16 %v6269, %v6260
        %v6297 = vpack.c.bf16 %v6270, %v6261
        %v6298 = vpack.c.bf16 %v6271, %v6262
        %v6299 = vpack.c.bf16 %v6272, %v6263
        %v6300 = vpack.c.bf16 %v6273, %v6264
        %v6301 = vpack.c.bf16 %v6274, %v6265
        %v6302 = vpack.c.bf16 %v6284, %v6275
        %v6303 = vpack.c.bf16 %v6285, %v6276
        %v6304 = vpack.c.bf16 %v6286, %v6277
        %v6305 = vpack.c.bf16 %v6287, %v6278
        %v6306 = vpack.c.bf16 %v6288, %v6279
        %v6307 = vpack.c.bf16 %v6289, %v6280
        %v6308 = vpack.c.bf16 %v6290, %v6281
        %v6309 = vpack.c.bf16 %v6291, %v6282
        %v6310 = vpack.c.bf16 %v6292, %v6283
        %6329 = vrot.lane.b32.xlu0 %v6293, 31
        %v6330 = vpop.permute.xlu0 %6329
        %6331 = vrot.lane.b32.xlu0 %v6294, 31
        %v6332 = vpop.permute.xlu0 %6331
        %6333 = vrot.lane.b32.xlu0 %v6295, 31
        %v6334 = vpop.permute.xlu0 %6333
        %6335 = vrot.lane.b32.xlu0 %v6296, 31
        %v6336 = vpop.permute.xlu0 %6335
        %6337 = vrot.lane.b32.xlu0 %v6297, 31
        %v6338 = vpop.permute.xlu0 %6337
        %6339 = vrot.lane.b32.xlu0 %v6298, 31
        %v6340 = vpop.permute.xlu0 %6339
        %6341 = vrot.lane.b32.xlu0 %v6299, 31
        %v6342 = vpop.permute.xlu0 %6341
        %6343 = vrot.lane.b32.xlu0 %v6300, 31
        %v6344 = vpop.permute.xlu0 %6343
        %6345 = vrot.lane.b32.xlu0 %v6301, 31
        %v6346 = vpop.permute.xlu0 %6345
        %6347 = vrot.lane.b32.xlu0 %v6302, 31
        %v6348 = vpop.permute.xlu0 %6347
        %6349 = vrot.lane.b32.xlu0 %v6303, 31
        %v6350 = vpop.permute.xlu0 %6349
        %6351 = vrot.lane.b32.xlu0 %v6304, 31
        %v6352 = vpop.permute.xlu0 %6351
        %6353 = vrot.lane.b32.xlu0 %v6305, 31
        %v6354 = vpop.permute.xlu0 %6353
        %6355 = vrot.lane.b32.xlu0 %v6306, 31
        %v6356 = vpop.permute.xlu0 %6355
        %6357 = vrot.lane.b32.xlu0 %v6307, 31
        %v6358 = vpop.permute.xlu0 %6357
        %6359 = vrot.lane.b32.xlu0 %v6308, 31
        %v6360 = vpop.permute.xlu0 %6359
        %6361 = vrot.lane.b32.xlu0 %v6309, 31
        %v6362 = vpop.permute.xlu0 %6361
        %6363 = vrot.lane.b32.xlu0 %v6310, 31
        %v6364 = vpop.permute.xlu0 %6363
        %vm6365 = vcmask 252928
        %v6366 = vsel %vm6365, %v6330, %v6332
        %v6367 = vsel %vm6365, %v6332, %v6334
        %v6368 = vsel %vm6365, %v6334, %v6336
        %v6369 = vsel %vm6365, %v6336, %v6338
        %v6370 = vsel %vm6365, %v6338, %v6340
        %v6371 = vsel %vm6365, %v6340, %v6342
        %v6372 = vsel %vm6365, %v6342, %v6344
        %v6373 = vsel %vm6365, %v6344, %v6346
        %v6374 = vsel %vm6365, %v6348, %v6350
        %v6375 = vsel %vm6365, %v6350, %v6352
        %v6376 = vsel %vm6365, %v6352, %v6354
        %v6377 = vsel %vm6365, %v6354, %v6356
        %v6378 = vsel %vm6365, %v6356, %v6358
        %v6379 = vsel %vm6365, %v6358, %v6360
        %v6380 = vsel %vm6365, %v6360, %v6362
        %v6381 = vsel %vm6365, %v6362, %v6364
        %6398 = vst [vmem:[#allocation3 + $0x100] sm:$0xff] %v6366
        %6399 = vst [vmem:[#allocation3 + $0x108] sm:$0xff] %v6367
        %6400 = vst [vmem:[#allocation3 + $0x110] sm:$0xff] %v6368
        %6401 = vst [vmem:[#allocation3 + $0x118] sm:$0xff] %v6369
        %6402 = vst [vmem:[#allocation3 + $0x120] sm:$0xff] %v6370
        %6403 = vst [vmem:[#allocation3 + $0x128] sm:$0xff] %v6371
        %6404 = vst [vmem:[#allocation3 + $0x130] sm:$0xff] %v6372
        %6405 = vst [vmem:[#allocation3 + $0x138] sm:$0xff] %v6373
        %6406 = vst [vmem:[#allocation3 + $0x140] sm:$0xff] %v6374
        %6407 = vst [vmem:[#allocation3 + $0x148] sm:$0xff] %v6375
        %6408 = vst [vmem:[#allocation3 + $0x150] sm:$0xff] %v6376
        %6409 = vst [vmem:[#allocation3 + $0x158] sm:$0xff] %v6377
        %6410 = vst [vmem:[#allocation3 + $0x160] sm:$0xff] %v6378
        %6411 = vst [vmem:[#allocation3 + $0x168] sm:$0xff] %v6379
        %6412 = vst [vmem:[#allocation3 + $0x170] sm:$0xff] %v6380
        %6413 = vst [vmem:[#allocation3 + $0x178] sm:$0xff] %v6381
        %v6414 = vld [vmem:[#allocation2] sm:$0xff]
        %v6415 = vld [vmem:[#allocation2 + $0x8] sm:$0xff]
        %v6416 = vld [vmem:[#allocation2 + $0x10] sm:$0xff]
        %v6417 = vld [vmem:[#allocation2 + $0x18] sm:$0xff]
        %v6418 = vld [vmem:[#allocation2 + $0x20] sm:$0xff]
        %v6419 = vld [vmem:[#allocation2 + $0x28] sm:$0xff]
        %v6420 = vld [vmem:[#allocation2 + $0x30] sm:$0xff]
        %v6421 = vld [vmem:[#allocation2 + $0x38] sm:$0xff]
        %v6422 = vld [vmem:[#allocation2 + $0x40] sm:$0xff]
        %v6423 = vld [vmem:[#allocation2 + $0x50] sm:$0xff]
        %v6424 = vld [vmem:[#allocation2 + $0x58] sm:$0xff]
        %v6425 = vld [vmem:[#allocation2 + $0x60] sm:$0xff]
        %v6426 = vld [vmem:[#allocation2 + $0x68] sm:$0xff]
        %v6427 = vld [vmem:[#allocation2 + $0x70] sm:$0xff]
        %v6428 = vld [vmem:[#allocation2 + $0x78] sm:$0xff]
        %v6429 = vld [vmem:[#allocation2 + $0x80] sm:$0xff]
        %v6430 = vld [vmem:[#allocation2 + $0x88] sm:$0xff]
        %v6431 = vld [vmem:[#allocation2 + $0x90] sm:$0xff]
        %v6432 = vld [vmem:[#allocation2 + $0xa0] sm:$0xff]
        %v6433 = vld [vmem:[#allocation2 + $0xa8] sm:$0xff]
        %v6434 = vld [vmem:[#allocation2 + $0xb0] sm:$0xff]
        %v6435 = vld [vmem:[#allocation2 + $0xb8] sm:$0xff]
        %v6436 = vld [vmem:[#allocation2 + $0xc0] sm:$0xff]
        %v6437 = vld [vmem:[#allocation2 + $0xc8] sm:$0xff]
        %v6438 = vld [vmem:[#allocation2 + $0xd0] sm:$0xff]
        %v6439 = vld [vmem:[#allocation2 + $0xd8] sm:$0xff]
        %v6440 = vld [vmem:[#allocation2 + $0xe0] sm:$0xff]
        %v6441 = vld [vmem:[#allocation2 + $0xf0] sm:$0xff]
        %v6442 = vld [vmem:[#allocation2 + $0xf8] sm:$0xff]
        %v6443 = vld [vmem:[#allocation2 + $0x100] sm:$0xff]
        %v6444 = vld [vmem:[#allocation2 + $0x108] sm:$0xff]
        %v6445 = vld [vmem:[#allocation2 + $0x110] sm:$0xff]
        %v6446 = vld [vmem:[#allocation2 + $0x118] sm:$0xff]
        %v6447 = vld [vmem:[#allocation2 + $0x120] sm:$0xff]
        %v6448 = vld [vmem:[#allocation2 + $0x128] sm:$0xff]
        %v6449 = vld [vmem:[#allocation2 + $0x130] sm:$0xff]
        %6450 = vrot.lane.b32.xlu0 %v5724, 127
        %v6451 = vpop.permute.xlu0 %6450
        %6452 = vrot.lane.b32.xlu0 %v5728, 127
        %v6453 = vpop.permute.xlu0 %6452
        %6454 = vrot.lane.b32.xlu0 %v5732, 127
        %v6455 = vpop.permute.xlu0 %6454
        %6456 = vrot.lane.b32.xlu0 %v5736, 127
        %v6457 = vpop.permute.xlu0 %6456
        %6458 = vrot.lane.b32.xlu0 %v5740, 127
        %v6459 = vpop.permute.xlu0 %6458
        %6460 = vrot.lane.b32.xlu0 %v5744, 127
        %v6461 = vpop.permute.xlu0 %6460
        %6462 = vrot.lane.b32.xlu0 %v5748, 127
        %v6463 = vpop.permute.xlu0 %6462
        %6464 = vrot.lane.b32.xlu0 %v5752, 127
        %v6465 = vpop.permute.xlu0 %6464
        %v6466 = vsel %vm3066, %v6451, %v6453
        %v6467 = vsel %vm3066, %v6453, %v6455
        %v6468 = vsel %vm3066, %v6455, %v6457
        %v6469 = vsel %vm3066, %v6457, %v6459
        %v6470 = vsel %vm3066, %v6459, %v6461
        %v6471 = vsel %vm3066, %v6461, %v6463
        %v6472 = vsel %vm3066, %v6463, %v6465
        %v6482 = vmul.f32 %v6414, %v6451
        %v6483 = vmul.f32 %v6415, %v6466
        %v6484 = vmul.f32 %v6416, %v6467
        %v6485 = vmul.f32 %v6417, %v6468
        %v6486 = vmul.f32 %v6418, %v6469
        %v6487 = vmul.f32 %v6419, %v6470
        %v6488 = vmul.f32 %v6420, %v6471
        %v6489 = vmul.f32 %v6421, %v6472
        %v6490 = vmul.f32 %v6422, %v6465
        %v6491 = vmul.f32 %v6423, %v6451
        %v6492 = vmul.f32 %v6424, %v6466
        %v6493 = vmul.f32 %v6425, %v6467
        %v6494 = vmul.f32 %v6426, %v6468
        %v6495 = vmul.f32 %v6427, %v6469
        %v6496 = vmul.f32 %v6428, %v6470
        %v6497 = vmul.f32 %v6429, %v6471
        %v6498 = vmul.f32 %v6430, %v6472
        %v6499 = vmul.f32 %v6431, %v6465
        %v6500 = vmul.f32 %v6432, %v6451
        %v6501 = vmul.f32 %v6433, %v6466
        %v6502 = vmul.f32 %v6434, %v6467
        %v6503 = vmul.f32 %v6435, %v6468
        %v6504 = vmul.f32 %v6436, %v6469
        %v6505 = vmul.f32 %v6437, %v6470
        %v6506 = vmul.f32 %v6438, %v6471
        %v6507 = vmul.f32 %v6439, %v6472
        %v6508 = vmul.f32 %v6440, %v6465
        %v6509 = vmul.f32 %v6441, %v6451
        %v6510 = vmul.f32 %v6442, %v6466
        %v6511 = vmul.f32 %v6443, %v6467
        %v6512 = vmul.f32 %v6444, %v6468
        %v6513 = vmul.f32 %v6445, %v6469
        %v6514 = vmul.f32 %v6446, %v6470
        %v6515 = vmul.f32 %v6447, %v6471
        %v6516 = vmul.f32 %v6448, %v6472
        %v6517 = vmul.f32 %v6449, %v6465
        %v6518 = vpack.c.bf16 %v6491, %v6482
        %v6519 = vpack.c.bf16 %v6492, %v6483
        %v6520 = vpack.c.bf16 %v6493, %v6484
        %v6521 = vpack.c.bf16 %v6494, %v6485
        %v6522 = vpack.c.bf16 %v6495, %v6486
        %v6523 = vpack.c.bf16 %v6496, %v6487
        %v6524 = vpack.c.bf16 %v6497, %v6488
        %v6525 = vpack.c.bf16 %v6498, %v6489
        %v6526 = vpack.c.bf16 %v6499, %v6490
        %v6527 = vpack.c.bf16 %v6509, %v6500
        %v6528 = vpack.c.bf16 %v6510, %v6501
        %v6529 = vpack.c.bf16 %v6511, %v6502
        %v6530 = vpack.c.bf16 %v6512, %v6503
        %v6531 = vpack.c.bf16 %v6513, %v6504
        %v6532 = vpack.c.bf16 %v6514, %v6505
        %v6533 = vpack.c.bf16 %v6515, %v6506
        %v6534 = vpack.c.bf16 %v6516, %v6507
        %v6535 = vpack.c.bf16 %v6517, %v6508
        %6554 = vrot.lane.b32.xlu0 %v6518, 1
        %v6555 = vpop.permute.xlu0 %6554
        %6556 = vrot.lane.b32.xlu0 %v6519, 1
        %v6557 = vpop.permute.xlu0 %6556
        %6558 = vrot.lane.b32.xlu0 %v6520, 1
        %v6559 = vpop.permute.xlu0 %6558
        %6560 = vrot.lane.b32.xlu0 %v6521, 1
        %v6561 = vpop.permute.xlu0 %6560
        %6562 = vrot.lane.b32.xlu0 %v6522, 1
        %v6563 = vpop.permute.xlu0 %6562
        %6564 = vrot.lane.b32.xlu0 %v6523, 1
        %v6565 = vpop.permute.xlu0 %6564
        %6566 = vrot.lane.b32.xlu0 %v6524, 1
        %v6567 = vpop.permute.xlu0 %6566
        %6568 = vrot.lane.b32.xlu0 %v6525, 1
        %v6569 = vpop.permute.xlu0 %6568
        %6570 = vrot.lane.b32.xlu0 %v6526, 1
        %v6571 = vpop.permute.xlu0 %6570
        %6572 = vrot.lane.b32.xlu0 %v6527, 1
        %v6573 = vpop.permute.xlu0 %6572
        %6574 = vrot.lane.b32.xlu0 %v6528, 1
        %v6575 = vpop.permute.xlu0 %6574
        %6576 = vrot.lane.b32.xlu0 %v6529, 1
        %v6577 = vpop.permute.xlu0 %6576
        %6578 = vrot.lane.b32.xlu0 %v6530, 1
        %v6579 = vpop.permute.xlu0 %6578
        %6580 = vrot.lane.b32.xlu0 %v6531, 1
        %v6581 = vpop.permute.xlu0 %6580
        %6582 = vrot.lane.b32.xlu0 %v6532, 1
        %v6583 = vpop.permute.xlu0 %6582
        %6584 = vrot.lane.b32.xlu0 %v6533, 1
        %v6585 = vpop.permute.xlu0 %6584
        %6586 = vrot.lane.b32.xlu0 %v6534, 1
        %v6587 = vpop.permute.xlu0 %6586
        %6588 = vrot.lane.b32.xlu0 %v6535, 1
        %v6589 = vpop.permute.xlu0 %6588
        %v6590 = vsel %vm1292, %v6555, %v6557
        %v6591 = vsel %vm1292, %v6557, %v6559
        %v6592 = vsel %vm1292, %v6559, %v6561
        %v6593 = vsel %vm1292, %v6561, %v6563
        %v6594 = vsel %vm1292, %v6563, %v6565
        %v6595 = vsel %vm1292, %v6565, %v6567
        %v6596 = vsel %vm1292, %v6567, %v6569
        %v6597 = vsel %vm1292, %v6569, %v6571
        %v6598 = vsel %vm1292, %v6573, %v6575
        %v6599 = vsel %vm1292, %v6575, %v6577
        %v6600 = vsel %vm1292, %v6577, %v6579
        %v6601 = vsel %vm1292, %v6579, %v6581
        %v6602 = vsel %vm1292, %v6581, %v6583
        %v6603 = vsel %vm1292, %v6583, %v6585
        %v6604 = vsel %vm1292, %v6585, %v6587
        %v6605 = vsel %vm1292, %v6587, %v6589
        %6622 = vst [vmem:[#allocation3 + $0x180] sm:$0xff] %v6590
        %6623 = vst [vmem:[#allocation3 + $0x188] sm:$0xff] %v6591
        %6624 = vst [vmem:[#allocation3 + $0x190] sm:$0xff] %v6592
        %6625 = vst [vmem:[#allocation3 + $0x198] sm:$0xff] %v6593
        %6626 = vst [vmem:[#allocation3 + $0x1a0] sm:$0xff] %v6594
        %6627 = vst [vmem:[#allocation3 + $0x1a8] sm:$0xff] %v6595
        %6628 = vst [vmem:[#allocation3 + $0x1b0] sm:$0xff] %v6596
        %6629 = vst [vmem:[#allocation3 + $0x1b8] sm:$0xff] %v6597
        %6630 = vst [vmem:[#allocation3 + $0x1c0] sm:$0xff] %v6598
        %6631 = vst [vmem:[#allocation3 + $0x1c8] sm:$0xff] %v6599
        %6632 = vst [vmem:[#allocation3 + $0x1d0] sm:$0xff] %v6600
        %6633 = vst [vmem:[#allocation3 + $0x1d8] sm:$0xff] %v6601
        %6634 = vst [vmem:[#allocation3 + $0x1e0] sm:$0xff] %v6602
        %6635 = vst [vmem:[#allocation3 + $0x1e8] sm:$0xff] %v6603
        %6636 = vst [vmem:[#allocation3 + $0x1f0] sm:$0xff] %v6604
        %6637 = vst [vmem:[#allocation3 + $0x1f8] sm:$0xff] %v6605
        %v6638 = vld [vmem:[#allocation2 + $0x8] sm:$0xff]
        %v6639 = vld [vmem:[#allocation2 + $0x10] sm:$0xff]
        %v6640 = vld [vmem:[#allocation2 + $0x18] sm:$0xff]
        %v6641 = vld [vmem:[#allocation2 + $0x20] sm:$0xff]
        %v6642 = vld [vmem:[#allocation2 + $0x28] sm:$0xff]
        %v6643 = vld [vmem:[#allocation2 + $0x30] sm:$0xff]
        %v6644 = vld [vmem:[#allocation2 + $0x38] sm:$0xff]
        %v6645 = vld [vmem:[#allocation2 + $0x40] sm:$0xff]
        %v6646 = vld [vmem:[#allocation2 + $0x58] sm:$0xff]
        %v6647 = vld [vmem:[#allocation2 + $0x60] sm:$0xff]
        %v6648 = vld [vmem:[#allocation2 + $0x68] sm:$0xff]
        %v6649 = vld [vmem:[#allocation2 + $0x70] sm:$0xff]
        %v6650 = vld [vmem:[#allocation2 + $0x78] sm:$0xff]
        %v6651 = vld [vmem:[#allocation2 + $0x80] sm:$0xff]
        %v6652 = vld [vmem:[#allocation2 + $0x88] sm:$0xff]
        %v6653 = vld [vmem:[#allocation2 + $0x90] sm:$0xff]
        %v6654 = vld [vmem:[#allocation2 + $0xa8] sm:$0xff]
        %v6655 = vld [vmem:[#allocation2 + $0xb0] sm:$0xff]
        %v6656 = vld [vmem:[#allocation2 + $0xb8] sm:$0xff]
        %v6657 = vld [vmem:[#allocation2 + $0xc0] sm:$0xff]
        %v6658 = vld [vmem:[#allocation2 + $0xc8] sm:$0xff]
        %v6659 = vld [vmem:[#allocation2 + $0xd0] sm:$0xff]
        %v6660 = vld [vmem:[#allocation2 + $0xd8] sm:$0xff]
        %v6661 = vld [vmem:[#allocation2 + $0xe0] sm:$0xff]
        %v6662 = vld [vmem:[#allocation2 + $0xf8] sm:$0xff]
        %v6663 = vld [vmem:[#allocation2 + $0x100] sm:$0xff]
        %v6664 = vld [vmem:[#allocation2 + $0x108] sm:$0xff]
        %v6665 = vld [vmem:[#allocation2 + $0x110] sm:$0xff]
        %v6666 = vld [vmem:[#allocation2 + $0x118] sm:$0xff]
        %v6667 = vld [vmem:[#allocation2 + $0x120] sm:$0xff]
        %v6668 = vld [vmem:[#allocation2 + $0x128] sm:$0xff]
        %v6669 = vld [vmem:[#allocation2 + $0x130] sm:$0xff]
        %v6670 = vpack.c.bf16 %v6646, %v6638
        %v6671 = vpack.c.bf16 %v6647, %v6639
        %v6672 = vpack.c.bf16 %v6648, %v6640
        %v6673 = vpack.c.bf16 %v6649, %v6641
        %v6674 = vpack.c.bf16 %v6650, %v6642
        %v6675 = vpack.c.bf16 %v6651, %v6643
        %v6676 = vpack.c.bf16 %v6652, %v6644
        %v6677 = vpack.c.bf16 %v6653, %v6645
        %v6678 = vpack.c.bf16 %v6662, %v6654
        %v6679 = vpack.c.bf16 %v6663, %v6655
        %v6680 = vpack.c.bf16 %v6664, %v6656
        %v6681 = vpack.c.bf16 %v6665, %v6657
        %v6682 = vpack.c.bf16 %v6666, %v6658
        %v6683 = vpack.c.bf16 %v6667, %v6659
        %v6684 = vpack.c.bf16 %v6668, %v6660
        %v6685 = vpack.c.bf16 %v6669, %v6661
        %6686 = vst [vmem:[#allocation3 + $0x200] sm:$0xff] %v6670
        %6687 = vst [vmem:[#allocation3 + $0x208] sm:$0xff] %v6671
        %6688 = vst [vmem:[#allocation3 + $0x210] sm:$0xff] %v6672
        %6689 = vst [vmem:[#allocation3 + $0x218] sm:$0xff] %v6673
        %6690 = vst [vmem:[#allocation3 + $0x220] sm:$0xff] %v6674
        %6691 = vst [vmem:[#allocation3 + $0x228] sm:$0xff] %v6675
        %6692 = vst [vmem:[#allocation3 + $0x230] sm:$0xff] %v6676
        %6693 = vst [vmem:[#allocation3 + $0x238] sm:$0xff] %v6677
        %6694 = vst [vmem:[#allocation3 + $0x240] sm:$0xff] %v6678
        %6695 = vst [vmem:[#allocation3 + $0x248] sm:$0xff] %v6679
        %6696 = vst [vmem:[#allocation3 + $0x250] sm:$0xff] %v6680
        %6697 = vst [vmem:[#allocation3 + $0x258] sm:$0xff] %v6681
        %6698 = vst [vmem:[#allocation3 + $0x260] sm:$0xff] %v6682
        %6699 = vst [vmem:[#allocation3 + $0x268] sm:$0xff] %v6683
        %6700 = vst [vmem:[#allocation3 + $0x270] sm:$0xff] %v6684
        %6701 = vst [vmem:[#allocation3 + $0x278] sm:$0xff] %v6685
        %v6702 = vld [vmem:[#allocation2 + $0x8] sm:$0xff]
        %v6703 = vld [vmem:[#allocation2 + $0x10] sm:$0xff]
        %v6704 = vld [vmem:[#allocation2 + $0x18] sm:$0xff]
        %v6705 = vld [vmem:[#allocation2 + $0x20] sm:$0xff]
        %v6706 = vld [vmem:[#allocation2 + $0x28] sm:$0xff]
        %v6707 = vld [vmem:[#allocation2 + $0x30] sm:$0xff]
        %v6708 = vld [vmem:[#allocation2 + $0x38] sm:$0xff]
        %v6709 = vld [vmem:[#allocation2 + $0x40] sm:$0xff]
        %v6710 = vld [vmem:[#allocation2 + $0x48] sm:$0xff]
        %v6711 = vld [vmem:[#allocation2 + $0x58] sm:$0xff]
        %v6712 = vld [vmem:[#allocation2 + $0x60] sm:$0xff]
        %v6713 = vld [vmem:[#allocation2 + $0x68] sm:$0xff]
        %v6714 = vld [vmem:[#allocation2 + $0x70] sm:$0xff]
        %v6715 = vld [vmem:[#allocation2 + $0x78] sm:$0xff]
        %v6716 = vld [vmem:[#allocation2 + $0x80] sm:$0xff]
        %v6717 = vld [vmem:[#allocation2 + $0x88] sm:$0xff]
        %v6718 = vld [vmem:[#allocation2 + $0x90] sm:$0xff]
        %v6719 = vld [vmem:[#allocation2 + $0x98] sm:$0xff]
        %v6720 = vld [vmem:[#allocation2 + $0xa8] sm:$0xff]
        %v6721 = vld [vmem:[#allocation2 + $0xb0] sm:$0xff]
        %v6722 = vld [vmem:[#allocation2 + $0xb8] sm:$0xff]
        %v6723 = vld [vmem:[#allocation2 + $0xc0] sm:$0xff]
        %v6724 = vld [vmem:[#allocation2 + $0xc8] sm:$0xff]
        %v6725 = vld [vmem:[#allocation2 + $0xd0] sm:$0xff]
        %v6726 = vld [vmem:[#allocation2 + $0xd8] sm:$0xff]
        %v6727 = vld [vmem:[#allocation2 + $0xe0] sm:$0xff]
        %v6728 = vld [vmem:[#allocation2 + $0xe8] sm:$0xff]
        %v6729 = vld [vmem:[#allocation2 + $0xf8] sm:$0xff]
        %v6730 = vld [vmem:[#allocation2 + $0x100] sm:$0xff]
        %v6731 = vld [vmem:[#allocation2 + $0x108] sm:$0xff]
        %v6732 = vld [vmem:[#allocation2 + $0x110] sm:$0xff]
        %v6733 = vld [vmem:[#allocation2 + $0x118] sm:$0xff]
        %v6734 = vld [vmem:[#allocation2 + $0x120] sm:$0xff]
        %v6735 = vld [vmem:[#allocation2 + $0x128] sm:$0xff]
        %v6736 = vld [vmem:[#allocation2 + $0x130] sm:$0xff]
        %v6737 = vld [vmem:[#allocation2 + $0x138] sm:$0xff]
        %6738 = vrot.lane.b32.xlu0 %v6187, 1
        %v6739 = vpop.permute.xlu0 %6738
        %6740 = vrot.lane.b32.xlu0 %v6191, 1
        %v6741 = vpop.permute.xlu0 %6740
        %6742 = vrot.lane.b32.xlu0 %v6195, 1
        %v6743 = vpop.permute.xlu0 %6742
        %6744 = vrot.lane.b32.xlu0 %v6199, 1
        %v6745 = vpop.permute.xlu0 %6744
        %6746 = vrot.lane.b32.xlu0 %v6203, 1
        %v6747 = vpop.permute.xlu0 %6746
        %6748 = vrot.lane.b32.xlu0 %v6207, 1
        %v6749 = vpop.permute.xlu0 %6748
        %6750 = vrot.lane.b32.xlu0 %v6211, 1
        %v6751 = vpop.permute.xlu0 %6750
        %6752 = vrot.lane.b32.xlu0 %v6215, 1
        %v6753 = vpop.permute.xlu0 %6752
        %v6754 = vsel %vm3151, %v6739, %v6741
        %v6755 = vsel %vm3151, %v6741, %v6743
        %v6756 = vsel %vm3151, %v6743, %v6745
        %v6757 = vsel %vm3151, %v6745, %v6747
        %v6758 = vsel %vm3151, %v6747, %v6749
        %v6759 = vsel %vm3151, %v6749, %v6751
        %v6760 = vsel %vm3151, %v6751, %v6753
        %v6770 = vmul.f32 %v6702, %v6739
        %v6771 = vmul.f32 %v6703, %v6754
        %v6772 = vmul.f32 %v6704, %v6755
        %v6773 = vmul.f32 %v6705, %v6756
        %v6774 = vmul.f32 %v6706, %v6757
        %v6775 = vmul.f32 %v6707, %v6758
        %v6776 = vmul.f32 %v6708, %v6759
        %v6777 = vmul.f32 %v6709, %v6760
        %v6778 = vmul.f32 %v6710, %v6753
        %v6779 = vmul.f32 %v6711, %v6739
        %v6780 = vmul.f32 %v6712, %v6754
        %v6781 = vmul.f32 %v6713, %v6755
        %v6782 = vmul.f32 %v6714, %v6756
        %v6783 = vmul.f32 %v6715, %v6757
        %v6784 = vmul.f32 %v6716, %v6758
        %v6785 = vmul.f32 %v6717, %v6759
        %v6786 = vmul.f32 %v6718, %v6760
        %v6787 = vmul.f32 %v6719, %v6753
        %v6788 = vmul.f32 %v6720, %v6739
        %v6789 = vmul.f32 %v6721, %v6754
        %v6790 = vmul.f32 %v6722, %v6755
        %v6791 = vmul.f32 %v6723, %v6756
        %v6792 = vmul.f32 %v6724, %v6757
        %v6793 = vmul.f32 %v6725, %v6758
        %v6794 = vmul.f32 %v6726, %v6759
        %v6795 = vmul.f32 %v6727, %v6760
        %v6796 = vmul.f32 %v6728, %v6753
        %v6797 = vmul.f32 %v6729, %v6739
        %v6798 = vmul.f32 %v6730, %v6754
        %v6799 = vmul.f32 %v6731, %v6755
        %v6800 = vmul.f32 %v6732, %v6756
        %v6801 = vmul.f32 %v6733, %v6757
        %v6802 = vmul.f32 %v6734, %v6758
        %v6803 = vmul.f32 %v6735, %v6759
        %v6804 = vmul.f32 %v6736, %v6760
        %v6805 = vmul.f32 %v6737, %v6753
        %v6806 = vpack.c.bf16 %v6779, %v6770
        %v6807 = vpack.c.bf16 %v6780, %v6771
        %v6808 = vpack.c.bf16 %v6781, %v6772
        %v6809 = vpack.c.bf16 %v6782, %v6773
        %v6810 = vpack.c.bf16 %v6783, %v6774
        %v6811 = vpack.c.bf16 %v6784, %v6775
        %v6812 = vpack.c.bf16 %v6785, %v6776
        %v6813 = vpack.c.bf16 %v6786, %v6777
        %v6814 = vpack.c.bf16 %v6787, %v6778
        %v6815 = vpack.c.bf16 %v6797, %v6788
        %v6816 = vpack.c.bf16 %v6798, %v6789
        %v6817 = vpack.c.bf16 %v6799, %v6790
        %v6818 = vpack.c.bf16 %v6800, %v6791
        %v6819 = vpack.c.bf16 %v6801, %v6792
        %v6820 = vpack.c.bf16 %v6802, %v6793
        %v6821 = vpack.c.bf16 %v6803, %v6794
        %v6822 = vpack.c.bf16 %v6804, %v6795
        %v6823 = vpack.c.bf16 %v6805, %v6796
        %6842 = vrot.lane.b32.xlu0 %v6806, 127
        %v6843 = vpop.permute.xlu0 %6842
        %6844 = vrot.lane.b32.xlu0 %v6807, 127
        %v6845 = vpop.permute.xlu0 %6844
        %6846 = vrot.lane.b32.xlu0 %v6808, 127
        %v6847 = vpop.permute.xlu0 %6846
        %6848 = vrot.lane.b32.xlu0 %v6809, 127
        %v6849 = vpop.permute.xlu0 %6848
        %6850 = vrot.lane.b32.xlu0 %v6810, 127
        %v6851 = vpop.permute.xlu0 %6850
        %6852 = vrot.lane.b32.xlu0 %v6811, 127
        %v6853 = vpop.permute.xlu0 %6852
        %6854 = vrot.lane.b32.xlu0 %v6812, 127
        %v6855 = vpop.permute.xlu0 %6854
        %6856 = vrot.lane.b32.xlu0 %v6813, 127
        %v6857 = vpop.permute.xlu0 %6856
        %6858 = vrot.lane.b32.xlu0 %v6814, 127
        %v6859 = vpop.permute.xlu0 %6858
        %6860 = vrot.lane.b32.xlu0 %v6815, 127
        %v6861 = vpop.permute.xlu0 %6860
        %6862 = vrot.lane.b32.xlu0 %v6816, 127
        %v6863 = vpop.permute.xlu0 %6862
        %6864 = vrot.lane.b32.xlu0 %v6817, 127
        %v6865 = vpop.permute.xlu0 %6864
        %6866 = vrot.lane.b32.xlu0 %v6818, 127
        %v6867 = vpop.permute.xlu0 %6866
        %6868 = vrot.lane.b32.xlu0 %v6819, 127
        %v6869 = vpop.permute.xlu0 %6868
        %6870 = vrot.lane.b32.xlu0 %v6820, 127
        %v6871 = vpop.permute.xlu0 %6870
        %6872 = vrot.lane.b32.xlu0 %v6821, 127
        %v6873 = vpop.permute.xlu0 %6872
        %6874 = vrot.lane.b32.xlu0 %v6822, 127
        %v6875 = vpop.permute.xlu0 %6874
        %6876 = vrot.lane.b32.xlu0 %v6823, 127
        %v6877 = vpop.permute.xlu0 %6876
        %v6878 = vsel %vm3192, %v6843, %v6845
        %v6879 = vsel %vm3192, %v6845, %v6847
        %v6880 = vsel %vm3192, %v6847, %v6849
        %v6881 = vsel %vm3192, %v6849, %v6851
        %v6882 = vsel %vm3192, %v6851, %v6853
        %v6883 = vsel %vm3192, %v6853, %v6855
        %v6884 = vsel %vm3192, %v6855, %v6857
        %v6885 = vsel %vm3192, %v6857, %v6859
        %v6886 = vsel %vm3192, %v6861, %v6863
        %v6887 = vsel %vm3192, %v6863, %v6865
        %v6888 = vsel %vm3192, %v6865, %v6867
        %v6889 = vsel %vm3192, %v6867, %v6869
        %v6890 = vsel %vm3192, %v6869, %v6871
        %v6891 = vsel %vm3192, %v6871, %v6873
        %v6892 = vsel %vm3192, %v6873, %v6875
        %v6893 = vsel %vm3192, %v6875, %v6877
        %6910 = vst [vmem:[#allocation3 + $0x280] sm:$0xff] %v6878
        %6911 = vst [vmem:[#allocation3 + $0x288] sm:$0xff] %v6879
        %6912 = vst [vmem:[#allocation3 + $0x290] sm:$0xff] %v6880
        %6913 = vst [vmem:[#allocation3 + $0x298] sm:$0xff] %v6881
        %6914 = vst [vmem:[#allocation3 + $0x2a0] sm:$0xff] %v6882
        %6915 = vst [vmem:[#allocation3 + $0x2a8] sm:$0xff] %v6883
        %6916 = vst [vmem:[#allocation3 + $0x2b0] sm:$0xff] %v6884
        %6917 = vst [vmem:[#allocation3 + $0x2b8] sm:$0xff] %v6885
        %6918 = vst [vmem:[#allocation3 + $0x2c0] sm:$0xff] %v6886
        %6919 = vst [vmem:[#allocation3 + $0x2c8] sm:$0xff] %v6887
        %6920 = vst [vmem:[#allocation3 + $0x2d0] sm:$0xff] %v6888
        %6921 = vst [vmem:[#allocation3 + $0x2d8] sm:$0xff] %v6889
        %6922 = vst [vmem:[#allocation3 + $0x2e0] sm:$0xff] %v6890
        %6923 = vst [vmem:[#allocation3 + $0x2e8] sm:$0xff] %v6891
        %6924 = vst [vmem:[#allocation3 + $0x2f0] sm:$0xff] %v6892
        %6925 = vst [vmem:[#allocation3 + $0x2f8] sm:$0xff] %v6893
        %v6926 = vld [vmem:[#allocation2 + $0x8] sm:$0xff]
        %v6927 = vld [vmem:[#allocation2 + $0x10] sm:$0xff]
        %v6928 = vld [vmem:[#allocation2 + $0x18] sm:$0xff]
        %v6929 = vld [vmem:[#allocation2 + $0x20] sm:$0xff]
        %v6930 = vld [vmem:[#allocation2 + $0x28] sm:$0xff]
        %v6931 = vld [vmem:[#allocation2 + $0x30] sm:$0xff]
        %v6932 = vld [vmem:[#allocation2 + $0x38] sm:$0xff]
        %v6933 = vld [vmem:[#allocation2 + $0x40] sm:$0xff]
        %v6934 = vld [vmem:[#allocation2 + $0x48] sm:$0xff]
        %v6935 = vld [vmem:[#allocation2 + $0x58] sm:$0xff]
        %v6936 = vld [vmem:[#allocation2 + $0x60] sm:$0xff]
        %v6937 = vld [vmem:[#allocation2 + $0x68] sm:$0xff]
        %v6938 = vld [vmem:[#allocation2 + $0x70] sm:$0xff]
        %v6939 = vld [vmem:[#allocation2 + $0x78] sm:$0xff]
        %v6940 = vld [vmem:[#allocation2 + $0x80] sm:$0xff]
        %v6941 = vld [vmem:[#allocation2 + $0x88] sm:$0xff]
        %v6942 = vld [vmem:[#allocation2 + $0x90] sm:$0xff]
        %v6943 = vld [vmem:[#allocation2 + $0x98] sm:$0xff]
        %v6944 = vld [vmem:[#allocation2 + $0xa8] sm:$0xff]
        %v6945 = vld [vmem:[#allocation2 + $0xb0] sm:$0xff]
        %v6946 = vld [vmem:[#allocation2 + $0xb8] sm:$0xff]
        %v6947 = vld [vmem:[#allocation2 + $0xc0] sm:$0xff]
        %v6948 = vld [vmem:[#allocation2 + $0xc8] sm:$0xff]
        %v6949 = vld [vmem:[#allocation2 + $0xd0] sm:$0xff]
        %v6950 = vld [vmem:[#allocation2 + $0xd8] sm:$0xff]
        %v6951 = vld [vmem:[#allocation2 + $0xe0] sm:$0xff]
        %v6952 = vld [vmem:[#allocation2 + $0xe8] sm:$0xff]
        %v6953 = vld [vmem:[#allocation2 + $0xf8] sm:$0xff]
        %v6954 = vld [vmem:[#allocation2 + $0x100] sm:$0xff]
        %v6955 = vld [vmem:[#allocation2 + $0x108] sm:$0xff]
        %v6956 = vld [vmem:[#allocation2 + $0x110] sm:$0xff]
        %v6957 = vld [vmem:[#allocation2 + $0x118] sm:$0xff]
        %v6958 = vld [vmem:[#allocation2 + $0x120] sm:$0xff]
        %v6959 = vld [vmem:[#allocation2 + $0x128] sm:$0xff]
        %v6960 = vld [vmem:[#allocation2 + $0x130] sm:$0xff]
        %v6961 = vld [vmem:[#allocation2 + $0x138] sm:$0xff]
        %6962 = vrot.lane.b32.xlu0 %v5724, 31
        %v6963 = vpop.permute.xlu0 %6962
        %6964 = vrot.lane.b32.xlu0 %v5728, 31
        %v6965 = vpop.permute.xlu0 %6964
        %6966 = vrot.lane.b32.xlu0 %v5732, 31
        %v6967 = vpop.permute.xlu0 %6966
        %6968 = vrot.lane.b32.xlu0 %v5736, 31
        %v6969 = vpop.permute.xlu0 %6968
        %6970 = vrot.lane.b32.xlu0 %v5740, 31
        %v6971 = vpop.permute.xlu0 %6970
        %6972 = vrot.lane.b32.xlu0 %v5744, 31
        %v6973 = vpop.permute.xlu0 %6972
        %6974 = vrot.lane.b32.xlu0 %v5748, 31
        %v6975 = vpop.permute.xlu0 %6974
        %6976 = vrot.lane.b32.xlu0 %v5752, 31
        %v6977 = vpop.permute.xlu0 %6976
        %vm6978 = vcmask 252928
        %v6979 = vsel %vm6978, %v6963, %v6965
        %v6980 = vsel %vm6978, %v6965, %v6967
        %v6981 = vsel %vm6978, %v6967, %v6969
        %v6982 = vsel %vm6978, %v6969, %v6971
        %v6983 = vsel %vm6978, %v6971, %v6973
        %v6984 = vsel %vm6978, %v6973, %v6975
        %v6985 = vsel %vm6978, %v6975, %v6977
        %v6995 = vmul.f32 %v6926, %v6963
        %v6996 = vmul.f32 %v6927, %v6979
        %v6997 = vmul.f32 %v6928, %v6980
        %v6998 = vmul.f32 %v6929, %v6981
        %v6999 = vmul.f32 %v6930, %v6982
        %v7000 = vmul.f32 %v6931, %v6983
        %v7001 = vmul.f32 %v6932, %v6984
        %v7002 = vmul.f32 %v6933, %v6985
        %v7003 = vmul.f32 %v6934, %v6977
        %v7004 = vmul.f32 %v6935, %v6963
        %v7005 = vmul.f32 %v6936, %v6979
        %v7006 = vmul.f32 %v6937, %v6980
        %v7007 = vmul.f32 %v6938, %v6981
        %v7008 = vmul.f32 %v6939, %v6982
        %v7009 = vmul.f32 %v6940, %v6983
        %v7010 = vmul.f32 %v6941, %v6984
        %v7011 = vmul.f32 %v6942, %v6985
        %v7012 = vmul.f32 %v6943, %v6977
        %v7013 = vmul.f32 %v6944, %v6963
        %v7014 = vmul.f32 %v6945, %v6979
        %v7015 = vmul.f32 %v6946, %v6980
        %v7016 = vmul.f32 %v6947, %v6981
        %v7017 = vmul.f32 %v6948, %v6982
        %v7018 = vmul.f32 %v6949, %v6983
        %v7019 = vmul.f32 %v6950, %v6984
        %v7020 = vmul.f32 %v6951, %v6985
        %v7021 = vmul.f32 %v6952, %v6977
        %v7022 = vmul.f32 %v6953, %v6963
        %v7023 = vmul.f32 %v6954, %v6979
        %v7024 = vmul.f32 %v6955, %v6980
        %v7025 = vmul.f32 %v6956, %v6981
        %v7026 = vmul.f32 %v6957, %v6982
        %v7027 = vmul.f32 %v6958, %v6983
        %v7028 = vmul.f32 %v6959, %v6984
        %v7029 = vmul.f32 %v6960, %v6985
        %v7030 = vmul.f32 %v6961, %v6977
        %v7031 = vpack.c.bf16 %v7004, %v6995
        %v7032 = vpack.c.bf16 %v7005, %v6996
        %v7033 = vpack.c.bf16 %v7006, %v6997
        %v7034 = vpack.c.bf16 %v7007, %v6998
        %v7035 = vpack.c.bf16 %v7008, %v6999
        %v7036 = vpack.c.bf16 %v7009, %v7000
        %v7037 = vpack.c.bf16 %v7010, %v7001
        %v7038 = vpack.c.bf16 %v7011, %v7002
        %v7039 = vpack.c.bf16 %v7012, %v7003
        %v7040 = vpack.c.bf16 %v7022, %v7013
        %v7041 = vpack.c.bf16 %v7023, %v7014
        %v7042 = vpack.c.bf16 %v7024, %v7015
        %v7043 = vpack.c.bf16 %v7025, %v7016
        %v7044 = vpack.c.bf16 %v7026, %v7017
        %v7045 = vpack.c.bf16 %v7027, %v7018
        %v7046 = vpack.c.bf16 %v7028, %v7019
        %v7047 = vpack.c.bf16 %v7029, %v7020
        %v7048 = vpack.c.bf16 %v7030, %v7021
        %7067 = vrot.lane.b32.xlu0 %v7031, 97
        %v7068 = vpop.permute.xlu0 %7067
        %7069 = vrot.lane.b32.xlu0 %v7032, 97
        %v7070 = vpop.permute.xlu0 %7069
        %7071 = vrot.lane.b32.xlu0 %v7033, 97
        %v7072 = vpop.permute.xlu0 %7071
        %7073 = vrot.lane.b32.xlu0 %v7034, 97
        %v7074 = vpop.permute.xlu0 %7073
        %7075 = vrot.lane.b32.xlu0 %v7035, 97
        %v7076 = vpop.permute.xlu0 %7075
        %7077 = vrot.lane.b32.xlu0 %v7036, 97
        %v7078 = vpop.permute.xlu0 %7077
        %7079 = vrot.lane.b32.xlu0 %v7037, 97
        %v7080 = vpop.permute.xlu0 %7079
        %7081 = vrot.lane.b32.xlu0 %v7038, 97
        %v7082 = vpop.permute.xlu0 %7081
        %7083 = vrot.lane.b32.xlu0 %v7039, 97
        %v7084 = vpop.permute.xlu0 %7083
        %7085 = vrot.lane.b32.xlu0 %v7040, 97
        %v7086 = vpop.permute.xlu0 %7085
        %7087 = vrot.lane.b32.xlu0 %v7041, 97
        %v7088 = vpop.permute.xlu0 %7087
        %7089 = vrot.lane.b32.xlu0 %v7042, 97
        %v7090 = vpop.permute.xlu0 %7089
        %7091 = vrot.lane.b32.xlu0 %v7043, 97
        %v7092 = vpop.permute.xlu0 %7091
        %7093 = vrot.lane.b32.xlu0 %v7044, 97
        %v7094 = vpop.permute.xlu0 %7093
        %7095 = vrot.lane.b32.xlu0 %v7045, 97
        %v7096 = vpop.permute.xlu0 %7095
        %7097 = vrot.lane.b32.xlu0 %v7046, 97
        %v7098 = vpop.permute.xlu0 %7097
        %7099 = vrot.lane.b32.xlu0 %v7047, 97
        %v7100 = vpop.permute.xlu0 %7099
        %7101 = vrot.lane.b32.xlu0 %v7048, 97
        %v7102 = vpop.permute.xlu0 %7101
        %vm7103 = vcmask 793600
        %v7104 = vsel %vm7103, %v7068, %v7070
        %v7105 = vsel %vm7103, %v7070, %v7072
        %v7106 = vsel %vm7103, %v7072, %v7074
        %v7107 = vsel %vm7103, %v7074, %v7076
        %v7108 = vsel %vm7103, %v7076, %v7078
        %v7109 = vsel %vm7103, %v7078, %v7080
        %v7110 = vsel %vm7103, %v7080, %v7082
        %v7111 = vsel %vm7103, %v7082, %v7084
        %v7112 = vsel %vm7103, %v7086, %v7088
        %v7113 = vsel %vm7103, %v7088, %v7090
        %v7114 = vsel %vm7103, %v7090, %v7092
        %v7115 = vsel %vm7103, %v7092, %v7094
        %v7116 = vsel %vm7103, %v7094, %v7096
        %v7117 = vsel %vm7103, %v7096, %v7098
        %v7118 = vsel %vm7103, %v7098, %v7100
        %v7119 = vsel %vm7103, %v7100, %v7102
        %7136 = vst [vmem:[#allocation3 + $0x300] sm:$0xff] %v7104
        %7137 = vst [vmem:[#allocation3 + $0x308] sm:$0xff] %v7105
        %7138 = vst [vmem:[#allocation3 + $0x310] sm:$0xff] %v7106
        %7139 = vst [vmem:[#allocation3 + $0x318] sm:$0xff] %v7107
        %7140 = vst [vmem:[#allocation3 + $0x320] sm:$0xff] %v7108
        %7141 = vst [vmem:[#allocation3 + $0x328] sm:$0xff] %v7109
        %7142 = vst [vmem:[#allocation3 + $0x330] sm:$0xff] %v7110
        %7143 = vst [vmem:[#allocation3 + $0x338] sm:$0xff] %v7111
        %7144 = vst [vmem:[#allocation3 + $0x340] sm:$0xff] %v7112
        %7145 = vst [vmem:[#allocation3 + $0x348] sm:$0xff] %v7113
        %7146 = vst [vmem:[#allocation3 + $0x350] sm:$0xff] %v7114
        %7147 = vst [vmem:[#allocation3 + $0x358] sm:$0xff] %v7115
        %7148 = vst [vmem:[#allocation3 + $0x360] sm:$0xff] %v7116
        %7149 = vst [vmem:[#allocation3 + $0x368] sm:$0xff] %v7117
        %7150 = vst [vmem:[#allocation3 + $0x370] sm:$0xff] %v7118
        %7151 = vst [vmem:[#allocation3 + $0x378] sm:$0xff] %v7119
        %v7152 = vld [vmem:[#allocation2 + $0x8] sm:$0xff]
        %v7153 = vld [vmem:[#allocation2 + $0x10] sm:$0xff]
        %v7154 = vld [vmem:[#allocation2 + $0x18] sm:$0xff]
        %v7155 = vld [vmem:[#allocation2 + $0x20] sm:$0xff]
        %v7156 = vld [vmem:[#allocation2 + $0x28] sm:$0xff]
        %v7157 = vld [vmem:[#allocation2 + $0x30] sm:$0xff]
        %v7158 = vld [vmem:[#allocation2 + $0x38] sm:$0xff]
        %v7159 = vld [vmem:[#allocation2 + $0x40] sm:$0xff]
        %v7160 = vld [vmem:[#allocation2 + $0x48] sm:$0xff]
        %v7161 = vld [vmem:[#allocation2 + $0x58] sm:$0xff]
        %v7162 = vld [vmem:[#allocation2 + $0x60] sm:$0xff]
        %v7163 = vld [vmem:[#allocation2 + $0x68] sm:$0xff]
        %v7164 = vld [vmem:[#allocation2 + $0x70] sm:$0xff]
        %v7165 = vld [vmem:[#allocation2 + $0x78] sm:$0xff]
        %v7166 = vld [vmem:[#allocation2 + $0x80] sm:$0xff]
        %v7167 = vld [vmem:[#allocation2 + $0x88] sm:$0xff]
        %v7168 = vld [vmem:[#allocation2 + $0x90] sm:$0xff]
        %v7169 = vld [vmem:[#allocation2 + $0x98] sm:$0xff]
        %v7170 = vld [vmem:[#allocation2 + $0xa8] sm:$0xff]
        %v7171 = vld [vmem:[#allocation2 + $0xb0] sm:$0xff]
        %v7172 = vld [vmem:[#allocation2 + $0xb8] sm:$0xff]
        %v7173 = vld [vmem:[#allocation2 + $0xc0] sm:$0xff]
        %v7174 = vld [vmem:[#allocation2 + $0xc8] sm:$0xff]
        %v7175 = vld [vmem:[#allocation2 + $0xd0] sm:$0xff]
        %v7176 = vld [vmem:[#allocation2 + $0xd8] sm:$0xff]
        %v7177 = vld [vmem:[#allocation2 + $0xe0] sm:$0xff]
        %v7178 = vld [vmem:[#allocation2 + $0xe8] sm:$0xff]
        %v7179 = vld [vmem:[#allocation2 + $0xf8] sm:$0xff]
        %v7180 = vld [vmem:[#allocation2 + $0x100] sm:$0xff]
        %v7181 = vld [vmem:[#allocation2 + $0x108] sm:$0xff]
        %v7182 = vld [vmem:[#allocation2 + $0x110] sm:$0xff]
        %v7183 = vld [vmem:[#allocation2 + $0x118] sm:$0xff]
        %v7184 = vld [vmem:[#allocation2 + $0x120] sm:$0xff]
        %v7185 = vld [vmem:[#allocation2 + $0x128] sm:$0xff]
        %v7186 = vld [vmem:[#allocation2 + $0x130] sm:$0xff]
        %v7187 = vld [vmem:[#allocation2 + $0x138] sm:$0xff]
        %v7188 = vpack.c.bf16 %v7161, %v7152
        %v7189 = vpack.c.bf16 %v7162, %v7153
        %v7190 = vpack.c.bf16 %v7163, %v7154
        %v7191 = vpack.c.bf16 %v7164, %v7155
        %v7192 = vpack.c.bf16 %v7165, %v7156
        %v7193 = vpack.c.bf16 %v7166, %v7157
        %v7194 = vpack.c.bf16 %v7167, %v7158
        %v7195 = vpack.c.bf16 %v7168, %v7159
        %v7196 = vpack.c.bf16 %v7169, %v7160
        %v7197 = vpack.c.bf16 %v7179, %v7170
        %v7198 = vpack.c.bf16 %v7180, %v7171
        %v7199 = vpack.c.bf16 %v7181, %v7172
        %v7200 = vpack.c.bf16 %v7182, %v7173
        %v7201 = vpack.c.bf16 %v7183, %v7174
        %v7202 = vpack.c.bf16 %v7184, %v7175
        %v7203 = vpack.c.bf16 %v7185, %v7176
        %v7204 = vpack.c.bf16 %v7186, %v7177
        %v7205 = vpack.c.bf16 %v7187, %v7178
        %7224 = vrot.lane.b32.xlu0 %v7188, 96
        %v7225 = vpop.permute.xlu0 %7224
        %7226 = vrot.lane.b32.xlu0 %v7189, 96
        %v7227 = vpop.permute.xlu0 %7226
        %7228 = vrot.lane.b32.xlu0 %v7190, 96
        %v7229 = vpop.permute.xlu0 %7228
        %7230 = vrot.lane.b32.xlu0 %v7191, 96
        %v7231 = vpop.permute.xlu0 %7230
        %7232 = vrot.lane.b32.xlu0 %v7192, 96
        %v7233 = vpop.permute.xlu0 %7232
        %7234 = vrot.lane.b32.xlu0 %v7193, 96
        %v7235 = vpop.permute.xlu0 %7234
        %7236 = vrot.lane.b32.xlu0 %v7194, 96
        %v7237 = vpop.permute.xlu0 %7236
        %7238 = vrot.lane.b32.xlu0 %v7195, 96
        %v7239 = vpop.permute.xlu0 %7238
        %7240 = vrot.lane.b32.xlu0 %v7196, 96
        %v7241 = vpop.permute.xlu0 %7240
        %7242 = vrot.lane.b32.xlu0 %v7197, 96
        %v7243 = vpop.permute.xlu0 %7242
        %7244 = vrot.lane.b32.xlu0 %v7198, 96
        %v7245 = vpop.permute.xlu0 %7244
        %7246 = vrot.lane.b32.xlu0 %v7199, 96
        %v7247 = vpop.permute.xlu0 %7246
        %7248 = vrot.lane.b32.xlu0 %v7200, 96
        %v7249 = vpop.permute.xlu0 %7248
        %7250 = vrot.lane.b32.xlu0 %v7201, 96
        %v7251 = vpop.permute.xlu0 %7250
        %7252 = vrot.lane.b32.xlu0 %v7202, 96
        %v7253 = vpop.permute.xlu0 %7252
        %7254 = vrot.lane.b32.xlu0 %v7203, 96
        %v7255 = vpop.permute.xlu0 %7254
        %7256 = vrot.lane.b32.xlu0 %v7204, 96
        %v7257 = vpop.permute.xlu0 %7256
        %7258 = vrot.lane.b32.xlu0 %v7205, 96
        %v7259 = vpop.permute.xlu0 %7258
        %vm7260 = vcmask 785408
        %v7261 = vsel %vm7260, %v7225, %v7227
        %v7262 = vsel %vm7260, %v7227, %v7229
        %v7263 = vsel %vm7260, %v7229, %v7231
        %v7264 = vsel %vm7260, %v7231, %v7233
        %v7265 = vsel %vm7260, %v7233, %v7235
        %v7266 = vsel %vm7260, %v7235, %v7237
        %v7267 = vsel %vm7260, %v7237, %v7239
        %v7268 = vsel %vm7260, %v7239, %v7241
        %v7269 = vsel %vm7260, %v7243, %v7245
        %v7270 = vsel %vm7260, %v7245, %v7247
        %v7271 = vsel %vm7260, %v7247, %v7249
        %v7272 = vsel %vm7260, %v7249, %v7251
        %v7273 = vsel %vm7260, %v7251, %v7253
        %v7274 = vsel %vm7260, %v7253, %v7255
        %v7275 = vsel %vm7260, %v7255, %v7257
        %v7276 = vsel %vm7260, %v7257, %v7259
        %7293 = vst [vmem:[#allocation3 + $0x380] sm:$0xff] %v7261
        %7294 = vst [vmem:[#allocation3 + $0x388] sm:$0xff] %v7262
        %7295 = vst [vmem:[#allocation3 + $0x390] sm:$0xff] %v7263
        %7296 = vst [vmem:[#allocation3 + $0x398] sm:$0xff] %v7264
        %7297 = vst [vmem:[#allocation3 + $0x3a0] sm:$0xff] %v7265
        %7298 = vst [vmem:[#allocation3 + $0x3a8] sm:$0xff] %v7266
        %7299 = vst [vmem:[#allocation3 + $0x3b0] sm:$0xff] %v7267
        %7300 = vst [vmem:[#allocation3 + $0x3b8] sm:$0xff] %v7268
        %7301 = vst [vmem:[#allocation3 + $0x3c0] sm:$0xff] %v7269
        %7302 = vst [vmem:[#allocation3 + $0x3c8] sm:$0xff] %v7270
        %7303 = vst [vmem:[#allocation3 + $0x3d0] sm:$0xff] %v7271
        %7304 = vst [vmem:[#allocation3 + $0x3d8] sm:$0xff] %v7272
        %7305 = vst [vmem:[#allocation3 + $0x3e0] sm:$0xff] %v7273
        %7306 = vst [vmem:[#allocation3 + $0x3e8] sm:$0xff] %v7274
        %7307 = vst [vmem:[#allocation3 + $0x3f0] sm:$0xff] %v7275
        %7308 = vst [vmem:[#allocation3 + $0x3f8] sm:$0xff] %v7276
        %v7309 = vld [vmem:[#allocation2 + $0x8] sm:$0xff]
        %v7310 = vld [vmem:[#allocation2 + $0x10] sm:$0xff]
        %v7311 = vld [vmem:[#allocation2 + $0x18] sm:$0xff]
        %v7312 = vld [vmem:[#allocation2 + $0x20] sm:$0xff]
        %v7313 = vld [vmem:[#allocation2 + $0x28] sm:$0xff]
        %v7314 = vld [vmem:[#allocation2 + $0x30] sm:$0xff]
        %v7315 = vld [vmem:[#allocation2 + $0x38] sm:$0xff]
        %v7316 = vld [vmem:[#allocation2 + $0x40] sm:$0xff]
        %v7317 = vld [vmem:[#allocation2 + $0x48] sm:$0xff]
        %v7318 = vld [vmem:[#allocation2 + $0x58] sm:$0xff]
        %v7319 = vld [vmem:[#allocation2 + $0x60] sm:$0xff]
        %v7320 = vld [vmem:[#allocation2 + $0x68] sm:$0xff]
        %v7321 = vld [vmem:[#allocation2 + $0x70] sm:$0xff]
        %v7322 = vld [vmem:[#allocation2 + $0x78] sm:$0xff]
        %v7323 = vld [vmem:[#allocation2 + $0x80] sm:$0xff]
        %v7324 = vld [vmem:[#allocation2 + $0x88] sm:$0xff]
        %v7325 = vld [vmem:[#allocation2 + $0x90] sm:$0xff]
        %v7326 = vld [vmem:[#allocation2 + $0x98] sm:$0xff]
        %v7327 = vld [vmem:[#allocation2 + $0xa8] sm:$0xff]
        %v7328 = vld [vmem:[#allocation2 + $0xb0] sm:$0xff]
        %v7329 = vld [vmem:[#allocation2 + $0xb8] sm:$0xff]
        %v7330 = vld [vmem:[#allocation2 + $0xc0] sm:$0xff]
        %v7331 = vld [vmem:[#allocation2 + $0xc8] sm:$0xff]
        %v7332 = vld [vmem:[#allocation2 + $0xd0] sm:$0xff]
        %v7333 = vld [vmem:[#allocation2 + $0xd8] sm:$0xff]
        %v7334 = vld [vmem:[#allocation2 + $0xe0] sm:$0xff]
        %v7335 = vld [vmem:[#allocation2 + $0xe8] sm:$0xff]
        %v7336 = vld [vmem:[#allocation2 + $0xf8] sm:$0xff]
        %v7337 = vld [vmem:[#allocation2 + $0x100] sm:$0xff]
        %v7338 = vld [vmem:[#allocation2 + $0x108] sm:$0xff]
        %v7339 = vld [vmem:[#allocation2 + $0x110] sm:$0xff]
        %v7340 = vld [vmem:[#allocation2 + $0x118] sm:$0xff]
        %v7341 = vld [vmem:[#allocation2 + $0x120] sm:$0xff]
        %v7342 = vld [vmem:[#allocation2 + $0x128] sm:$0xff]
        %v7343 = vld [vmem:[#allocation2 + $0x130] sm:$0xff]
        %v7344 = vld [vmem:[#allocation2 + $0x138] sm:$0xff]
        %7345 = vrot.lane.b32.xlu0 %v6187, 33
        %v7346 = vpop.permute.xlu0 %7345
        %7347 = vrot.lane.b32.xlu0 %v6191, 33
        %v7348 = vpop.permute.xlu0 %7347
        %7349 = vrot.lane.b32.xlu0 %v6195, 33
        %v7350 = vpop.permute.xlu0 %7349
        %7351 = vrot.lane.b32.xlu0 %v6199, 33
        %v7352 = vpop.permute.xlu0 %7351
        %7353 = vrot.lane.b32.xlu0 %v6203, 33
        %v7354 = vpop.permute.xlu0 %7353
        %7355 = vrot.lane.b32.xlu0 %v6207, 33
        %v7356 = vpop.permute.xlu0 %7355
        %7357 = vrot.lane.b32.xlu0 %v6211, 33
        %v7358 = vpop.permute.xlu0 %7357
        %7359 = vrot.lane.b32.xlu0 %v6215, 33
        %v7360 = vpop.permute.xlu0 %7359
        %vm7361 = vcmask 269312
        %v7362 = vsel %vm7361, %v7346, %v7348
        %v7363 = vsel %vm7361, %v7348, %v7350
        %v7364 = vsel %vm7361, %v7350, %v7352
        %v7365 = vsel %vm7361, %v7352, %v7354
        %v7366 = vsel %vm7361, %v7354, %v7356
        %v7367 = vsel %vm7361, %v7356, %v7358
        %v7368 = vsel %vm7361, %v7358, %v7360
        %v7378 = vmul.f32 %v7309, %v7346
        %v7379 = vmul.f32 %v7310, %v7362
        %v7380 = vmul.f32 %v7311, %v7363
        %v7381 = vmul.f32 %v7312, %v7364
        %v7382 = vmul.f32 %v7313, %v7365
        %v7383 = vmul.f32 %v7314, %v7366
        %v7384 = vmul.f32 %v7315, %v7367
        %v7385 = vmul.f32 %v7316, %v7368
        %v7386 = vmul.f32 %v7317, %v7360
        %v7387 = vmul.f32 %v7318, %v7346
        %v7388 = vmul.f32 %v7319, %v7362
        %v7389 = vmul.f32 %v7320, %v7363
        %v7390 = vmul.f32 %v7321, %v7364
        %v7391 = vmul.f32 %v7322, %v7365
        %v7392 = vmul.f32 %v7323, %v7366
        %v7393 = vmul.f32 %v7324, %v7367
        %v7394 = vmul.f32 %v7325, %v7368
        %v7395 = vmul.f32 %v7326, %v7360
        %v7396 = vmul.f32 %v7327, %v7346
        %v7397 = vmul.f32 %v7328, %v7362
        %v7398 = vmul.f32 %v7329, %v7363
        %v7399 = vmul.f32 %v7330, %v7364
        %v7400 = vmul.f32 %v7331, %v7365
        %v7401 = vmul.f32 %v7332, %v7366
        %v7402 = vmul.f32 %v7333, %v7367
        %v7403 = vmul.f32 %v7334, %v7368
        %v7404 = vmul.f32 %v7335, %v7360
        %v7405 = vmul.f32 %v7336, %v7346
        %v7406 = vmul.f32 %v7337, %v7362
        %v7407 = vmul.f32 %v7338, %v7363
        %v7408 = vmul.f32 %v7339, %v7364
        %v7409 = vmul.f32 %v7340, %v7365
        %v7410 = vmul.f32 %v7341, %v7366
        %v7411 = vmul.f32 %v7342, %v7367
        %v7412 = vmul.f32 %v7343, %v7368
        %v7413 = vmul.f32 %v7344, %v7360
        %v7414 = vpack.c.bf16 %v7387, %v7378
        %v7415 = vpack.c.bf16 %v7388, %v7379
        %v7416 = vpack.c.bf16 %v7389, %v7380
        %v7417 = vpack.c.bf16 %v7390, %v7381
        %v7418 = vpack.c.bf16 %v7391, %v7382
        %v7419 = vpack.c.bf16 %v7392, %v7383
        %v7420 = vpack.c.bf16 %v7393, %v7384
        %v7421 = vpack.c.bf16 %v7394, %v7385
        %v7422 = vpack.c.bf16 %v7395, %v7386
        %v7423 = vpack.c.bf16 %v7405, %v7396
        %v7424 = vpack.c.bf16 %v7406, %v7397
        %v7425 = vpack.c.bf16 %v7407, %v7398
        %v7426 = vpack.c.bf16 %v7408, %v7399
        %v7427 = vpack.c.bf16 %v7409, %v7400
        %v7428 = vpack.c.bf16 %v7410, %v7401
        %v7429 = vpack.c.bf16 %v7411, %v7402
        %v7430 = vpack.c.bf16 %v7412, %v7403
        %v7431 = vpack.c.bf16 %v7413, %v7404
        %7450 = vrot.lane.b32.xlu0 %v7414, 95
        %v7451 = vpop.permute.xlu0 %7450
        %7452 = vrot.lane.b32.xlu0 %v7415, 95
        %v7453 = vpop.permute.xlu0 %7452
        %7454 = vrot.lane.b32.xlu0 %v7416, 95
        %v7455 = vpop.permute.xlu0 %7454
        %7456 = vrot.lane.b32.xlu0 %v7417, 95
        %v7457 = vpop.permute.xlu0 %7456
        %7458 = vrot.lane.b32.xlu0 %v7418, 95
        %v7459 = vpop.permute.xlu0 %7458
        %7460 = vrot.lane.b32.xlu0 %v7419, 95
        %v7461 = vpop.permute.xlu0 %7460
        %7462 = vrot.lane.b32.xlu0 %v7420, 95
        %v7463 = vpop.permute.xlu0 %7462
        %7464 = vrot.lane.b32.xlu0 %v7421, 95
        %v7465 = vpop.permute.xlu0 %7464
        %7466 = vrot.lane.b32.xlu0 %v7422, 95
        %v7467 = vpop.permute.xlu0 %7466
        %7468 = vrot.lane.b32.xlu0 %v7423, 95
        %v7469 = vpop.permute.xlu0 %7468
        %7470 = vrot.lane.b32.xlu0 %v7424, 95
        %v7471 = vpop.permute.xlu0 %7470
        %7472 = vrot.lane.b32.xlu0 %v7425, 95
        %v7473 = vpop.permute.xlu0 %7472
        %7474 = vrot.lane.b32.xlu0 %v7426, 95
        %v7475 = vpop.permute.xlu0 %7474
        %7476 = vrot.lane.b32.xlu0 %v7427, 95
        %v7477 = vpop.permute.xlu0 %7476
        %7478 = vrot.lane.b32.xlu0 %v7428, 95
        %v7479 = vpop.permute.xlu0 %7478
        %7480 = vrot.lane.b32.xlu0 %v7429, 95
        %v7481 = vpop.permute.xlu0 %7480
        %7482 = vrot.lane.b32.xlu0 %v7430, 95
        %v7483 = vpop.permute.xlu0 %7482
        %7484 = vrot.lane.b32.xlu0 %v7431, 95
        %v7485 = vpop.permute.xlu0 %7484
        %vm7486 = vcmask 777216
        %v7487 = vsel %vm7486, %v7451, %v7453
        %v7488 = vsel %vm7486, %v7453, %v7455
        %v7489 = vsel %vm7486, %v7455, %v7457
        %v7490 = vsel %vm7486, %v7457, %v7459
        %v7491 = vsel %vm7486, %v7459, %v7461
        %v7492 = vsel %vm7486, %v7461, %v7463
        %v7493 = vsel %vm7486, %v7463, %v7465
        %v7494 = vsel %vm7486, %v7465, %v7467
        %v7495 = vsel %vm7486, %v7469, %v7471
        %v7496 = vsel %vm7486, %v7471, %v7473
        %v7497 = vsel %vm7486, %v7473, %v7475
        %v7498 = vsel %vm7486, %v7475, %v7477
        %v7499 = vsel %vm7486, %v7477, %v7479
        %v7500 = vsel %vm7486, %v7479, %v7481
        %v7501 = vsel %vm7486, %v7481, %v7483
        %v7502 = vsel %vm7486, %v7483, %v7485
        %7519 = vst [vmem:[#allocation3 + $0x400] sm:$0xff] %v7487
        %7520 = vst [vmem:[#allocation3 + $0x408] sm:$0xff] %v7488
        %7521 = vst [vmem:[#allocation3 + $0x410] sm:$0xff] %v7489
        %7522 = vst [vmem:[#allocation3 + $0x418] sm:$0xff] %v7490
        %7523 = vst [vmem:[#allocation3 + $0x420] sm:$0xff] %v7491
        %7524 = vst [vmem:[#allocation3 + $0x428] sm:$0xff] %v7492
        %7525 = vst [vmem:[#allocation3 + $0x430] sm:$0xff] %v7493
        %7526 = vst [vmem:[#allocation3 + $0x438] sm:$0xff] %v7494
        %7527 = vst [vmem:[#allocation3 + $0x440] sm:$0xff] %v7495
        %7528 = vst [vmem:[#allocation3 + $0x448] sm:$0xff] %v7496
        %7529 = vst [vmem:[#allocation3 + $0x450] sm:$0xff] %v7497
        %7530 = vst [vmem:[#allocation3 + $0x458] sm:$0xff] %v7498
        %7531 = vst [vmem:[#allocation3 + $0x460] sm:$0xff] %v7499
        %7532 = vst [vmem:[#allocation3 + $0x468] sm:$0xff] %v7500
        %7533 = vst [vmem:[#allocation3 + $0x470] sm:$0xff] %v7501
        %7534 = vst [vmem:[#allocation3 + $0x478] sm:$0xff] %v7502
        %s7535 = scalar_lea.vmem [#allocation15], 240
        %v7536 = vld [vmem:[%s7535] sm:$0xff]
        %v7537 = vld [vmem:[%s7535 + $0x8] sm:$0xf]
        %v7538 = vld [vmem:[%s7535 + $0xc] sm:$0xff]
        %v7539 = vld [vmem:[%s7535 + $0x14] sm:$0xf]
        %v7540 = vld [vmem:[%s7535 + $0x18] sm:$0xff]
        %v7541 = vld [vmem:[%s7535 + $0x20] sm:$0xf]
        %v7542 = vld [vmem:[%s7535 + $0x24] sm:$0xff]
        %v7543 = vld [vmem:[%s7535 + $0x2c] sm:$0xf]
        %v7544 = vld [vmem:[#allocation3] sm:$0xff]
        %v7545 = vld [vmem:[#allocation3 + $0x8] sm:$0xff]
        %v7546 = vld [vmem:[#allocation3 + $0x10] sm:$0xff]
        %v7547 = vld [vmem:[#allocation3 + $0x18] sm:$0xff]
        %v7548 = vld [vmem:[#allocation3 + $0x20] sm:$0xff]
        %v7549 = vld [vmem:[#allocation3 + $0x28] sm:$0xff]
        %v7550 = vld [vmem:[#allocation3 + $0x30] sm:$0xff]
        %v7551 = vld [vmem:[#allocation3 + $0x38] sm:$0xff]
        %v7552 = vld [vmem:[#allocation3 + $0x40] sm:$0xff]
        %v7553 = vld [vmem:[#allocation3 + $0x48] sm:$0xff]
        %v7554 = vld [vmem:[#allocation3 + $0x50] sm:$0xff]
        %v7555 = vld [vmem:[#allocation3 + $0x58] sm:$0xff]
        %v7556 = vld [vmem:[#allocation3 + $0x60] sm:$0xff]
        %v7557 = vld [vmem:[#allocation3 + $0x68] sm:$0xff]
        %v7558 = vld [vmem:[#allocation3 + $0x70] sm:$0xff]
        %v7559 = vld [vmem:[#allocation3 + $0x78] sm:$0xff]
        %v7560 = vld [vmem:[#allocation3 + $0x80] sm:$0xff]
        %v7561 = vld [vmem:[#allocation3 + $0x88] sm:$0xff]
        %v7562 = vld [vmem:[#allocation3 + $0x90] sm:$0xff]
        %v7563 = vld [vmem:[#allocation3 + $0x98] sm:$0xff]
        %v7564 = vld [vmem:[#allocation3 + $0xa0] sm:$0xff]
        %v7565 = vld [vmem:[#allocation3 + $0xa8] sm:$0xff]
        %v7566 = vld [vmem:[#allocation3 + $0xb0] sm:$0xff]
        %v7567 = vld [vmem:[#allocation3 + $0xb8] sm:$0xff]
        %v7568 = vld [vmem:[#allocation3 + $0xc0] sm:$0xff]
        %v7569 = vld [vmem:[#allocation3 + $0xc8] sm:$0xff]
        %v7570 = vld [vmem:[#allocation3 + $0xd0] sm:$0xff]
        %v7571 = vld [vmem:[#allocation3 + $0xd8] sm:$0xff]
        %v7572 = vld [vmem:[#allocation3 + $0xe0] sm:$0xff]
        %v7573 = vld [vmem:[#allocation3 + $0xe8] sm:$0xff]
        %v7574 = vld [vmem:[#allocation3 + $0xf0] sm:$0xff]
        %v7575 = vld [vmem:[#allocation3 + $0xf8] sm:$0xff]
        %v7576 = vld [vmem:[#allocation3 + $0x100] sm:$0xff]
        %v7577 = vld [vmem:[#allocation3 + $0x108] sm:$0xff]
        %v7578 = vld [vmem:[#allocation3 + $0x110] sm:$0xff]
        %v7579 = vld [vmem:[#allocation3 + $0x118] sm:$0xff]
        %v7580 = vld [vmem:[#allocation3 + $0x120] sm:$0xff]
        %v7581 = vld [vmem:[#allocation3 + $0x128] sm:$0xff]
        %v7582 = vld [vmem:[#allocation3 + $0x130] sm:$0xff]
        %v7583 = vld [vmem:[#allocation3 + $0x138] sm:$0xff]
        %v7584 = vld [vmem:[#allocation3 + $0x140] sm:$0xff]
        %v7585 = vld [vmem:[#allocation3 + $0x148] sm:$0xff]
        %v7586 = vld [vmem:[#allocation3 + $0x150] sm:$0xff]
        %v7587 = vld [vmem:[#allocation3 + $0x158] sm:$0xff]
        %v7588 = vld [vmem:[#allocation3 + $0x160] sm:$0xff]
        %v7589 = vld [vmem:[#allocation3 + $0x168] sm:$0xff]
        %v7590 = vld [vmem:[#allocation3 + $0x170] sm:$0xff]
        %v7591 = vld [vmem:[#allocation3 + $0x178] sm:$0xff]
        %v7592 = vld [vmem:[#allocation3 + $0x180] sm:$0xff]
        %v7593 = vld [vmem:[#allocation3 + $0x188] sm:$0xff]
        %v7594 = vld [vmem:[#allocation3 + $0x190] sm:$0xff]
        %v7595 = vld [vmem:[#allocation3 + $0x198] sm:$0xff]
        %v7596 = vld [vmem:[#allocation3 + $0x1a0] sm:$0xff]
        %v7597 = vld [vmem:[#allocation3 + $0x1a8] sm:$0xff]
        %v7598 = vld [vmem:[#allocation3 + $0x1b0] sm:$0xff]
        %v7599 = vld [vmem:[#allocation3 + $0x1b8] sm:$0xff]
        %v7600 = vld [vmem:[#allocation3 + $0x1c0] sm:$0xff]
        %v7601 = vld [vmem:[#allocation3 + $0x1c8] sm:$0xff]
        %v7602 = vld [vmem:[#allocation3 + $0x1d0] sm:$0xff]
        %v7603 = vld [vmem:[#allocation3 + $0x1d8] sm:$0xff]
        %v7604 = vld [vmem:[#allocation3 + $0x1e0] sm:$0xff]
        %v7605 = vld [vmem:[#allocation3 + $0x1e8] sm:$0xff]
        %v7606 = vld [vmem:[#allocation3 + $0x1f0] sm:$0xff]
        %v7607 = vld [vmem:[#allocation3 + $0x1f8] sm:$0xff]
        %v7608 = vld [vmem:[#allocation3 + $0x200] sm:$0xff]
        %v7609 = vld [vmem:[#allocation3 + $0x208] sm:$0xff]
        %v7610 = vld [vmem:[#allocation3 + $0x210] sm:$0xff]
        %v7611 = vld [vmem:[#allocation3 + $0x218] sm:$0xff]
        %v7612 = vld [vmem:[#allocation3 + $0x220] sm:$0xff]
        %v7613 = vld [vmem:[#allocation3 + $0x228] sm:$0xff]
        %v7614 = vld [vmem:[#allocation3 + $0x230] sm:$0xff]
        %v7615 = vld [vmem:[#allocation3 + $0x238] sm:$0xff]
        %v7616 = vld [vmem:[#allocation3 + $0x240] sm:$0xff]
        %v7617 = vld [vmem:[#allocation3 + $0x248] sm:$0xff]
        %v7618 = vld [vmem:[#allocation3 + $0x250] sm:$0xff]
        %v7619 = vld [vmem:[#allocation3 + $0x258] sm:$0xff]
        %v7620 = vld [vmem:[#allocation3 + $0x260] sm:$0xff]
        %v7621 = vld [vmem:[#allocation3 + $0x268] sm:$0xff]
        %v7622 = vld [vmem:[#allocation3 + $0x270] sm:$0xff]
        %v7623 = vld [vmem:[#allocation3 + $0x278] sm:$0xff]
        %v7624 = vld [vmem:[#allocation3 + $0x280] sm:$0xff]
        %v7625 = vld [vmem:[#allocation3 + $0x288] sm:$0xff]
        %v7626 = vld [vmem:[#allocation3 + $0x290] sm:$0xff]
        %v7627 = vld [vmem:[#allocation3 + $0x298] sm:$0xff]
        %v7628 = vld [vmem:[#allocation3 + $0x2a0] sm:$0xff]
        %v7629 = vld [vmem:[#allocation3 + $0x2a8] sm:$0xff]
        %v7630 = vld [vmem:[#allocation3 + $0x2b0] sm:$0xff]
        %v7631 = vld [vmem:[#allocation3 + $0x2b8] sm:$0xff]
        %v7632 = vld [vmem:[#allocation3 + $0x2c0] sm:$0xff]
        %v7633 = vld [vmem:[#allocation3 + $0x2c8] sm:$0xff]
        %v7634 = vld [vmem:[#allocation3 + $0x2d0] sm:$0xff]
        %v7635 = vld [vmem:[#allocation3 + $0x2d8] sm:$0xff]
        %v7636 = vld [vmem:[#allocation3 + $0x2e0] sm:$0xff]
        %v7637 = vld [vmem:[#allocation3 + $0x2e8] sm:$0xff]
        %v7638 = vld [vmem:[#allocation3 + $0x2f0] sm:$0xff]
        %v7639 = vld [vmem:[#allocation3 + $0x2f8] sm:$0xff]
        %v7640 = vld [vmem:[#allocation3 + $0x300] sm:$0xff]
        %v7641 = vld [vmem:[#allocation3 + $0x308] sm:$0xff]
        %v7642 = vld [vmem:[#allocation3 + $0x310] sm:$0xff]
        %v7643 = vld [vmem:[#allocation3 + $0x318] sm:$0xff]
        %v7644 = vld [vmem:[#allocation3 + $0x320] sm:$0xff]
        %v7645 = vld [vmem:[#allocation3 + $0x328] sm:$0xff]
        %v7646 = vld [vmem:[#allocation3 + $0x330] sm:$0xff]
        %v7647 = vld [vmem:[#allocation3 + $0x338] sm:$0xff]
        %v7648 = vld [vmem:[#allocation3 + $0x340] sm:$0xff]
        %v7649 = vld [vmem:[#allocation3 + $0x348] sm:$0xff]
        %v7650 = vld [vmem:[#allocation3 + $0x350] sm:$0xff]
        %v7651 = vld [vmem:[#allocation3 + $0x358] sm:$0xff]
        %v7652 = vld [vmem:[#allocation3 + $0x360] sm:$0xff]
        %v7653 = vld [vmem:[#allocation3 + $0x368] sm:$0xff]
        %v7654 = vld [vmem:[#allocation3 + $0x370] sm:$0xff]
        %v7655 = vld [vmem:[#allocation3 + $0x378] sm:$0xff]
        %v7656 = vld [vmem:[#allocation3 + $0x380] sm:$0xff]
        %v7657 = vld [vmem:[#allocation3 + $0x388] sm:$0xff]
        %v7658 = vld [vmem:[#allocation3 + $0x390] sm:$0xff]
        %v7659 = vld [vmem:[#allocation3 + $0x398] sm:$0xff]
        %v7660 = vld [vmem:[#allocation3 + $0x3a0] sm:$0xff]
        %v7661 = vld [vmem:[#allocation3 + $0x3a8] sm:$0xff]
        %v7662 = vld [vmem:[#allocation3 + $0x3b0] sm:$0xff]
        %v7663 = vld [vmem:[#allocation3 + $0x3b8] sm:$0xff]
        %v7664 = vld [vmem:[#allocation3 + $0x3c0] sm:$0xff]
        %v7665 = vld [vmem:[#allocation3 + $0x3c8] sm:$0xff]
        %v7666 = vld [vmem:[#allocation3 + $0x3d0] sm:$0xff]
        %v7667 = vld [vmem:[#allocation3 + $0x3d8] sm:$0xff]
        %v7668 = vld [vmem:[#allocation3 + $0x3e0] sm:$0xff]
        %v7669 = vld [vmem:[#allocation3 + $0x3e8] sm:$0xff]
        %v7670 = vld [vmem:[#allocation3 + $0x3f0] sm:$0xff]
        %v7671 = vld [vmem:[#allocation3 + $0x3f8] sm:$0xff]
        %v7672 = vld [vmem:[#allocation3 + $0x400] sm:$0xff]
        %v7673 = vld [vmem:[#allocation3 + $0x408] sm:$0xff]
        %v7674 = vld [vmem:[#allocation3 + $0x410] sm:$0xff]
        %v7675 = vld [vmem:[#allocation3 + $0x418] sm:$0xff]
        %v7676 = vld [vmem:[#allocation3 + $0x420] sm:$0xff]
        %v7677 = vld [vmem:[#allocation3 + $0x428] sm:$0xff]
        %v7678 = vld [vmem:[#allocation3 + $0x430] sm:$0xff]
        %v7679 = vld [vmem:[#allocation3 + $0x438] sm:$0xff]
        %v7680 = vld [vmem:[#allocation3 + $0x440] sm:$0xff]
        %v7681 = vld [vmem:[#allocation3 + $0x448] sm:$0xff]
        %v7682 = vld [vmem:[#allocation3 + $0x450] sm:$0xff]
        %v7683 = vld [vmem:[#allocation3 + $0x458] sm:$0xff]
        %v7684 = vld [vmem:[#allocation3 + $0x460] sm:$0xff]
        %v7685 = vld [vmem:[#allocation3 + $0x468] sm:$0xff]
        %v7686 = vld [vmem:[#allocation3 + $0x470] sm:$0xff]
        %v7687 = vld [vmem:[#allocation3 + $0x478] sm:$0xff]
        %s7688 = scalar_lea.vmem %s12, 160
        %v7689 = vld [vmem:[%s7688] sm:$0xff]
        %v7690 = vld [vmem:[%s7688 + $0x8] sm:$0xff]
        %v7691 = vld [vmem:[%s7688 + $0x10] sm:$0xff]
        %v7692 = vld [vmem:[%s7688 + $0x18] sm:$0xff]
        %7694 = vset.pattern.permute.xlu0 0
        %7695 = vperm.xlu0 %7694, %v7689
        %v7696 = vpop.permute.xlu0 %7695
        %7699 = vset.pattern.permute.xlu0 0
        %7700 = vperm.xlu0 %7699, %v7690
        %v7701 = vpop.permute.xlu0 %7700
        %7704 = vset.pattern.permute.xlu0 0
        %7705 = vperm.xlu0 %7704, %v7691
        %v7706 = vpop.permute.xlu0 %7705
        %7709 = vset.pattern.permute.xlu0 0
        %7710 = vperm.xlu0 %7709, %v7692
        %v7711 = vpop.permute.xlu0 %7710
        %v7721 = vunpack.c.l.b16 %v7536
        %v7722 = vunpack.c.h.b16 %v7536
        %v7723 = vunpack.c.l.b16 %v7537
        %v7724 = vunpack.c.l.b16 %v7538
        %v7725 = vunpack.c.h.b16 %v7538
        %v7726 = vunpack.c.l.b16 %v7539
        %v7727 = vunpack.c.l.b16 %v7540
        %v7728 = vunpack.c.h.b16 %v7540
        %v7729 = vunpack.c.l.b16 %v7541
        %v7730 = vunpack.c.l.b16 %v7542
        %v7731 = vunpack.c.h.b16 %v7542
        %v7732 = vunpack.c.l.b16 %v7543
        %v7733 = vpack.c.b16 %v7724, %v7721
        %v7734 = vpack.c.b16 %v7725, %v7722
        %v7735 = vpack.c.b16 %v7726, %v7723
        %v7736 = vpack.c.b16 %v7730, %v7727
        %v7737 = vpack.c.b16 %v7731, %v7728
        %v7738 = vpack.c.b16 %v7732, %v7729
        %v7744 = vsel %vm1472, %v7735, 0
        %v7747 = vsel %vm1472, %v7738, 0
        %7749 = vmatprep.subr.bf16.mxu0 %v7545
        %7750 = vmatpush1.bf16.msra.mxu0 %v7544
        %7751 = vmatprep.subr.bf16.mxu0 %v7553
        %7752 = vmatpush1.bf16.msra.mxu0 %v7552
        %7753 = vmatprep.subr.bf16.mxu0 %v7561
        %7754 = vmatpush1.bf16.msra.mxu0 %v7560
        %7755 = vmatprep.subr.bf16.mxu0 %v7569
        %7756 = vmatpush1.bf16.msra.mxu0 %v7568
        %7757 = vmatprep.subr.bf16.mxu0 %v7577
        %7758 = vmatpush1.bf16.msra.mxu0 %v7576
        %7759 = vmatprep.subr.bf16.mxu0 %v7585
        %7760 = vmatpush1.bf16.msra.mxu0 %v7584
        %7761 = vmatprep.subr.bf16.mxu0 %v7593
        %7762 = vmatpush1.bf16.msra.mxu0 %v7592
        %7763 = vmatprep.subr.bf16.mxu0 %v7601
        %7764 = vmatpush1.bf16.msra.mxu0 %v7600
        %7765 = vmatprep.subr.bf16.mxu0 %v7609
        %7766 = vmatpush1.bf16.msra.mxu0 %v7608
        %7767 = vmatprep.subr.bf16.mxu0 %v7617
        %7768 = vmatpush1.bf16.msra.mxu0 %v7616
        %7769 = vmatprep.subr.bf16.mxu0 %v7625
        %7770 = vmatpush1.bf16.msra.mxu0 %v7624
        %7771 = vmatprep.subr.bf16.mxu0 %v7633
        %7772 = vmatpush1.bf16.msra.mxu0 %v7632
        %7773 = vmatprep.subr.bf16.mxu0 %v7641
        %7774 = vmatpush1.bf16.msra.mxu0 %v7640
        %7775 = vmatprep.subr.bf16.mxu0 %v7649
        %7776 = vmatpush1.bf16.msra.mxu0 %v7648
        %7777 = vmatprep.subr.bf16.mxu0 %v7657
        %7778 = vmatpush1.bf16.msra.mxu0 %v7656
        %7779 = vmatprep.subr.bf16.mxu0 %v7665
        %7780 = vmatpush1.bf16.msra.mxu0 %v7664
        %7781 = vmatprep.mubr.bf16.mxu0 %v7734
        %7782 = vmatmul.mubr.bf16.gmra.mrb[0].mxu0 %v7733
        %v7783 = vpop.f32.mrb[0].mxu0
        %v7784 = vadd.f32 %v7696, %v7783
        %v7785 = vpop.f32.mrb[0].mxu0
        %v7786 = vadd.f32 %v7696, %v7785
        %v7787 = vpop.f32.mrb[0].mxu0
        %v7788 = vadd.f32 %v7701, %v7787
        %v7789 = vpop.f32.mrb[0].mxu0
        %v7790 = vadd.f32 %v7701, %v7789
        %7791 = vmatprep.mubr.bf16.mxu0 %v7737
        %7792 = vmatmul.mubr.bf16.gmra.mrb[0].mxu0 %v7736
        %v7793 = vpop.f32.mrb[0].mxu0
        %v7794 = vadd.f32 %v7706, %v7793
        %v7795 = vpop.f32.mrb[0].mxu0
        %v7796 = vadd.f32 %v7706, %v7795
        %v7797 = vpop.f32.mrb[0].mxu0
        %v7798 = vadd.f32 %v7711, %v7797
        %v7799 = vpop.f32.mrb[0].mxu0
        %v7800 = vadd.f32 %v7711, %v7799
        %7801 = vdwg.mxu0
        %7802 = vmatprep.subr.bf16.mxu0 %v7673
        %7803 = vmatpush1.bf16.msra.mxu0 %v7672
        %7804 = vmatprep.subr.bf16.mxu0 %v7681
        %7805 = vmatpush1.bf16.msra.mxu0 %v7680
        %7806 = vmatprep.subr.bf16.mxu0 0
        %7807 = vmatpush1.bf16.msra.mxu0 0
        %7808 = vmatprep.subr.bf16.mxu0 0
        %7809 = vmatpush1.bf16.msra.mxu0 0
        %7810 = vmatprep.subr.bf16.mxu0 0
        %7811 = vmatpush1.bf16.msra.mxu0 0
        %7812 = vmatprep.subr.bf16.mxu0 0
        %7813 = vmatpush1.bf16.msra.mxu0 0
        %7814 = vmatprep.subr.bf16.mxu0 0
        %7815 = vmatpush1.bf16.msra.mxu0 0
        %7816 = vmatprep.subr.bf16.mxu0 0
        %7817 = vmatpush1.bf16.msra.mxu0 0
        %7818 = vmatprep.subr.bf16.mxu0 0
        %7819 = vmatpush1.bf16.msra.mxu0 0
        %7820 = vmatprep.subr.bf16.mxu0 0
        %7821 = vmatpush1.bf16.msra.mxu0 0
        %7822 = vmatprep.subr.bf16.mxu0 0
        %7823 = vmatpush1.bf16.msra.mxu0 0
        %7824 = vmatprep.subr.bf16.mxu0 0
        %7825 = vmatpush1.bf16.msra.mxu0 0
        %7826 = vmatprep.subr.bf16.mxu0 0
        %7827 = vmatpush1.bf16.msra.mxu0 0
        %7828 = vmatprep.subr.bf16.mxu0 0
        %7829 = vmatpush1.bf16.msra.mxu0 0
        %7830 = vmatprep.subr.bf16.mxu0 0
        %7831 = vmatpush1.bf16.msra.mxu0 0
        %7832 = vmatprep.subr.bf16.mxu0 0
        %7833 = vmatpush1.bf16.msra.mxu0 0
        %7834 = vmatprep.mubr.bf16.mxu0 0
        %7835 = vmatmul.mubr.bf16.gmra.mrb[0].mxu0 %v7744
        %v7836 = vpop.f32.mrb[0].mxu0
        %v7837 = vadd.f32 %v7784, %v7836
        %v7838 = vpop.f32.mrb[0].mxu0
        %v7839 = vadd.f32 %v7786, %v7838
        %v7840 = vpop.f32.mrb[0].mxu0
        %v7841 = vadd.f32 %v7788, %v7840
        %v7842 = vpop.f32.mrb[0].mxu0
        %v7843 = vadd.f32 %v7790, %v7842
        %7844 = vmatprep.mubr.bf16.mxu0 0
        %7845 = vmatmul.mubr.bf16.gmra.mrb[0].mxu0 %v7747
        %v7846 = vpop.f32.mrb[0].mxu0
        %v7847 = vadd.f32 %v7794, %v7846
        %v7848 = vpop.f32.mrb[0].mxu0
        %v7849 = vadd.f32 %v7796, %v7848
        %v7850 = vpop.f32.mrb[0].mxu0
        %v7851 = vadd.f32 %v7798, %v7850
        %v7852 = vpop.f32.mrb[0].mxu0
        %v7853 = vadd.f32 %v7800, %v7852
        %7854 = vdwg.mxu0
        %7855 = vmatprep.subr.bf16.mxu0 %v7547
        %7856 = vmatpush1.bf16.msra.mxu0 %v7546
        %7857 = vmatprep.subr.bf16.mxu0 %v7555
        %7858 = vmatpush1.bf16.msra.mxu0 %v7554
        %7859 = vmatprep.subr.bf16.mxu0 %v7563
        %7860 = vmatpush1.bf16.msra.mxu0 %v7562
        %7861 = vmatprep.subr.bf16.mxu0 %v7571
        %7862 = vmatpush1.bf16.msra.mxu0 %v7570
        %7863 = vmatprep.subr.bf16.mxu0 %v7579
        %7864 = vmatpush1.bf16.msra.mxu0 %v7578
        %7865 = vmatprep.subr.bf16.mxu0 %v7587
        %7866 = vmatpush1.bf16.msra.mxu0 %v7586
        %7867 = vmatprep.subr.bf16.mxu0 %v7595
        %7868 = vmatpush1.bf16.msra.mxu0 %v7594
        %7869 = vmatprep.subr.bf16.mxu0 %v7603
        %7870 = vmatpush1.bf16.msra.mxu0 %v7602
        %7871 = vmatprep.subr.bf16.mxu0 %v7611
        %7872 = vmatpush1.bf16.msra.mxu0 %v7610
        %7873 = vmatprep.subr.bf16.mxu0 %v7619
        %7874 = vmatpush1.bf16.msra.mxu0 %v7618
        %7875 = vmatprep.subr.bf16.mxu0 %v7627
        %7876 = vmatpush1.bf16.msra.mxu0 %v7626
        %7877 = vmatprep.subr.bf16.mxu0 %v7635
        %7878 = vmatpush1.bf16.msra.mxu0 %v7634
        %7879 = vmatprep.subr.bf16.mxu0 %v7643
        %7880 = vmatpush1.bf16.msra.mxu0 %v7642
        %7881 = vmatprep.subr.bf16.mxu0 %v7651
        %7882 = vmatpush1.bf16.msra.mxu0 %v7650
        %7883 = vmatprep.subr.bf16.mxu0 %v7659
        %7884 = vmatpush1.bf16.msra.mxu0 %v7658
        %7885 = vmatprep.subr.bf16.mxu0 %v7667
        %7886 = vmatpush1.bf16.msra.mxu0 %v7666
        %7887 = vmatprep.mubr.bf16.mxu0 %v7734
        %7888 = vmatmul.mubr.bf16.gmra.mrb[0].mxu0 %v7733
        %v7889 = vpop.f32.mrb[0].mxu0
        %v7890 = vadd.f32 %v7696, %v7889
        %v7891 = vpop.f32.mrb[0].mxu0
        %v7892 = vadd.f32 %v7696, %v7891
        %v7893 = vpop.f32.mrb[0].mxu0
        %v7894 = vadd.f32 %v7701, %v7893
        %v7895 = vpop.f32.mrb[0].mxu0
        %v7896 = vadd.f32 %v7701, %v7895
        %7897 = vmatprep.mubr.bf16.mxu0 %v7737
        %7898 = vmatmul.mubr.bf16.gmra.mrb[0].mxu0 %v7736
        %v7899 = vpop.f32.mrb[0].mxu0
        %v7900 = vadd.f32 %v7706, %v7899
        %v7901 = vpop.f32.mrb[0].mxu0
        %v7902 = vadd.f32 %v7706, %v7901
        %v7903 = vpop.f32.mrb[0].mxu0
        %v7904 = vadd.f32 %v7711, %v7903
        %v7905 = vpop.f32.mrb[0].mxu0
        %v7906 = vadd.f32 %v7711, %v7905
        %7907 = vdwg.mxu0
        %7908 = vmatprep.subr.bf16.mxu0 %v7675
        %7909 = vmatpush1.bf16.msra.mxu0 %v7674
        %7910 = vmatprep.subr.bf16.mxu0 %v7683
        %7911 = vmatpush1.bf16.msra.mxu0 %v7682
        %7912 = vmatprep.subr.bf16.mxu0 0
        %7913 = vmatpush1.bf16.msra.mxu0 0
        %7914 = vmatprep.subr.bf16.mxu0 0
        %7915 = vmatpush1.bf16.msra.mxu0 0
        %7916 = vmatprep.subr.bf16.mxu0 0
        %7917 = vmatpush1.bf16.msra.mxu0 0
        %7918 = vmatprep.subr.bf16.mxu0 0
        %7919 = vmatpush1.bf16.msra.mxu0 0
        %7920 = vmatprep.subr.bf16.mxu0 0
        %7921 = vmatpush1.bf16.msra.mxu0 0
        %7922 = vmatprep.subr.bf16.mxu0 0
        %7923 = vmatpush1.bf16.msra.mxu0 0
        %7924 = vmatprep.subr.bf16.mxu0 0
        %7925 = vmatpush1.bf16.msra.mxu0 0
        %7926 = vmatprep.subr.bf16.mxu0 0
        %7927 = vmatpush1.bf16.msra.mxu0 0
        %7928 = vmatprep.subr.bf16.mxu0 0
        %7929 = vmatpush1.bf16.msra.mxu0 0
        %7930 = vmatprep.subr.bf16.mxu0 0
        %7931 = vmatpush1.bf16.msra.mxu0 0
        %7932 = vmatprep.subr.bf16.mxu0 0
        %7933 = vmatpush1.bf16.msra.mxu0 0
        %7934 = vmatprep.subr.bf16.mxu0 0
        %7935 = vmatpush1.bf16.msra.mxu0 0
        %7936 = vmatprep.subr.bf16.mxu0 0
        %7937 = vmatpush1.bf16.msra.mxu0 0
        %7938 = vmatprep.subr.bf16.mxu0 0
        %7939 = vmatpush1.bf16.msra.mxu0 0
        %7940 = vmatprep.mubr.bf16.mxu0 0
        %7941 = vmatmul.mubr.bf16.gmra.mrb[0].mxu0 %v7744
        %v7942 = vpop.f32.mrb[0].mxu0
        %v7943 = vadd.f32 %v7890, %v7942
        %v7944 = vpop.f32.mrb[0].mxu0
        %v7945 = vadd.f32 %v7892, %v7944
        %v7946 = vpop.f32.mrb[0].mxu0
        %v7947 = vadd.f32 %v7894, %v7946
        %v7948 = vpop.f32.mrb[0].mxu0
        %v7949 = vadd.f32 %v7896, %v7948
        %7950 = vmatprep.mubr.bf16.mxu0 0
        %7951 = vmatmul.mubr.bf16.gmra.mrb[0].mxu0 %v7747
        %v7952 = vpop.f32.mrb[0].mxu0
        %v7953 = vadd.f32 %v7900, %v7952
        %v7954 = vpop.f32.mrb[0].mxu0
        %v7955 = vadd.f32 %v7902, %v7954
        %v7956 = vpop.f32.mrb[0].mxu0
        %v7957 = vadd.f32 %v7904, %v7956
        %v7958 = vpop.f32.mrb[0].mxu0
        %v7959 = vadd.f32 %v7906, %v7958
        %7960 = vdwg.mxu0
        %7961 = vmatprep.subr.bf16.mxu0 %v7549
        %7962 = vmatpush1.bf16.msra.mxu0 %v7548
        %7963 = vmatprep.subr.bf16.mxu0 %v7557
        %7964 = vmatpush1.bf16.msra.mxu0 %v7556
        %7965 = vmatprep.subr.bf16.mxu0 %v7565
        %7966 = vmatpush1.bf16.msra.mxu0 %v7564
        %7967 = vmatprep.subr.bf16.mxu0 %v7573
        %7968 = vmatpush1.bf16.msra.mxu0 %v7572
        %7969 = vmatprep.subr.bf16.mxu0 %v7581
        %7970 = vmatpush1.bf16.msra.mxu0 %v7580
        %7971 = vmatprep.subr.bf16.mxu0 %v7589
        %7972 = vmatpush1.bf16.msra.mxu0 %v7588
        %7973 = vmatprep.subr.bf16.mxu0 %v7597
        %7974 = vmatpush1.bf16.msra.mxu0 %v7596
        %7975 = vmatprep.subr.bf16.mxu0 %v7605
        %7976 = vmatpush1.bf16.msra.mxu0 %v7604
        %7977 = vmatprep.subr.bf16.mxu0 %v7613
        %7978 = vmatpush1.bf16.msra.mxu0 %v7612
        %7979 = vmatprep.subr.bf16.mxu0 %v7621
        %7980 = vmatpush1.bf16.msra.mxu0 %v7620
        %7981 = vmatprep.subr.bf16.mxu0 %v7629
        %7982 = vmatpush1.bf16.msra.mxu0 %v7628
        %7983 = vmatprep.subr.bf16.mxu0 %v7637
        %7984 = vmatpush1.bf16.msra.mxu0 %v7636
        %7985 = vmatprep.subr.bf16.mxu0 %v7645
        %7986 = vmatpush1.bf16.msra.mxu0 %v7644
        %7987 = vmatprep.subr.bf16.mxu0 %v7653
        %7988 = vmatpush1.bf16.msra.mxu0 %v7652
        %7989 = vmatprep.subr.bf16.mxu0 %v7661
        %7990 = vmatpush1.bf16.msra.mxu0 %v7660
        %7991 = vmatprep.subr.bf16.mxu0 %v7669
        %7992 = vmatpush1.bf16.msra.mxu0 %v7668
        %7993 = vmatprep.mubr.bf16.mxu0 %v7734
        %7994 = vmatmul.mubr.bf16.gmra.mrb[0].mxu0 %v7733
        %v7995 = vpop.f32.mrb[0].mxu0
        %v7996 = vadd.f32 %v7696, %v7995
        %v7997 = vpop.f32.mrb[0].mxu0
        %v7998 = vadd.f32 %v7696, %v7997
        %v7999 = vpop.f32.mrb[0].mxu0
        %v8000 = vadd.f32 %v7701, %v7999
        %v8001 = vpop.f32.mrb[0].mxu0
        %v8002 = vadd.f32 %v7701, %v8001
        %8003 = vmatprep.mubr.bf16.mxu0 %v7737
        %8004 = vmatmul.mubr.bf16.gmra.mrb[0].mxu0 %v7736
        %v8005 = vpop.f32.mrb[0].mxu0
        %v8006 = vadd.f32 %v7706, %v8005
        %v8007 = vpop.f32.mrb[0].mxu0
        %v8008 = vadd.f32 %v7706, %v8007
        %v8009 = vpop.f32.mrb[0].mxu0
        %v8010 = vadd.f32 %v7711, %v8009
        %v8011 = vpop.f32.mrb[0].mxu0
        %v8012 = vadd.f32 %v7711, %v8011
        %8013 = vdwg.mxu0
        %8014 = vmatprep.subr.bf16.mxu0 %v7677
        %8015 = vmatpush1.bf16.msra.mxu0 %v7676
        %8016 = vmatprep.subr.bf16.mxu0 %v7685
        %8017 = vmatpush1.bf16.msra.mxu0 %v7684
        %8018 = vmatprep.subr.bf16.mxu0 0
        %8019 = vmatpush1.bf16.msra.mxu0 0
        %8020 = vmatprep.subr.bf16.mxu0 0
        %8021 = vmatpush1.bf16.msra.mxu0 0
        %8022 = vmatprep.subr.bf16.mxu0 0
        %8023 = vmatpush1.bf16.msra.mxu0 0
        %8024 = vmatprep.subr.bf16.mxu0 0
        %8025 = vmatpush1.bf16.msra.mxu0 0
        %8026 = vmatprep.subr.bf16.mxu0 0
        %8027 = vmatpush1.bf16.msra.mxu0 0
        %8028 = vmatprep.subr.bf16.mxu0 0
        %8029 = vmatpush1.bf16.msra.mxu0 0
        %8030 = vmatprep.subr.bf16.mxu0 0
        %8031 = vmatpush1.bf16.msra.mxu0 0
        %8032 = vmatprep.subr.bf16.mxu0 0
        %8033 = vmatpush1.bf16.msra.mxu0 0
        %8034 = vmatprep.subr.bf16.mxu0 0
        %8035 = vmatpush1.bf16.msra.mxu0 0
        %8036 = vmatprep.subr.bf16.mxu0 0
        %8037 = vmatpush1.bf16.msra.mxu0 0
        %8038 = vmatprep.subr.bf16.mxu0 0
        %8039 = vmatpush1.bf16.msra.mxu0 0
        %8040 = vmatprep.subr.bf16.mxu0 0
        %8041 = vmatpush1.bf16.msra.mxu0 0
        %8042 = vmatprep.subr.bf16.mxu0 0
        %8043 = vmatpush1.bf16.msra.mxu0 0
        %8044 = vmatprep.subr.bf16.mxu0 0
        %8045 = vmatpush1.bf16.msra.mxu0 0
        %8046 = vmatprep.mubr.bf16.mxu0 0
        %8047 = vmatmul.mubr.bf16.gmra.mrb[0].mxu0 %v7744
        %v8048 = vpop.f32.mrb[0].mxu0
        %v8049 = vadd.f32 %v7996, %v8048
        %v8050 = vpop.f32.mrb[0].mxu0
        %v8051 = vadd.f32 %v7998, %v8050
        %v8052 = vpop.f32.mrb[0].mxu0
        %v8053 = vadd.f32 %v8000, %v8052
        %v8054 = vpop.f32.mrb[0].mxu0
        %v8055 = vadd.f32 %v8002, %v8054
        %8056 = vmatprep.mubr.bf16.mxu0 0
        %8057 = vmatmul.mubr.bf16.gmra.mrb[0].mxu0 %v7747
        %v8058 = vpop.f32.mrb[0].mxu0
        %v8059 = vadd.f32 %v8006, %v8058
        %v8060 = vpop.f32.mrb[0].mxu0
        %v8061 = vadd.f32 %v8008, %v8060
        %v8062 = vpop.f32.mrb[0].mxu0
        %v8063 = vadd.f32 %v8010, %v8062
        %v8064 = vpop.f32.mrb[0].mxu0
        %v8065 = vadd.f32 %v8012, %v8064
        %8066 = vdwg.mxu0
        %8067 = vmatprep.subr.bf16.mxu0 %v7551
        %8068 = vmatpush1.bf16.msra.mxu0 %v7550
        %8069 = vmatprep.subr.bf16.mxu0 %v7559
        %8070 = vmatpush1.bf16.msra.mxu0 %v7558
        %8071 = vmatprep.subr.bf16.mxu0 %v7567
        %8072 = vmatpush1.bf16.msra.mxu0 %v7566
        %8073 = vmatprep.subr.bf16.mxu0 %v7575
        %8074 = vmatpush1.bf16.msra.mxu0 %v7574
        %8075 = vmatprep.subr.bf16.mxu0 %v7583
        %8076 = vmatpush1.bf16.msra.mxu0 %v7582
        %8077 = vmatprep.subr.bf16.mxu0 %v7591
        %8078 = vmatpush1.bf16.msra.mxu0 %v7590
        %8079 = vmatprep.subr.bf16.mxu0 %v7599
        %8080 = vmatpush1.bf16.msra.mxu0 %v7598
        %8081 = vmatprep.subr.bf16.mxu0 %v7607
        %8082 = vmatpush1.bf16.msra.mxu0 %v7606
        %8083 = vmatprep.subr.bf16.mxu0 %v7615
        %8084 = vmatpush1.bf16.msra.mxu0 %v7614
        %8085 = vmatprep.subr.bf16.mxu0 %v7623
        %8086 = vmatpush1.bf16.msra.mxu0 %v7622
        %8087 = vmatprep.subr.bf16.mxu0 %v7631
        %8088 = vmatpush1.bf16.msra.mxu0 %v7630
        %8089 = vmatprep.subr.bf16.mxu0 %v7639
        %8090 = vmatpush1.bf16.msra.mxu0 %v7638
        %8091 = vmatprep.subr.bf16.mxu0 %v7647
        %8092 = vmatpush1.bf16.msra.mxu0 %v7646
        %8093 = vmatprep.subr.bf16.mxu0 %v7655
        %8094 = vmatpush1.bf16.msra.mxu0 %v7654
        %8095 = vmatprep.subr.bf16.mxu0 %v7663
        %8096 = vmatpush1.bf16.msra.mxu0 %v7662
        %8097 = vmatprep.subr.bf16.mxu0 %v7671
        %8098 = vmatpush1.bf16.msra.mxu0 %v7670
        %8099 = vmatprep.mubr.bf16.mxu0 %v7734
        %8100 = vmatmul.mubr.bf16.gmra.mrb[0].mxu0 %v7733
        %v8101 = vpop.f32.mrb[0].mxu0
        %v8102 = vadd.f32 %v7696, %v8101
        %v8103 = vpop.f32.mrb[0].mxu0
        %v8104 = vadd.f32 %v7696, %v8103
        %v8105 = vpop.f32.mrb[0].mxu0
        %v8106 = vadd.f32 %v7701, %v8105
        %v8107 = vpop.f32.mrb[0].mxu0
        %v8108 = vadd.f32 %v7701, %v8107
        %8109 = vmatprep.mubr.bf16.mxu0 %v7737
        %8110 = vmatmul.mubr.bf16.gmra.mrb[0].mxu0 %v7736
        %v8111 = vpop.f32.mrb[0].mxu0
        %v8112 = vadd.f32 %v7706, %v8111
        %v8113 = vpop.f32.mrb[0].mxu0
        %v8114 = vadd.f32 %v7706, %v8113
        %v8115 = vpop.f32.mrb[0].mxu0
        %v8116 = vadd.f32 %v7711, %v8115
        %v8117 = vpop.f32.mrb[0].mxu0
        %v8118 = vadd.f32 %v7711, %v8117
        %8119 = vdwg.mxu0
        %8120 = vmatprep.subr.bf16.mxu0 %v7679
        %8121 = vmatpush1.bf16.msra.mxu0 %v7678
        %8122 = vmatprep.subr.bf16.mxu0 %v7687
        %8123 = vmatpush1.bf16.msra.mxu0 %v7686
        %8124 = vmatprep.subr.bf16.mxu0 0
        %8125 = vmatpush1.bf16.msra.mxu0 0
        %8126 = vmatprep.subr.bf16.mxu0 0
        %8127 = vmatpush1.bf16.msra.mxu0 0
        %8128 = vmatprep.subr.bf16.mxu0 0
        %8129 = vmatpush1.bf16.msra.mxu0 0
        %8130 = vmatprep.subr.bf16.mxu0 0
        %8131 = vmatpush1.bf16.msra.mxu0 0
        %8132 = vmatprep.subr.bf16.mxu0 0
        %8133 = vmatpush1.bf16.msra.mxu0 0
        %8134 = vmatprep.subr.bf16.mxu0 0
        %8135 = vmatpush1.bf16.msra.mxu0 0
        %8136 = vmatprep.subr.bf16.mxu0 0
        %8137 = vmatpush1.bf16.msra.mxu0 0
        %8138 = vmatprep.subr.bf16.mxu0 0
        %8139 = vmatpush1.bf16.msra.mxu0 0
        %8140 = vmatprep.subr.bf16.mxu0 0
        %8141 = vmatpush1.bf16.msra.mxu0 0
        %8142 = vmatprep.subr.bf16.mxu0 0
        %8143 = vmatpush1.bf16.msra.mxu0 0
        %8144 = vmatprep.subr.bf16.mxu0 0
        %8145 = vmatpush1.bf16.msra.mxu0 0
        %8146 = vmatprep.subr.bf16.mxu0 0
        %8147 = vmatpush1.bf16.msra.mxu0 0
        %8148 = vmatprep.subr.bf16.mxu0 0
        %8149 = vmatpush1.bf16.msra.mxu0 0
        %8150 = vmatprep.subr.bf16.mxu0 0
        %8151 = vmatpush1.bf16.msra.mxu0 0
        %8152 = vmatprep.mubr.bf16.mxu0 0
        %8153 = vmatmul.mubr.bf16.gmra.mrb[0].mxu0 %v7744
        %v8154 = vpop.f32.mrb[0].mxu0
        %v8155 = vadd.f32 %v8102, %v8154
        %v8156 = vpop.f32.mrb[0].mxu0
        %v8157 = vadd.f32 %v8104, %v8156
        %v8158 = vpop.f32.mrb[0].mxu0
        %v8159 = vadd.f32 %v8106, %v8158
        %v8160 = vpop.f32.mrb[0].mxu0
        %v8161 = vadd.f32 %v8108, %v8160
        %8162 = vmatprep.mubr.bf16.mxu0 0
        %8163 = vmatmul.mubr.bf16.gmra.mrb[0].mxu0 %v7747
        %v8164 = vpop.f32.mrb[0].mxu0
        %v8165 = vadd.f32 %v8112, %v8164
        %v8166 = vpop.f32.mrb[0].mxu0
        %v8167 = vadd.f32 %v8114, %v8166
        %v8168 = vpop.f32.mrb[0].mxu0
        %v8169 = vadd.f32 %v8116, %v8168
        %v8170 = vpop.f32.mrb[0].mxu0
        %v8171 = vadd.f32 %v8118, %v8170
        %8172 = vdwg.mxu0
        %v8173 = vmax.f32 %v7837, 0.0
        %v8174 = vmax.f32 %v7839, 0.0
        %v8175 = vmax.f32 %v7943, 0.0
        %v8176 = vmax.f32 %v7945, 0.0
        %v8177 = vmax.f32 %v8049, 0.0
        %v8178 = vmax.f32 %v8051, 0.0
        %v8179 = vmax.f32 %v8155, 0.0
        %v8180 = vmax.f32 %v8157, 0.0
        %v8181 = vmax.f32 %v7841, 0.0
        %v8182 = vmax.f32 %v7843, 0.0
        %v8183 = vmax.f32 %v7947, 0.0
        %v8184 = vmax.f32 %v7949, 0.0
        %v8185 = vmax.f32 %v8053, 0.0
        %v8186 = vmax.f32 %v8055, 0.0
        %v8187 = vmax.f32 %v8159, 0.0
        %v8188 = vmax.f32 %v8161, 0.0
        %v8189 = vmax.f32 %v7847, 0.0
        %v8190 = vmax.f32 %v7849, 0.0
        %v8191 = vmax.f32 %v7953, 0.0
        %v8192 = vmax.f32 %v7955, 0.0
        %v8193 = vmax.f32 %v8059, 0.0
        %v8194 = vmax.f32 %v8061, 0.0
        %v8195 = vmax.f32 %v8165, 0.0
        %v8196 = vmax.f32 %v8167, 0.0
        %v8197 = vmax.f32 %v7851, 0.0
        %v8198 = vmax.f32 %v7853, 0.0
        %v8199 = vmax.f32 %v7957, 0.0
        %v8200 = vmax.f32 %v7959, 0.0
        %v8201 = vmax.f32 %v8063, 0.0
        %v8202 = vmax.f32 %v8065, 0.0
        %v8203 = vmax.f32 %v8169, 0.0
        %v8204 = vmax.f32 %v8171, 0.0
        %s8205 = scalar_lea.vmem %s13, 96
        %v8206 = vld [vmem:[%s8205] sm:$0xff]
        %v8207 = vld [vmem:[%s8205 + $0x8] sm:$0xff]
        %v8208 = vld [vmem:[%s8205 + $0x10] sm:$0xff]
        %v8209 = vld [vmem:[%s8205 + $0x18] sm:$0xff]
        %8211 = vset.pattern.permute.xlu0 0
        %8212 = vperm.xlu0 %8211, %v8206
        %v8213 = vpop.permute.xlu0 %8212
        %8216 = vset.pattern.permute.xlu0 0
        %8217 = vperm.xlu0 %8216, %v8207
        %v8218 = vpop.permute.xlu0 %8217
        %8221 = vset.pattern.permute.xlu0 0
        %8222 = vperm.xlu0 %8221, %v8208
        %v8223 = vpop.permute.xlu0 %8222
        %8226 = vset.pattern.permute.xlu0 0
        %8227 = vperm.xlu0 %8226, %v8209
        %v8228 = vpop.permute.xlu0 %8227
        %v8230 = vmul.f32 %v8173, %v8213
        %v8231 = vmul.f32 %v8174, %v8213
        %v8232 = vmul.f32 %v8175, %v8213
        %v8233 = vmul.f32 %v8176, %v8213
        %v8234 = vmul.f32 %v8177, %v8213
        %v8235 = vmul.f32 %v8178, %v8213
        %v8236 = vmul.f32 %v8179, %v8213
        %v8237 = vmul.f32 %v8180, %v8213
        %v8238 = vmul.f32 %v8181, %v8218
        %v8239 = vmul.f32 %v8182, %v8218
        %v8240 = vmul.f32 %v8183, %v8218
        %v8241 = vmul.f32 %v8184, %v8218
        %v8242 = vmul.f32 %v8185, %v8218
        %v8243 = vmul.f32 %v8186, %v8218
        %v8244 = vmul.f32 %v8187, %v8218
        %v8245 = vmul.f32 %v8188, %v8218
        %v8246 = vmul.f32 %v8189, %v8223
        %v8247 = vmul.f32 %v8190, %v8223
        %v8248 = vmul.f32 %v8191, %v8223
        %v8249 = vmul.f32 %v8192, %v8223
        %v8250 = vmul.f32 %v8193, %v8223
        %v8251 = vmul.f32 %v8194, %v8223
        %v8252 = vmul.f32 %v8195, %v8223
        %v8253 = vmul.f32 %v8196, %v8223
        %v8254 = vmul.f32 %v8197, %v8228
        %v8255 = vmul.f32 %v8198, %v8228
        %v8256 = vmul.f32 %v8199, %v8228
        %v8257 = vmul.f32 %v8200, %v8228
        %v8258 = vmul.f32 %v8201, %v8228
        %v8259 = vmul.f32 %v8202, %v8228
        %v8260 = vmul.f32 %v8203, %v8228
        %v8261 = vmul.f32 %v8204, %v8228
        %v8262 = vadd.f32 %v8230, %v8238
        %v8263 = vadd.f32 %v8262, %v8246
        %v8264 = vadd.f32 %v8263, %v8254
        %v8265 = vrot.slane %v8264, 4
        %v8266 = vadd.f32 %v8264, %v8265
        %v8267 = vrot.slane %v8266, 2
        %v8268 = vadd.f32 %v8266, %v8267
        %v8269 = vrot.slane %v8268, 1
        %v8270 = vadd.f32 %v8268, %v8269
        %v8271 = vadd.f32 %v8231, %v8239
        %v8272 = vadd.f32 %v8271, %v8247
        %v8273 = vadd.f32 %v8272, %v8255
        %v8274 = vrot.slane %v8273, 4
        %v8275 = vadd.f32 %v8273, %v8274
        %v8276 = vrot.slane %v8275, 2
        %v8277 = vadd.f32 %v8275, %v8276
        %v8278 = vrot.slane %v8277, 1
        %v8279 = vadd.f32 %v8277, %v8278
        %v8280 = vadd.f32 %v8232, %v8240
        %v8281 = vadd.f32 %v8280, %v8248
        %v8282 = vadd.f32 %v8281, %v8256
        %v8283 = vrot.slane %v8282, 4
        %v8284 = vadd.f32 %v8282, %v8283
        %v8285 = vrot.slane %v8284, 2
        %v8286 = vadd.f32 %v8284, %v8285
        %v8287 = vrot.slane %v8286, 1
        %v8288 = vadd.f32 %v8286, %v8287
        %v8289 = vadd.f32 %v8233, %v8241
        %v8290 = vadd.f32 %v8289, %v8249
        %v8291 = vadd.f32 %v8290, %v8257
        %v8292 = vrot.slane %v8291, 4
        %v8293 = vadd.f32 %v8291, %v8292
        %v8294 = vrot.slane %v8293, 2
        %v8295 = vadd.f32 %v8293, %v8294
        %v8296 = vrot.slane %v8295, 1
        %v8297 = vadd.f32 %v8295, %v8296
        %v8298 = vadd.f32 %v8234, %v8242
        %v8299 = vadd.f32 %v8298, %v8250
        %v8300 = vadd.f32 %v8299, %v8258
        %v8301 = vrot.slane %v8300, 4
        %v8302 = vadd.f32 %v8300, %v8301
        %v8303 = vrot.slane %v8302, 2
        %v8304 = vadd.f32 %v8302, %v8303
        %v8305 = vrot.slane %v8304, 1
        %v8306 = vadd.f32 %v8304, %v8305
        %v8307 = vadd.f32 %v8235, %v8243
        %v8308 = vadd.f32 %v8307, %v8251
        %v8309 = vadd.f32 %v8308, %v8259
        %v8310 = vrot.slane %v8309, 4
        %v8311 = vadd.f32 %v8309, %v8310
        %v8312 = vrot.slane %v8311, 2
        %v8313 = vadd.f32 %v8311, %v8312
        %v8314 = vrot.slane %v8313, 1
        %v8315 = vadd.f32 %v8313, %v8314
        %v8316 = vadd.f32 %v8236, %v8244
        %v8317 = vadd.f32 %v8316, %v8252
        %v8318 = vadd.f32 %v8317, %v8260
        %v8319 = vrot.slane %v8318, 4
        %v8320 = vadd.f32 %v8318, %v8319
        %v8321 = vrot.slane %v8320, 2
        %v8322 = vadd.f32 %v8320, %v8321
        %v8323 = vrot.slane %v8322, 1
        %v8324 = vadd.f32 %v8322, %v8323
        %v8325 = vadd.f32 %v8237, %v8245
        %v8326 = vadd.f32 %v8325, %v8253
        %v8327 = vadd.f32 %v8326, %v8261
        %v8328 = vrot.slane %v8327, 4
        %v8329 = vadd.f32 %v8327, %v8328
        %v8330 = vrot.slane %v8329, 2
        %v8331 = vadd.f32 %v8329, %v8330
        %v8332 = vrot.slane %v8331, 1
        %v8333 = vadd.f32 %v8331, %v8332
        %s8334 = scalar_lea.vmem %s14, 3
        %v8335 = vld [vmem:[%s8334] sm:$0x1]
        %8337 = vset.pattern.permute.xlu0 0
        %8338 = vperm.xlu0 %8337, %v8335
        %v8339 = vpop.permute.xlu0 %8338
        %v8341 = vlaneseq
        %v8342 = vshrl.u32 %v8341, 7
        %v8343 = vsub.s32 0, %v8342
        %v8344 = vrot.slane %v8339, %v8343
        %v8345 = vadd.f32 %v8270, %v8344
        %v8346 = vadd.f32 %v8279, %v8344
        %v8347 = vadd.f32 %v8288, %v8344
        %v8348 = vadd.f32 %v8297, %v8344
        %v8349 = vadd.f32 %v8306, %v8344
        %v8350 = vadd.f32 %v8315, %v8344
        %v8351 = vadd.f32 %v8324, %v8344
        %v8352 = vadd.f32 %v8333, %v8344
        %8353 = vst [vmem:[%s891] sm:$0xff] %v8173
        %8354 = vst [vmem:[%s891 + $0x8] sm:$0xff] %v8174
        %8355 = vst [vmem:[%s891 + $0x10] sm:$0xff] %v8175
        %8356 = vst [vmem:[%s891 + $0x18] sm:$0xff] %v8176
        %8357 = vst [vmem:[%s891 + $0x20] sm:$0xff] %v8177
        %8358 = vst [vmem:[%s891 + $0x28] sm:$0xff] %v8178
        %8359 = vst [vmem:[%s891 + $0x30] sm:$0xff] %v8179
        %8360 = vst [vmem:[%s891 + $0x38] sm:$0xff] %v8180
        %8361 = vst [vmem:[%s891 + $0x40] sm:$0xff] %v8181
        %8362 = vst [vmem:[%s891 + $0x48] sm:$0xff] %v8182
        %8363 = vst [vmem:[%s891 + $0x50] sm:$0xff] %v8183
        %8364 = vst [vmem:[%s891 + $0x58] sm:$0xff] %v8184
        %8365 = vst [vmem:[%s891 + $0x60] sm:$0xff] %v8185
        %8366 = vst [vmem:[%s891 + $0x68] sm:$0xff] %v8186
        %8367 = vst [vmem:[%s891 + $0x70] sm:$0xff] %v8187
        %8368 = vst [vmem:[%s891 + $0x78] sm:$0xff] %v8188
        %8369 = vst [vmem:[%s891 + $0x80] sm:$0xff] %v8189
        %8370 = vst [vmem:[%s891 + $0x88] sm:$0xff] %v8190
        %8371 = vst [vmem:[%s891 + $0x90] sm:$0xff] %v8191
        %8372 = vst [vmem:[%s891 + $0x98] sm:$0xff] %v8192
        %8373 = vst [vmem:[%s891 + $0xa0] sm:$0xff] %v8193
        %8374 = vst [vmem:[%s891 + $0xa8] sm:$0xff] %v8194
        %8375 = vst [vmem:[%s891 + $0xb0] sm:$0xff] %v8195
        %8376 = vst [vmem:[%s891 + $0xb8] sm:$0xff] %v8196
        %8377 = vst [vmem:[%s891 + $0xc0] sm:$0xff] %v8197
        %8378 = vst [vmem:[%s891 + $0xc8] sm:$0xff] %v8198
        %8379 = vst [vmem:[%s891 + $0xd0] sm:$0xff] %v8199
        %8380 = vst [vmem:[%s891 + $0xd8] sm:$0xff] %v8200
        %8381 = vst [vmem:[%s891 + $0xe0] sm:$0xff] %v8201
        %8382 = vst [vmem:[%s891 + $0xe8] sm:$0xff] %v8202
        %8383 = vst [vmem:[%s891 + $0xf0] sm:$0xff] %v8203
        %8384 = vst [vmem:[%s891 + $0xf8] sm:$0xff] %v8204
        %v8393 = vcombine.low %v8345, %v8346
        %v8394 = vcombine.low %v8347, %v8348
        %v8395 = vcombine.low %v8349, %v8350
        %v8396 = vcombine.low %v8351, %v8352
        %v8398 = vunpack.c.l.s4 1966171168
        %v8399 = vunpack.c.0.s8 %v8398
        %v8400 = vlaneseq
        %v8401 = vshrl.u32 %v8400, 7
        %v8402 = vsub.s32 %v8399, %v8401
        %v8403 = vrot.slane %v8393, %v8402
        %v8405 = vunpack.c.l.s4 1966171168
        %v8406 = vunpack.c.0.s8 %v8405
        %v8407 = vlaneseq
        %v8408 = vshrl.u32 %v8407, 7
        %v8409 = vsub.s32 %v8406, %v8408
        %v8410 = vrot.slane %v8394, %v8409
        %v8412 = vunpack.c.l.s4 1966171168
        %v8413 = vunpack.c.0.s8 %v8412
        %v8414 = vlaneseq
        %v8415 = vshrl.u32 %v8414, 7
        %v8416 = vsub.s32 %v8413, %v8415
        %v8417 = vrot.slane %v8395, %v8416
        %v8419 = vunpack.c.l.s4 1966171168
        %v8420 = vunpack.c.0.s8 %v8419
        %v8421 = vlaneseq
        %v8422 = vshrl.u32 %v8421, 7
        %v8423 = vsub.s32 %v8420, %v8422
        %v8424 = vrot.slane %v8396, %v8423
        %v8425 = vcombine.low %v8403, %v8410
        %v8426 = vcombine.low %v8417, %v8424
        %v8428 = vunpack.c.l.s4 1966171168
        %v8429 = vunpack.c.0.s8 %v8428
        %v8430 = vlaneseq
        %v8431 = vshrl.u32 %v8430, 7
        %v8432 = vsub.s32 %v8429, %v8431
        %v8433 = vrot.slane %v8425, %v8432
        %v8435 = vunpack.c.l.s4 1966171168
        %v8436 = vunpack.c.0.s8 %v8435
        %v8437 = vlaneseq
        %v8438 = vshrl.u32 %v8437, 7
        %v8439 = vsub.s32 %v8436, %v8438
        %v8440 = vrot.slane %v8426, %v8439
        %v8441 = vcombine.low %v8433, %v8440
        %8443 = vst [vmem:[%s919] sm:$0xff] %v8441
        %s8444 = sand.u32 %s439, 1
        %s8445 = scalar_lea.sflag [#allocation6], %s8444
        %s8446 = sand.u32 %s439, 1
        %s8447 = smul.addr %s8446, 256
        %s8448 = scalar_lea.vmem [#allocation16], %s8447
        %s8449 = sand.u32 %s54, 1
        %s8450 = scalar_lea.sflag [#allocation18], %s8449
        %s8451 = sand.u32 %s465, 1
        %s8452 = smul.addr %s8451, 64
        %s8453 = scalar_lea.vmem [#allocation17], %s8452
        %s8454 = sand.u32 %s54, 1
        %s8455 = scalar_lea.sflag [#allocation18], %s8454
        %s8456 = sand.u32 %s491, 1
        %s8457 = smul.addr %s8456, 32
        %s8458 = scalar_lea.vmem [#allocation19], %s8457
        %p8459 = scmp.lt.s32.totalorder %s54, 1
        %s8460 = scalar_select %p8459, %s54, 1
        %s8461 = smul.addr %s8460, 4
        %s8462 = smul.addr %s8461, 8
        %s8463 = scalar_lea.vmem %s20, %s8462
        %s8464 = sand.u32 %s54, 1
        %s8465 = scalar_lea.sflag [#allocation21], %s8464
        %s8466 = sand.u32 %s543, 1
        %s8467 = smul.addr %s8466, 8
        %s8468 = scalar_lea.vmem [#allocation20], %s8467
        %s8469 = sand.u32 %s54, 1
        %s8470 = scalar_lea.sflag [#allocation21], %s8469
        %s8471 = sand.u32 %s569, 1
        %s8472 = smul.addr %s8471, 2
        %s8473 = scalar_lea.vmem [#allocation22], %s8472
        %s8474 = sand.u32 %s54, 1
        %s8475 = scalar_lea.sflag [#allocation24], %s8474
        %s8476 = sand.u32 %s595, 1
        %s8477 = scalar_lea.vmem [#allocation23], %s8476
        %s8478 = sand.u32 %s54, 1
        %s8479 = scalar_lea.sflag [#allocation24], %s8478
        %s8480 = sand.u32 %s621, 1
        %s8481 = scalar_lea.vmem [#allocation25], %s8480
        // Predicated region
        $region117: #{tpu_custom_call.1} parent=87 // pred_check
          %p8482 = pneg %p449
        $region118: #{tpu_custom_call.1} parent=87 // pred_check_branch
          %8484 = sbr.rel (%p8482) target = $region120
        $region119: #{tpu_custom_call.1} parent=87 // pred_region
          %s8486 = ssub.s32 4096, 4096
          %8487 = vsyncadd %s8445, %s8486
          %s8488 = smul.addr %s54, 32
          %s8489 = smul.addr %s8488, 128
          %s8490 = scalar_lea.hbm %s17, %s8489
          %s8491 = sshll.u32 %s8448, 4
          %s8492 = int_to_ptr.vmem [resolvable:$true] %s8491
          %8497 = dma.vmem_to_hbm [thread:$0]  %s8492, 4096, %s8490, %s8445, 1024, 1024, 64
        $region120: #{tpu_custom_call.1} parent=87 // pred_fallthru
          _
        // Predicated region
        $region121: #{tpu_custom_call.1} parent=87 // pred_check
          %p8498 = pneg %p475
        $region122: #{tpu_custom_call.1} parent=87 // pred_check_branch
          %8500 = sbr.rel (%p8498) target = $region124
        $region123: #{tpu_custom_call.1} parent=87 // pred_region
          %s8502 = ssub.s32 1024, 1024
          %8503 = vsyncadd %s8450, %s8502
          %s8504 = smul.addr %s54, 8
          %s8505 = smul.addr %s8504, 128
          %s8506 = scalar_lea.hbm %s18, %s8505
          %s8507 = sshll.u32 %s8453, 4
          %s8508 = int_to_ptr.vmem [resolvable:$true] %s8507
          %8513 = dma.vmem_to_hbm [thread:$0]  %s8508, 1024, %s8506, %s8450, 256, 256, 16
        $region124: #{tpu_custom_call.1} parent=87 // pred_fallthru
          _
        // Predicated region
        $region125: #{tpu_custom_call.1} parent=87 // pred_check
          %p8514 = pneg %p501
        $region126: #{tpu_custom_call.1} parent=87 // pred_check_branch
          %8516 = sbr.rel (%p8514) target = $region128
        $region127: #{tpu_custom_call.1} parent=87 // pred_region
          %s8518 = ssub.s32 512, 512
          %8519 = vsyncadd %s8455, %s8518
          %s8520 = smul.addr %s54, 4
          %s8521 = smul.addr %s8520, 128
          %s8522 = scalar_lea.hbm %s19, %s8521
          %s8523 = sshll.u32 %s8458, 4
          %s8524 = int_to_ptr.vmem [resolvable:$true] %s8523
          %8529 = dma.vmem_to_hbm [thread:$0]  %s8524, 512, %s8522, %s8455, 128, 128, 8
        $region128: #{tpu_custom_call.1} parent=87 // pred_fallthru
          _
        // Predicated region
        $region129: #{tpu_custom_call.1} parent=87 // pred_check
          %p8530 = pneg %p527
        $region130: #{tpu_custom_call.1} parent=87 // pred_check_branch
          %8532 = sbr.rel (%p8530) target = $region132
        $region131: #{tpu_custom_call.1} parent=87 // pred_region
          _
        $region132: #{tpu_custom_call.1} parent=87 // pred_fallthru
          _
        // Predicated region
        $region133: #{tpu_custom_call.1} parent=87 // pred_check
          %p8533 = pneg %p553
        $region134: #{tpu_custom_call.1} parent=87 // pred_check_branch
          %8535 = sbr.rel (%p8533) target = $region136
        $region135: #{tpu_custom_call.1} parent=87 // pred_region
          %s8537 = ssub.s32 128, 128
          %8538 = vsyncadd %s8465, %s8537
          %s8539 = smul.addr %s54, 8
          %s8540 = smul.addr %s8539, 16
          %s8541 = scalar_lea.hbm %s21, %s8540
          %s8543 = sshll.u32 %s8468, 4
          %s8544 = int_to_ptr.vmem [resolvable:$true] %s8543
          %8546 = dma.vmem_to_hbm [thread:$0]  %s8544, 128, %s8541, %s8465
        $region136: #{tpu_custom_call.1} parent=87 // pred_fallthru
          _
        // Predicated region
        $region137: #{tpu_custom_call.1} parent=87 // pred_check
          %p8547 = pneg %p579
        $region138: #{tpu_custom_call.1} parent=87 // pred_check_branch
          %8549 = sbr.rel (%p8547) target = $region140
        $region139: #{tpu_custom_call.1} parent=87 // pred_region
          %s8551 = ssub.s32 32, 32
          %8552 = vsyncadd %s8470, %s8551
          %s8553 = smul.addr %s54, 2
          %s8554 = smul.addr %s8553, 16
          %s8555 = scalar_lea.hbm %s22, %s8554
          %s8557 = sshll.u32 %s8473, 4
          %s8558 = int_to_ptr.vmem [resolvable:$true] %s8557
          %8560 = dma.vmem_to_hbm [thread:$0]  %s8558, 32, %s8555, %s8470
        $region140: #{tpu_custom_call.1} parent=87 // pred_fallthru
          _
        // Predicated region
        $region141: #{tpu_custom_call.1} parent=87 // pred_check
          %p8561 = pneg %p605
        $region142: #{tpu_custom_call.1} parent=87 // pred_check_branch
          %8563 = sbr.rel (%p8561) target = $region144
        $region143: #{tpu_custom_call.1} parent=87 // pred_region
          %s8565 = ssub.s32 16, 16
          %8566 = vsyncadd %s8475, %s8565
          %s8567 = smul.addr %s54, 16
          %s8568 = scalar_lea.hbm %s23, %s8567
          %s8570 = sshll.u32 %s8477, 4
          %s8571 = int_to_ptr.vmem [resolvable:$true] %s8570
          %8573 = dma.vmem_to_hbm [thread:$0]  %s8571, 16, %s8568, %s8475
        $region144: #{tpu_custom_call.1} parent=87 // pred_fallthru
          _
        // Predicated region
        $region145: #{tpu_custom_call.1} parent=87 // pred_check
          %p8574 = pneg %p631
        $region146: #{tpu_custom_call.1} parent=87 // pred_check_branch
          %8576 = sbr.rel (%p8574) target = $region148
        $region147: #{tpu_custom_call.1} parent=87 // pred_region
          %s8578 = ssub.s32 16, 16
          %8579 = vsyncadd %s8479, %s8578
          %s8580 = smul.addr %s54, 16
          %s8581 = scalar_lea.hbm %s24, %s8580
          %s8583 = sshll.u32 %s8481, 4
          %s8584 = int_to_ptr.vmem [resolvable:$true] %s8583
          %8586 = dma.vmem_to_hbm [thread:$0]  %s8584, 16, %s8581, %s8479
        $region148: #{tpu_custom_call.1} parent=87 // pred_fallthru
          _
      $region88: #{tpu_custom_call.1} parent=5 // pred_fallthru
        _
      %p8587 = scmp.le.s32.totalorder 2, %s49
      // Predicated region
      $region149: #{tpu_custom_call.1} parent=5 // pred_check
        %p8588 = pneg %p8587
      $region150: #{tpu_custom_call.1} parent=5 // pred_check_branch
        %8590 = sbr.rel (%p8588) target = $region152
      $region151: #{tpu_custom_call.1} parent=5 // pred_region
        %s8591 = ssub.s32 %s49, 2
        // Predicated region
        $region153: #{tpu_custom_call.1} parent=151 // pred_check
          %p8592 = pneg %p455
        $region154: #{tpu_custom_call.1} parent=151 // pred_check_branch
          %8594 = sbr.rel (%p8592) target = $region156
        $region155: #{tpu_custom_call.1} parent=151 // pred_region
          %s8595 = sand.u32 %s440, 1
          %s8596 = scalar_lea.sflag [#allocation6], %s8595
          %s8597 = sand.u32 %s440, 1
          %s8598 = smul.addr %s8597, 256
          %s8599 = scalar_lea.vmem [#allocation16], %s8598
          %8600 = dma.done %s8596, 4096
        $region156: #{tpu_custom_call.1} parent=151 // pred_fallthru
          _
        // Predicated region
        $region157: #{tpu_custom_call.1} parent=151 // pred_check
          %p8601 = pneg %p481
        $region158: #{tpu_custom_call.1} parent=151 // pred_check_branch
          %8603 = sbr.rel (%p8601) target = $region160
        $region159: #{tpu_custom_call.1} parent=151 // pred_region
          %s8604 = sand.u32 %s55, 1
          %s8605 = scalar_lea.sflag [#allocation18], %s8604
          %s8606 = sand.u32 %s466, 1
          %s8607 = smul.addr %s8606, 64
          %s8608 = scalar_lea.vmem [#allocation17], %s8607
          %8609 = dma.done %s8605, 1024
        $region160: #{tpu_custom_call.1} parent=151 // pred_fallthru
          _
        // Predicated region
        $region161: #{tpu_custom_call.1} parent=151 // pred_check
          %p8610 = pneg %p507
        $region162: #{tpu_custom_call.1} parent=151 // pred_check_branch
          %8612 = sbr.rel (%p8610) target = $region164
        $region163: #{tpu_custom_call.1} parent=151 // pred_region
          %s8613 = sand.u32 %s55, 1
          %s8614 = scalar_lea.sflag [#allocation18], %s8613
          %s8615 = sand.u32 %s492, 1
          %s8616 = smul.addr %s8615, 32
          %s8617 = scalar_lea.vmem [#allocation19], %s8616
          %8618 = dma.done %s8614, 512
        $region164: #{tpu_custom_call.1} parent=151 // pred_fallthru
          _
        // Predicated region
        $region165: #{tpu_custom_call.1} parent=151 // pred_check
          %p8619 = pneg %p533
        $region166: #{tpu_custom_call.1} parent=151 // pred_check_branch
          %8621 = sbr.rel (%p8619) target = $region168
        $region167: #{tpu_custom_call.1} parent=151 // pred_region
          %p8622 = scmp.lt.s32.totalorder %s55, 1
          %s8623 = scalar_select %p8622, %s55, 1
          %s8624 = smul.addr %s8623, 4
          %s8625 = smul.addr %s8624, 8
          %s8626 = scalar_lea.vmem %s20, %s8625
        $region168: #{tpu_custom_call.1} parent=151 // pred_fallthru
          _
        // Predicated region
        $region169: #{tpu_custom_call.1} parent=151 // pred_check
          %p8627 = pneg %p559
        $region170: #{tpu_custom_call.1} parent=151 // pred_check_branch
          %8629 = sbr.rel (%p8627) target = $region172
        $region171: #{tpu_custom_call.1} parent=151 // pred_region
          %s8630 = sand.u32 %s55, 1
          %s8631 = scalar_lea.sflag [#allocation21], %s8630
          %s8632 = sand.u32 %s544, 1
          %s8633 = smul.addr %s8632, 8
          %s8634 = scalar_lea.vmem [#allocation20], %s8633
          %8635 = dma.done %s8631, 128
        $region172: #{tpu_custom_call.1} parent=151 // pred_fallthru
          _
        // Predicated region
        $region173: #{tpu_custom_call.1} parent=151 // pred_check
          %p8636 = pneg %p585
        $region174: #{tpu_custom_call.1} parent=151 // pred_check_branch
          %8638 = sbr.rel (%p8636) target = $region176
        $region175: #{tpu_custom_call.1} parent=151 // pred_region
          %s8639 = sand.u32 %s55, 1
          %s8640 = scalar_lea.sflag [#allocation21], %s8639
          %s8641 = sand.u32 %s570, 1
          %s8642 = smul.addr %s8641, 2
          %s8643 = scalar_lea.vmem [#allocation22], %s8642
          %8644 = dma.done %s8640, 32
        $region176: #{tpu_custom_call.1} parent=151 // pred_fallthru
          _
        // Predicated region
        $region177: #{tpu_custom_call.1} parent=151 // pred_check
          %p8645 = pneg %p611
        $region178: #{tpu_custom_call.1} parent=151 // pred_check_branch
          %8647 = sbr.rel (%p8645) target = $region180
        $region179: #{tpu_custom_call.1} parent=151 // pred_region
          %s8648 = sand.u32 %s55, 1
          %s8649 = scalar_lea.sflag [#allocation24], %s8648
          %s8650 = sand.u32 %s596, 1
          %s8651 = scalar_lea.vmem [#allocation23], %s8650
          %8652 = dma.done %s8649, 16
        $region180: #{tpu_custom_call.1} parent=151 // pred_fallthru
          _
        // Predicated region
        $region181: #{tpu_custom_call.1} parent=151 // pred_check
          %p8653 = pneg %p637
        $region182: #{tpu_custom_call.1} parent=151 // pred_check_branch
          %8655 = sbr.rel (%p8653) target = $region184
        $region183: #{tpu_custom_call.1} parent=151 // pred_region
          %s8656 = sand.u32 %s55, 1
          %s8657 = scalar_lea.sflag [#allocation24], %s8656
          %s8658 = sand.u32 %s622, 1
          %s8659 = scalar_lea.vmem [#allocation25], %s8658
          %8660 = dma.done %s8657, 16
        $region184: #{tpu_custom_call.1} parent=151 // pred_fallthru
          _
      $region152: #{tpu_custom_call.1} parent=5 // pred_fallthru
        _
    $region6: #{tpu_custom_call.1} parent=1 // loop_footer
      %s53 = sadd.s32 1, %s49
    $region7: #{tpu_custom_call.1} parent=1 // loop_footer_branch
      %48 = sbr.rel target = $region3
    $region8: #{tpu_custom_call.1} parent=1 // loop_exit
      _
    %8661 = vsyncpa [#allocation5], 1
    %s8662 = scalar_lea.sflag [#allocation5], 1
    %8663 = vsyncpa %s8662, 1
    %8664 = vsyncpa [#allocation8], 1
    %8665 = vsyncpa [#allocation11], 1
    %8666 = vsyncpa [#allocation14], 1
    %8667 = vsyncpa [#allocation6], 1
    %s8668 = scalar_lea.sflag [#allocation6], 1
    %8669 = vsyncpa %s8668, 1
    %8670 = vsyncpa [#allocation18], 1
    %s8671 = scalar_lea.sflag [#allocation18], 1
    %8672 = vsyncpa %s8671, 1
    %8673 = vsyncpa [#allocation21], 1
    %s8674 = scalar_lea.sflag [#allocation21], 1
    %8675 = vsyncpa %s8674, 1
    %8676 = vsyncpa [#allocation24], 1
    %s8677 = scalar_lea.sflag [#allocation24], 1
    %8678 = vsyncpa %s8677, 1

</llo_original>
